<compile_context>
chip_gen: v6e
topology: v6e:2x2x1
jax: 0.10.0
libtpu: 0.0.40
codegen_flags: <defaults>
</compile_context>

<pallas_src>
import functools

import jax
import jax.numpy as jnp
from jax.experimental import pallas as pl
from jax.experimental.pallas import tpu as pltpu

EPS = 1e-5

# Tap enumeration order shared by the kernel loop, the host-side boundary
# masks and the folded weight layout (stacked row index = k * Cin_p + cin).
_OFFSETS = tuple((kd, kh, kw) for kd in (-1, 0, 1)
                 for kh in (-1, 0, 1) for kw in (-1, 0, 1))


def _round_up(v, m):
    return ((v + m - 1) // m) * m


# ----------------------------------------------------------------------------
# Fused Block kernel: 4 x (InstanceNorm + ReLU + 3x3x3 conv) + residual skip
# ----------------------------------------------------------------------------
def _block_kernel(x_ref, mask_ref, w1_ref, b1_ref, w2_ref, b2_ref,
                  w3_ref, b3_ref, w4_ref, b4_ref, o_ref, y_buf, stk_ref,
                  *, D, H, W, guard):
    """One batch element.

    x_ref:    (1, Cin_p, S) f32          activation, S = D*H*W on lanes
    mask_ref: (27, S) f32                per-tap 0/1 boundary masks (host-built)
    wX_ref:   (Cout_p, 27*CinX_p) bf16   pre-folded per-tap weight slabs
    bX_ref:   (Cout_p, 1) f32            bias
    o_ref:    (1, Cout_p, S) f32         output
    y_buf:    (C_max, S + 2*guard) f32   normalized sample + zero guard bands
    stk_ref:  (27*C_max, S) f32          folded-K stacked conv operand
    """
    hw = H * W
    s_len = x_ref.shape[2]
    c_max = y_buf.shape[0]
    inv_s = 1.0 / float(s_len)

    # Zero only the guard bands; the middle [guard, guard+S) is fully
    # overwritten by every stage.  (Done every step for megacore safety.)
    y_buf[:, pl.ds(0, guard)] = jnp.zeros((c_max, guard), y_buf.dtype)
    y_buf[:, pl.ds(guard + s_len, guard)] = jnp.zeros((c_max, guard), y_buf.dtype)

    def stage(x, w_ref, b_ref):
        """out = conv3x3x3(relu(instancenorm(x))) + bias, all in VMEM."""
        c_in = x.shape[0]

        # ---- InstanceNorm (affine=False) + ReLU, centered two-pass, f32 ----
        mean = jnp.sum(x, axis=1, keepdims=True) * inv_s          # (c_in, 1)
        xc = x - mean
        var = jnp.sum(xc * xc, axis=1, keepdims=True) * inv_s
        y = jnp.maximum(xc * jax.lax.rsqrt(var + EPS), 0.0)       # (c_in, S)

        # ---- Stage the normalized sample once; taps read shifted views -----
        y_buf[pl.ds(0, c_in), pl.ds(guard, s_len)] = y

        # ---- Build folded-K operand: 27 shifted, boundary-masked slabs -----
        for k, (kd, kh, kw) in enumerate(_OFFSETS):
            delta = kd * hw + kh * W + kw
            shifted = y_buf[pl.ds(0, c_in), pl.ds(guard + delta, s_len)]
            if (kd, kh, kw) == (0, 0, 0):
                slab = shifted                      # centre tap: mask is all-ones
            else:
                slab = shifted * mask_ref[pl.ds(k, 1), :]
            stk_ref[pl.ds(k * c_in, c_in), :] = slab

        # ---- Single MXU matmul over the folded contraction K = 27*c_in -----
        stacked = stk_ref[pl.ds(0, 27 * c_in), :].astype(jnp.bfloat16)
        out = jnp.dot(w_ref[...], stacked, preferred_element_type=jnp.float32)
        return out + b_ref[...]                                    # (c_out, S)

    x = x_ref[0]
    h = stage(x, w1_ref, b1_ref)             # conv1(relu(norm1(x)))
    z = stage(h, w2_ref, b2_ref)             # res-block conv1
    h = h + stage(z, w3_ref, b3_ref)         # res-block conv2 + skip
    out = stage(h, w4_ref, b4_ref)           # conv2(relu(norm2(.)))
    o_ref[0] = out.astype(o_ref.dtype)


# ----------------------------------------------------------------------------
# Pallas wrapper
# ----------------------------------------------------------------------------
def fused_block_call(x_pad, mask27, params, *, D, H, W):
    """x_pad: (N, Cin_p, S) f32. Returns (N, Cout_p, S) f32."""
    N, cin_p, S = x_pad.shape
    cout_p = params["w1"].shape[0]
    hw = H * W
    assert S == D * hw
    assert S % 128 == 0, "flattened spatial size must be lane-aligned"
    guard = _round_up(max(hw + W + 1, 8), 128)     # >= max |tap offset|, aligned
    c_max = max(cin_p, cout_p)

    kernel = functools.partial(_block_kernel, D=D, H=H, W=W, guard=guard)

    def bcast2(shape):
        return pl.BlockSpec(shape, lambda n: (0, 0))

    in_specs = [
        pl.BlockSpec((1, cin_p, S), lambda n: (n, 0, 0)),
        bcast2(mask27.shape),
        bcast2(params["w1"].shape), bcast2(params["b1"].shape),
        bcast2(params["w2"].shape), bcast2(params["b2"].shape),
        bcast2(params["w3"].shape), bcast2(params["b3"].shape),
        bcast2(params["w4"].shape), bcast2(params["b4"].shape),
    ]

    flops = 2 * N * S * (cout_p * 27 * cin_p + 3 * cout_p * 27 * cout_p)
    bytes_accessed = (4 * (x_pad.size + N * cout_p * S + mask27.size)
                      + 2 * sum(params[f"w{i}"].size for i in (1, 2, 3, 4))
                      + 4 * sum(params[f"b{i}"].size for i in (1, 2, 3, 4)))
    cost = pl.CostEstimate(flops=int(flops),
                           transcendentals=int(N * (cin_p + 3 * cout_p)),
                           bytes_accessed=int(bytes_accessed))

    # Per-step VMEM use is < 1 MiB at these shapes — well under every
    # generation's scoped default, so no vmem_limit_bytes override is needed.
    return pl.pallas_call(
        kernel,
        out_shape=jax.ShapeDtypeStruct((N, cout_p, S), x_pad.dtype),
        grid=(N,),
        in_specs=in_specs,
        out_specs=pl.BlockSpec((1, cout_p, S), lambda n: (n, 0, 0)),
        scratch_shapes=[
            pltpu.VMEM((c_max, S + 2 * guard), jnp.float32),  # normalized sample
            pltpu.VMEM((27 * c_max, S), jnp.float32),         # folded-K operand
        ],
        compiler_params=pltpu.CompilerParams(
            dimension_semantics=("parallel",)),
        cost_estimate=cost,
    )(x_pad, mask27, params["w1"], params["b1"], params["w2"], params["b2"],
      params["w3"], params["b3"], params["w4"], params["b4"])


def make_boundary_masks(D, H, W):
    """(27, D*H*W) f32 0/1 masks: mask[k, s] == 1 iff tap k of output voxel s
    lands inside the (zero-padded) volume."""
    d = jnp.arange(D).reshape(D, 1, 1)
    h = jnp.arange(H).reshape(1, H, 1)
    w = jnp.arange(W).reshape(1, 1, W)
    rows = []
    for kd, kh, kw in _OFFSETS:
        ok = ((d + kd >= 0) & (d + kd < D) &
              (h + kh >= 0) & (h + kh < H) &
              (w + kw >= 0) & (w + kw < W))
        rows.append(ok.reshape(-1))
    return jnp.stack(rows, axis=0).astype(jnp.float32)


# ----------------------------------------------------------------------------
# Block forward (matches the PyTorch module with drop_last=False)
# ----------------------------------------------------------------------------
def block_forward(x_ncdhw, params, *, D, H, W, out_channels):
    N, cin = x_ncdhw.shape[0], x_ncdhw.shape[1]
    S = D * H * W
    cin_p = params["w1"].shape[1] // 27

    # NCDHW -> (N, C, S): pure reshape, no transpose; S sits on the lane axis.
    x = x_ncdhw.reshape(N, cin, S)
    if cin_p != cin:
        x = jnp.pad(x, ((0, 0), (0, cin_p - cin), (0, 0)))

    mask27 = make_boundary_masks(D, H, W)
    out = fused_block_call(x, mask27, params, D=D, H=H, W=W)
    return out[:, :out_channels, :].reshape(N, out_channels, D, H, W)


# ----------------------------------------------------------------------------
# Deterministic synthetic parameters.  Weights are generated directly in the
# pre-folded (Cout_p, 27*Cin_p) bf16 layout used by the kernel; padded channel
# slots are masked to zero so they never contribute.
# ----------------------------------------------------------------------------
def make_params(key, cin, cout):
    cin_p = _round_up(cin, 8)
    cout_p = _round_up(cout, 8)
    keys = jax.random.split(key, 8)

    def conv(kw_key, kb_key, ci, co, ci_p, co_p):
        fan_in = 27.0 * ci
        w = jax.random.normal(kw_key, (co_p, 27, ci_p), jnp.float32) / jnp.sqrt(fan_in)
        w = (w * (jnp.arange(ci_p) < ci)[None, None, :]
               * (jnp.arange(co_p) < co)[:, None, None])
        b = jax.random.normal(kb_key, (co_p, 1), jnp.float32) * 0.01
        b = b * (jnp.arange(co_p) < co)[:, None]
        return w.reshape(co_p, 27 * ci_p).astype(jnp.bfloat16), b

    p = {}
    p["w1"], p["b1"] = conv(keys[0], keys[1], cin, cout, cin_p, cout_p)
    p["w2"], p["b2"] = conv(keys[2], keys[3], cout, cout, cout_p, cout_p)
    p["w3"], p["b3"] = conv(keys[4], keys[5], cout, cout, cout_p, cout_p)
    p["w4"], p["b4"] = conv(keys[6], keys[7], cout, cout, cout_p, cout_p)
    return p


# ----------------------------------------------------------------------------
# Pure-XLA reference (same numerics: centered-variance norm, bf16 conv
# operands, f32 accumulation) for a correctness check.
# ----------------------------------------------------------------------------
def reference_block(x, params, *, out_channels):
    N, cin = x.shape[:2]
    cin_p = params["w1"].shape[1] // 27
    xp = jnp.pad(x, ((0, 0), (0, cin_p - cin), (0, 0), (0, 0), (0, 0)))

    def norm_relu(v):
        mean = jnp.mean(v, axis=(2, 3, 4), keepdims=True)
        xc = v - mean
        var = jnp.mean(xc * xc, axis=(2, 3, 4), keepdims=True)
        return jnp.maximum(xc * jax.lax.rsqrt(var + EPS), 0.0)

    def conv_stage(v, w_folded, b, res=None):
        co = w_folded.shape[0]
        ci = w_folded.shape[1] // 27
        # Unfold (Cout_p, 27*Cin_p) -> OIDHW, matching the _OFFSETS/tap order.
        w = w_folded.astype(jnp.float32).reshape(co, 3, 3, 3, ci)
        w = jnp.transpose(w, (0, 4, 1, 2, 3))
        y = norm_relu(v).astype(jnp.bfloat16).astype(jnp.float32)
        out = jax.lax.conv_general_dilated(
            y, w, window_strides=(1, 1, 1), padding="SAME",
            dimension_numbers=("NCDHW", "OIDHW", "NCDHW"),
            precision=jax.lax.Precision.HIGHEST)
        out = out + b.reshape(1, co, 1, 1, 1)
        return out if res is None else out + res

    h = conv_stage(xp, params["w1"], params["b1"])
    z = conv_stage(h, params["w2"], params["b2"])
    h = conv_stage(z, params["w3"], params["b3"], res=h)
    out = conv_stage(h, params["w4"], params["b4"])
    return out[:, :out_channels]


if __name__ == "__main__":
    N, Cin, Cout = 2, 4, 8
    D = H = W = 8

    key = jax.random.PRNGKey(0)
    kx, kp = jax.random.split(key)
    x = jax.random.normal(kx, (N, Cin, D, H, W), jnp.float32)   # NCDHW like torch
    params = make_params(kp, Cin, Cout)

    fwd = jax.jit(functools.partial(block_forward, D=D, H=H, W=W,
                                    out_channels=Cout))
    out = fwd(x, params)
    jax.block_until_ready(out)
    assert out.shape == (N, Cout, D, H, W)

    # Numerical check against a pure-XLA reference of the same Block.
    ref = reference_block(x, params, out_channels=Cout)
    err = float(jnp.max(jnp.abs(out - ref)))
    assert err < 5e-2, f"mismatch vs XLA reference: max abs err {err}"
    print("KERNEL_OK")
</pallas_src>

<mosaic_0001>
module attributes {stable_mosaic.version = 11 : i64} {
  func.func @_block_kernel(%arg0: i32, %arg1: memref<1x8x512xf32, #tpu.memory_space<vmem>>, %arg2: memref<27x512xf32, #tpu.memory_space<vmem>>, %arg3: memref<8x216xbf16, #tpu.memory_space<vmem>>, %arg4: memref<8x1xf32, #tpu.memory_space<vmem>>, %arg5: memref<8x216xbf16, #tpu.memory_space<vmem>>, %arg6: memref<8x1xf32, #tpu.memory_space<vmem>>, %arg7: memref<8x216xbf16, #tpu.memory_space<vmem>>, %arg8: memref<8x1xf32, #tpu.memory_space<vmem>>, %arg9: memref<8x216xbf16, #tpu.memory_space<vmem>>, %arg10: memref<8x1xf32, #tpu.memory_space<vmem>>, %arg11: memref<1x8x512xf32, #tpu.memory_space<vmem>>, %arg12: memref<8x768xf32, #tpu.memory_space<vmem>>, %arg13: memref<216x512xf32, #tpu.memory_space<vmem>>) attributes {dimension_semantics = [#tpu.dimension_semantics<parallel>], iteration_bounds = array<i64: 2>, scalar_prefetch = 0 : i64, scratch_operands = 2 : i64, tpu.core_type = #tpu.core_type<tc>, window_params = [{transform_indices = @transform_0, window_bounds = array<i64: 1, 8, 512>}, {pipeline_mode = #tpu.pipeline_mode<synchronous>, transform_indices = @transform_1, window_bounds = array<i64: 27, 512>}, {pipeline_mode = #tpu.pipeline_mode<synchronous>, transform_indices = @transform_2, window_bounds = array<i64: 8, 216>}, {pipeline_mode = #tpu.pipeline_mode<synchronous>, transform_indices = @transform_3, window_bounds = array<i64: 8, 1>}, {pipeline_mode = #tpu.pipeline_mode<synchronous>, transform_indices = @transform_4, window_bounds = array<i64: 8, 216>}, {pipeline_mode = #tpu.pipeline_mode<synchronous>, transform_indices = @transform_5, window_bounds = array<i64: 8, 1>}, {pipeline_mode = #tpu.pipeline_mode<synchronous>, transform_indices = @transform_6, window_bounds = array<i64: 8, 216>}, {pipeline_mode = #tpu.pipeline_mode<synchronous>, transform_indices = @transform_7, window_bounds = array<i64: 8, 1>}, {pipeline_mode = #tpu.pipeline_mode<synchronous>, transform_indices = @transform_8, window_bounds = array<i64: 8, 216>}, {pipeline_mode = #tpu.pipeline_mode<synchronous>, transform_indices = @transform_9, window_bounds = array<i64: 8, 1>}, {transform_indices = @transform_10, window_bounds = array<i64: 1, 8, 512>}]} {
    %cst = arith.constant 0.000000e+00 : f32
    %0 = vector.broadcast %cst : f32 to vector<8x128xf32>
    %c0 = arith.constant 0 : index
    %c0_0 = arith.constant 0 : index
    %1 = vector.load %arg12[%c0, %c0_0] : memref<8x768xf32, #tpu.memory_space<vmem>>, vector<8x128xf32>
    tpu.vector_store %arg12[%c0, %c0_0], %0 {strides = array<i32>} : memref<8x768xf32, #tpu.memory_space<vmem>>, vector<8x128xf32>,
    %cst_1 = arith.constant 0.000000e+00 : f32
    %2 = vector.broadcast %cst_1 : f32 to vector<8x128xf32>
    %c0_2 = arith.constant 0 : index
    %c640 = arith.constant 640 : index
    %3 = vector.load %arg12[%c0_2, %c640] : memref<8x768xf32, #tpu.memory_space<vmem>>, vector<8x128xf32>
    tpu.vector_store %arg12[%c0_2, %c640], %2 {strides = array<i32>} : memref<8x768xf32, #tpu.memory_space<vmem>>, vector<8x128xf32>,
    %c0_3 = arith.constant 0 : index
    %c0_4 = arith.constant 0 : index
    %c0_5 = arith.constant 0 : index
    %4 = vector.load %arg1[%c0_3, %c0_4, %c0_5] : memref<1x8x512xf32, #tpu.memory_space<vmem>>, vector<1x8x512xf32>
    %5 = vector.shape_cast %4 : vector<1x8x512xf32> to vector<8x512xf32>
    %cst_6 = arith.constant dense<0.000000e+00> : vector<8xf32>
    %6 = vector.multi_reduction <add>, %5, %cst_6 [1] : vector<8x512xf32> to vector<8xf32>
    %7 = vector.shape_cast %6 : vector<8xf32> to vector<8x1xf32>
    %cst_7 = arith.constant 0.001953125 : f32
    %8 = vector.broadcast %cst_7 : f32 to vector<8x1xf32>
    %9 = arith.mulf %7, %8 : vector<8x1xf32>
    %10 = vector.broadcast %9 : vector<8x1xf32> to vector<8x512xf32>
    %11 = arith.subf %5, %10 : vector<8x512xf32>
    %12 = arith.mulf %11, %11 : vector<8x512xf32>
    %cst_8 = arith.constant dense<0.000000e+00> : vector<8xf32>
    %13 = vector.multi_reduction <add>, %12, %cst_8 [1] : vector<8x512xf32> to vector<8xf32>
    %14 = vector.shape_cast %13 : vector<8xf32> to vector<8x1xf32>
    %cst_9 = arith.constant 0.001953125 : f32
    %15 = vector.broadcast %cst_9 : f32 to vector<8x1xf32>
    %16 = arith.mulf %14, %15 : vector<8x1xf32>
    %cst_10 = arith.constant 9.99999974E-6 : f32
    %17 = vector.broadcast %cst_10 : f32 to vector<8x1xf32>
    %18 = arith.addf %16, %17 : vector<8x1xf32>
    %19 = math.rsqrt %18 : vector<8x1xf32>
    %20 = vector.broadcast %19 : vector<8x1xf32> to vector<8x512xf32>
    %21 = arith.mulf %11, %20 : vector<8x512xf32>
    %cst_11 = arith.constant 0.000000e+00 : f32
    %22 = vector.broadcast %cst_11 : f32 to vector<8x512xf32>
    %23 = arith.maximumf %21, %22 : vector<8x512xf32>
    %c0_12 = arith.constant 0 : index
    %c128 = arith.constant 128 : index
    %24 = vector.load %arg12[%c0_12, %c128] : memref<8x768xf32, #tpu.memory_space<vmem>>, vector<8x512xf32>
    tpu.vector_store %arg12[%c0_12, %c128], %23 {strides = array<i32>} : memref<8x768xf32, #tpu.memory_space<vmem>>, vector<8x512xf32>,
    %c0_13 = arith.constant 0 : index
    %c55 = arith.constant 55 : index
    %25 = vector.load %arg12[%c0_13, %c55] : memref<8x768xf32, #tpu.memory_space<vmem>>, vector<8x512xf32>
    %c0_14 = arith.constant 0 : index
    %c0_15 = arith.constant 0 : index
    %26 = vector.load %arg2[%c0_14, %c0_15] : memref<27x512xf32, #tpu.memory_space<vmem>>, vector<1x512xf32>
    %27 = vector.broadcast %26 : vector<1x512xf32> to vector<8x512xf32>
    %28 = arith.mulf %25, %27 : vector<8x512xf32>
    %c0_16 = arith.constant 0 : index
    %c0_17 = arith.constant 0 : index
    %29 = vector.load %arg13[%c0_16, %c0_17] : memref<216x512xf32, #tpu.memory_space<vmem>>, vector<8x512xf32>
    tpu.vector_store %arg13[%c0_16, %c0_17], %28 {strides = array<i32>} : memref<216x512xf32, #tpu.memory_space<vmem>>, vector<8x512xf32>,
    %c0_18 = arith.constant 0 : index
    %c56 = arith.constant 56 : index
    %30 = vector.load %arg12[%c0_18, %c56] : memref<8x768xf32, #tpu.memory_space<vmem>>, vector<8x512xf32>
    %c1 = arith.constant 1 : index
    %c0_19 = arith.constant 0 : index
    %31 = vector.load %arg2[%c1, %c0_19] : memref<27x512xf32, #tpu.memory_space<vmem>>, vector<1x512xf32>
    %32 = vector.broadcast %31 : vector<1x512xf32> to vector<8x512xf32>
    %33 = arith.mulf %30, %32 : vector<8x512xf32>
    %c8 = arith.constant 8 : index
    %c0_20 = arith.constant 0 : index
    %34 = vector.load %arg13[%c8, %c0_20] : memref<216x512xf32, #tpu.memory_space<vmem>>, vector<8x512xf32>
    tpu.vector_store %arg13[%c8, %c0_20], %33 {strides = array<i32>} : memref<216x512xf32, #tpu.memory_space<vmem>>, vector<8x512xf32>,
    %c0_21 = arith.constant 0 : index
    %c57 = arith.constant 57 : index
    %35 = vector.load %arg12[%c0_21, %c57] : memref<8x768xf32, #tpu.memory_space<vmem>>, vector<8x512xf32>
    %c2 = arith.constant 2 : index
    %c0_22 = arith.constant 0 : index
    %36 = vector.load %arg2[%c2, %c0_22] : memref<27x512xf32, #tpu.memory_space<vmem>>, vector<1x512xf32>
    %37 = vector.broadcast %36 : vector<1x512xf32> to vector<8x512xf32>
    %38 = arith.mulf %35, %37 : vector<8x512xf32>
    %c16 = arith.constant 16 : index
    %c0_23 = arith.constant 0 : index
    %39 = vector.load %arg13[%c16, %c0_23] : memref<216x512xf32, #tpu.memory_space<vmem>>, vector<8x512xf32>
    tpu.vector_store %arg13[%c16, %c0_23], %38 {strides = array<i32>} : memref<216x512xf32, #tpu.memory_space<vmem>>, vector<8x512xf32>,
    %c0_24 = arith.constant 0 : index
    %c63 = arith.constant 63 : index
    %40 = vector.load %arg12[%c0_24, %c63] : memref<8x768xf32, #tpu.memory_space<vmem>>, vector<8x512xf32>
    %c3 = arith.constant 3 : index
    %c0_25 = arith.constant 0 : index
    %41 = vector.load %arg2[%c3, %c0_25] : memref<27x512xf32, #tpu.memory_space<vmem>>, vector<1x512xf32>
    %42 = vector.broadcast %41 : vector<1x512xf32> to vector<8x512xf32>
    %43 = arith.mulf %40, %42 : vector<8x512xf32>
    %c24 = arith.constant 24 : index
    %c0_26 = arith.constant 0 : index
    %44 = vector.load %arg13[%c24, %c0_26] : memref<216x512xf32, #tpu.memory_space<vmem>>, vector<8x512xf32>
    tpu.vector_store %arg13[%c24, %c0_26], %43 {strides = array<i32>} : memref<216x512xf32, #tpu.memory_space<vmem>>, vector<8x512xf32>,
    %c0_27 = arith.constant 0 : index
    %c64 = arith.constant 64 : index
    %45 = vector.load %arg12[%c0_27, %c64] : memref<8x768xf32, #tpu.memory_space<vmem>>, vector<8x512xf32>
    %c4 = arith.constant 4 : index
    %c0_28 = arith.constant 0 : index
    %46 = vector.load %arg2[%c4, %c0_28] : memref<27x512xf32, #tpu.memory_space<vmem>>, vector<1x512xf32>
    %47 = vector.broadcast %46 : vector<1x512xf32> to vector<8x512xf32>
    %48 = arith.mulf %45, %47 : vector<8x512xf32>
    %c32 = arith.constant 32 : index
    %c0_29 = arith.constant 0 : index
    %49 = vector.load %arg13[%c32, %c0_29] : memref<216x512xf32, #tpu.memory_space<vmem>>, vector<8x512xf32>
    tpu.vector_store %arg13[%c32, %c0_29], %48 {strides = array<i32>} : memref<216x512xf32, #tpu.memory_space<vmem>>, vector<8x512xf32>,
    %c0_30 = arith.constant 0 : index
    %c65 = arith.constant 65 : index
    %50 = vector.load %arg12[%c0_30, %c65] : memref<8x768xf32, #tpu.memory_space<vmem>>, vector<8x512xf32>
    %c5 = arith.constant 5 : index
    %c0_31 = arith.constant 0 : index
    %51 = vector.load %arg2[%c5, %c0_31] : memref<27x512xf32, #tpu.memory_space<vmem>>, vector<1x512xf32>
    %52 = vector.broadcast %51 : vector<1x512xf32> to vector<8x512xf32>
    %53 = arith.mulf %50, %52 : vector<8x512xf32>
    %c40 = arith.constant 40 : index
    %c0_32 = arith.constant 0 : index
    %54 = vector.load %arg13[%c40, %c0_32] : memref<216x512xf32, #tpu.memory_space<vmem>>, vector<8x512xf32>
    tpu.vector_store %arg13[%c40, %c0_32], %53 {strides = array<i32>} : memref<216x512xf32, #tpu.memory_space<vmem>>, vector<8x512xf32>,
    %c0_33 = arith.constant 0 : index
    %c71 = arith.constant 71 : index
    %55 = vector.load %arg12[%c0_33, %c71] : memref<8x768xf32, #tpu.memory_space<vmem>>, vector<8x512xf32>
    %c6 = arith.constant 6 : index
    %c0_34 = arith.constant 0 : index
    %56 = vector.load %arg2[%c6, %c0_34] : memref<27x512xf32, #tpu.memory_space<vmem>>, vector<1x512xf32>
    %57 = vector.broadcast %56 : vector<1x512xf32> to vector<8x512xf32>
    %58 = arith.mulf %55, %57 : vector<8x512xf32>
    %c48 = arith.constant 48 : index
    %c0_35 = arith.constant 0 : index
    %59 = vector.load %arg13[%c48, %c0_35] : memref<216x512xf32, #tpu.memory_space<vmem>>, vector<8x512xf32>
    tpu.vector_store %arg13[%c48, %c0_35], %58 {strides = array<i32>} : memref<216x512xf32, #tpu.memory_space<vmem>>, vector<8x512xf32>,
    %c0_36 = arith.constant 0 : index
    %c72 = arith.constant 72 : index
    %60 = vector.load %arg12[%c0_36, %c72] : memref<8x768xf32, #tpu.memory_space<vmem>>, vector<8x512xf32>
    %c7 = arith.constant 7 : index
    %c0_37 = arith.constant 0 : index
    %61 = vector.load %arg2[%c7, %c0_37] : memref<27x512xf32, #tpu.memory_space<vmem>>, vector<1x512xf32>
    %62 = vector.broadcast %61 : vector<1x512xf32> to vector<8x512xf32>
    %63 = arith.mulf %60, %62 : vector<8x512xf32>
    %c56_38 = arith.constant 56 : index
    %c0_39 = arith.constant 0 : index
    %64 = vector.load %arg13[%c56_38, %c0_39] : memref<216x512xf32, #tpu.memory_space<vmem>>, vector<8x512xf32>
    tpu.vector_store %arg13[%c56_38, %c0_39], %63 {strides = array<i32>} : memref<216x512xf32, #tpu.memory_space<vmem>>, vector<8x512xf32>,
    %c0_40 = arith.constant 0 : index
    %c73 = arith.constant 73 : index
    %65 = vector.load %arg12[%c0_40, %c73] : memref<8x768xf32, #tpu.memory_space<vmem>>, vector<8x512xf32>
    %c8_41 = arith.constant 8 : index
    %c0_42 = arith.constant 0 : index
    %66 = vector.load %arg2[%c8_41, %c0_42] : memref<27x512xf32, #tpu.memory_space<vmem>>, vector<1x512xf32>
    %67 = vector.broadcast %66 : vector<1x512xf32> to vector<8x512xf32>
    %68 = arith.mulf %65, %67 : vector<8x512xf32>
    %c64_43 = arith.constant 64 : index
    %c0_44 = arith.constant 0 : index
    %69 = vector.load %arg13[%c64_43, %c0_44] : memref<216x512xf32, #tpu.memory_space<vmem>>, vector<8x512xf32>
    tpu.vector_store %arg13[%c64_43, %c0_44], %68 {strides = array<i32>} : memref<216x512xf32, #tpu.memory_space<vmem>>, vector<8x512xf32>,
    %c0_45 = arith.constant 0 : index
    %c119 = arith.constant 119 : index
    %70 = vector.load %arg12[%c0_45, %c119] : memref<8x768xf32, #tpu.memory_space<vmem>>, vector<8x512xf32>
    %c9 = arith.constant 9 : index
    %c0_46 = arith.constant 0 : index
    %71 = vector.load %arg2[%c9, %c0_46] : memref<27x512xf32, #tpu.memory_space<vmem>>, vector<1x512xf32>
    %72 = vector.broadcast %71 : vector<1x512xf32> to vector<8x512xf32>
    %73 = arith.mulf %70, %72 : vector<8x512xf32>
    %c72_47 = arith.constant 72 : index
    %c0_48 = arith.constant 0 : index
    %74 = vector.load %arg13[%c72_47, %c0_48] : memref<216x512xf32, #tpu.memory_space<vmem>>, vector<8x512xf32>
    tpu.vector_store %arg13[%c72_47, %c0_48], %73 {strides = array<i32>} : memref<216x512xf32, #tpu.memory_space<vmem>>, vector<8x512xf32>,
    %c0_49 = arith.constant 0 : index
    %c120 = arith.constant 120 : index
    %75 = vector.load %arg12[%c0_49, %c120] : memref<8x768xf32, #tpu.memory_space<vmem>>, vector<8x512xf32>
    %c10 = arith.constant 10 : index
    %c0_50 = arith.constant 0 : index
    %76 = vector.load %arg2[%c10, %c0_50] : memref<27x512xf32, #tpu.memory_space<vmem>>, vector<1x512xf32>
    %77 = vector.broadcast %76 : vector<1x512xf32> to vector<8x512xf32>
    %78 = arith.mulf %75, %77 : vector<8x512xf32>
    %c80 = arith.constant 80 : index
    %c0_51 = arith.constant 0 : index
    %79 = vector.load %arg13[%c80, %c0_51] : memref<216x512xf32, #tpu.memory_space<vmem>>, vector<8x512xf32>
    tpu.vector_store %arg13[%c80, %c0_51], %78 {strides = array<i32>} : memref<216x512xf32, #tpu.memory_space<vmem>>, vector<8x512xf32>,
    %c0_52 = arith.constant 0 : index
    %c121 = arith.constant 121 : index
    %80 = vector.load %arg12[%c0_52, %c121] : memref<8x768xf32, #tpu.memory_space<vmem>>, vector<8x512xf32>
    %c11 = arith.constant 11 : index
    %c0_53 = arith.constant 0 : index
    %81 = vector.load %arg2[%c11, %c0_53] : memref<27x512xf32, #tpu.memory_space<vmem>>, vector<1x512xf32>
    %82 = vector.broadcast %81 : vector<1x512xf32> to vector<8x512xf32>
    %83 = arith.mulf %80, %82 : vector<8x512xf32>
    %c88 = arith.constant 88 : index
    %c0_54 = arith.constant 0 : index
    %84 = vector.load %arg13[%c88, %c0_54] : memref<216x512xf32, #tpu.memory_space<vmem>>, vector<8x512xf32>
    tpu.vector_store %arg13[%c88, %c0_54], %83 {strides = array<i32>} : memref<216x512xf32, #tpu.memory_space<vmem>>, vector<8x512xf32>,
    %c0_55 = arith.constant 0 : index
    %c127 = arith.constant 127 : index
    %85 = vector.load %arg12[%c0_55, %c127] : memref<8x768xf32, #tpu.memory_space<vmem>>, vector<8x512xf32>
    %c12 = arith.constant 12 : index
    %c0_56 = arith.constant 0 : index
    %86 = vector.load %arg2[%c12, %c0_56] : memref<27x512xf32, #tpu.memory_space<vmem>>, vector<1x512xf32>
    %87 = vector.broadcast %86 : vector<1x512xf32> to vector<8x512xf32>
    %88 = arith.mulf %85, %87 : vector<8x512xf32>
    %c96 = arith.constant 96 : index
    %c0_57 = arith.constant 0 : index
    %89 = vector.load %arg13[%c96, %c0_57] : memref<216x512xf32, #tpu.memory_space<vmem>>, vector<8x512xf32>
    tpu.vector_store %arg13[%c96, %c0_57], %88 {strides = array<i32>} : memref<216x512xf32, #tpu.memory_space<vmem>>, vector<8x512xf32>,
    %c0_58 = arith.constant 0 : index
    %c128_59 = arith.constant 128 : index
    %90 = vector.load %arg12[%c0_58, %c128_59] : memref<8x768xf32, #tpu.memory_space<vmem>>, vector<8x512xf32>
    %c104 = arith.constant 104 : index
    %c0_60 = arith.constant 0 : index
    %91 = vector.load %arg13[%c104, %c0_60] : memref<216x512xf32, #tpu.memory_space<vmem>>, vector<8x512xf32>
    tpu.vector_store %arg13[%c104, %c0_60], %90 {strides = array<i32>} : memref<216x512xf32, #tpu.memory_space<vmem>>, vector<8x512xf32>,
    %c0_61 = arith.constant 0 : index
    %c129 = arith.constant 129 : index
    %92 = vector.load %arg12[%c0_61, %c129] : memref<8x768xf32, #tpu.memory_space<vmem>>, vector<8x512xf32>
    %c14 = arith.constant 14 : index
    %c0_62 = arith.constant 0 : index
    %93 = vector.load %arg2[%c14, %c0_62] : memref<27x512xf32, #tpu.memory_space<vmem>>, vector<1x512xf32>
    %94 = vector.broadcast %93 : vector<1x512xf32> to vector<8x512xf32>
    %95 = arith.mulf %92, %94 : vector<8x512xf32>
    %c112 = arith.constant 112 : index
    %c0_63 = arith.constant 0 : index
    %96 = vector.load %arg13[%c112, %c0_63] : memref<216x512xf32, #tpu.memory_space<vmem>>, vector<8x512xf32>
    tpu.vector_store %arg13[%c112, %c0_63], %95 {strides = array<i32>} : memref<216x512xf32, #tpu.memory_space<vmem>>, vector<8x512xf32>,
    %c0_64 = arith.constant 0 : index
    %c135 = arith.constant 135 : index
    %97 = vector.load %arg12[%c0_64, %c135] : memref<8x768xf32, #tpu.memory_space<vmem>>, vector<8x512xf32>
    %c15 = arith.constant 15 : index
    %c0_65 = arith.constant 0 : index
    %98 = vector.load %arg2[%c15, %c0_65] : memref<27x512xf32, #tpu.memory_space<vmem>>, vector<1x512xf32>
    %99 = vector.broadcast %98 : vector<1x512xf32> to vector<8x512xf32>
    %100 = arith.mulf %97, %99 : vector<8x512xf32>
    %c120_66 = arith.constant 120 : index
    %c0_67 = arith.constant 0 : index
    %101 = vector.load %arg13[%c120_66, %c0_67] : memref<216x512xf32, #tpu.memory_space<vmem>>, vector<8x512xf32>
    tpu.vector_store %arg13[%c120_66, %c0_67], %100 {strides = array<i32>} : memref<216x512xf32, #tpu.memory_space<vmem>>, vector<8x512xf32>,
    %c0_68 = arith.constant 0 : index
    %c136 = arith.constant 136 : index
    %102 = vector.load %arg12[%c0_68, %c136] : memref<8x768xf32, #tpu.memory_space<vmem>>, vector<8x512xf32>
    %c16_69 = arith.constant 16 : index
    %c0_70 = arith.constant 0 : index
    %103 = vector.load %arg2[%c16_69, %c0_70] : memref<27x512xf32, #tpu.memory_space<vmem>>, vector<1x512xf32>
    %104 = vector.broadcast %103 : vector<1x512xf32> to vector<8x512xf32>
    %105 = arith.mulf %102, %104 : vector<8x512xf32>
    %c128_71 = arith.constant 128 : index
    %c0_72 = arith.constant 0 : index
    %106 = vector.load %arg13[%c128_71, %c0_72] : memref<216x512xf32, #tpu.memory_space<vmem>>, vector<8x512xf32>
    tpu.vector_store %arg13[%c128_71, %c0_72], %105 {strides = array<i32>} : memref<216x512xf32, #tpu.memory_space<vmem>>, vector<8x512xf32>,
    %c0_73 = arith.constant 0 : index
    %c137 = arith.constant 137 : index
    %107 = vector.load %arg12[%c0_73, %c137] : memref<8x768xf32, #tpu.memory_space<vmem>>, vector<8x512xf32>
    %c17 = arith.constant 17 : index
    %c0_74 = arith.constant 0 : index
    %108 = vector.load %arg2[%c17, %c0_74] : memref<27x512xf32, #tpu.memory_space<vmem>>, vector<1x512xf32>
    %109 = vector.broadcast %108 : vector<1x512xf32> to vector<8x512xf32>
    %110 = arith.mulf %107, %109 : vector<8x512xf32>
    %c136_75 = arith.constant 136 : index
    %c0_76 = arith.constant 0 : index
    %111 = vector.load %arg13[%c136_75, %c0_76] : memref<216x512xf32, #tpu.memory_space<vmem>>, vector<8x512xf32>
    tpu.vector_store %arg13[%c136_75, %c0_76], %110 {strides = array<i32>} : memref<216x512xf32, #tpu.memory_space<vmem>>, vector<8x512xf32>,
    %c0_77 = arith.constant 0 : index
    %c183 = arith.constant 183 : index
    %112 = vector.load %arg12[%c0_77, %c183] : memref<8x768xf32, #tpu.memory_space<vmem>>, vector<8x512xf32>
    %c18 = arith.constant 18 : index
    %c0_78 = arith.constant 0 : index
    %113 = vector.load %arg2[%c18, %c0_78] : memref<27x512xf32, #tpu.memory_space<vmem>>, vector<1x512xf32>
    %114 = vector.broadcast %113 : vector<1x512xf32> to vector<8x512xf32>
    %115 = arith.mulf %112, %114 : vector<8x512xf32>
    %c144 = arith.constant 144 : index
    %c0_79 = arith.constant 0 : index
    %116 = vector.load %arg13[%c144, %c0_79] : memref<216x512xf32, #tpu.memory_space<vmem>>, vector<8x512xf32>
    tpu.vector_store %arg13[%c144, %c0_79], %115 {strides = array<i32>} : memref<216x512xf32, #tpu.memory_space<vmem>>, vector<8x512xf32>,
    %c0_80 = arith.constant 0 : index
    %c184 = arith.constant 184 : index
    %117 = vector.load %arg12[%c0_80, %c184] : memref<8x768xf32, #tpu.memory_space<vmem>>, vector<8x512xf32>
    %c19 = arith.constant 19 : index
    %c0_81 = arith.constant 0 : index
    %118 = vector.load %arg2[%c19, %c0_81] : memref<27x512xf32, #tpu.memory_space<vmem>>, vector<1x512xf32>
    %119 = vector.broadcast %118 : vector<1x512xf32> to vector<8x512xf32>
    %120 = arith.mulf %117, %119 : vector<8x512xf32>
    %c152 = arith.constant 152 : index
    %c0_82 = arith.constant 0 : index
    %121 = vector.load %arg13[%c152, %c0_82] : memref<216x512xf32, #tpu.memory_space<vmem>>, vector<8x512xf32>
    tpu.vector_store %arg13[%c152, %c0_82], %120 {strides = array<i32>} : memref<216x512xf32, #tpu.memory_space<vmem>>, vector<8x512xf32>,
    %c0_83 = arith.constant 0 : index
    %c185 = arith.constant 185 : index
    %122 = vector.load %arg12[%c0_83, %c185] : memref<8x768xf32, #tpu.memory_space<vmem>>, vector<8x512xf32>
    %c20 = arith.constant 20 : index
    %c0_84 = arith.constant 0 : index
    %123 = vector.load %arg2[%c20, %c0_84] : memref<27x512xf32, #tpu.memory_space<vmem>>, vector<1x512xf32>
    %124 = vector.broadcast %123 : vector<1x512xf32> to vector<8x512xf32>
    %125 = arith.mulf %122, %124 : vector<8x512xf32>
    %c160 = arith.constant 160 : index
    %c0_85 = arith.constant 0 : index
    %126 = vector.load %arg13[%c160, %c0_85] : memref<216x512xf32, #tpu.memory_space<vmem>>, vector<8x512xf32>
    tpu.vector_store %arg13[%c160, %c0_85], %125 {strides = array<i32>} : memref<216x512xf32, #tpu.memory_space<vmem>>, vector<8x512xf32>,
    %c0_86 = arith.constant 0 : index
    %c191 = arith.constant 191 : index
    %127 = vector.load %arg12[%c0_86, %c191] : memref<8x768xf32, #tpu.memory_space<vmem>>, vector<8x512xf32>
    %c21 = arith.constant 21 : index
    %c0_87 = arith.constant 0 : index
    %128 = vector.load %arg2[%c21, %c0_87] : memref<27x512xf32, #tpu.memory_space<vmem>>, vector<1x512xf32>
    %129 = vector.broadcast %128 : vector<1x512xf32> to vector<8x512xf32>
    %130 = arith.mulf %127, %129 : vector<8x512xf32>
    %c168 = arith.constant 168 : index
    %c0_88 = arith.constant 0 : index
    %131 = vector.load %arg13[%c168, %c0_88] : memref<216x512xf32, #tpu.memory_space<vmem>>, vector<8x512xf32>
    tpu.vector_store %arg13[%c168, %c0_88], %130 {strides = array<i32>} : memref<216x512xf32, #tpu.memory_space<vmem>>, vector<8x512xf32>,
    %c0_89 = arith.constant 0 : index
    %c192 = arith.constant 192 : index
    %132 = vector.load %arg12[%c0_89, %c192] : memref<8x768xf32, #tpu.memory_space<vmem>>, vector<8x512xf32>
    %c22 = arith.constant 22 : index
    %c0_90 = arith.constant 0 : index
    %133 = vector.load %arg2[%c22, %c0_90] : memref<27x512xf32, #tpu.memory_space<vmem>>, vector<1x512xf32>
    %134 = vector.broadcast %133 : vector<1x512xf32> to vector<8x512xf32>
    %135 = arith.mulf %132, %134 : vector<8x512xf32>
    %c176 = arith.constant 176 : index
    %c0_91 = arith.constant 0 : index
    %136 = vector.load %arg13[%c176, %c0_91] : memref<216x512xf32, #tpu.memory_space<vmem>>, vector<8x512xf32>
    tpu.vector_store %arg13[%c176, %c0_91], %135 {strides = array<i32>} : memref<216x512xf32, #tpu.memory_space<vmem>>, vector<8x512xf32>,
    %c0_92 = arith.constant 0 : index
    %c193 = arith.constant 193 : index
    %137 = vector.load %arg12[%c0_92, %c193] : memref<8x768xf32, #tpu.memory_space<vmem>>, vector<8x512xf32>
    %c23 = arith.constant 23 : index
    %c0_93 = arith.constant 0 : index
    %138 = vector.load %arg2[%c23, %c0_93] : memref<27x512xf32, #tpu.memory_space<vmem>>, vector<1x512xf32>
    %139 = vector.broadcast %138 : vector<1x512xf32> to vector<8x512xf32>
    %140 = arith.mulf %137, %139 : vector<8x512xf32>
    %c184_94 = arith.constant 184 : index
    %c0_95 = arith.constant 0 : index
    %141 = vector.load %arg13[%c184_94, %c0_95] : memref<216x512xf32, #tpu.memory_space<vmem>>, vector<8x512xf32>
    tpu.vector_store %arg13[%c184_94, %c0_95], %140 {strides = array<i32>} : memref<216x512xf32, #tpu.memory_space<vmem>>, vector<8x512xf32>,
    %c0_96 = arith.constant 0 : index
    %c199 = arith.constant 199 : index
    %142 = vector.load %arg12[%c0_96, %c199] : memref<8x768xf32, #tpu.memory_space<vmem>>, vector<8x512xf32>
    %c24_97 = arith.constant 24 : index
    %c0_98 = arith.constant 0 : index
    %143 = vector.load %arg2[%c24_97, %c0_98] : memref<27x512xf32, #tpu.memory_space<vmem>>, vector<1x512xf32>
    %144 = vector.broadcast %143 : vector<1x512xf32> to vector<8x512xf32>
    %145 = arith.mulf %142, %144 : vector<8x512xf32>
    %c192_99 = arith.constant 192 : index
    %c0_100 = arith.constant 0 : index
    %146 = vector.load %arg13[%c192_99, %c0_100] : memref<216x512xf32, #tpu.memory_space<vmem>>, vector<8x512xf32>
    tpu.vector_store %arg13[%c192_99, %c0_100], %145 {strides = array<i32>} : memref<216x512xf32, #tpu.memory_space<vmem>>, vector<8x512xf32>,
    %c0_101 = arith.constant 0 : index
    %c200 = arith.constant 200 : index
    %147 = vector.load %arg12[%c0_101, %c200] : memref<8x768xf32, #tpu.memory_space<vmem>>, vector<8x512xf32>
    %c25 = arith.constant 25 : index
    %c0_102 = arith.constant 0 : index
    %148 = vector.load %arg2[%c25, %c0_102] : memref<27x512xf32, #tpu.memory_space<vmem>>, vector<1x512xf32>
    %149 = vector.broadcast %148 : vector<1x512xf32> to vector<8x512xf32>
    %150 = arith.mulf %147, %149 : vector<8x512xf32>
    %c200_103 = arith.constant 200 : index
    %c0_104 = arith.constant 0 : index
    %151 = vector.load %arg13[%c200_103, %c0_104] : memref<216x512xf32, #tpu.memory_space<vmem>>, vector<8x512xf32>
    tpu.vector_store %arg13[%c200_103, %c0_104], %150 {strides = array<i32>} : memref<216x512xf32, #tpu.memory_space<vmem>>, vector<8x512xf32>,
    %c0_105 = arith.constant 0 : index
    %c201 = arith.constant 201 : index
    %152 = vector.load %arg12[%c0_105, %c201] : memref<8x768xf32, #tpu.memory_space<vmem>>, vector<8x512xf32>
    %c26 = arith.constant 26 : index
    %c0_106 = arith.constant 0 : index
    %153 = vector.load %arg2[%c26, %c0_106] : memref<27x512xf32, #tpu.memory_space<vmem>>, vector<1x512xf32>
    %154 = vector.broadcast %153 : vector<1x512xf32> to vector<8x512xf32>
    %155 = arith.mulf %152, %154 : vector<8x512xf32>
    %c208 = arith.constant 208 : index
    %c0_107 = arith.constant 0 : index
    %156 = vector.load %arg13[%c208, %c0_107] : memref<216x512xf32, #tpu.memory_space<vmem>>, vector<8x512xf32>
    tpu.vector_store %arg13[%c208, %c0_107], %155 {strides = array<i32>} : memref<216x512xf32, #tpu.memory_space<vmem>>, vector<8x512xf32>,
    %c0_108 = arith.constant 0 : index
    %c0_109 = arith.constant 0 : index
    %157 = vector.load %arg13[%c0_108, %c0_109] : memref<216x512xf32, #tpu.memory_space<vmem>>, vector<216x512xf32>
    %158 = arith.truncf %157 : vector<216x512xf32> to vector<216x512xbf16>
    %c0_110 = arith.constant 0 : index
    %c0_111 = arith.constant 0 : index
    %159 = vector.load %arg3[%c0_110, %c0_111] : memref<8x216xbf16, #tpu.memory_space<vmem>>, vector<8x216xbf16>
    %cst_112 = arith.constant dense<0.000000e+00> : vector<8x512xf32>
    %160 = tpu.matmul %159, %158, %cst_112 {dimension_numbers = #tpu.dot_dimension_numbers<[1], [0], [0], [1], [0, 0, 1, 1], [], []>} : vector<8x216xbf16>, vector<216x512xbf16>, vector<8x512xf32> -> vector<8x512xf32>
    %c0_113 = arith.constant 0 : index
    %c0_114 = arith.constant 0 : index
    %161 = vector.load %arg4[%c0_113, %c0_114] : memref<8x1xf32, #tpu.memory_space<vmem>>, vector<8x1xf32>
    %162 = vector.broadcast %161 : vector<8x1xf32> to vector<8x512xf32>
    %163 = arith.addf %160, %162 : vector<8x512xf32>
    %cst_115 = arith.constant dense<0.000000e+00> : vector<8xf32>
    %164 = vector.multi_reduction <add>, %163, %cst_115 [1] : vector<8x512xf32> to vector<8xf32>
    %165 = vector.shape_cast %164 : vector<8xf32> to vector<8x1xf32>
    %cst_116 = arith.constant 0.001953125 : f32
    %166 = vector.broadcast %cst_116 : f32 to vector<8x1xf32>
    %167 = arith.mulf %165, %166 : vector<8x1xf32>
    %168 = vector.broadcast %167 : vector<8x1xf32> to vector<8x512xf32>
    %169 = arith.subf %163, %168 : vector<8x512xf32>
    %170 = arith.mulf %169, %169 : vector<8x512xf32>
    %cst_117 = arith.constant dense<0.000000e+00> : vector<8xf32>
    %171 = vector.multi_reduction <add>, %170, %cst_117 [1] : vector<8x512xf32> to vector<8xf32>
    %172 = vector.shape_cast %171 : vector<8xf32> to vector<8x1xf32>
    %cst_118 = arith.constant 0.001953125 : f32
    %173 = vector.broadcast %cst_118 : f32 to vector<8x1xf32>
    %174 = arith.mulf %172, %173 : vector<8x1xf32>
    %cst_119 = arith.constant 9.99999974E-6 : f32
    %175 = vector.broadcast %cst_119 : f32 to vector<8x1xf32>
    %176 = arith.addf %174, %175 : vector<8x1xf32>
    %177 = math.rsqrt %176 : vector<8x1xf32>
    %178 = vector.broadcast %177 : vector<8x1xf32> to vector<8x512xf32>
    %179 = arith.mulf %169, %178 : vector<8x512xf32>
    %cst_120 = arith.constant 0.000000e+00 : f32
    %180 = vector.broadcast %cst_120 : f32 to vector<8x512xf32>
    %181 = arith.maximumf %179, %180 : vector<8x512xf32>
    %c0_121 = arith.constant 0 : index
    %c128_122 = arith.constant 128 : index
    %182 = vector.load %arg12[%c0_121, %c128_122] : memref<8x768xf32, #tpu.memory_space<vmem>>, vector<8x512xf32>
    tpu.vector_store %arg12[%c0_121, %c128_122], %181 {strides = array<i32>} : memref<8x768xf32, #tpu.memory_space<vmem>>, vector<8x512xf32>,
    %c0_123 = arith.constant 0 : index
    %c55_124 = arith.constant 55 : index
    %183 = vector.load %arg12[%c0_123, %c55_124] : memref<8x768xf32, #tpu.memory_space<vmem>>, vector<8x512xf32>
    %c0_125 = arith.constant 0 : index
    %c0_126 = arith.constant 0 : index
    %184 = vector.load %arg2[%c0_125, %c0_126] : memref<27x512xf32, #tpu.memory_space<vmem>>, vector<1x512xf32>
    %185 = vector.broadcast %184 : vector<1x512xf32> to vector<8x512xf32>
    %186 = arith.mulf %183, %185 : vector<8x512xf32>
    %c0_127 = arith.constant 0 : index
    %c0_128 = arith.constant 0 : index
    %187 = vector.load %arg13[%c0_127, %c0_128] : memref<216x512xf32, #tpu.memory_space<vmem>>, vector<8x512xf32>
    tpu.vector_store %arg13[%c0_127, %c0_128], %186 {strides = array<i32>} : memref<216x512xf32, #tpu.memory_space<vmem>>, vector<8x512xf32>,
    %c0_129 = arith.constant 0 : index
    %c56_130 = arith.constant 56 : index
    %188 = vector.load %arg12[%c0_129, %c56_130] : memref<8x768xf32, #tpu.memory_space<vmem>>, vector<8x512xf32>
    %c1_131 = arith.constant 1 : index
    %c0_132 = arith.constant 0 : index
    %189 = vector.load %arg2[%c1_131, %c0_132] : memref<27x512xf32, #tpu.memory_space<vmem>>, vector<1x512xf32>
    %190 = vector.broadcast %189 : vector<1x512xf32> to vector<8x512xf32>
    %191 = arith.mulf %188, %190 : vector<8x512xf32>
    %c8_133 = arith.constant 8 : index
    %c0_134 = arith.constant 0 : index
    %192 = vector.load %arg13[%c8_133, %c0_134] : memref<216x512xf32, #tpu.memory_space<vmem>>, vector<8x512xf32>
    tpu.vector_store %arg13[%c8_133, %c0_134], %191 {strides = array<i32>} : memref<216x512xf32, #tpu.memory_space<vmem>>, vector<8x512xf32>,
    %c0_135 = arith.constant 0 : index
    %c57_136 = arith.constant 57 : index
    %193 = vector.load %arg12[%c0_135, %c57_136] : memref<8x768xf32, #tpu.memory_space<vmem>>, vector<8x512xf32>
    %c2_137 = arith.constant 2 : index
    %c0_138 = arith.constant 0 : index
    %194 = vector.load %arg2[%c2_137, %c0_138] : memref<27x512xf32, #tpu.memory_space<vmem>>, vector<1x512xf32>
    %195 = vector.broadcast %194 : vector<1x512xf32> to vector<8x512xf32>
    %196 = arith.mulf %193, %195 : vector<8x512xf32>
    %c16_139 = arith.constant 16 : index
    %c0_140 = arith.constant 0 : index
    %197 = vector.load %arg13[%c16_139, %c0_140] : memref<216x512xf32, #tpu.memory_space<vmem>>, vector<8x512xf32>
    tpu.vector_store %arg13[%c16_139, %c0_140], %196 {strides = array<i32>} : memref<216x512xf32, #tpu.memory_space<vmem>>, vector<8x512xf32>,
    %c0_141 = arith.constant 0 : index
    %c63_142 = arith.constant 63 : index
    %198 = vector.load %arg12[%c0_141, %c63_142] : memref<8x768xf32, #tpu.memory_space<vmem>>, vector<8x512xf32>
    %c3_143 = arith.constant 3 : index
    %c0_144 = arith.constant 0 : index
    %199 = vector.load %arg2[%c3_143, %c0_144] : memref<27x512xf32, #tpu.memory_space<vmem>>, vector<1x512xf32>
    %200 = vector.broadcast %199 : vector<1x512xf32> to vector<8x512xf32>
    %201 = arith.mulf %198, %200 : vector<8x512xf32>
    %c24_145 = arith.constant 24 : index
    %c0_146 = arith.constant 0 : index
    %202 = vector.load %arg13[%c24_145, %c0_146] : memref<216x512xf32, #tpu.memory_space<vmem>>, vector<8x512xf32>
    tpu.vector_store %arg13[%c24_145, %c0_146], %201 {strides = array<i32>} : memref<216x512xf32, #tpu.memory_space<vmem>>, vector<8x512xf32>,
    %c0_147 = arith.constant 0 : index
    %c64_148 = arith.constant 64 : index
    %203 = vector.load %arg12[%c0_147, %c64_148] : memref<8x768xf32, #tpu.memory_space<vmem>>, vector<8x512xf32>
    %c4_149 = arith.constant 4 : index
    %c0_150 = arith.constant 0 : index
    %204 = vector.load %arg2[%c4_149, %c0_150] : memref<27x512xf32, #tpu.memory_space<vmem>>, vector<1x512xf32>
    %205 = vector.broadcast %204 : vector<1x512xf32> to vector<8x512xf32>
    %206 = arith.mulf %203, %205 : vector<8x512xf32>
    %c32_151 = arith.constant 32 : index
    %c0_152 = arith.constant 0 : index
    %207 = vector.load %arg13[%c32_151, %c0_152] : memref<216x512xf32, #tpu.memory_space<vmem>>, vector<8x512xf32>
    tpu.vector_store %arg13[%c32_151, %c0_152], %206 {strides = array<i32>} : memref<216x512xf32, #tpu.memory_space<vmem>>, vector<8x512xf32>,
    %c0_153 = arith.constant 0 : index
    %c65_154 = arith.constant 65 : index
    %208 = vector.load %arg12[%c0_153, %c65_154] : memref<8x768xf32, #tpu.memory_space<vmem>>, vector<8x512xf32>
    %c5_155 = arith.constant 5 : index
    %c0_156 = arith.constant 0 : index
    %209 = vector.load %arg2[%c5_155, %c0_156] : memref<27x512xf32, #tpu.memory_space<vmem>>, vector<1x512xf32>
    %210 = vector.broadcast %209 : vector<1x512xf32> to vector<8x512xf32>
    %211 = arith.mulf %208, %210 : vector<8x512xf32>
    %c40_157 = arith.constant 40 : index
    %c0_158 = arith.constant 0 : index
    %212 = vector.load %arg13[%c40_157, %c0_158] : memref<216x512xf32, #tpu.memory_space<vmem>>, vector<8x512xf32>
    tpu.vector_store %arg13[%c40_157, %c0_158], %211 {strides = array<i32>} : memref<216x512xf32, #tpu.memory_space<vmem>>, vector<8x512xf32>,
    %c0_159 = arith.constant 0 : index
    %c71_160 = arith.constant 71 : index
    %213 = vector.load %arg12[%c0_159, %c71_160] : memref<8x768xf32, #tpu.memory_space<vmem>>, vector<8x512xf32>
    %c6_161 = arith.constant 6 : index
    %c0_162 = arith.constant 0 : index
    %214 = vector.load %arg2[%c6_161, %c0_162] : memref<27x512xf32, #tpu.memory_space<vmem>>, vector<1x512xf32>
    %215 = vector.broadcast %214 : vector<1x512xf32> to vector<8x512xf32>
    %216 = arith.mulf %213, %215 : vector<8x512xf32>
    %c48_163 = arith.constant 48 : index
    %c0_164 = arith.constant 0 : index
    %217 = vector.load %arg13[%c48_163, %c0_164] : memref<216x512xf32, #tpu.memory_space<vmem>>, vector<8x512xf32>
    tpu.vector_store %arg13[%c48_163, %c0_164], %216 {strides = array<i32>} : memref<216x512xf32, #tpu.memory_space<vmem>>, vector<8x512xf32>,
    %c0_165 = arith.constant 0 : index
    %c72_166 = arith.constant 72 : index
    %218 = vector.load %arg12[%c0_165, %c72_166] : memref<8x768xf32, #tpu.memory_space<vmem>>, vector<8x512xf32>
    %c7_167 = arith.constant 7 : index
    %c0_168 = arith.constant 0 : index
    %219 = vector.load %arg2[%c7_167, %c0_168] : memref<27x512xf32, #tpu.memory_space<vmem>>, vector<1x512xf32>
    %220 = vector.broadcast %219 : vector<1x512xf32> to vector<8x512xf32>
    %221 = arith.mulf %218, %220 : vector<8x512xf32>
    %c56_169 = arith.constant 56 : index
    %c0_170 = arith.constant 0 : index
    %222 = vector.load %arg13[%c56_169, %c0_170] : memref<216x512xf32, #tpu.memory_space<vmem>>, vector<8x512xf32>
    tpu.vector_store %arg13[%c56_169, %c0_170], %221 {strides = array<i32>} : memref<216x512xf32, #tpu.memory_space<vmem>>, vector<8x512xf32>,
    %c0_171 = arith.constant 0 : index
    %c73_172 = arith.constant 73 : index
    %223 = vector.load %arg12[%c0_171, %c73_172] : memref<8x768xf32, #tpu.memory_space<vmem>>, vector<8x512xf32>
    %c8_173 = arith.constant 8 : index
    %c0_174 = arith.constant 0 : index
    %224 = vector.load %arg2[%c8_173, %c0_174] : memref<27x512xf32, #tpu.memory_space<vmem>>, vector<1x512xf32>
    %225 = vector.broadcast %224 : vector<1x512xf32> to vector<8x512xf32>
    %226 = arith.mulf %223, %225 : vector<8x512xf32>
    %c64_175 = arith.constant 64 : index
    %c0_176 = arith.constant 0 : index
    %227 = vector.load %arg13[%c64_175, %c0_176] : memref<216x512xf32, #tpu.memory_space<vmem>>, vector<8x512xf32>
    tpu.vector_store %arg13[%c64_175, %c0_176], %226 {strides = array<i32>} : memref<216x512xf32, #tpu.memory_space<vmem>>, vector<8x512xf32>,
    %c0_177 = arith.constant 0 : index
    %c119_178 = arith.constant 119 : index
    %228 = vector.load %arg12[%c0_177, %c119_178] : memref<8x768xf32, #tpu.memory_space<vmem>>, vector<8x512xf32>
    %c9_179 = arith.constant 9 : index
    %c0_180 = arith.constant 0 : index
    %229 = vector.load %arg2[%c9_179, %c0_180] : memref<27x512xf32, #tpu.memory_space<vmem>>, vector<1x512xf32>
    %230 = vector.broadcast %229 : vector<1x512xf32> to vector<8x512xf32>
    %231 = arith.mulf %228, %230 : vector<8x512xf32>
    %c72_181 = arith.constant 72 : index
    %c0_182 = arith.constant 0 : index
    %232 = vector.load %arg13[%c72_181, %c0_182] : memref<216x512xf32, #tpu.memory_space<vmem>>, vector<8x512xf32>
    tpu.vector_store %arg13[%c72_181, %c0_182], %231 {strides = array<i32>} : memref<216x512xf32, #tpu.memory_space<vmem>>, vector<8x512xf32>,
    %c0_183 = arith.constant 0 : index
    %c120_184 = arith.constant 120 : index
    %233 = vector.load %arg12[%c0_183, %c120_184] : memref<8x768xf32, #tpu.memory_space<vmem>>, vector<8x512xf32>
    %c10_185 = arith.constant 10 : index
    %c0_186 = arith.constant 0 : index
    %234 = vector.load %arg2[%c10_185, %c0_186] : memref<27x512xf32, #tpu.memory_space<vmem>>, vector<1x512xf32>
    %235 = vector.broadcast %234 : vector<1x512xf32> to vector<8x512xf32>
    %236 = arith.mulf %233, %235 : vector<8x512xf32>
    %c80_187 = arith.constant 80 : index
    %c0_188 = arith.constant 0 : index
    %237 = vector.load %arg13[%c80_187, %c0_188] : memref<216x512xf32, #tpu.memory_space<vmem>>, vector<8x512xf32>
    tpu.vector_store %arg13[%c80_187, %c0_188], %236 {strides = array<i32>} : memref<216x512xf32, #tpu.memory_space<vmem>>, vector<8x512xf32>,
    %c0_189 = arith.constant 0 : index
    %c121_190 = arith.constant 121 : index
    %238 = vector.load %arg12[%c0_189, %c121_190] : memref<8x768xf32, #tpu.memory_space<vmem>>, vector<8x512xf32>
    %c11_191 = arith.constant 11 : index
    %c0_192 = arith.constant 0 : index
    %239 = vector.load %arg2[%c11_191, %c0_192] : memref<27x512xf32, #tpu.memory_space<vmem>>, vector<1x512xf32>
    %240 = vector.broadcast %239 : vector<1x512xf32> to vector<8x512xf32>
    %241 = arith.mulf %238, %240 : vector<8x512xf32>
    %c88_193 = arith.constant 88 : index
    %c0_194 = arith.constant 0 : index
    %242 = vector.load %arg13[%c88_193, %c0_194] : memref<216x512xf32, #tpu.memory_space<vmem>>, vector<8x512xf32>
    tpu.vector_store %arg13[%c88_193, %c0_194], %241 {strides = array<i32>} : memref<216x512xf32, #tpu.memory_space<vmem>>, vector<8x512xf32>,
    %c0_195 = arith.constant 0 : index
    %c127_196 = arith.constant 127 : index
    %243 = vector.load %arg12[%c0_195, %c127_196] : memref<8x768xf32, #tpu.memory_space<vmem>>, vector<8x512xf32>
    %c12_197 = arith.constant 12 : index
    %c0_198 = arith.constant 0 : index
    %244 = vector.load %arg2[%c12_197, %c0_198] : memref<27x512xf32, #tpu.memory_space<vmem>>, vector<1x512xf32>
    %245 = vector.broadcast %244 : vector<1x512xf32> to vector<8x512xf32>
    %246 = arith.mulf %243, %245 : vector<8x512xf32>
    %c96_199 = arith.constant 96 : index
    %c0_200 = arith.constant 0 : index
    %247 = vector.load %arg13[%c96_199, %c0_200] : memref<216x512xf32, #tpu.memory_space<vmem>>, vector<8x512xf32>
    tpu.vector_store %arg13[%c96_199, %c0_200], %246 {strides = array<i32>} : memref<216x512xf32, #tpu.memory_space<vmem>>, vector<8x512xf32>,
    %c0_201 = arith.constant 0 : index
    %c128_202 = arith.constant 128 : index
    %248 = vector.load %arg12[%c0_201, %c128_202] : memref<8x768xf32, #tpu.memory_space<vmem>>, vector<8x512xf32>
    %c104_203 = arith.constant 104 : index
    %c0_204 = arith.constant 0 : index
    %249 = vector.load %arg13[%c104_203, %c0_204] : memref<216x512xf32, #tpu.memory_space<vmem>>, vector<8x512xf32>
    tpu.vector_store %arg13[%c104_203, %c0_204], %248 {strides = array<i32>} : memref<216x512xf32, #tpu.memory_space<vmem>>, vector<8x512xf32>,
    %c0_205 = arith.constant 0 : index
    %c129_206 = arith.constant 129 : index
    %250 = vector.load %arg12[%c0_205, %c129_206] : memref<8x768xf32, #tpu.memory_space<vmem>>, vector<8x512xf32>
    %c14_207 = arith.constant 14 : index
    %c0_208 = arith.constant 0 : index
    %251 = vector.load %arg2[%c14_207, %c0_208] : memref<27x512xf32, #tpu.memory_space<vmem>>, vector<1x512xf32>
    %252 = vector.broadcast %251 : vector<1x512xf32> to vector<8x512xf32>
    %253 = arith.mulf %250, %252 : vector<8x512xf32>
    %c112_209 = arith.constant 112 : index
    %c0_210 = arith.constant 0 : index
    %254 = vector.load %arg13[%c112_209, %c0_210] : memref<216x512xf32, #tpu.memory_space<vmem>>, vector<8x512xf32>
    tpu.vector_store %arg13[%c112_209, %c0_210], %253 {strides = array<i32>} : memref<216x512xf32, #tpu.memory_space<vmem>>, vector<8x512xf32>,
    %c0_211 = arith.constant 0 : index
    %c135_212 = arith.constant 135 : index
    %255 = vector.load %arg12[%c0_211, %c135_212] : memref<8x768xf32, #tpu.memory_space<vmem>>, vector<8x512xf32>
    %c15_213 = arith.constant 15 : index
    %c0_214 = arith.constant 0 : index
    %256 = vector.load %arg2[%c15_213, %c0_214] : memref<27x512xf32, #tpu.memory_space<vmem>>, vector<1x512xf32>
    %257 = vector.broadcast %256 : vector<1x512xf32> to vector<8x512xf32>
    %258 = arith.mulf %255, %257 : vector<8x512xf32>
    %c120_215 = arith.constant 120 : index
    %c0_216 = arith.constant 0 : index
    %259 = vector.load %arg13[%c120_215, %c0_216] : memref<216x512xf32, #tpu.memory_space<vmem>>, vector<8x512xf32>
    tpu.vector_store %arg13[%c120_215, %c0_216], %258 {strides = array<i32>} : memref<216x512xf32, #tpu.memory_space<vmem>>, vector<8x512xf32>,
    %c0_217 = arith.constant 0 : index
    %c136_218 = arith.constant 136 : index
    %260 = vector.load %arg12[%c0_217, %c136_218] : memref<8x768xf32, #tpu.memory_space<vmem>>, vector<8x512xf32>
    %c16_219 = arith.constant 16 : index
    %c0_220 = arith.constant 0 : index
    %261 = vector.load %arg2[%c16_219, %c0_220] : memref<27x512xf32, #tpu.memory_space<vmem>>, vector<1x512xf32>
    %262 = vector.broadcast %261 : vector<1x512xf32> to vector<8x512xf32>
    %263 = arith.mulf %260, %262 : vector<8x512xf32>
    %c128_221 = arith.constant 128 : index
    %c0_222 = arith.constant 0 : index
    %264 = vector.load %arg13[%c128_221, %c0_222] : memref<216x512xf32, #tpu.memory_space<vmem>>, vector<8x512xf32>
    tpu.vector_store %arg13[%c128_221, %c0_222], %263 {strides = array<i32>} : memref<216x512xf32, #tpu.memory_space<vmem>>, vector<8x512xf32>,
    %c0_223 = arith.constant 0 : index
    %c137_224 = arith.constant 137 : index
    %265 = vector.load %arg12[%c0_223, %c137_224] : memref<8x768xf32, #tpu.memory_space<vmem>>, vector<8x512xf32>
    %c17_225 = arith.constant 17 : index
    %c0_226 = arith.constant 0 : index
    %266 = vector.load %arg2[%c17_225, %c0_226] : memref<27x512xf32, #tpu.memory_space<vmem>>, vector<1x512xf32>
    %267 = vector.broadcast %266 : vector<1x512xf32> to vector<8x512xf32>
    %268 = arith.mulf %265, %267 : vector<8x512xf32>
    %c136_227 = arith.constant 136 : index
    %c0_228 = arith.constant 0 : index
    %269 = vector.load %arg13[%c136_227, %c0_228] : memref<216x512xf32, #tpu.memory_space<vmem>>, vector<8x512xf32>
    tpu.vector_store %arg13[%c136_227, %c0_228], %268 {strides = array<i32>} : memref<216x512xf32, #tpu.memory_space<vmem>>, vector<8x512xf32>,
    %c0_229 = arith.constant 0 : index
    %c183_230 = arith.constant 183 : index
    %270 = vector.load %arg12[%c0_229, %c183_230] : memref<8x768xf32, #tpu.memory_space<vmem>>, vector<8x512xf32>
    %c18_231 = arith.constant 18 : index
    %c0_232 = arith.constant 0 : index
    %271 = vector.load %arg2[%c18_231, %c0_232] : memref<27x512xf32, #tpu.memory_space<vmem>>, vector<1x512xf32>
    %272 = vector.broadcast %271 : vector<1x512xf32> to vector<8x512xf32>
    %273 = arith.mulf %270, %272 : vector<8x512xf32>
    %c144_233 = arith.constant 144 : index
    %c0_234 = arith.constant 0 : index
    %274 = vector.load %arg13[%c144_233, %c0_234] : memref<216x512xf32, #tpu.memory_space<vmem>>, vector<8x512xf32>
    tpu.vector_store %arg13[%c144_233, %c0_234], %273 {strides = array<i32>} : memref<216x512xf32, #tpu.memory_space<vmem>>, vector<8x512xf32>,
    %c0_235 = arith.constant 0 : index
    %c184_236 = arith.constant 184 : index
    %275 = vector.load %arg12[%c0_235, %c184_236] : memref<8x768xf32, #tpu.memory_space<vmem>>, vector<8x512xf32>
    %c19_237 = arith.constant 19 : index
    %c0_238 = arith.constant 0 : index
    %276 = vector.load %arg2[%c19_237, %c0_238] : memref<27x512xf32, #tpu.memory_space<vmem>>, vector<1x512xf32>
    %277 = vector.broadcast %276 : vector<1x512xf32> to vector<8x512xf32>
    %278 = arith.mulf %275, %277 : vector<8x512xf32>
    %c152_239 = arith.constant 152 : index
    %c0_240 = arith.constant 0 : index
    %279 = vector.load %arg13[%c152_239, %c0_240] : memref<216x512xf32, #tpu.memory_space<vmem>>, vector<8x512xf32>
    tpu.vector_store %arg13[%c152_239, %c0_240], %278 {strides = array<i32>} : memref<216x512xf32, #tpu.memory_space<vmem>>, vector<8x512xf32>,
    %c0_241 = arith.constant 0 : index
    %c185_242 = arith.constant 185 : index
    %280 = vector.load %arg12[%c0_241, %c185_242] : memref<8x768xf32, #tpu.memory_space<vmem>>, vector<8x512xf32>
    %c20_243 = arith.constant 20 : index
    %c0_244 = arith.constant 0 : index
    %281 = vector.load %arg2[%c20_243, %c0_244] : memref<27x512xf32, #tpu.memory_space<vmem>>, vector<1x512xf32>
    %282 = vector.broadcast %281 : vector<1x512xf32> to vector<8x512xf32>
    %283 = arith.mulf %280, %282 : vector<8x512xf32>
    %c160_245 = arith.constant 160 : index
    %c0_246 = arith.constant 0 : index
    %284 = vector.load %arg13[%c160_245, %c0_246] : memref<216x512xf32, #tpu.memory_space<vmem>>, vector<8x512xf32>
    tpu.vector_store %arg13[%c160_245, %c0_246], %283 {strides = array<i32>} : memref<216x512xf32, #tpu.memory_space<vmem>>, vector<8x512xf32>,
    %c0_247 = arith.constant 0 : index
    %c191_248 = arith.constant 191 : index
    %285 = vector.load %arg12[%c0_247, %c191_248] : memref<8x768xf32, #tpu.memory_space<vmem>>, vector<8x512xf32>
    %c21_249 = arith.constant 21 : index
    %c0_250 = arith.constant 0 : index
    %286 = vector.load %arg2[%c21_249, %c0_250] : memref<27x512xf32, #tpu.memory_space<vmem>>, vector<1x512xf32>
    %287 = vector.broadcast %286 : vector<1x512xf32> to vector<8x512xf32>
    %288 = arith.mulf %285, %287 : vector<8x512xf32>
    %c168_251 = arith.constant 168 : index
    %c0_252 = arith.constant 0 : index
    %289 = vector.load %arg13[%c168_251, %c0_252] : memref<216x512xf32, #tpu.memory_space<vmem>>, vector<8x512xf32>
    tpu.vector_store %arg13[%c168_251, %c0_252], %288 {strides = array<i32>} : memref<216x512xf32, #tpu.memory_space<vmem>>, vector<8x512xf32>,
    %c0_253 = arith.constant 0 : index
    %c192_254 = arith.constant 192 : index
    %290 = vector.load %arg12[%c0_253, %c192_254] : memref<8x768xf32, #tpu.memory_space<vmem>>, vector<8x512xf32>
    %c22_255 = arith.constant 22 : index
    %c0_256 = arith.constant 0 : index
    %291 = vector.load %arg2[%c22_255, %c0_256] : memref<27x512xf32, #tpu.memory_space<vmem>>, vector<1x512xf32>
    %292 = vector.broadcast %291 : vector<1x512xf32> to vector<8x512xf32>
    %293 = arith.mulf %290, %292 : vector<8x512xf32>
    %c176_257 = arith.constant 176 : index
    %c0_258 = arith.constant 0 : index
    %294 = vector.load %arg13[%c176_257, %c0_258] : memref<216x512xf32, #tpu.memory_space<vmem>>, vector<8x512xf32>
    tpu.vector_store %arg13[%c176_257, %c0_258], %293 {strides = array<i32>} : memref<216x512xf32, #tpu.memory_space<vmem>>, vector<8x512xf32>,
    %c0_259 = arith.constant 0 : index
    %c193_260 = arith.constant 193 : index
    %295 = vector.load %arg12[%c0_259, %c193_260] : memref<8x768xf32, #tpu.memory_space<vmem>>, vector<8x512xf32>
    %c23_261 = arith.constant 23 : index
    %c0_262 = arith.constant 0 : index
    %296 = vector.load %arg2[%c23_261, %c0_262] : memref<27x512xf32, #tpu.memory_space<vmem>>, vector<1x512xf32>
    %297 = vector.broadcast %296 : vector<1x512xf32> to vector<8x512xf32>
    %298 = arith.mulf %295, %297 : vector<8x512xf32>
    %c184_263 = arith.constant 184 : index
    %c0_264 = arith.constant 0 : index
    %299 = vector.load %arg13[%c184_263, %c0_264] : memref<216x512xf32, #tpu.memory_space<vmem>>, vector<8x512xf32>
    tpu.vector_store %arg13[%c184_263, %c0_264], %298 {strides = array<i32>} : memref<216x512xf32, #tpu.memory_space<vmem>>, vector<8x512xf32>,
    %c0_265 = arith.constant 0 : index
    %c199_266 = arith.constant 199 : index
    %300 = vector.load %arg12[%c0_265, %c199_266] : memref<8x768xf32, #tpu.memory_space<vmem>>, vector<8x512xf32>
    %c24_267 = arith.constant 24 : index
    %c0_268 = arith.constant 0 : index
    %301 = vector.load %arg2[%c24_267, %c0_268] : memref<27x512xf32, #tpu.memory_space<vmem>>, vector<1x512xf32>
    %302 = vector.broadcast %301 : vector<1x512xf32> to vector<8x512xf32>
    %303 = arith.mulf %300, %302 : vector<8x512xf32>
    %c192_269 = arith.constant 192 : index
    %c0_270 = arith.constant 0 : index
    %304 = vector.load %arg13[%c192_269, %c0_270] : memref<216x512xf32, #tpu.memory_space<vmem>>, vector<8x512xf32>
    tpu.vector_store %arg13[%c192_269, %c0_270], %303 {strides = array<i32>} : memref<216x512xf32, #tpu.memory_space<vmem>>, vector<8x512xf32>,
    %c0_271 = arith.constant 0 : index
    %c200_272 = arith.constant 200 : index
    %305 = vector.load %arg12[%c0_271, %c200_272] : memref<8x768xf32, #tpu.memory_space<vmem>>, vector<8x512xf32>
    %c25_273 = arith.constant 25 : index
    %c0_274 = arith.constant 0 : index
    %306 = vector.load %arg2[%c25_273, %c0_274] : memref<27x512xf32, #tpu.memory_space<vmem>>, vector<1x512xf32>
    %307 = vector.broadcast %306 : vector<1x512xf32> to vector<8x512xf32>
    %308 = arith.mulf %305, %307 : vector<8x512xf32>
    %c200_275 = arith.constant 200 : index
    %c0_276 = arith.constant 0 : index
    %309 = vector.load %arg13[%c200_275, %c0_276] : memref<216x512xf32, #tpu.memory_space<vmem>>, vector<8x512xf32>
    tpu.vector_store %arg13[%c200_275, %c0_276], %308 {strides = array<i32>} : memref<216x512xf32, #tpu.memory_space<vmem>>, vector<8x512xf32>,
    %c0_277 = arith.constant 0 : index
    %c201_278 = arith.constant 201 : index
    %310 = vector.load %arg12[%c0_277, %c201_278] : memref<8x768xf32, #tpu.memory_space<vmem>>, vector<8x512xf32>
    %c26_279 = arith.constant 26 : index
    %c0_280 = arith.constant 0 : index
    %311 = vector.load %arg2[%c26_279, %c0_280] : memref<27x512xf32, #tpu.memory_space<vmem>>, vector<1x512xf32>
    %312 = vector.broadcast %311 : vector<1x512xf32> to vector<8x512xf32>
    %313 = arith.mulf %310, %312 : vector<8x512xf32>
    %c208_281 = arith.constant 208 : index
    %c0_282 = arith.constant 0 : index
    %314 = vector.load %arg13[%c208_281, %c0_282] : memref<216x512xf32, #tpu.memory_space<vmem>>, vector<8x512xf32>
    tpu.vector_store %arg13[%c208_281, %c0_282], %313 {strides = array<i32>} : memref<216x512xf32, #tpu.memory_space<vmem>>, vector<8x512xf32>,
    %c0_283 = arith.constant 0 : index
    %c0_284 = arith.constant 0 : index
    %315 = vector.load %arg13[%c0_283, %c0_284] : memref<216x512xf32, #tpu.memory_space<vmem>>, vector<216x512xf32>
    %316 = arith.truncf %315 : vector<216x512xf32> to vector<216x512xbf16>
    %c0_285 = arith.constant 0 : index
    %c0_286 = arith.constant 0 : index
    %317 = vector.load %arg5[%c0_285, %c0_286] : memref<8x216xbf16, #tpu.memory_space<vmem>>, vector<8x216xbf16>
    %cst_287 = arith.constant dense<0.000000e+00> : vector<8x512xf32>
    %318 = tpu.matmul %317, %316, %cst_287 {dimension_numbers = #tpu.dot_dimension_numbers<[1], [0], [0], [1], [0, 0, 1, 1], [], []>} : vector<8x216xbf16>, vector<216x512xbf16>, vector<8x512xf32> -> vector<8x512xf32>
    %c0_288 = arith.constant 0 : index
    %c0_289 = arith.constant 0 : index
    %319 = vector.load %arg6[%c0_288, %c0_289] : memref<8x1xf32, #tpu.memory_space<vmem>>, vector<8x1xf32>
    %320 = vector.broadcast %319 : vector<8x1xf32> to vector<8x512xf32>
    %321 = arith.addf %318, %320 : vector<8x512xf32>
    %cst_290 = arith.constant dense<0.000000e+00> : vector<8xf32>
    %322 = vector.multi_reduction <add>, %321, %cst_290 [1] : vector<8x512xf32> to vector<8xf32>
    %323 = vector.shape_cast %322 : vector<8xf32> to vector<8x1xf32>
    %cst_291 = arith.constant 0.001953125 : f32
    %324 = vector.broadcast %cst_291 : f32 to vector<8x1xf32>
    %325 = arith.mulf %323, %324 : vector<8x1xf32>
    %326 = vector.broadcast %325 : vector<8x1xf32> to vector<8x512xf32>
    %327 = arith.subf %321, %326 : vector<8x512xf32>
    %328 = arith.mulf %327, %327 : vector<8x512xf32>
    %cst_292 = arith.constant dense<0.000000e+00> : vector<8xf32>
    %329 = vector.multi_reduction <add>, %328, %cst_292 [1] : vector<8x512xf32> to vector<8xf32>
    %330 = vector.shape_cast %329 : vector<8xf32> to vector<8x1xf32>
    %cst_293 = arith.constant 0.001953125 : f32
    %331 = vector.broadcast %cst_293 : f32 to vector<8x1xf32>
    %332 = arith.mulf %330, %331 : vector<8x1xf32>
    %cst_294 = arith.constant 9.99999974E-6 : f32
    %333 = vector.broadcast %cst_294 : f32 to vector<8x1xf32>
    %334 = arith.addf %332, %333 : vector<8x1xf32>
    %335 = math.rsqrt %334 : vector<8x1xf32>
    %336 = vector.broadcast %335 : vector<8x1xf32> to vector<8x512xf32>
    %337 = arith.mulf %327, %336 : vector<8x512xf32>
    %cst_295 = arith.constant 0.000000e+00 : f32
    %338 = vector.broadcast %cst_295 : f32 to vector<8x512xf32>
    %339 = arith.maximumf %337, %338 : vector<8x512xf32>
    %c0_296 = arith.constant 0 : index
    %c128_297 = arith.constant 128 : index
    %340 = vector.load %arg12[%c0_296, %c128_297] : memref<8x768xf32, #tpu.memory_space<vmem>>, vector<8x512xf32>
    tpu.vector_store %arg12[%c0_296, %c128_297], %339 {strides = array<i32>} : memref<8x768xf32, #tpu.memory_space<vmem>>, vector<8x512xf32>,
    %c0_298 = arith.constant 0 : index
    %c55_299 = arith.constant 55 : index
    %341 = vector.load %arg12[%c0_298, %c55_299] : memref<8x768xf32, #tpu.memory_space<vmem>>, vector<8x512xf32>
    %c0_300 = arith.constant 0 : index
    %c0_301 = arith.constant 0 : index
    %342 = vector.load %arg2[%c0_300, %c0_301] : memref<27x512xf32, #tpu.memory_space<vmem>>, vector<1x512xf32>
    %343 = vector.broadcast %342 : vector<1x512xf32> to vector<8x512xf32>
    %344 = arith.mulf %341, %343 : vector<8x512xf32>
    %c0_302 = arith.constant 0 : index
    %c0_303 = arith.constant 0 : index
    %345 = vector.load %arg13[%c0_302, %c0_303] : memref<216x512xf32, #tpu.memory_space<vmem>>, vector<8x512xf32>
    tpu.vector_store %arg13[%c0_302, %c0_303], %344 {strides = array<i32>} : memref<216x512xf32, #tpu.memory_space<vmem>>, vector<8x512xf32>,
    %c0_304 = arith.constant 0 : index
    %c56_305 = arith.constant 56 : index
    %346 = vector.load %arg12[%c0_304, %c56_305] : memref<8x768xf32, #tpu.memory_space<vmem>>, vector<8x512xf32>
    %c1_306 = arith.constant 1 : index
    %c0_307 = arith.constant 0 : index
    %347 = vector.load %arg2[%c1_306, %c0_307] : memref<27x512xf32, #tpu.memory_space<vmem>>, vector<1x512xf32>
    %348 = vector.broadcast %347 : vector<1x512xf32> to vector<8x512xf32>
    %349 = arith.mulf %346, %348 : vector<8x512xf32>
    %c8_308 = arith.constant 8 : index
    %c0_309 = arith.constant 0 : index
    %350 = vector.load %arg13[%c8_308, %c0_309] : memref<216x512xf32, #tpu.memory_space<vmem>>, vector<8x512xf32>
    tpu.vector_store %arg13[%c8_308, %c0_309], %349 {strides = array<i32>} : memref<216x512xf32, #tpu.memory_space<vmem>>, vector<8x512xf32>,
    %c0_310 = arith.constant 0 : index
    %c57_311 = arith.constant 57 : index
    %351 = vector.load %arg12[%c0_310, %c57_311] : memref<8x768xf32, #tpu.memory_space<vmem>>, vector<8x512xf32>
    %c2_312 = arith.constant 2 : index
    %c0_313 = arith.constant 0 : index
    %352 = vector.load %arg2[%c2_312, %c0_313] : memref<27x512xf32, #tpu.memory_space<vmem>>, vector<1x512xf32>
    %353 = vector.broadcast %352 : vector<1x512xf32> to vector<8x512xf32>
    %354 = arith.mulf %351, %353 : vector<8x512xf32>
    %c16_314 = arith.constant 16 : index
    %c0_315 = arith.constant 0 : index
    %355 = vector.load %arg13[%c16_314, %c0_315] : memref<216x512xf32, #tpu.memory_space<vmem>>, vector<8x512xf32>
    tpu.vector_store %arg13[%c16_314, %c0_315], %354 {strides = array<i32>} : memref<216x512xf32, #tpu.memory_space<vmem>>, vector<8x512xf32>,
    %c0_316 = arith.constant 0 : index
    %c63_317 = arith.constant 63 : index
    %356 = vector.load %arg12[%c0_316, %c63_317] : memref<8x768xf32, #tpu.memory_space<vmem>>, vector<8x512xf32>
    %c3_318 = arith.constant 3 : index
    %c0_319 = arith.constant 0 : index
    %357 = vector.load %arg2[%c3_318, %c0_319] : memref<27x512xf32, #tpu.memory_space<vmem>>, vector<1x512xf32>
    %358 = vector.broadcast %357 : vector<1x512xf32> to vector<8x512xf32>
    %359 = arith.mulf %356, %358 : vector<8x512xf32>
    %c24_320 = arith.constant 24 : index
    %c0_321 = arith.constant 0 : index
    %360 = vector.load %arg13[%c24_320, %c0_321] : memref<216x512xf32, #tpu.memory_space<vmem>>, vector<8x512xf32>
    tpu.vector_store %arg13[%c24_320, %c0_321], %359 {strides = array<i32>} : memref<216x512xf32, #tpu.memory_space<vmem>>, vector<8x512xf32>,
    %c0_322 = arith.constant 0 : index
    %c64_323 = arith.constant 64 : index
    %361 = vector.load %arg12[%c0_322, %c64_323] : memref<8x768xf32, #tpu.memory_space<vmem>>, vector<8x512xf32>
    %c4_324 = arith.constant 4 : index
    %c0_325 = arith.constant 0 : index
    %362 = vector.load %arg2[%c4_324, %c0_325] : memref<27x512xf32, #tpu.memory_space<vmem>>, vector<1x512xf32>
    %363 = vector.broadcast %362 : vector<1x512xf32> to vector<8x512xf32>
    %364 = arith.mulf %361, %363 : vector<8x512xf32>
    %c32_326 = arith.constant 32 : index
    %c0_327 = arith.constant 0 : index
    %365 = vector.load %arg13[%c32_326, %c0_327] : memref<216x512xf32, #tpu.memory_space<vmem>>, vector<8x512xf32>
    tpu.vector_store %arg13[%c32_326, %c0_327], %364 {strides = array<i32>} : memref<216x512xf32, #tpu.memory_space<vmem>>, vector<8x512xf32>,
    %c0_328 = arith.constant 0 : index
    %c65_329 = arith.constant 65 : index
    %366 = vector.load %arg12[%c0_328, %c65_329] : memref<8x768xf32, #tpu.memory_space<vmem>>, vector<8x512xf32>
    %c5_330 = arith.constant 5 : index
    %c0_331 = arith.constant 0 : index
    %367 = vector.load %arg2[%c5_330, %c0_331] : memref<27x512xf32, #tpu.memory_space<vmem>>, vector<1x512xf32>
    %368 = vector.broadcast %367 : vector<1x512xf32> to vector<8x512xf32>
    %369 = arith.mulf %366, %368 : vector<8x512xf32>
    %c40_332 = arith.constant 40 : index
    %c0_333 = arith.constant 0 : index
    %370 = vector.load %arg13[%c40_332, %c0_333] : memref<216x512xf32, #tpu.memory_space<vmem>>, vector<8x512xf32>
    tpu.vector_store %arg13[%c40_332, %c0_333], %369 {strides = array<i32>} : memref<216x512xf32, #tpu.memory_space<vmem>>, vector<8x512xf32>,
    %c0_334 = arith.constant 0 : index
    %c71_335 = arith.constant 71 : index
    %371 = vector.load %arg12[%c0_334, %c71_335] : memref<8x768xf32, #tpu.memory_space<vmem>>, vector<8x512xf32>
    %c6_336 = arith.constant 6 : index
    %c0_337 = arith.constant 0 : index
    %372 = vector.load %arg2[%c6_336, %c0_337] : memref<27x512xf32, #tpu.memory_space<vmem>>, vector<1x512xf32>
    %373 = vector.broadcast %372 : vector<1x512xf32> to vector<8x512xf32>
    %374 = arith.mulf %371, %373 : vector<8x512xf32>
    %c48_338 = arith.constant 48 : index
    %c0_339 = arith.constant 0 : index
    %375 = vector.load %arg13[%c48_338, %c0_339] : memref<216x512xf32, #tpu.memory_space<vmem>>, vector<8x512xf32>
    tpu.vector_store %arg13[%c48_338, %c0_339], %374 {strides = array<i32>} : memref<216x512xf32, #tpu.memory_space<vmem>>, vector<8x512xf32>,
    %c0_340 = arith.constant 0 : index
    %c72_341 = arith.constant 72 : index
    %376 = vector.load %arg12[%c0_340, %c72_341] : memref<8x768xf32, #tpu.memory_space<vmem>>, vector<8x512xf32>
    %c7_342 = arith.constant 7 : index
    %c0_343 = arith.constant 0 : index
    %377 = vector.load %arg2[%c7_342, %c0_343] : memref<27x512xf32, #tpu.memory_space<vmem>>, vector<1x512xf32>
    %378 = vector.broadcast %377 : vector<1x512xf32> to vector<8x512xf32>
    %379 = arith.mulf %376, %378 : vector<8x512xf32>
    %c56_344 = arith.constant 56 : index
    %c0_345 = arith.constant 0 : index
    %380 = vector.load %arg13[%c56_344, %c0_345] : memref<216x512xf32, #tpu.memory_space<vmem>>, vector<8x512xf32>
    tpu.vector_store %arg13[%c56_344, %c0_345], %379 {strides = array<i32>} : memref<216x512xf32, #tpu.memory_space<vmem>>, vector<8x512xf32>,
    %c0_346 = arith.constant 0 : index
    %c73_347 = arith.constant 73 : index
    %381 = vector.load %arg12[%c0_346, %c73_347] : memref<8x768xf32, #tpu.memory_space<vmem>>, vector<8x512xf32>
    %c8_348 = arith.constant 8 : index
    %c0_349 = arith.constant 0 : index
    %382 = vector.load %arg2[%c8_348, %c0_349] : memref<27x512xf32, #tpu.memory_space<vmem>>, vector<1x512xf32>
    %383 = vector.broadcast %382 : vector<1x512xf32> to vector<8x512xf32>
    %384 = arith.mulf %381, %383 : vector<8x512xf32>
    %c64_350 = arith.constant 64 : index
    %c0_351 = arith.constant 0 : index
    %385 = vector.load %arg13[%c64_350, %c0_351] : memref<216x512xf32, #tpu.memory_space<vmem>>, vector<8x512xf32>
    tpu.vector_store %arg13[%c64_350, %c0_351], %384 {strides = array<i32>} : memref<216x512xf32, #tpu.memory_space<vmem>>, vector<8x512xf32>,
    %c0_352 = arith.constant 0 : index
    %c119_353 = arith.constant 119 : index
    %386 = vector.load %arg12[%c0_352, %c119_353] : memref<8x768xf32, #tpu.memory_space<vmem>>, vector<8x512xf32>
    %c9_354 = arith.constant 9 : index
    %c0_355 = arith.constant 0 : index
    %387 = vector.load %arg2[%c9_354, %c0_355] : memref<27x512xf32, #tpu.memory_space<vmem>>, vector<1x512xf32>
    %388 = vector.broadcast %387 : vector<1x512xf32> to vector<8x512xf32>
    %389 = arith.mulf %386, %388 : vector<8x512xf32>
    %c72_356 = arith.constant 72 : index
    %c0_357 = arith.constant 0 : index
    %390 = vector.load %arg13[%c72_356, %c0_357] : memref<216x512xf32, #tpu.memory_space<vmem>>, vector<8x512xf32>
    tpu.vector_store %arg13[%c72_356, %c0_357], %389 {strides = array<i32>} : memref<216x512xf32, #tpu.memory_space<vmem>>, vector<8x512xf32>,
    %c0_358 = arith.constant 0 : index
    %c120_359 = arith.constant 120 : index
    %391 = vector.load %arg12[%c0_358, %c120_359] : memref<8x768xf32, #tpu.memory_space<vmem>>, vector<8x512xf32>
    %c10_360 = arith.constant 10 : index
    %c0_361 = arith.constant 0 : index
    %392 = vector.load %arg2[%c10_360, %c0_361] : memref<27x512xf32, #tpu.memory_space<vmem>>, vector<1x512xf32>
    %393 = vector.broadcast %392 : vector<1x512xf32> to vector<8x512xf32>
    %394 = arith.mulf %391, %393 : vector<8x512xf32>
    %c80_362 = arith.constant 80 : index
    %c0_363 = arith.constant 0 : index
    %395 = vector.load %arg13[%c80_362, %c0_363] : memref<216x512xf32, #tpu.memory_space<vmem>>, vector<8x512xf32>
    tpu.vector_store %arg13[%c80_362, %c0_363], %394 {strides = array<i32>} : memref<216x512xf32, #tpu.memory_space<vmem>>, vector<8x512xf32>,
    %c0_364 = arith.constant 0 : index
    %c121_365 = arith.constant 121 : index
    %396 = vector.load %arg12[%c0_364, %c121_365] : memref<8x768xf32, #tpu.memory_space<vmem>>, vector<8x512xf32>
    %c11_366 = arith.constant 11 : index
    %c0_367 = arith.constant 0 : index
    %397 = vector.load %arg2[%c11_366, %c0_367] : memref<27x512xf32, #tpu.memory_space<vmem>>, vector<1x512xf32>
    %398 = vector.broadcast %397 : vector<1x512xf32> to vector<8x512xf32>
    %399 = arith.mulf %396, %398 : vector<8x512xf32>
    %c88_368 = arith.constant 88 : index
    %c0_369 = arith.constant 0 : index
    %400 = vector.load %arg13[%c88_368, %c0_369] : memref<216x512xf32, #tpu.memory_space<vmem>>, vector<8x512xf32>
    tpu.vector_store %arg13[%c88_368, %c0_369], %399 {strides = array<i32>} : memref<216x512xf32, #tpu.memory_space<vmem>>, vector<8x512xf32>,
    %c0_370 = arith.constant 0 : index
    %c127_371 = arith.constant 127 : index
    %401 = vector.load %arg12[%c0_370, %c127_371] : memref<8x768xf32, #tpu.memory_space<vmem>>, vector<8x512xf32>
    %c12_372 = arith.constant 12 : index
    %c0_373 = arith.constant 0 : index
    %402 = vector.load %arg2[%c12_372, %c0_373] : memref<27x512xf32, #tpu.memory_space<vmem>>, vector<1x512xf32>
    %403 = vector.broadcast %402 : vector<1x512xf32> to vector<8x512xf32>
    %404 = arith.mulf %401, %403 : vector<8x512xf32>
    %c96_374 = arith.constant 96 : index
    %c0_375 = arith.constant 0 : index
    %405 = vector.load %arg13[%c96_374, %c0_375] : memref<216x512xf32, #tpu.memory_space<vmem>>, vector<8x512xf32>
    tpu.vector_store %arg13[%c96_374, %c0_375], %404 {strides = array<i32>} : memref<216x512xf32, #tpu.memory_space<vmem>>, vector<8x512xf32>,
    %c0_376 = arith.constant 0 : index
    %c128_377 = arith.constant 128 : index
    %406 = vector.load %arg12[%c0_376, %c128_377] : memref<8x768xf32, #tpu.memory_space<vmem>>, vector<8x512xf32>
    %c104_378 = arith.constant 104 : index
    %c0_379 = arith.constant 0 : index
    %407 = vector.load %arg13[%c104_378, %c0_379] : memref<216x512xf32, #tpu.memory_space<vmem>>, vector<8x512xf32>
    tpu.vector_store %arg13[%c104_378, %c0_379], %406 {strides = array<i32>} : memref<216x512xf32, #tpu.memory_space<vmem>>, vector<8x512xf32>,
    %c0_380 = arith.constant 0 : index
    %c129_381 = arith.constant 129 : index
    %408 = vector.load %arg12[%c0_380, %c129_381] : memref<8x768xf32, #tpu.memory_space<vmem>>, vector<8x512xf32>
    %c14_382 = arith.constant 14 : index
    %c0_383 = arith.constant 0 : index
    %409 = vector.load %arg2[%c14_382, %c0_383] : memref<27x512xf32, #tpu.memory_space<vmem>>, vector<1x512xf32>
    %410 = vector.broadcast %409 : vector<1x512xf32> to vector<8x512xf32>
    %411 = arith.mulf %408, %410 : vector<8x512xf32>
    %c112_384 = arith.constant 112 : index
    %c0_385 = arith.constant 0 : index
    %412 = vector.load %arg13[%c112_384, %c0_385] : memref<216x512xf32, #tpu.memory_space<vmem>>, vector<8x512xf32>
    tpu.vector_store %arg13[%c112_384, %c0_385], %411 {strides = array<i32>} : memref<216x512xf32, #tpu.memory_space<vmem>>, vector<8x512xf32>,
    %c0_386 = arith.constant 0 : index
    %c135_387 = arith.constant 135 : index
    %413 = vector.load %arg12[%c0_386, %c135_387] : memref<8x768xf32, #tpu.memory_space<vmem>>, vector<8x512xf32>
    %c15_388 = arith.constant 15 : index
    %c0_389 = arith.constant 0 : index
    %414 = vector.load %arg2[%c15_388, %c0_389] : memref<27x512xf32, #tpu.memory_space<vmem>>, vector<1x512xf32>
    %415 = vector.broadcast %414 : vector<1x512xf32> to vector<8x512xf32>
    %416 = arith.mulf %413, %415 : vector<8x512xf32>
    %c120_390 = arith.constant 120 : index
    %c0_391 = arith.constant 0 : index
    %417 = vector.load %arg13[%c120_390, %c0_391] : memref<216x512xf32, #tpu.memory_space<vmem>>, vector<8x512xf32>
    tpu.vector_store %arg13[%c120_390, %c0_391], %416 {strides = array<i32>} : memref<216x512xf32, #tpu.memory_space<vmem>>, vector<8x512xf32>,
    %c0_392 = arith.constant 0 : index
    %c136_393 = arith.constant 136 : index
    %418 = vector.load %arg12[%c0_392, %c136_393] : memref<8x768xf32, #tpu.memory_space<vmem>>, vector<8x512xf32>
    %c16_394 = arith.constant 16 : index
    %c0_395 = arith.constant 0 : index
    %419 = vector.load %arg2[%c16_394, %c0_395] : memref<27x512xf32, #tpu.memory_space<vmem>>, vector<1x512xf32>
    %420 = vector.broadcast %419 : vector<1x512xf32> to vector<8x512xf32>
    %421 = arith.mulf %418, %420 : vector<8x512xf32>
    %c128_396 = arith.constant 128 : index
    %c0_397 = arith.constant 0 : index
    %422 = vector.load %arg13[%c128_396, %c0_397] : memref<216x512xf32, #tpu.memory_space<vmem>>, vector<8x512xf32>
    tpu.vector_store %arg13[%c128_396, %c0_397], %421 {strides = array<i32>} : memref<216x512xf32, #tpu.memory_space<vmem>>, vector<8x512xf32>,
    %c0_398 = arith.constant 0 : index
    %c137_399 = arith.constant 137 : index
    %423 = vector.load %arg12[%c0_398, %c137_399] : memref<8x768xf32, #tpu.memory_space<vmem>>, vector<8x512xf32>
    %c17_400 = arith.constant 17 : index
    %c0_401 = arith.constant 0 : index
    %424 = vector.load %arg2[%c17_400, %c0_401] : memref<27x512xf32, #tpu.memory_space<vmem>>, vector<1x512xf32>
    %425 = vector.broadcast %424 : vector<1x512xf32> to vector<8x512xf32>
    %426 = arith.mulf %423, %425 : vector<8x512xf32>
    %c136_402 = arith.constant 136 : index
    %c0_403 = arith.constant 0 : index
    %427 = vector.load %arg13[%c136_402, %c0_403] : memref<216x512xf32, #tpu.memory_space<vmem>>, vector<8x512xf32>
    tpu.vector_store %arg13[%c136_402, %c0_403], %426 {strides = array<i32>} : memref<216x512xf32, #tpu.memory_space<vmem>>, vector<8x512xf32>,
    %c0_404 = arith.constant 0 : index
    %c183_405 = arith.constant 183 : index
    %428 = vector.load %arg12[%c0_404, %c183_405] : memref<8x768xf32, #tpu.memory_space<vmem>>, vector<8x512xf32>
    %c18_406 = arith.constant 18 : index
    %c0_407 = arith.constant 0 : index
    %429 = vector.load %arg2[%c18_406, %c0_407] : memref<27x512xf32, #tpu.memory_space<vmem>>, vector<1x512xf32>
    %430 = vector.broadcast %429 : vector<1x512xf32> to vector<8x512xf32>
    %431 = arith.mulf %428, %430 : vector<8x512xf32>
    %c144_408 = arith.constant 144 : index
    %c0_409 = arith.constant 0 : index
    %432 = vector.load %arg13[%c144_408, %c0_409] : memref<216x512xf32, #tpu.memory_space<vmem>>, vector<8x512xf32>
    tpu.vector_store %arg13[%c144_408, %c0_409], %431 {strides = array<i32>} : memref<216x512xf32, #tpu.memory_space<vmem>>, vector<8x512xf32>,
    %c0_410 = arith.constant 0 : index
    %c184_411 = arith.constant 184 : index
    %433 = vector.load %arg12[%c0_410, %c184_411] : memref<8x768xf32, #tpu.memory_space<vmem>>, vector<8x512xf32>
    %c19_412 = arith.constant 19 : index
    %c0_413 = arith.constant 0 : index
    %434 = vector.load %arg2[%c19_412, %c0_413] : memref<27x512xf32, #tpu.memory_space<vmem>>, vector<1x512xf32>
    %435 = vector.broadcast %434 : vector<1x512xf32> to vector<8x512xf32>
    %436 = arith.mulf %433, %435 : vector<8x512xf32>
    %c152_414 = arith.constant 152 : index
    %c0_415 = arith.constant 0 : index
    %437 = vector.load %arg13[%c152_414, %c0_415] : memref<216x512xf32, #tpu.memory_space<vmem>>, vector<8x512xf32>
    tpu.vector_store %arg13[%c152_414, %c0_415], %436 {strides = array<i32>} : memref<216x512xf32, #tpu.memory_space<vmem>>, vector<8x512xf32>,
    %c0_416 = arith.constant 0 : index
    %c185_417 = arith.constant 185 : index
    %438 = vector.load %arg12[%c0_416, %c185_417] : memref<8x768xf32, #tpu.memory_space<vmem>>, vector<8x512xf32>
    %c20_418 = arith.constant 20 : index
    %c0_419 = arith.constant 0 : index
    %439 = vector.load %arg2[%c20_418, %c0_419] : memref<27x512xf32, #tpu.memory_space<vmem>>, vector<1x512xf32>
    %440 = vector.broadcast %439 : vector<1x512xf32> to vector<8x512xf32>
    %441 = arith.mulf %438, %440 : vector<8x512xf32>
    %c160_420 = arith.constant 160 : index
    %c0_421 = arith.constant 0 : index
    %442 = vector.load %arg13[%c160_420, %c0_421] : memref<216x512xf32, #tpu.memory_space<vmem>>, vector<8x512xf32>
    tpu.vector_store %arg13[%c160_420, %c0_421], %441 {strides = array<i32>} : memref<216x512xf32, #tpu.memory_space<vmem>>, vector<8x512xf32>,
    %c0_422 = arith.constant 0 : index
    %c191_423 = arith.constant 191 : index
    %443 = vector.load %arg12[%c0_422, %c191_423] : memref<8x768xf32, #tpu.memory_space<vmem>>, vector<8x512xf32>
    %c21_424 = arith.constant 21 : index
    %c0_425 = arith.constant 0 : index
    %444 = vector.load %arg2[%c21_424, %c0_425] : memref<27x512xf32, #tpu.memory_space<vmem>>, vector<1x512xf32>
    %445 = vector.broadcast %444 : vector<1x512xf32> to vector<8x512xf32>
    %446 = arith.mulf %443, %445 : vector<8x512xf32>
    %c168_426 = arith.constant 168 : index
    %c0_427 = arith.constant 0 : index
    %447 = vector.load %arg13[%c168_426, %c0_427] : memref<216x512xf32, #tpu.memory_space<vmem>>, vector<8x512xf32>
    tpu.vector_store %arg13[%c168_426, %c0_427], %446 {strides = array<i32>} : memref<216x512xf32, #tpu.memory_space<vmem>>, vector<8x512xf32>,
    %c0_428 = arith.constant 0 : index
    %c192_429 = arith.constant 192 : index
    %448 = vector.load %arg12[%c0_428, %c192_429] : memref<8x768xf32, #tpu.memory_space<vmem>>, vector<8x512xf32>
    %c22_430 = arith.constant 22 : index
    %c0_431 = arith.constant 0 : index
    %449 = vector.load %arg2[%c22_430, %c0_431] : memref<27x512xf32, #tpu.memory_space<vmem>>, vector<1x512xf32>
    %450 = vector.broadcast %449 : vector<1x512xf32> to vector<8x512xf32>
    %451 = arith.mulf %448, %450 : vector<8x512xf32>
    %c176_432 = arith.constant 176 : index
    %c0_433 = arith.constant 0 : index
    %452 = vector.load %arg13[%c176_432, %c0_433] : memref<216x512xf32, #tpu.memory_space<vmem>>, vector<8x512xf32>
    tpu.vector_store %arg13[%c176_432, %c0_433], %451 {strides = array<i32>} : memref<216x512xf32, #tpu.memory_space<vmem>>, vector<8x512xf32>,
    %c0_434 = arith.constant 0 : index
    %c193_435 = arith.constant 193 : index
    %453 = vector.load %arg12[%c0_434, %c193_435] : memref<8x768xf32, #tpu.memory_space<vmem>>, vector<8x512xf32>
    %c23_436 = arith.constant 23 : index
    %c0_437 = arith.constant 0 : index
    %454 = vector.load %arg2[%c23_436, %c0_437] : memref<27x512xf32, #tpu.memory_space<vmem>>, vector<1x512xf32>
    %455 = vector.broadcast %454 : vector<1x512xf32> to vector<8x512xf32>
    %456 = arith.mulf %453, %455 : vector<8x512xf32>
    %c184_438 = arith.constant 184 : index
    %c0_439 = arith.constant 0 : index
    %457 = vector.load %arg13[%c184_438, %c0_439] : memref<216x512xf32, #tpu.memory_space<vmem>>, vector<8x512xf32>
    tpu.vector_store %arg13[%c184_438, %c0_439], %456 {strides = array<i32>} : memref<216x512xf32, #tpu.memory_space<vmem>>, vector<8x512xf32>,
    %c0_440 = arith.constant 0 : index
    %c199_441 = arith.constant 199 : index
    %458 = vector.load %arg12[%c0_440, %c199_441] : memref<8x768xf32, #tpu.memory_space<vmem>>, vector<8x512xf32>
    %c24_442 = arith.constant 24 : index
    %c0_443 = arith.constant 0 : index
    %459 = vector.load %arg2[%c24_442, %c0_443] : memref<27x512xf32, #tpu.memory_space<vmem>>, vector<1x512xf32>
    %460 = vector.broadcast %459 : vector<1x512xf32> to vector<8x512xf32>
    %461 = arith.mulf %458, %460 : vector<8x512xf32>
    %c192_444 = arith.constant 192 : index
    %c0_445 = arith.constant 0 : index
    %462 = vector.load %arg13[%c192_444, %c0_445] : memref<216x512xf32, #tpu.memory_space<vmem>>, vector<8x512xf32>
    tpu.vector_store %arg13[%c192_444, %c0_445], %461 {strides = array<i32>} : memref<216x512xf32, #tpu.memory_space<vmem>>, vector<8x512xf32>,
    %c0_446 = arith.constant 0 : index
    %c200_447 = arith.constant 200 : index
    %463 = vector.load %arg12[%c0_446, %c200_447] : memref<8x768xf32, #tpu.memory_space<vmem>>, vector<8x512xf32>
    %c25_448 = arith.constant 25 : index
    %c0_449 = arith.constant 0 : index
    %464 = vector.load %arg2[%c25_448, %c0_449] : memref<27x512xf32, #tpu.memory_space<vmem>>, vector<1x512xf32>
    %465 = vector.broadcast %464 : vector<1x512xf32> to vector<8x512xf32>
    %466 = arith.mulf %463, %465 : vector<8x512xf32>
    %c200_450 = arith.constant 200 : index
    %c0_451 = arith.constant 0 : index
    %467 = vector.load %arg13[%c200_450, %c0_451] : memref<216x512xf32, #tpu.memory_space<vmem>>, vector<8x512xf32>
    tpu.vector_store %arg13[%c200_450, %c0_451], %466 {strides = array<i32>} : memref<216x512xf32, #tpu.memory_space<vmem>>, vector<8x512xf32>,
    %c0_452 = arith.constant 0 : index
    %c201_453 = arith.constant 201 : index
    %468 = vector.load %arg12[%c0_452, %c201_453] : memref<8x768xf32, #tpu.memory_space<vmem>>, vector<8x512xf32>
    %c26_454 = arith.constant 26 : index
    %c0_455 = arith.constant 0 : index
    %469 = vector.load %arg2[%c26_454, %c0_455] : memref<27x512xf32, #tpu.memory_space<vmem>>, vector<1x512xf32>
    %470 = vector.broadcast %469 : vector<1x512xf32> to vector<8x512xf32>
    %471 = arith.mulf %468, %470 : vector<8x512xf32>
    %c208_456 = arith.constant 208 : index
    %c0_457 = arith.constant 0 : index
    %472 = vector.load %arg13[%c208_456, %c0_457] : memref<216x512xf32, #tpu.memory_space<vmem>>, vector<8x512xf32>
    tpu.vector_store %arg13[%c208_456, %c0_457], %471 {strides = array<i32>} : memref<216x512xf32, #tpu.memory_space<vmem>>, vector<8x512xf32>,
    %c0_458 = arith.constant 0 : index
    %c0_459 = arith.constant 0 : index
    %473 = vector.load %arg13[%c0_458, %c0_459] : memref<216x512xf32, #tpu.memory_space<vmem>>, vector<216x512xf32>
    %474 = arith.truncf %473 : vector<216x512xf32> to vector<216x512xbf16>
    %c0_460 = arith.constant 0 : index
    %c0_461 = arith.constant 0 : index
    %475 = vector.load %arg7[%c0_460, %c0_461] : memref<8x216xbf16, #tpu.memory_space<vmem>>, vector<8x216xbf16>
    %cst_462 = arith.constant dense<0.000000e+00> : vector<8x512xf32>
    %476 = tpu.matmul %475, %474, %cst_462 {dimension_numbers = #tpu.dot_dimension_numbers<[1], [0], [0], [1], [0, 0, 1, 1], [], []>} : vector<8x216xbf16>, vector<216x512xbf16>, vector<8x512xf32> -> vector<8x512xf32>
    %c0_463 = arith.constant 0 : index
    %c0_464 = arith.constant 0 : index
    %477 = vector.load %arg8[%c0_463, %c0_464] : memref<8x1xf32, #tpu.memory_space<vmem>>, vector<8x1xf32>
    %478 = vector.broadcast %477 : vector<8x1xf32> to vector<8x512xf32>
    %479 = arith.addf %476, %478 : vector<8x512xf32>
    %480 = arith.addf %163, %479 : vector<8x512xf32>
    %cst_465 = arith.constant dense<0.000000e+00> : vector<8xf32>
    %481 = vector.multi_reduction <add>, %480, %cst_465 [1] : vector<8x512xf32> to vector<8xf32>
    %482 = vector.shape_cast %481 : vector<8xf32> to vector<8x1xf32>
    %cst_466 = arith.constant 0.001953125 : f32
    %483 = vector.broadcast %cst_466 : f32 to vector<8x1xf32>
    %484 = arith.mulf %482, %483 : vector<8x1xf32>
    %485 = vector.broadcast %484 : vector<8x1xf32> to vector<8x512xf32>
    %486 = arith.subf %480, %485 : vector<8x512xf32>
    %487 = arith.mulf %486, %486 : vector<8x512xf32>
    %cst_467 = arith.constant dense<0.000000e+00> : vector<8xf32>
    %488 = vector.multi_reduction <add>, %487, %cst_467 [1] : vector<8x512xf32> to vector<8xf32>
    %489 = vector.shape_cast %488 : vector<8xf32> to vector<8x1xf32>
    %cst_468 = arith.constant 0.001953125 : f32
    %490 = vector.broadcast %cst_468 : f32 to vector<8x1xf32>
    %491 = arith.mulf %489, %490 : vector<8x1xf32>
    %cst_469 = arith.constant 9.99999974E-6 : f32
    %492 = vector.broadcast %cst_469 : f32 to vector<8x1xf32>
    %493 = arith.addf %491, %492 : vector<8x1xf32>
    %494 = math.rsqrt %493 : vector<8x1xf32>
    %495 = vector.broadcast %494 : vector<8x1xf32> to vector<8x512xf32>
    %496 = arith.mulf %486, %495 : vector<8x512xf32>
    %cst_470 = arith.constant 0.000000e+00 : f32
    %497 = vector.broadcast %cst_470 : f32 to vector<8x512xf32>
    %498 = arith.maximumf %496, %497 : vector<8x512xf32>
    %c0_471 = arith.constant 0 : index
    %c128_472 = arith.constant 128 : index
    %499 = vector.load %arg12[%c0_471, %c128_472] : memref<8x768xf32, #tpu.memory_space<vmem>>, vector<8x512xf32>
    tpu.vector_store %arg12[%c0_471, %c128_472], %498 {strides = array<i32>} : memref<8x768xf32, #tpu.memory_space<vmem>>, vector<8x512xf32>,
    %c0_473 = arith.constant 0 : index
    %c55_474 = arith.constant 55 : index
    %500 = vector.load %arg12[%c0_473, %c55_474] : memref<8x768xf32, #tpu.memory_space<vmem>>, vector<8x512xf32>
    %c0_475 = arith.constant 0 : index
    %c0_476 = arith.constant 0 : index
    %501 = vector.load %arg2[%c0_475, %c0_476] : memref<27x512xf32, #tpu.memory_space<vmem>>, vector<1x512xf32>
    %502 = vector.broadcast %501 : vector<1x512xf32> to vector<8x512xf32>
    %503 = arith.mulf %500, %502 : vector<8x512xf32>
    %c0_477 = arith.constant 0 : index
    %c0_478 = arith.constant 0 : index
    %504 = vector.load %arg13[%c0_477, %c0_478] : memref<216x512xf32, #tpu.memory_space<vmem>>, vector<8x512xf32>
    tpu.vector_store %arg13[%c0_477, %c0_478], %503 {strides = array<i32>} : memref<216x512xf32, #tpu.memory_space<vmem>>, vector<8x512xf32>,
    %c0_479 = arith.constant 0 : index
    %c56_480 = arith.constant 56 : index
    %505 = vector.load %arg12[%c0_479, %c56_480] : memref<8x768xf32, #tpu.memory_space<vmem>>, vector<8x512xf32>
    %c1_481 = arith.constant 1 : index
    %c0_482 = arith.constant 0 : index
    %506 = vector.load %arg2[%c1_481, %c0_482] : memref<27x512xf32, #tpu.memory_space<vmem>>, vector<1x512xf32>
    %507 = vector.broadcast %506 : vector<1x512xf32> to vector<8x512xf32>
    %508 = arith.mulf %505, %507 : vector<8x512xf32>
    %c8_483 = arith.constant 8 : index
    %c0_484 = arith.constant 0 : index
    %509 = vector.load %arg13[%c8_483, %c0_484] : memref<216x512xf32, #tpu.memory_space<vmem>>, vector<8x512xf32>
    tpu.vector_store %arg13[%c8_483, %c0_484], %508 {strides = array<i32>} : memref<216x512xf32, #tpu.memory_space<vmem>>, vector<8x512xf32>,
    %c0_485 = arith.constant 0 : index
    %c57_486 = arith.constant 57 : index
    %510 = vector.load %arg12[%c0_485, %c57_486] : memref<8x768xf32, #tpu.memory_space<vmem>>, vector<8x512xf32>
    %c2_487 = arith.constant 2 : index
    %c0_488 = arith.constant 0 : index
    %511 = vector.load %arg2[%c2_487, %c0_488] : memref<27x512xf32, #tpu.memory_space<vmem>>, vector<1x512xf32>
    %512 = vector.broadcast %511 : vector<1x512xf32> to vector<8x512xf32>
    %513 = arith.mulf %510, %512 : vector<8x512xf32>
    %c16_489 = arith.constant 16 : index
    %c0_490 = arith.constant 0 : index
    %514 = vector.load %arg13[%c16_489, %c0_490] : memref<216x512xf32, #tpu.memory_space<vmem>>, vector<8x512xf32>
    tpu.vector_store %arg13[%c16_489, %c0_490], %513 {strides = array<i32>} : memref<216x512xf32, #tpu.memory_space<vmem>>, vector<8x512xf32>,
    %c0_491 = arith.constant 0 : index
    %c63_492 = arith.constant 63 : index
    %515 = vector.load %arg12[%c0_491, %c63_492] : memref<8x768xf32, #tpu.memory_space<vmem>>, vector<8x512xf32>
    %c3_493 = arith.constant 3 : index
    %c0_494 = arith.constant 0 : index
    %516 = vector.load %arg2[%c3_493, %c0_494] : memref<27x512xf32, #tpu.memory_space<vmem>>, vector<1x512xf32>
    %517 = vector.broadcast %516 : vector<1x512xf32> to vector<8x512xf32>
    %518 = arith.mulf %515, %517 : vector<8x512xf32>
    %c24_495 = arith.constant 24 : index
    %c0_496 = arith.constant 0 : index
    %519 = vector.load %arg13[%c24_495, %c0_496] : memref<216x512xf32, #tpu.memory_space<vmem>>, vector<8x512xf32>
    tpu.vector_store %arg13[%c24_495, %c0_496], %518 {strides = array<i32>} : memref<216x512xf32, #tpu.memory_space<vmem>>, vector<8x512xf32>,
    %c0_497 = arith.constant 0 : index
    %c64_498 = arith.constant 64 : index
    %520 = vector.load %arg12[%c0_497, %c64_498] : memref<8x768xf32, #tpu.memory_space<vmem>>, vector<8x512xf32>
    %c4_499 = arith.constant 4 : index
    %c0_500 = arith.constant 0 : index
    %521 = vector.load %arg2[%c4_499, %c0_500] : memref<27x512xf32, #tpu.memory_space<vmem>>, vector<1x512xf32>
    %522 = vector.broadcast %521 : vector<1x512xf32> to vector<8x512xf32>
    %523 = arith.mulf %520, %522 : vector<8x512xf32>
    %c32_501 = arith.constant 32 : index
    %c0_502 = arith.constant 0 : index
    %524 = vector.load %arg13[%c32_501, %c0_502] : memref<216x512xf32, #tpu.memory_space<vmem>>, vector<8x512xf32>
    tpu.vector_store %arg13[%c32_501, %c0_502], %523 {strides = array<i32>} : memref<216x512xf32, #tpu.memory_space<vmem>>, vector<8x512xf32>,
    %c0_503 = arith.constant 0 : index
    %c65_504 = arith.constant 65 : index
    %525 = vector.load %arg12[%c0_503, %c65_504] : memref<8x768xf32, #tpu.memory_space<vmem>>, vector<8x512xf32>
    %c5_505 = arith.constant 5 : index
    %c0_506 = arith.constant 0 : index
    %526 = vector.load %arg2[%c5_505, %c0_506] : memref<27x512xf32, #tpu.memory_space<vmem>>, vector<1x512xf32>
    %527 = vector.broadcast %526 : vector<1x512xf32> to vector<8x512xf32>
    %528 = arith.mulf %525, %527 : vector<8x512xf32>
    %c40_507 = arith.constant 40 : index
    %c0_508 = arith.constant 0 : index
    %529 = vector.load %arg13[%c40_507, %c0_508] : memref<216x512xf32, #tpu.memory_space<vmem>>, vector<8x512xf32>
    tpu.vector_store %arg13[%c40_507, %c0_508], %528 {strides = array<i32>} : memref<216x512xf32, #tpu.memory_space<vmem>>, vector<8x512xf32>,
    %c0_509 = arith.constant 0 : index
    %c71_510 = arith.constant 71 : index
    %530 = vector.load %arg12[%c0_509, %c71_510] : memref<8x768xf32, #tpu.memory_space<vmem>>, vector<8x512xf32>
    %c6_511 = arith.constant 6 : index
    %c0_512 = arith.constant 0 : index
    %531 = vector.load %arg2[%c6_511, %c0_512] : memref<27x512xf32, #tpu.memory_space<vmem>>, vector<1x512xf32>
    %532 = vector.broadcast %531 : vector<1x512xf32> to vector<8x512xf32>
    %533 = arith.mulf %530, %532 : vector<8x512xf32>
    %c48_513 = arith.constant 48 : index
    %c0_514 = arith.constant 0 : index
    %534 = vector.load %arg13[%c48_513, %c0_514] : memref<216x512xf32, #tpu.memory_space<vmem>>, vector<8x512xf32>
    tpu.vector_store %arg13[%c48_513, %c0_514], %533 {strides = array<i32>} : memref<216x512xf32, #tpu.memory_space<vmem>>, vector<8x512xf32>,
    %c0_515 = arith.constant 0 : index
    %c72_516 = arith.constant 72 : index
    %535 = vector.load %arg12[%c0_515, %c72_516] : memref<8x768xf32, #tpu.memory_space<vmem>>, vector<8x512xf32>
    %c7_517 = arith.constant 7 : index
    %c0_518 = arith.constant 0 : index
    %536 = vector.load %arg2[%c7_517, %c0_518] : memref<27x512xf32, #tpu.memory_space<vmem>>, vector<1x512xf32>
    %537 = vector.broadcast %536 : vector<1x512xf32> to vector<8x512xf32>
    %538 = arith.mulf %535, %537 : vector<8x512xf32>
    %c56_519 = arith.constant 56 : index
    %c0_520 = arith.constant 0 : index
    %539 = vector.load %arg13[%c56_519, %c0_520] : memref<216x512xf32, #tpu.memory_space<vmem>>, vector<8x512xf32>
    tpu.vector_store %arg13[%c56_519, %c0_520], %538 {strides = array<i32>} : memref<216x512xf32, #tpu.memory_space<vmem>>, vector<8x512xf32>,
    %c0_521 = arith.constant 0 : index
    %c73_522 = arith.constant 73 : index
    %540 = vector.load %arg12[%c0_521, %c73_522] : memref<8x768xf32, #tpu.memory_space<vmem>>, vector<8x512xf32>
    %c8_523 = arith.constant 8 : index
    %c0_524 = arith.constant 0 : index
    %541 = vector.load %arg2[%c8_523, %c0_524] : memref<27x512xf32, #tpu.memory_space<vmem>>, vector<1x512xf32>
    %542 = vector.broadcast %541 : vector<1x512xf32> to vector<8x512xf32>
    %543 = arith.mulf %540, %542 : vector<8x512xf32>
    %c64_525 = arith.constant 64 : index
    %c0_526 = arith.constant 0 : index
    %544 = vector.load %arg13[%c64_525, %c0_526] : memref<216x512xf32, #tpu.memory_space<vmem>>, vector<8x512xf32>
    tpu.vector_store %arg13[%c64_525, %c0_526], %543 {strides = array<i32>} : memref<216x512xf32, #tpu.memory_space<vmem>>, vector<8x512xf32>,
    %c0_527 = arith.constant 0 : index
    %c119_528 = arith.constant 119 : index
    %545 = vector.load %arg12[%c0_527, %c119_528] : memref<8x768xf32, #tpu.memory_space<vmem>>, vector<8x512xf32>
    %c9_529 = arith.constant 9 : index
    %c0_530 = arith.constant 0 : index
    %546 = vector.load %arg2[%c9_529, %c0_530] : memref<27x512xf32, #tpu.memory_space<vmem>>, vector<1x512xf32>
    %547 = vector.broadcast %546 : vector<1x512xf32> to vector<8x512xf32>
    %548 = arith.mulf %545, %547 : vector<8x512xf32>
    %c72_531 = arith.constant 72 : index
    %c0_532 = arith.constant 0 : index
    %549 = vector.load %arg13[%c72_531, %c0_532] : memref<216x512xf32, #tpu.memory_space<vmem>>, vector<8x512xf32>
    tpu.vector_store %arg13[%c72_531, %c0_532], %548 {strides = array<i32>} : memref<216x512xf32, #tpu.memory_space<vmem>>, vector<8x512xf32>,
    %c0_533 = arith.constant 0 : index
    %c120_534 = arith.constant 120 : index
    %550 = vector.load %arg12[%c0_533, %c120_534] : memref<8x768xf32, #tpu.memory_space<vmem>>, vector<8x512xf32>
    %c10_535 = arith.constant 10 : index
    %c0_536 = arith.constant 0 : index
    %551 = vector.load %arg2[%c10_535, %c0_536] : memref<27x512xf32, #tpu.memory_space<vmem>>, vector<1x512xf32>
    %552 = vector.broadcast %551 : vector<1x512xf32> to vector<8x512xf32>
    %553 = arith.mulf %550, %552 : vector<8x512xf32>
    %c80_537 = arith.constant 80 : index
    %c0_538 = arith.constant 0 : index
    %554 = vector.load %arg13[%c80_537, %c0_538] : memref<216x512xf32, #tpu.memory_space<vmem>>, vector<8x512xf32>
    tpu.vector_store %arg13[%c80_537, %c0_538], %553 {strides = array<i32>} : memref<216x512xf32, #tpu.memory_space<vmem>>, vector<8x512xf32>,
    %c0_539 = arith.constant 0 : index
    %c121_540 = arith.constant 121 : index
    %555 = vector.load %arg12[%c0_539, %c121_540] : memref<8x768xf32, #tpu.memory_space<vmem>>, vector<8x512xf32>
    %c11_541 = arith.constant 11 : index
    %c0_542 = arith.constant 0 : index
    %556 = vector.load %arg2[%c11_541, %c0_542] : memref<27x512xf32, #tpu.memory_space<vmem>>, vector<1x512xf32>
    %557 = vector.broadcast %556 : vector<1x512xf32> to vector<8x512xf32>
    %558 = arith.mulf %555, %557 : vector<8x512xf32>
    %c88_543 = arith.constant 88 : index
    %c0_544 = arith.constant 0 : index
    %559 = vector.load %arg13[%c88_543, %c0_544] : memref<216x512xf32, #tpu.memory_space<vmem>>, vector<8x512xf32>
    tpu.vector_store %arg13[%c88_543, %c0_544], %558 {strides = array<i32>} : memref<216x512xf32, #tpu.memory_space<vmem>>, vector<8x512xf32>,
    %c0_545 = arith.constant 0 : index
    %c127_546 = arith.constant 127 : index
    %560 = vector.load %arg12[%c0_545, %c127_546] : memref<8x768xf32, #tpu.memory_space<vmem>>, vector<8x512xf32>
    %c12_547 = arith.constant 12 : index
    %c0_548 = arith.constant 0 : index
    %561 = vector.load %arg2[%c12_547, %c0_548] : memref<27x512xf32, #tpu.memory_space<vmem>>, vector<1x512xf32>
    %562 = vector.broadcast %561 : vector<1x512xf32> to vector<8x512xf32>
    %563 = arith.mulf %560, %562 : vector<8x512xf32>
    %c96_549 = arith.constant 96 : index
    %c0_550 = arith.constant 0 : index
    %564 = vector.load %arg13[%c96_549, %c0_550] : memref<216x512xf32, #tpu.memory_space<vmem>>, vector<8x512xf32>
    tpu.vector_store %arg13[%c96_549, %c0_550], %563 {strides = array<i32>} : memref<216x512xf32, #tpu.memory_space<vmem>>, vector<8x512xf32>,
    %c0_551 = arith.constant 0 : index
    %c128_552 = arith.constant 128 : index
    %565 = vector.load %arg12[%c0_551, %c128_552] : memref<8x768xf32, #tpu.memory_space<vmem>>, vector<8x512xf32>
    %c104_553 = arith.constant 104 : index
    %c0_554 = arith.constant 0 : index
    %566 = vector.load %arg13[%c104_553, %c0_554] : memref<216x512xf32, #tpu.memory_space<vmem>>, vector<8x512xf32>
    tpu.vector_store %arg13[%c104_553, %c0_554], %565 {strides = array<i32>} : memref<216x512xf32, #tpu.memory_space<vmem>>, vector<8x512xf32>,
    %c0_555 = arith.constant 0 : index
    %c129_556 = arith.constant 129 : index
    %567 = vector.load %arg12[%c0_555, %c129_556] : memref<8x768xf32, #tpu.memory_space<vmem>>, vector<8x512xf32>
    %c14_557 = arith.constant 14 : index
    %c0_558 = arith.constant 0 : index
    %568 = vector.load %arg2[%c14_557, %c0_558] : memref<27x512xf32, #tpu.memory_space<vmem>>, vector<1x512xf32>
    %569 = vector.broadcast %568 : vector<1x512xf32> to vector<8x512xf32>
    %570 = arith.mulf %567, %569 : vector<8x512xf32>
    %c112_559 = arith.constant 112 : index
    %c0_560 = arith.constant 0 : index
    %571 = vector.load %arg13[%c112_559, %c0_560] : memref<216x512xf32, #tpu.memory_space<vmem>>, vector<8x512xf32>
    tpu.vector_store %arg13[%c112_559, %c0_560], %570 {strides = array<i32>} : memref<216x512xf32, #tpu.memory_space<vmem>>, vector<8x512xf32>,
    %c0_561 = arith.constant 0 : index
    %c135_562 = arith.constant 135 : index
    %572 = vector.load %arg12[%c0_561, %c135_562] : memref<8x768xf32, #tpu.memory_space<vmem>>, vector<8x512xf32>
    %c15_563 = arith.constant 15 : index
    %c0_564 = arith.constant 0 : index
    %573 = vector.load %arg2[%c15_563, %c0_564] : memref<27x512xf32, #tpu.memory_space<vmem>>, vector<1x512xf32>
    %574 = vector.broadcast %573 : vector<1x512xf32> to vector<8x512xf32>
    %575 = arith.mulf %572, %574 : vector<8x512xf32>
    %c120_565 = arith.constant 120 : index
    %c0_566 = arith.constant 0 : index
    %576 = vector.load %arg13[%c120_565, %c0_566] : memref<216x512xf32, #tpu.memory_space<vmem>>, vector<8x512xf32>
    tpu.vector_store %arg13[%c120_565, %c0_566], %575 {strides = array<i32>} : memref<216x512xf32, #tpu.memory_space<vmem>>, vector<8x512xf32>,
    %c0_567 = arith.constant 0 : index
    %c136_568 = arith.constant 136 : index
    %577 = vector.load %arg12[%c0_567, %c136_568] : memref<8x768xf32, #tpu.memory_space<vmem>>, vector<8x512xf32>
    %c16_569 = arith.constant 16 : index
    %c0_570 = arith.constant 0 : index
    %578 = vector.load %arg2[%c16_569, %c0_570] : memref<27x512xf32, #tpu.memory_space<vmem>>, vector<1x512xf32>
    %579 = vector.broadcast %578 : vector<1x512xf32> to vector<8x512xf32>
    %580 = arith.mulf %577, %579 : vector<8x512xf32>
    %c128_571 = arith.constant 128 : index
    %c0_572 = arith.constant 0 : index
    %581 = vector.load %arg13[%c128_571, %c0_572] : memref<216x512xf32, #tpu.memory_space<vmem>>, vector<8x512xf32>
    tpu.vector_store %arg13[%c128_571, %c0_572], %580 {strides = array<i32>} : memref<216x512xf32, #tpu.memory_space<vmem>>, vector<8x512xf32>,
    %c0_573 = arith.constant 0 : index
    %c137_574 = arith.constant 137 : index
    %582 = vector.load %arg12[%c0_573, %c137_574] : memref<8x768xf32, #tpu.memory_space<vmem>>, vector<8x512xf32>
    %c17_575 = arith.constant 17 : index
    %c0_576 = arith.constant 0 : index
    %583 = vector.load %arg2[%c17_575, %c0_576] : memref<27x512xf32, #tpu.memory_space<vmem>>, vector<1x512xf32>
    %584 = vector.broadcast %583 : vector<1x512xf32> to vector<8x512xf32>
    %585 = arith.mulf %582, %584 : vector<8x512xf32>
    %c136_577 = arith.constant 136 : index
    %c0_578 = arith.constant 0 : index
    %586 = vector.load %arg13[%c136_577, %c0_578] : memref<216x512xf32, #tpu.memory_space<vmem>>, vector<8x512xf32>
    tpu.vector_store %arg13[%c136_577, %c0_578], %585 {strides = array<i32>} : memref<216x512xf32, #tpu.memory_space<vmem>>, vector<8x512xf32>,
    %c0_579 = arith.constant 0 : index
    %c183_580 = arith.constant 183 : index
    %587 = vector.load %arg12[%c0_579, %c183_580] : memref<8x768xf32, #tpu.memory_space<vmem>>, vector<8x512xf32>
    %c18_581 = arith.constant 18 : index
    %c0_582 = arith.constant 0 : index
    %588 = vector.load %arg2[%c18_581, %c0_582] : memref<27x512xf32, #tpu.memory_space<vmem>>, vector<1x512xf32>
    %589 = vector.broadcast %588 : vector<1x512xf32> to vector<8x512xf32>
    %590 = arith.mulf %587, %589 : vector<8x512xf32>
    %c144_583 = arith.constant 144 : index
    %c0_584 = arith.constant 0 : index
    %591 = vector.load %arg13[%c144_583, %c0_584] : memref<216x512xf32, #tpu.memory_space<vmem>>, vector<8x512xf32>
    tpu.vector_store %arg13[%c144_583, %c0_584], %590 {strides = array<i32>} : memref<216x512xf32, #tpu.memory_space<vmem>>, vector<8x512xf32>,
    %c0_585 = arith.constant 0 : index
    %c184_586 = arith.constant 184 : index
    %592 = vector.load %arg12[%c0_585, %c184_586] : memref<8x768xf32, #tpu.memory_space<vmem>>, vector<8x512xf32>
    %c19_587 = arith.constant 19 : index
    %c0_588 = arith.constant 0 : index
    %593 = vector.load %arg2[%c19_587, %c0_588] : memref<27x512xf32, #tpu.memory_space<vmem>>, vector<1x512xf32>
    %594 = vector.broadcast %593 : vector<1x512xf32> to vector<8x512xf32>
    %595 = arith.mulf %592, %594 : vector<8x512xf32>
    %c152_589 = arith.constant 152 : index
    %c0_590 = arith.constant 0 : index
    %596 = vector.load %arg13[%c152_589, %c0_590] : memref<216x512xf32, #tpu.memory_space<vmem>>, vector<8x512xf32>
    tpu.vector_store %arg13[%c152_589, %c0_590], %595 {strides = array<i32>} : memref<216x512xf32, #tpu.memory_space<vmem>>, vector<8x512xf32>,
    %c0_591 = arith.constant 0 : index
    %c185_592 = arith.constant 185 : index
    %597 = vector.load %arg12[%c0_591, %c185_592] : memref<8x768xf32, #tpu.memory_space<vmem>>, vector<8x512xf32>
    %c20_593 = arith.constant 20 : index
    %c0_594 = arith.constant 0 : index
    %598 = vector.load %arg2[%c20_593, %c0_594] : memref<27x512xf32, #tpu.memory_space<vmem>>, vector<1x512xf32>
    %599 = vector.broadcast %598 : vector<1x512xf32> to vector<8x512xf32>
    %600 = arith.mulf %597, %599 : vector<8x512xf32>
    %c160_595 = arith.constant 160 : index
    %c0_596 = arith.constant 0 : index
    %601 = vector.load %arg13[%c160_595, %c0_596] : memref<216x512xf32, #tpu.memory_space<vmem>>, vector<8x512xf32>
    tpu.vector_store %arg13[%c160_595, %c0_596], %600 {strides = array<i32>} : memref<216x512xf32, #tpu.memory_space<vmem>>, vector<8x512xf32>,
    %c0_597 = arith.constant 0 : index
    %c191_598 = arith.constant 191 : index
    %602 = vector.load %arg12[%c0_597, %c191_598] : memref<8x768xf32, #tpu.memory_space<vmem>>, vector<8x512xf32>
    %c21_599 = arith.constant 21 : index
    %c0_600 = arith.constant 0 : index
    %603 = vector.load %arg2[%c21_599, %c0_600] : memref<27x512xf32, #tpu.memory_space<vmem>>, vector<1x512xf32>
    %604 = vector.broadcast %603 : vector<1x512xf32> to vector<8x512xf32>
    %605 = arith.mulf %602, %604 : vector<8x512xf32>
    %c168_601 = arith.constant 168 : index
    %c0_602 = arith.constant 0 : index
    %606 = vector.load %arg13[%c168_601, %c0_602] : memref<216x512xf32, #tpu.memory_space<vmem>>, vector<8x512xf32>
    tpu.vector_store %arg13[%c168_601, %c0_602], %605 {strides = array<i32>} : memref<216x512xf32, #tpu.memory_space<vmem>>, vector<8x512xf32>,
    %c0_603 = arith.constant 0 : index
    %c192_604 = arith.constant 192 : index
    %607 = vector.load %arg12[%c0_603, %c192_604] : memref<8x768xf32, #tpu.memory_space<vmem>>, vector<8x512xf32>
    %c22_605 = arith.constant 22 : index
    %c0_606 = arith.constant 0 : index
    %608 = vector.load %arg2[%c22_605, %c0_606] : memref<27x512xf32, #tpu.memory_space<vmem>>, vector<1x512xf32>
    %609 = vector.broadcast %608 : vector<1x512xf32> to vector<8x512xf32>
    %610 = arith.mulf %607, %609 : vector<8x512xf32>
    %c176_607 = arith.constant 176 : index
    %c0_608 = arith.constant 0 : index
    %611 = vector.load %arg13[%c176_607, %c0_608] : memref<216x512xf32, #tpu.memory_space<vmem>>, vector<8x512xf32>
    tpu.vector_store %arg13[%c176_607, %c0_608], %610 {strides = array<i32>} : memref<216x512xf32, #tpu.memory_space<vmem>>, vector<8x512xf32>,
    %c0_609 = arith.constant 0 : index
    %c193_610 = arith.constant 193 : index
    %612 = vector.load %arg12[%c0_609, %c193_610] : memref<8x768xf32, #tpu.memory_space<vmem>>, vector<8x512xf32>
    %c23_611 = arith.constant 23 : index
    %c0_612 = arith.constant 0 : index
    %613 = vector.load %arg2[%c23_611, %c0_612] : memref<27x512xf32, #tpu.memory_space<vmem>>, vector<1x512xf32>
    %614 = vector.broadcast %613 : vector<1x512xf32> to vector<8x512xf32>
    %615 = arith.mulf %612, %614 : vector<8x512xf32>
    %c184_613 = arith.constant 184 : index
    %c0_614 = arith.constant 0 : index
    %616 = vector.load %arg13[%c184_613, %c0_614] : memref<216x512xf32, #tpu.memory_space<vmem>>, vector<8x512xf32>
    tpu.vector_store %arg13[%c184_613, %c0_614], %615 {strides = array<i32>} : memref<216x512xf32, #tpu.memory_space<vmem>>, vector<8x512xf32>,
    %c0_615 = arith.constant 0 : index
    %c199_616 = arith.constant 199 : index
    %617 = vector.load %arg12[%c0_615, %c199_616] : memref<8x768xf32, #tpu.memory_space<vmem>>, vector<8x512xf32>
    %c24_617 = arith.constant 24 : index
    %c0_618 = arith.constant 0 : index
    %618 = vector.load %arg2[%c24_617, %c0_618] : memref<27x512xf32, #tpu.memory_space<vmem>>, vector<1x512xf32>
    %619 = vector.broadcast %618 : vector<1x512xf32> to vector<8x512xf32>
    %620 = arith.mulf %617, %619 : vector<8x512xf32>
    %c192_619 = arith.constant 192 : index
    %c0_620 = arith.constant 0 : index
    %621 = vector.load %arg13[%c192_619, %c0_620] : memref<216x512xf32, #tpu.memory_space<vmem>>, vector<8x512xf32>
    tpu.vector_store %arg13[%c192_619, %c0_620], %620 {strides = array<i32>} : memref<216x512xf32, #tpu.memory_space<vmem>>, vector<8x512xf32>,
    %c0_621 = arith.constant 0 : index
    %c200_622 = arith.constant 200 : index
    %622 = vector.load %arg12[%c0_621, %c200_622] : memref<8x768xf32, #tpu.memory_space<vmem>>, vector<8x512xf32>
    %c25_623 = arith.constant 25 : index
    %c0_624 = arith.constant 0 : index
    %623 = vector.load %arg2[%c25_623, %c0_624] : memref<27x512xf32, #tpu.memory_space<vmem>>, vector<1x512xf32>
    %624 = vector.broadcast %623 : vector<1x512xf32> to vector<8x512xf32>
    %625 = arith.mulf %622, %624 : vector<8x512xf32>
    %c200_625 = arith.constant 200 : index
    %c0_626 = arith.constant 0 : index
    %626 = vector.load %arg13[%c200_625, %c0_626] : memref<216x512xf32, #tpu.memory_space<vmem>>, vector<8x512xf32>
    tpu.vector_store %arg13[%c200_625, %c0_626], %625 {strides = array<i32>} : memref<216x512xf32, #tpu.memory_space<vmem>>, vector<8x512xf32>,
    %c0_627 = arith.constant 0 : index
    %c201_628 = arith.constant 201 : index
    %627 = vector.load %arg12[%c0_627, %c201_628] : memref<8x768xf32, #tpu.memory_space<vmem>>, vector<8x512xf32>
    %c26_629 = arith.constant 26 : index
    %c0_630 = arith.constant 0 : index
    %628 = vector.load %arg2[%c26_629, %c0_630] : memref<27x512xf32, #tpu.memory_space<vmem>>, vector<1x512xf32>
    %629 = vector.broadcast %628 : vector<1x512xf32> to vector<8x512xf32>
    %630 = arith.mulf %627, %629 : vector<8x512xf32>
    %c208_631 = arith.constant 208 : index
    %c0_632 = arith.constant 0 : index
    %631 = vector.load %arg13[%c208_631, %c0_632] : memref<216x512xf32, #tpu.memory_space<vmem>>, vector<8x512xf32>
    tpu.vector_store %arg13[%c208_631, %c0_632], %630 {strides = array<i32>} : memref<216x512xf32, #tpu.memory_space<vmem>>, vector<8x512xf32>,
    %c0_633 = arith.constant 0 : index
    %c0_634 = arith.constant 0 : index
    %632 = vector.load %arg13[%c0_633, %c0_634] : memref<216x512xf32, #tpu.memory_space<vmem>>, vector<216x512xf32>
    %633 = arith.truncf %632 : vector<216x512xf32> to vector<216x512xbf16>
    %c0_635 = arith.constant 0 : index
    %c0_636 = arith.constant 0 : index
    %634 = vector.load %arg9[%c0_635, %c0_636] : memref<8x216xbf16, #tpu.memory_space<vmem>>, vector<8x216xbf16>
    %cst_637 = arith.constant dense<0.000000e+00> : vector<8x512xf32>
    %635 = tpu.matmul %634, %633, %cst_637 {dimension_numbers = #tpu.dot_dimension_numbers<[1], [0], [0], [1], [0, 0, 1, 1], [], []>} : vector<8x216xbf16>, vector<216x512xbf16>, vector<8x512xf32> -> vector<8x512xf32>
    %c0_638 = arith.constant 0 : index
    %c0_639 = arith.constant 0 : index
    %636 = vector.load %arg10[%c0_638, %c0_639] : memref<8x1xf32, #tpu.memory_space<vmem>>, vector<8x1xf32>
    %637 = vector.broadcast %636 : vector<8x1xf32> to vector<8x512xf32>
    %638 = arith.addf %635, %637 : vector<8x512xf32>
    %c0_640 = arith.constant 0 : index
    %c0_641 = arith.constant 0 : index
    %c0_642 = arith.constant 0 : index
    %639 = vector.load %arg11[%c0_640, %c0_641, %c0_642] : memref<1x8x512xf32, #tpu.memory_space<vmem>>, vector<1x8x512xf32>
    %640 = vector.shape_cast %639 : vector<1x8x512xf32> to vector<8x512xf32>
    %641 = vector.shape_cast %638 : vector<8x512xf32> to vector<1x8x512xf32>
    tpu.vector_store %arg11[%c0_640, %c0_641, %c0_642], %641 {strides = array<i32>} : memref<1x8x512xf32, #tpu.memory_space<vmem>>, vector<1x8x512xf32>,
    return
  }
  func.func @transform_0(%arg0: i32) -> (i32, i32, i32) {
    %c0_i32 = arith.constant 0 : i32
    %c0_i32_0 = arith.constant 0 : i32
    %c0_i32_1 = arith.constant 0 : i32
    return %arg0, %c0_i32, %c0_i32_0 : i32, i32, i32
  }
  func.func @transform_1(%arg0: i32) -> (i32, i32) {
    %c0_i32 = arith.constant 0 : i32
    %c0_i32_0 = arith.constant 0 : i32
    %c0_i32_1 = arith.constant 0 : i32
    return %c0_i32, %c0_i32_0 : i32, i32
  }
  func.func @transform_2(%arg0: i32) -> (i32, i32) {
    %c0_i32 = arith.constant 0 : i32
    %c0_i32_0 = arith.constant 0 : i32
    %c0_i32_1 = arith.constant 0 : i32
    return %c0_i32, %c0_i32_0 : i32, i32
  }
  func.func @transform_3(%arg0: i32) -> (i32, i32) {
    %c0_i32 = arith.constant 0 : i32
    %c0_i32_0 = arith.constant 0 : i32
    %c0_i32_1 = arith.constant 0 : i32
    return %c0_i32, %c0_i32_0 : i32, i32
  }
  func.func @transform_4(%arg0: i32) -> (i32, i32) {
    %c0_i32 = arith.constant 0 : i32
    %c0_i32_0 = arith.constant 0 : i32
    %c0_i32_1 = arith.constant 0 : i32
    return %c0_i32, %c0_i32_0 : i32, i32
  }
  func.func @transform_5(%arg0: i32) -> (i32, i32) {
    %c0_i32 = arith.constant 0 : i32
    %c0_i32_0 = arith.constant 0 : i32
    %c0_i32_1 = arith.constant 0 : i32
    return %c0_i32, %c0_i32_0 : i32, i32
  }
  func.func @transform_6(%arg0: i32) -> (i32, i32) {
    %c0_i32 = arith.constant 0 : i32
    %c0_i32_0 = arith.constant 0 : i32
    %c0_i32_1 = arith.constant 0 : i32
    return %c0_i32, %c0_i32_0 : i32, i32
  }
  func.func @transform_7(%arg0: i32) -> (i32, i32) {
    %c0_i32 = arith.constant 0 : i32
    %c0_i32_0 = arith.constant 0 : i32
    %c0_i32_1 = arith.constant 0 : i32
    return %c0_i32, %c0_i32_0 : i32, i32
  }
  func.func @transform_8(%arg0: i32) -> (i32, i32) {
    %c0_i32 = arith.constant 0 : i32
    %c0_i32_0 = arith.constant 0 : i32
    %c0_i32_1 = arith.constant 0 : i32
    return %c0_i32, %c0_i32_0 : i32, i32
  }
  func.func @transform_9(%arg0: i32) -> (i32, i32) {
    %c0_i32 = arith.constant 0 : i32
    %c0_i32_0 = arith.constant 0 : i32
    %c0_i32_1 = arith.constant 0 : i32
    return %c0_i32, %c0_i32_0 : i32, i32
  }
  func.func @transform_10(%arg0: i32) -> (i32, i32, i32) {
    %c0_i32 = arith.constant 0 : i32
    %c0_i32_0 = arith.constant 0 : i32
    %c0_i32_1 = arith.constant 0 : i32
    return %arg0, %c0_i32, %c0_i32_0 : i32, i32, i32
  }
}

</mosaic_0001>

<llo_original>
// kernel: block_forward.1
$region0: #{block_forward.1}
  #allocation0 [shape = 'u32[]', space=smem, size = 0x4, offset = 0x4, fixed_abs, tag = 'smem constant byte address 0x4 - core index']
  #allocation1 [shape = 'u32[144,128]{1,0:T(1,128)}', space=vmem, size = 0x12000, scoped, tag = 'internal scratch']
  #allocation2 [shape = 'f32[8,768]{1,0:T(8,128)}', space=vmem, size = 0x6000, scoped, tag = 'scratch operand']
  #allocation3 [shape = 'f32[216,512]{1,0:T(8,128)}', space=vmem, size = 0x6c000, scoped, tag = 'scratch operand']
  %s0 = inlined_call_operand.vmem [shape: f32[2,8,512], index: 0, kind: input, shape index: {}]
  %s1 = inlined_call_operand.vmem [shape: f32[27,512], index: 1, kind: input, shape index: {}]
  %s2 = inlined_call_operand.vmem [shape: bf16[8,216], index: 2, kind: input, shape index: {}]
  %s3 = inlined_call_operand.vmem [shape: f32[8,1], index: 3, kind: input, shape index: {}]
  %s4 = inlined_call_operand.vmem [shape: bf16[8,216], index: 4, kind: input, shape index: {}]
  %s5 = inlined_call_operand.vmem [shape: f32[8,1], index: 5, kind: input, shape index: {}]
  %s6 = inlined_call_operand.vmem [shape: bf16[8,216], index: 6, kind: input, shape index: {}]
  %s7 = inlined_call_operand.vmem [shape: f32[8,1], index: 7, kind: input, shape index: {}]
  %s8 = inlined_call_operand.vmem [shape: bf16[8,216], index: 8, kind: input, shape index: {}]
  %s9 = inlined_call_operand.vmem [shape: f32[8,1], index: 9, kind: input, shape index: {}]
  %s10 = inlined_call_operand.vmem [shape: f32[2,8,512], index: 10, kind: output, shape index: {}]
  %s11 = sld [smem:[#allocation0]]
  $region73: #{block_forward.1} parent=0
    _
  %s13 = ssub.s32 1, %s11
  %s14 = scalar_select 0, %s13, %s11
  loop: start=0, step=1, limit=4
  $region2: #{block_forward.1} parent=0 // loop_pre_header
    _
  $region3: #{block_forward.1} parent=0 // loop_header
    %s16 = sphi 0, %s20
    %p17 = scmp.ge.s32.totalorder %s16, 4
    %s26 = sphi 0, %s28
    %s29 = sphi 0, %s26
    %s30 = sphi 0, %s29
    %s46 = sphi 0, %s30
    %s50 = sphi 0, %s50
    %s52 = sphi 0, %s50
    %s53 = sphi 0, %s52
    %s67 = sphi 0, %s53
    %s71 = sphi 0, %s71
    %s73 = sphi 0, %s71
    %s74 = sphi 0, %s73
    %s88 = sphi 0, %s74
    %s92 = sphi 0, %s92
    %s94 = sphi 0, %s92
    %s95 = sphi 0, %s94
    %s109 = sphi 0, %s95
    %s113 = sphi 0, %s113
    %s115 = sphi 0, %s113
    %s116 = sphi 0, %s115
    %s130 = sphi 0, %s116
    %s134 = sphi 0, %s134
    %s136 = sphi 0, %s134
    %s137 = sphi 0, %s136
    %s151 = sphi 0, %s137
    %s155 = sphi 0, %s155
    %s157 = sphi 0, %s155
    %s158 = sphi 0, %s157
    %s172 = sphi 0, %s158
    %s176 = sphi 0, %s176
    %s178 = sphi 0, %s176
    %s179 = sphi 0, %s178
    %s193 = sphi 0, %s179
    %s197 = sphi 0, %s197
    %s199 = sphi 0, %s197
    %s200 = sphi 0, %s199
    %s214 = sphi 0, %s200
    %s218 = sphi 0, %s218
    %s220 = sphi 0, %s218
    %s221 = sphi 0, %s220
    %s235 = sphi 0, %s221
    %s241 = sphi 0, %s243
    %s244 = sphi 0, %s241
    %s245 = sphi 0, %s244
    %s261 = sphi 0, %s245
  $region4: #{block_forward.1} parent=0 // loop_header_branch
    %19 = sbr.rel (%p17) target = $region8
  $region5: #{block_forward.1} parent=0 // loop_body
    %s21 = ssub.s32 %s16, 1
    %s22 = ssub.s32 %s16, 2
    %s23 = sadd.s32 %s16, 1
    %s24 = ssub.s32 %s16, %s23
    %p25 = scmp.eq.s32.totalorder %s24, 0
    %s27 = sadd.s32 %s26, 1
    %s28 = scalar_select %p25, %s26, %s27
    %p31 = pneg %p25
    %p32 = scmp.eq.s32.totalorder %s16, 1
    %p33 = por %p31, %p32
    %p34 = scmp.ne.s32.totalorder %s26, %s29
    %p35 = scmp.eq.s32.totalorder %s16, 0
    %p36 = por %p34, %p35
    %p37 = scmp.ne.s32.totalorder %s26, %s29
    %p38 = scmp.eq.s32.totalorder %s21, 1
    %p39 = por %p37, %p38
    %p40 = scmp.ne.s32.totalorder %s29, %s30
    %p41 = scmp.eq.s32.totalorder %s21, 0
    %p42 = por %p40, %p41
    %p43 = scmp.ne.s32.totalorder %s29, %s30
    %p44 = scmp.eq.s32.totalorder %s22, 1
    %p45 = por %p43, %p44
    %p47 = scmp.ne.s32.totalorder %s30, %s46
    %p48 = scmp.eq.s32.totalorder %s22, 0
    %p49 = por %p47, %p48
    %s51 = sadd.s32 %s50, 1
    %p54 = scmp.eq.s32.totalorder %s16, 1
    %p55 = scmp.ne.s32.totalorder %s50, %s52
    %p56 = scmp.eq.s32.totalorder %s16, 0
    %p57 = por %p55, %p56
    %p58 = scmp.ne.s32.totalorder %s50, %s52
    %p59 = scmp.eq.s32.totalorder %s21, 1
    %p60 = por %p58, %p59
    %p61 = scmp.ne.s32.totalorder %s52, %s53
    %p62 = scmp.eq.s32.totalorder %s21, 0
    %p63 = por %p61, %p62
    %p64 = scmp.ne.s32.totalorder %s52, %s53
    %p65 = scmp.eq.s32.totalorder %s22, 1
    %p66 = por %p64, %p65
    %p68 = scmp.ne.s32.totalorder %s53, %s67
    %p69 = scmp.eq.s32.totalorder %s22, 0
    %p70 = por %p68, %p69
    %s72 = sadd.s32 %s71, 1
    %p75 = scmp.eq.s32.totalorder %s16, 1
    %p76 = scmp.ne.s32.totalorder %s71, %s73
    %p77 = scmp.eq.s32.totalorder %s16, 0
    %p78 = por %p76, %p77
    %p79 = scmp.ne.s32.totalorder %s71, %s73
    %p80 = scmp.eq.s32.totalorder %s21, 1
    %p81 = por %p79, %p80
    %p82 = scmp.ne.s32.totalorder %s73, %s74
    %p83 = scmp.eq.s32.totalorder %s21, 0
    %p84 = por %p82, %p83
    %p85 = scmp.ne.s32.totalorder %s73, %s74
    %p86 = scmp.eq.s32.totalorder %s22, 1
    %p87 = por %p85, %p86
    %p89 = scmp.ne.s32.totalorder %s74, %s88
    %p90 = scmp.eq.s32.totalorder %s22, 0
    %p91 = por %p89, %p90
    %s93 = sadd.s32 %s92, 1
    %p96 = scmp.eq.s32.totalorder %s16, 1
    %p97 = scmp.ne.s32.totalorder %s92, %s94
    %p98 = scmp.eq.s32.totalorder %s16, 0
    %p99 = por %p97, %p98
    %p100 = scmp.ne.s32.totalorder %s92, %s94
    %p101 = scmp.eq.s32.totalorder %s21, 1
    %p102 = por %p100, %p101
    %p103 = scmp.ne.s32.totalorder %s94, %s95
    %p104 = scmp.eq.s32.totalorder %s21, 0
    %p105 = por %p103, %p104
    %p106 = scmp.ne.s32.totalorder %s94, %s95
    %p107 = scmp.eq.s32.totalorder %s22, 1
    %p108 = por %p106, %p107
    %p110 = scmp.ne.s32.totalorder %s95, %s109
    %p111 = scmp.eq.s32.totalorder %s22, 0
    %p112 = por %p110, %p111
    %s114 = sadd.s32 %s113, 1
    %p117 = scmp.eq.s32.totalorder %s16, 1
    %p118 = scmp.ne.s32.totalorder %s113, %s115
    %p119 = scmp.eq.s32.totalorder %s16, 0
    %p120 = por %p118, %p119
    %p121 = scmp.ne.s32.totalorder %s113, %s115
    %p122 = scmp.eq.s32.totalorder %s21, 1
    %p123 = por %p121, %p122
    %p124 = scmp.ne.s32.totalorder %s115, %s116
    %p125 = scmp.eq.s32.totalorder %s21, 0
    %p126 = por %p124, %p125
    %p127 = scmp.ne.s32.totalorder %s115, %s116
    %p128 = scmp.eq.s32.totalorder %s22, 1
    %p129 = por %p127, %p128
    %p131 = scmp.ne.s32.totalorder %s116, %s130
    %p132 = scmp.eq.s32.totalorder %s22, 0
    %p133 = por %p131, %p132
    %s135 = sadd.s32 %s134, 1
    %p138 = scmp.eq.s32.totalorder %s16, 1
    %p139 = scmp.ne.s32.totalorder %s134, %s136
    %p140 = scmp.eq.s32.totalorder %s16, 0
    %p141 = por %p139, %p140
    %p142 = scmp.ne.s32.totalorder %s134, %s136
    %p143 = scmp.eq.s32.totalorder %s21, 1
    %p144 = por %p142, %p143
    %p145 = scmp.ne.s32.totalorder %s136, %s137
    %p146 = scmp.eq.s32.totalorder %s21, 0
    %p147 = por %p145, %p146
    %p148 = scmp.ne.s32.totalorder %s136, %s137
    %p149 = scmp.eq.s32.totalorder %s22, 1
    %p150 = por %p148, %p149
    %p152 = scmp.ne.s32.totalorder %s137, %s151
    %p153 = scmp.eq.s32.totalorder %s22, 0
    %p154 = por %p152, %p153
    %s156 = sadd.s32 %s155, 1
    %p159 = scmp.eq.s32.totalorder %s16, 1
    %p160 = scmp.ne.s32.totalorder %s155, %s157
    %p161 = scmp.eq.s32.totalorder %s16, 0
    %p162 = por %p160, %p161
    %p163 = scmp.ne.s32.totalorder %s155, %s157
    %p164 = scmp.eq.s32.totalorder %s21, 1
    %p165 = por %p163, %p164
    %p166 = scmp.ne.s32.totalorder %s157, %s158
    %p167 = scmp.eq.s32.totalorder %s21, 0
    %p168 = por %p166, %p167
    %p169 = scmp.ne.s32.totalorder %s157, %s158
    %p170 = scmp.eq.s32.totalorder %s22, 1
    %p171 = por %p169, %p170
    %p173 = scmp.ne.s32.totalorder %s158, %s172
    %p174 = scmp.eq.s32.totalorder %s22, 0
    %p175 = por %p173, %p174
    %s177 = sadd.s32 %s176, 1
    %p180 = scmp.eq.s32.totalorder %s16, 1
    %p181 = scmp.ne.s32.totalorder %s176, %s178
    %p182 = scmp.eq.s32.totalorder %s16, 0
    %p183 = por %p181, %p182
    %p184 = scmp.ne.s32.totalorder %s176, %s178
    %p185 = scmp.eq.s32.totalorder %s21, 1
    %p186 = por %p184, %p185
    %p187 = scmp.ne.s32.totalorder %s178, %s179
    %p188 = scmp.eq.s32.totalorder %s21, 0
    %p189 = por %p187, %p188
    %p190 = scmp.ne.s32.totalorder %s178, %s179
    %p191 = scmp.eq.s32.totalorder %s22, 1
    %p192 = por %p190, %p191
    %p194 = scmp.ne.s32.totalorder %s179, %s193
    %p195 = scmp.eq.s32.totalorder %s22, 0
    %p196 = por %p194, %p195
    %s198 = sadd.s32 %s197, 1
    %p201 = scmp.eq.s32.totalorder %s16, 1
    %p202 = scmp.ne.s32.totalorder %s197, %s199
    %p203 = scmp.eq.s32.totalorder %s16, 0
    %p204 = por %p202, %p203
    %p205 = scmp.ne.s32.totalorder %s197, %s199
    %p206 = scmp.eq.s32.totalorder %s21, 1
    %p207 = por %p205, %p206
    %p208 = scmp.ne.s32.totalorder %s199, %s200
    %p209 = scmp.eq.s32.totalorder %s21, 0
    %p210 = por %p208, %p209
    %p211 = scmp.ne.s32.totalorder %s199, %s200
    %p212 = scmp.eq.s32.totalorder %s22, 1
    %p213 = por %p211, %p212
    %p215 = scmp.ne.s32.totalorder %s200, %s214
    %p216 = scmp.eq.s32.totalorder %s22, 0
    %p217 = por %p215, %p216
    %s219 = sadd.s32 %s218, 1
    %p222 = scmp.eq.s32.totalorder %s16, 1
    %p223 = scmp.ne.s32.totalorder %s218, %s220
    %p224 = scmp.eq.s32.totalorder %s16, 0
    %p225 = por %p223, %p224
    %p226 = scmp.ne.s32.totalorder %s218, %s220
    %p227 = scmp.eq.s32.totalorder %s21, 1
    %p228 = por %p226, %p227
    %p229 = scmp.ne.s32.totalorder %s220, %s221
    %p230 = scmp.eq.s32.totalorder %s21, 0
    %p231 = por %p229, %p230
    %p232 = scmp.ne.s32.totalorder %s220, %s221
    %p233 = scmp.eq.s32.totalorder %s22, 1
    %p234 = por %p232, %p233
    %p236 = scmp.ne.s32.totalorder %s221, %s235
    %p237 = scmp.eq.s32.totalorder %s22, 0
    %p238 = por %p236, %p237
    %s239 = ssub.s32 %s16, %s23
    %p240 = scmp.eq.s32.totalorder %s239, 0
    %s242 = sadd.s32 %s241, 1
    %s243 = scalar_select %p240, %s241, %s242
    %p246 = pneg %p240
    %p247 = scmp.eq.s32.totalorder %s16, 1
    %p248 = por %p246, %p247
    %p249 = scmp.ne.s32.totalorder %s241, %s244
    %p250 = scmp.eq.s32.totalorder %s16, 0
    %p251 = por %p249, %p250
    %p252 = scmp.ne.s32.totalorder %s241, %s244
    %p253 = scmp.eq.s32.totalorder %s21, 1
    %p254 = por %p252, %p253
    %p255 = scmp.ne.s32.totalorder %s244, %s245
    %p256 = scmp.eq.s32.totalorder %s21, 0
    %p257 = por %p255, %p256
    %p258 = scmp.ne.s32.totalorder %s244, %s245
    %p259 = scmp.eq.s32.totalorder %s22, 1
    %p260 = por %p258, %p259
    %p262 = scmp.ne.s32.totalorder %s245, %s261
    %p263 = scmp.eq.s32.totalorder %s22, 0
    %p264 = por %p262, %p263
    %p265 = scmp.le.s32.totalorder 1, %s16
    %p266 = scmp.lt.s32.totalorder %s16, 3
    %p267 = pnand %p265, %p266
    %p268 = pneg %p267
    // Predicated region
    $region9: #{block_forward.1} parent=5 // pred_check
      _
    $region10: #{block_forward.1} parent=5 // pred_check_branch
      %270 = sbr.rel (%p267) target = $region12
    $region11: #{block_forward.1} parent=5 // pred_region
      %s271 = ssub.s32 %s16, 1
      // Predicated region
      $region13: #{block_forward.1} parent=11 // pred_check
        %p272 = pneg %p63
      $region14: #{block_forward.1} parent=11 // pred_check_branch
        %274 = sbr.rel (%p272) target = $region16
      $region15: #{block_forward.1} parent=11 // pred_region
        _
      $region16: #{block_forward.1} parent=11 // pred_fallthru
        _
      // Predicated region
      $region17: #{block_forward.1} parent=11 // pred_check
        %p275 = pneg %p84
      $region18: #{block_forward.1} parent=11 // pred_check_branch
        %277 = sbr.rel (%p275) target = $region20
      $region19: #{block_forward.1} parent=11 // pred_region
        _
      $region20: #{block_forward.1} parent=11 // pred_fallthru
        _
      // Predicated region
      $region21: #{block_forward.1} parent=11 // pred_check
        %p278 = pneg %p105
      $region22: #{block_forward.1} parent=11 // pred_check_branch
        %280 = sbr.rel (%p278) target = $region24
      $region23: #{block_forward.1} parent=11 // pred_region
        _
      $region24: #{block_forward.1} parent=11 // pred_fallthru
        _
      // Predicated region
      $region25: #{block_forward.1} parent=11 // pred_check
        %p281 = pneg %p126
      $region26: #{block_forward.1} parent=11 // pred_check_branch
        %283 = sbr.rel (%p281) target = $region28
      $region27: #{block_forward.1} parent=11 // pred_region
        _
      $region28: #{block_forward.1} parent=11 // pred_fallthru
        _
      // Predicated region
      $region29: #{block_forward.1} parent=11 // pred_check
        %p284 = pneg %p147
      $region30: #{block_forward.1} parent=11 // pred_check_branch
        %286 = sbr.rel (%p284) target = $region32
      $region31: #{block_forward.1} parent=11 // pred_region
        _
      $region32: #{block_forward.1} parent=11 // pred_fallthru
        _
      // Predicated region
      $region33: #{block_forward.1} parent=11 // pred_check
        %p287 = pneg %p168
      $region34: #{block_forward.1} parent=11 // pred_check_branch
        %289 = sbr.rel (%p287) target = $region36
      $region35: #{block_forward.1} parent=11 // pred_region
        _
      $region36: #{block_forward.1} parent=11 // pred_fallthru
        _
      // Predicated region
      $region37: #{block_forward.1} parent=11 // pred_check
        %p290 = pneg %p189
      $region38: #{block_forward.1} parent=11 // pred_check_branch
        %292 = sbr.rel (%p290) target = $region40
      $region39: #{block_forward.1} parent=11 // pred_region
        _
      $region40: #{block_forward.1} parent=11 // pred_fallthru
        _
      // Predicated region
      $region41: #{block_forward.1} parent=11 // pred_check
        %p293 = pneg %p210
      $region42: #{block_forward.1} parent=11 // pred_check_branch
        %295 = sbr.rel (%p293) target = $region44
      $region43: #{block_forward.1} parent=11 // pred_region
        _
      $region44: #{block_forward.1} parent=11 // pred_fallthru
        _
      // Predicated region
      $region45: #{block_forward.1} parent=11 // pred_check
        %p296 = pneg %p231
      $region46: #{block_forward.1} parent=11 // pred_check_branch
        %298 = sbr.rel (%p296) target = $region48
      $region47: #{block_forward.1} parent=11 // pred_region
        _
      $region48: #{block_forward.1} parent=11 // pred_fallthru
        _
    $region12: #{block_forward.1} parent=5 // pred_fallthru
      _
    %p299 = scmp.lt.s32.totalorder %s16, 2
    // Predicated region
    $region49: #{block_forward.1} parent=5 // pred_check
      %p300 = pneg %p299
    $region50: #{block_forward.1} parent=5 // pred_check_branch
      %302 = sbr.rel (%p300) target = $region52
    $region51: #{block_forward.1} parent=5 // pred_region
      // Predicated region
      $region53: #{block_forward.1} parent=51 // pred_check
        %p303 = pneg %p36
      $region54: #{block_forward.1} parent=51 // pred_check_branch
        %305 = sbr.rel (%p303) target = $region56
      $region55: #{block_forward.1} parent=51 // pred_region
        %p306 = scmp.lt.s32.totalorder %s16, 1
        %s307 = scalar_select %p306, %s16, 1
        %s308 = smul.addr %s307, 4
        %s309 = smul.addr %s308, 8
        %s310 = scalar_lea.vmem %s0, %s309
      $region56: #{block_forward.1} parent=51 // pred_fallthru
        _
    $region52: #{block_forward.1} parent=5 // pred_fallthru
      _
    %p311 = scmp.le.s32.totalorder 1, %s16
    %p312 = scmp.lt.s32.totalorder %s16, 3
    %p313 = pnand %p311, %p312
    %p314 = pneg %p313
    // Predicated region
    $region57: #{block_forward.1} parent=5 // pred_check
      _
    $region58: #{block_forward.1} parent=5 // pred_check_branch
      %316 = sbr.rel (%p313) target = $region60
    $region59: #{block_forward.1} parent=5 // pred_region
      %s317 = ssub.s32 %s16, 1
      %p318 = scmp.lt.s32.totalorder %s21, 1
      %s319 = scalar_select %p318, %s21, 1
      %s320 = smul.addr %s319, 4
      %s321 = smul.addr %s320, 8
      %s322 = scalar_lea.vmem %s0, %s321
      %p323 = pneg %p42
      %p324 = pneg %p39
      %p325 = pneg %p63
      %p326 = pneg %p60
      %p327 = pneg %p84
      %p328 = pneg %p81
      %p329 = pneg %p105
      %p330 = pneg %p102
      %p331 = pneg %p126
      %p332 = pneg %p123
      %p333 = pneg %p147
      %p334 = pneg %p144
      %p335 = pneg %p168
      %p336 = pneg %p165
      %p337 = pneg %p189
      %p338 = pneg %p186
      %p339 = pneg %p210
      %p340 = pneg %p207
      %p341 = pneg %p231
      %p342 = pneg %p228
      %p343 = pneg %p257
      %p344 = pneg %p254
      %p345 = scmp.lt.s32.totalorder %s21, 1
      %s346 = scalar_select %p345, %s21, 1
      %s347 = smul.addr %s346, 4
      %s348 = smul.addr %s347, 8
      %s349 = scalar_lea.vmem %s10, %s348
      %p350 = scmp.lt.s32.totalorder %s21, 1
      %s351 = scalar_select %p350, %s21, 1
      %s352 = smul.addr %s351, 4
      %s353 = smul.addr %s352, 8
      %s354 = scalar_lea.vmem %s0, %s353
      %p355 = scmp.lt.s32.totalorder %s21, 1
      %s356 = scalar_select %p355, %s21, 1
      %s357 = smul.addr %s356, 4
      %s358 = smul.addr %s357, 8
      %s359 = scalar_lea.vmem %s10, %s358
      %361 = vst [vmem:[#allocation2] sm:$0xff] 0.0
      %362 = vst [vmem:[#allocation2 + $0x28] sm:$0xff] 0.0
      %v363 = vld [vmem:[%s354] sm:$0xff]
      %v364 = vld [vmem:[%s354 + $0x8] sm:$0xff]
      %v365 = vld [vmem:[%s354 + $0x10] sm:$0xff]
      %v366 = vld [vmem:[%s354 + $0x18] sm:$0xff]
      %v367 = vadd.f32 %v363, %v364
      %v368 = vadd.f32 %v367, %v365
      %v369 = vadd.f32 %v368, %v366
      %370 = vadd.xlane.f32.xlu0 %v369
      %v371 = vpop.xlane.xlu0 %370
      %v372 = vmul.f32 %v371, 0.001953125
      %v373 = vsub.f32 %v363, %v372
      %v374 = vsub.f32 %v364, %v372
      %v375 = vsub.f32 %v365, %v372
      %v376 = vsub.f32 %v366, %v372
      %v377 = vmul.f32 %v373, %v373
      %v378 = vmul.f32 %v374, %v374
      %v379 = vmul.f32 %v375, %v375
      %v380 = vmul.f32 %v376, %v376
      %v381 = vadd.f32 %v377, %v378
      %v382 = vadd.f32 %v381, %v379
      %v383 = vadd.f32 %v382, %v380
      %384 = vadd.xlane.f32.xlu0 %v383
      %v385 = vpop.xlane.xlu0 %384
      %v386 = vmul.f32 %v385, 0.001953125
      %v387 = vadd.f32 %v386, 1e-05
      %v388 = vrsqrt.pop %v387
      %v389 = vmul.f32 %v373, %v388
      %v390 = vmul.f32 %v374, %v388
      %v391 = vmul.f32 %v375, %v388
      %v392 = vmul.f32 %v376, %v388
      %v393 = vmax.f32 %v389, 0.0
      %v394 = vmax.f32 %v390, 0.0
      %v395 = vmax.f32 %v391, 0.0
      %v396 = vmax.f32 %v392, 0.0
      %397 = vst [vmem:[#allocation2 + $0x8] sm:$0xff] %v393
      %398 = vst [vmem:[#allocation2 + $0x10] sm:$0xff] %v394
      %399 = vst [vmem:[#allocation2 + $0x18] sm:$0xff] %v395
      %400 = vst [vmem:[#allocation2 + $0x20] sm:$0xff] %v396
      %v401 = vld [vmem:[#allocation2] sm:$0xff]
      %v402 = vld [vmem:[#allocation2 + $0x8] sm:$0xff]
      %v403 = vld [vmem:[#allocation2 + $0x10] sm:$0xff]
      %v404 = vld [vmem:[#allocation2 + $0x18] sm:$0xff]
      %v405 = vld [vmem:[#allocation2 + $0x20] sm:$0xff]
      %v406 = vld [vmem:[%s1] ss:$8 sm:$0xf]
      %v408 = vlaneseq
      %v409 = vshrl.u32 %v408, 7
      %v410 = vsub.s32 0, %v409
      %v411 = vrot.slane %v406, %v410
      %v412 = vlaneseq
      %v413 = vshrl.u32 %v412, 7
      %v414 = vsub.s32 1, %v413
      %v415 = vrot.slane %v406, %v414
      %v416 = vlaneseq
      %v417 = vshrl.u32 %v416, 7
      %v418 = vsub.s32 2, %v417
      %v419 = vrot.slane %v406, %v418
      %v420 = vlaneseq
      %v421 = vshrl.u32 %v420, 7
      %v422 = vsub.s32 3, %v421
      %v423 = vrot.slane %v406, %v422
      %424 = vrot.lane.b32.xlu0 %v411, 55
      %v425 = vpop.permute.xlu0 %424
      %426 = vrot.lane.b32.xlu0 %v415, 55
      %v427 = vpop.permute.xlu0 %426
      %428 = vrot.lane.b32.xlu0 %v419, 55
      %v429 = vpop.permute.xlu0 %428
      %430 = vrot.lane.b32.xlu0 %v423, 55
      %v431 = vpop.permute.xlu0 %430
      %vm432 = vcmask 449536
      %v433 = vsel %vm432, %v425, %v427
      %v434 = vsel %vm432, %v427, %v429
      %v435 = vsel %vm432, %v429, %v431
      %v441 = vmul.f32 %v401, %v425
      %v442 = vmul.f32 %v402, %v433
      %v443 = vmul.f32 %v403, %v434
      %v444 = vmul.f32 %v404, %v435
      %v445 = vmul.f32 %v405, %v431
      %451 = vrot.lane.b32.xlu0 %v441, 73
      %v452 = vpop.permute.xlu0 %451
      %453 = vrot.lane.b32.xlu0 %v442, 73
      %v454 = vpop.permute.xlu0 %453
      %455 = vrot.lane.b32.xlu0 %v443, 73
      %v456 = vpop.permute.xlu0 %455
      %457 = vrot.lane.b32.xlu0 %v444, 73
      %v458 = vpop.permute.xlu0 %457
      %459 = vrot.lane.b32.xlu0 %v445, 73
      %v460 = vpop.permute.xlu0 %459
      %vm461 = vcmask 596992
      %v462 = vsel %vm461, %v452, %v454
      %v463 = vsel %vm461, %v454, %v456
      %v464 = vsel %vm461, %v456, %v458
      %v465 = vsel %vm461, %v458, %v460
      %470 = vst [vmem:[#allocation3] sm:$0xff] %v462
      %471 = vst [vmem:[#allocation3 + $0x8] sm:$0xff] %v463
      %472 = vst [vmem:[#allocation3 + $0x10] sm:$0xff] %v464
      %473 = vst [vmem:[#allocation3 + $0x18] sm:$0xff] %v465
      %v474 = vld [vmem:[#allocation2] sm:$0xff]
      %v475 = vld [vmem:[#allocation2 + $0x8] sm:$0xff]
      %v476 = vld [vmem:[#allocation2 + $0x10] sm:$0xff]
      %v477 = vld [vmem:[#allocation2 + $0x18] sm:$0xff]
      %v478 = vld [vmem:[#allocation2 + $0x20] sm:$0xff]
      %s479 = scalar_lea.vmem %s1, 1
      %v480 = vld [vmem:[%s479] ss:$8 sm:$0xf]
      %v482 = vlaneseq
      %v483 = vshrl.u32 %v482, 7
      %v484 = vsub.s32 0, %v483
      %v485 = vrot.slane %v480, %v484
      %v486 = vlaneseq
      %v487 = vshrl.u32 %v486, 7
      %v488 = vsub.s32 1, %v487
      %v489 = vrot.slane %v480, %v488
      %v490 = vlaneseq
      %v491 = vshrl.u32 %v490, 7
      %v492 = vsub.s32 2, %v491
      %v493 = vrot.slane %v480, %v492
      %v494 = vlaneseq
      %v495 = vshrl.u32 %v494, 7
      %v496 = vsub.s32 3, %v495
      %v497 = vrot.slane %v480, %v496
      %498 = vrot.lane.b32.xlu0 %v485, 56
      %v499 = vpop.permute.xlu0 %498
      %500 = vrot.lane.b32.xlu0 %v489, 56
      %v501 = vpop.permute.xlu0 %500
      %502 = vrot.lane.b32.xlu0 %v493, 56
      %v503 = vpop.permute.xlu0 %502
      %504 = vrot.lane.b32.xlu0 %v497, 56
      %v505 = vpop.permute.xlu0 %504
      %vm506 = vcmask 457728
      %v507 = vsel %vm506, %v499, %v501
      %v508 = vsel %vm506, %v501, %v503
      %v509 = vsel %vm506, %v503, %v505
      %v515 = vmul.f32 %v474, %v499
      %v516 = vmul.f32 %v475, %v507
      %v517 = vmul.f32 %v476, %v508
      %v518 = vmul.f32 %v477, %v509
      %v519 = vmul.f32 %v478, %v505
      %525 = vrot.lane.b32.xlu0 %v515, 72
      %v526 = vpop.permute.xlu0 %525
      %527 = vrot.lane.b32.xlu0 %v516, 72
      %v528 = vpop.permute.xlu0 %527
      %529 = vrot.lane.b32.xlu0 %v517, 72
      %v530 = vpop.permute.xlu0 %529
      %531 = vrot.lane.b32.xlu0 %v518, 72
      %v532 = vpop.permute.xlu0 %531
      %533 = vrot.lane.b32.xlu0 %v519, 72
      %v534 = vpop.permute.xlu0 %533
      %vm535 = vcmask 588800
      %v536 = vsel %vm535, %v526, %v528
      %v537 = vsel %vm535, %v528, %v530
      %v538 = vsel %vm535, %v530, %v532
      %v539 = vsel %vm535, %v532, %v534
      %544 = vst [vmem:[#allocation3 + $0x20] sm:$0xff] %v536
      %545 = vst [vmem:[#allocation3 + $0x28] sm:$0xff] %v537
      %546 = vst [vmem:[#allocation3 + $0x30] sm:$0xff] %v538
      %547 = vst [vmem:[#allocation3 + $0x38] sm:$0xff] %v539
      %v548 = vld [vmem:[#allocation2] sm:$0xff]
      %v549 = vld [vmem:[#allocation2 + $0x8] sm:$0xff]
      %v550 = vld [vmem:[#allocation2 + $0x10] sm:$0xff]
      %v551 = vld [vmem:[#allocation2 + $0x18] sm:$0xff]
      %v552 = vld [vmem:[#allocation2 + $0x20] sm:$0xff]
      %s553 = scalar_lea.vmem %s1, 2
      %v554 = vld [vmem:[%s553] ss:$8 sm:$0xf]
      %v556 = vlaneseq
      %v557 = vshrl.u32 %v556, 7
      %v558 = vsub.s32 0, %v557
      %v559 = vrot.slane %v554, %v558
      %v560 = vlaneseq
      %v561 = vshrl.u32 %v560, 7
      %v562 = vsub.s32 1, %v561
      %v563 = vrot.slane %v554, %v562
      %v564 = vlaneseq
      %v565 = vshrl.u32 %v564, 7
      %v566 = vsub.s32 2, %v565
      %v567 = vrot.slane %v554, %v566
      %v568 = vlaneseq
      %v569 = vshrl.u32 %v568, 7
      %v570 = vsub.s32 3, %v569
      %v571 = vrot.slane %v554, %v570
      %572 = vrot.lane.b32.xlu0 %v559, 57
      %v573 = vpop.permute.xlu0 %572
      %574 = vrot.lane.b32.xlu0 %v563, 57
      %v575 = vpop.permute.xlu0 %574
      %576 = vrot.lane.b32.xlu0 %v567, 57
      %v577 = vpop.permute.xlu0 %576
      %578 = vrot.lane.b32.xlu0 %v571, 57
      %v579 = vpop.permute.xlu0 %578
      %vm580 = vcmask 465920
      %v581 = vsel %vm580, %v573, %v575
      %v582 = vsel %vm580, %v575, %v577
      %v583 = vsel %vm580, %v577, %v579
      %v589 = vmul.f32 %v548, %v573
      %v590 = vmul.f32 %v549, %v581
      %v591 = vmul.f32 %v550, %v582
      %v592 = vmul.f32 %v551, %v583
      %v593 = vmul.f32 %v552, %v579
      %599 = vrot.lane.b32.xlu0 %v589, 71
      %v600 = vpop.permute.xlu0 %599
      %601 = vrot.lane.b32.xlu0 %v590, 71
      %v602 = vpop.permute.xlu0 %601
      %603 = vrot.lane.b32.xlu0 %v591, 71
      %v604 = vpop.permute.xlu0 %603
      %605 = vrot.lane.b32.xlu0 %v592, 71
      %v606 = vpop.permute.xlu0 %605
      %607 = vrot.lane.b32.xlu0 %v593, 71
      %v608 = vpop.permute.xlu0 %607
      %vm609 = vcmask 580608
      %v610 = vsel %vm609, %v600, %v602
      %v611 = vsel %vm609, %v602, %v604
      %v612 = vsel %vm609, %v604, %v606
      %v613 = vsel %vm609, %v606, %v608
      %618 = vst [vmem:[#allocation3 + $0x40] sm:$0xff] %v610
      %619 = vst [vmem:[#allocation3 + $0x48] sm:$0xff] %v611
      %620 = vst [vmem:[#allocation3 + $0x50] sm:$0xff] %v612
      %621 = vst [vmem:[#allocation3 + $0x58] sm:$0xff] %v613
      %v622 = vld [vmem:[#allocation2] sm:$0xff]
      %v623 = vld [vmem:[#allocation2 + $0x8] sm:$0xff]
      %v624 = vld [vmem:[#allocation2 + $0x10] sm:$0xff]
      %v625 = vld [vmem:[#allocation2 + $0x18] sm:$0xff]
      %v626 = vld [vmem:[#allocation2 + $0x20] sm:$0xff]
      %s627 = scalar_lea.vmem %s1, 3
      %v628 = vld [vmem:[%s627] ss:$8 sm:$0xf]
      %v630 = vlaneseq
      %v631 = vshrl.u32 %v630, 7
      %v632 = vsub.s32 0, %v631
      %v633 = vrot.slane %v628, %v632
      %v634 = vlaneseq
      %v635 = vshrl.u32 %v634, 7
      %v636 = vsub.s32 1, %v635
      %v637 = vrot.slane %v628, %v636
      %v638 = vlaneseq
      %v639 = vshrl.u32 %v638, 7
      %v640 = vsub.s32 2, %v639
      %v641 = vrot.slane %v628, %v640
      %v642 = vlaneseq
      %v643 = vshrl.u32 %v642, 7
      %v644 = vsub.s32 3, %v643
      %v645 = vrot.slane %v628, %v644
      %646 = vrot.lane.b32.xlu0 %v633, 63
      %v647 = vpop.permute.xlu0 %646
      %648 = vrot.lane.b32.xlu0 %v637, 63
      %v649 = vpop.permute.xlu0 %648
      %650 = vrot.lane.b32.xlu0 %v641, 63
      %v651 = vpop.permute.xlu0 %650
      %652 = vrot.lane.b32.xlu0 %v645, 63
      %v653 = vpop.permute.xlu0 %652
      %vm654 = vcmask 515072
      %v655 = vsel %vm654, %v647, %v649
      %v656 = vsel %vm654, %v649, %v651
      %v657 = vsel %vm654, %v651, %v653
      %v663 = vmul.f32 %v622, %v647
      %v664 = vmul.f32 %v623, %v655
      %v665 = vmul.f32 %v624, %v656
      %v666 = vmul.f32 %v625, %v657
      %v667 = vmul.f32 %v626, %v653
      %673 = vrot.lane.b32.xlu0 %v663, 65
      %v674 = vpop.permute.xlu0 %673
      %675 = vrot.lane.b32.xlu0 %v664, 65
      %v676 = vpop.permute.xlu0 %675
      %677 = vrot.lane.b32.xlu0 %v665, 65
      %v678 = vpop.permute.xlu0 %677
      %679 = vrot.lane.b32.xlu0 %v666, 65
      %v680 = vpop.permute.xlu0 %679
      %681 = vrot.lane.b32.xlu0 %v667, 65
      %v682 = vpop.permute.xlu0 %681
      %vm683 = vcmask 531456
      %v684 = vsel %vm683, %v674, %v676
      %v685 = vsel %vm683, %v676, %v678
      %v686 = vsel %vm683, %v678, %v680
      %v687 = vsel %vm683, %v680, %v682
      %692 = vst [vmem:[#allocation3 + $0x60] sm:$0xff] %v684
      %693 = vst [vmem:[#allocation3 + $0x68] sm:$0xff] %v685
      %694 = vst [vmem:[#allocation3 + $0x70] sm:$0xff] %v686
      %695 = vst [vmem:[#allocation3 + $0x78] sm:$0xff] %v687
      %v696 = vld [vmem:[#allocation2] sm:$0xff]
      %v697 = vld [vmem:[#allocation2 + $0x8] sm:$0xff]
      %v698 = vld [vmem:[#allocation2 + $0x10] sm:$0xff]
      %v699 = vld [vmem:[#allocation2 + $0x18] sm:$0xff]
      %v700 = vld [vmem:[#allocation2 + $0x20] sm:$0xff]
      %s701 = scalar_lea.vmem %s1, 4
      %v702 = vld [vmem:[%s701] ss:$8 sm:$0xf]
      %v704 = vlaneseq
      %v705 = vshrl.u32 %v704, 7
      %v706 = vsub.s32 0, %v705
      %v707 = vrot.slane %v702, %v706
      %v708 = vlaneseq
      %v709 = vshrl.u32 %v708, 7
      %v710 = vsub.s32 1, %v709
      %v711 = vrot.slane %v702, %v710
      %v712 = vlaneseq
      %v713 = vshrl.u32 %v712, 7
      %v714 = vsub.s32 2, %v713
      %v715 = vrot.slane %v702, %v714
      %v716 = vlaneseq
      %v717 = vshrl.u32 %v716, 7
      %v718 = vsub.s32 3, %v717
      %v719 = vrot.slane %v702, %v718
      %720 = vrot.lane.b32.xlu0 %v707, 64
      %v721 = vpop.permute.xlu0 %720
      %722 = vrot.lane.b32.xlu0 %v711, 64
      %v723 = vpop.permute.xlu0 %722
      %724 = vrot.lane.b32.xlu0 %v715, 64
      %v725 = vpop.permute.xlu0 %724
      %726 = vrot.lane.b32.xlu0 %v719, 64
      %v727 = vpop.permute.xlu0 %726
      %vm728 = vcmask 523264
      %v729 = vsel %vm728, %v721, %v723
      %v730 = vsel %vm728, %v723, %v725
      %v731 = vsel %vm728, %v725, %v727
      %v737 = vmul.f32 %v696, %v721
      %v738 = vmul.f32 %v697, %v729
      %v739 = vmul.f32 %v698, %v730
      %v740 = vmul.f32 %v699, %v731
      %v741 = vmul.f32 %v700, %v727
      %747 = vrot.lane.b32.xlu0 %v737, 64
      %v748 = vpop.permute.xlu0 %747
      %749 = vrot.lane.b32.xlu0 %v738, 64
      %v750 = vpop.permute.xlu0 %749
      %751 = vrot.lane.b32.xlu0 %v739, 64
      %v752 = vpop.permute.xlu0 %751
      %753 = vrot.lane.b32.xlu0 %v740, 64
      %v754 = vpop.permute.xlu0 %753
      %755 = vrot.lane.b32.xlu0 %v741, 64
      %v756 = vpop.permute.xlu0 %755
      %v757 = vsel %vm728, %v748, %v750
      %v758 = vsel %vm728, %v750, %v752
      %v759 = vsel %vm728, %v752, %v754
      %v760 = vsel %vm728, %v754, %v756
      %765 = vst [vmem:[#allocation3 + $0x80] sm:$0xff] %v757
      %766 = vst [vmem:[#allocation3 + $0x88] sm:$0xff] %v758
      %767 = vst [vmem:[#allocation3 + $0x90] sm:$0xff] %v759
      %768 = vst [vmem:[#allocation3 + $0x98] sm:$0xff] %v760
      %v769 = vld [vmem:[#allocation2] sm:$0xff]
      %v770 = vld [vmem:[#allocation2 + $0x8] sm:$0xff]
      %v771 = vld [vmem:[#allocation2 + $0x10] sm:$0xff]
      %v772 = vld [vmem:[#allocation2 + $0x18] sm:$0xff]
      %v773 = vld [vmem:[#allocation2 + $0x20] sm:$0xff]
      %s774 = scalar_lea.vmem %s1, 5
      %v775 = vld [vmem:[%s774] ss:$8 sm:$0xf]
      %v777 = vlaneseq
      %v778 = vshrl.u32 %v777, 7
      %v779 = vsub.s32 0, %v778
      %v780 = vrot.slane %v775, %v779
      %v781 = vlaneseq
      %v782 = vshrl.u32 %v781, 7
      %v783 = vsub.s32 1, %v782
      %v784 = vrot.slane %v775, %v783
      %v785 = vlaneseq
      %v786 = vshrl.u32 %v785, 7
      %v787 = vsub.s32 2, %v786
      %v788 = vrot.slane %v775, %v787
      %v789 = vlaneseq
      %v790 = vshrl.u32 %v789, 7
      %v791 = vsub.s32 3, %v790
      %v792 = vrot.slane %v775, %v791
      %793 = vrot.lane.b32.xlu0 %v780, 65
      %v794 = vpop.permute.xlu0 %793
      %795 = vrot.lane.b32.xlu0 %v784, 65
      %v796 = vpop.permute.xlu0 %795
      %797 = vrot.lane.b32.xlu0 %v788, 65
      %v798 = vpop.permute.xlu0 %797
      %799 = vrot.lane.b32.xlu0 %v792, 65
      %v800 = vpop.permute.xlu0 %799
      %v801 = vsel %vm683, %v794, %v796
      %v802 = vsel %vm683, %v796, %v798
      %v803 = vsel %vm683, %v798, %v800
      %v809 = vmul.f32 %v769, %v794
      %v810 = vmul.f32 %v770, %v801
      %v811 = vmul.f32 %v771, %v802
      %v812 = vmul.f32 %v772, %v803
      %v813 = vmul.f32 %v773, %v800
      %819 = vrot.lane.b32.xlu0 %v809, 63
      %v820 = vpop.permute.xlu0 %819
      %821 = vrot.lane.b32.xlu0 %v810, 63
      %v822 = vpop.permute.xlu0 %821
      %823 = vrot.lane.b32.xlu0 %v811, 63
      %v824 = vpop.permute.xlu0 %823
      %825 = vrot.lane.b32.xlu0 %v812, 63
      %v826 = vpop.permute.xlu0 %825
      %827 = vrot.lane.b32.xlu0 %v813, 63
      %v828 = vpop.permute.xlu0 %827
      %v829 = vsel %vm654, %v820, %v822
      %v830 = vsel %vm654, %v822, %v824
      %v831 = vsel %vm654, %v824, %v826
      %v832 = vsel %vm654, %v826, %v828
      %837 = vst [vmem:[#allocation3 + $0xa0] sm:$0xff] %v829
      %838 = vst [vmem:[#allocation3 + $0xa8] sm:$0xff] %v830
      %839 = vst [vmem:[#allocation3 + $0xb0] sm:$0xff] %v831
      %840 = vst [vmem:[#allocation3 + $0xb8] sm:$0xff] %v832
      %v841 = vld [vmem:[#allocation2] sm:$0xff]
      %v842 = vld [vmem:[#allocation2 + $0x8] sm:$0xff]
      %v843 = vld [vmem:[#allocation2 + $0x10] sm:$0xff]
      %v844 = vld [vmem:[#allocation2 + $0x18] sm:$0xff]
      %v845 = vld [vmem:[#allocation2 + $0x20] sm:$0xff]
      %s846 = scalar_lea.vmem %s1, 6
      %v847 = vld [vmem:[%s846] ss:$8 sm:$0xf]
      %v849 = vlaneseq
      %v850 = vshrl.u32 %v849, 7
      %v851 = vsub.s32 0, %v850
      %v852 = vrot.slane %v847, %v851
      %v853 = vlaneseq
      %v854 = vshrl.u32 %v853, 7
      %v855 = vsub.s32 1, %v854
      %v856 = vrot.slane %v847, %v855
      %v857 = vlaneseq
      %v858 = vshrl.u32 %v857, 7
      %v859 = vsub.s32 2, %v858
      %v860 = vrot.slane %v847, %v859
      %v861 = vlaneseq
      %v862 = vshrl.u32 %v861, 7
      %v863 = vsub.s32 3, %v862
      %v864 = vrot.slane %v847, %v863
      %865 = vrot.lane.b32.xlu0 %v852, 71
      %v866 = vpop.permute.xlu0 %865
      %867 = vrot.lane.b32.xlu0 %v856, 71
      %v868 = vpop.permute.xlu0 %867
      %869 = vrot.lane.b32.xlu0 %v860, 71
      %v870 = vpop.permute.xlu0 %869
      %871 = vrot.lane.b32.xlu0 %v864, 71
      %v872 = vpop.permute.xlu0 %871
      %v873 = vsel %vm609, %v866, %v868
      %v874 = vsel %vm609, %v868, %v870
      %v875 = vsel %vm609, %v870, %v872
      %v881 = vmul.f32 %v841, %v866
      %v882 = vmul.f32 %v842, %v873
      %v883 = vmul.f32 %v843, %v874
      %v884 = vmul.f32 %v844, %v875
      %v885 = vmul.f32 %v845, %v872
      %891 = vrot.lane.b32.xlu0 %v881, 57
      %v892 = vpop.permute.xlu0 %891
      %893 = vrot.lane.b32.xlu0 %v882, 57
      %v894 = vpop.permute.xlu0 %893
      %895 = vrot.lane.b32.xlu0 %v883, 57
      %v896 = vpop.permute.xlu0 %895
      %897 = vrot.lane.b32.xlu0 %v884, 57
      %v898 = vpop.permute.xlu0 %897
      %899 = vrot.lane.b32.xlu0 %v885, 57
      %v900 = vpop.permute.xlu0 %899
      %v901 = vsel %vm580, %v892, %v894
      %v902 = vsel %vm580, %v894, %v896
      %v903 = vsel %vm580, %v896, %v898
      %v904 = vsel %vm580, %v898, %v900
      %909 = vst [vmem:[#allocation3 + $0xc0] sm:$0xff] %v901
      %910 = vst [vmem:[#allocation3 + $0xc8] sm:$0xff] %v902
      %911 = vst [vmem:[#allocation3 + $0xd0] sm:$0xff] %v903
      %912 = vst [vmem:[#allocation3 + $0xd8] sm:$0xff] %v904
      %v913 = vld [vmem:[#allocation2] sm:$0xff]
      %v914 = vld [vmem:[#allocation2 + $0x8] sm:$0xff]
      %v915 = vld [vmem:[#allocation2 + $0x10] sm:$0xff]
      %v916 = vld [vmem:[#allocation2 + $0x18] sm:$0xff]
      %v917 = vld [vmem:[#allocation2 + $0x20] sm:$0xff]
      %s918 = scalar_lea.vmem %s1, 7
      %v919 = vld [vmem:[%s918] ss:$8 sm:$0xf]
      %v921 = vlaneseq
      %v922 = vshrl.u32 %v921, 7
      %v923 = vsub.s32 0, %v922
      %v924 = vrot.slane %v919, %v923
      %v925 = vlaneseq
      %v926 = vshrl.u32 %v925, 7
      %v927 = vsub.s32 1, %v926
      %v928 = vrot.slane %v919, %v927
      %v929 = vlaneseq
      %v930 = vshrl.u32 %v929, 7
      %v931 = vsub.s32 2, %v930
      %v932 = vrot.slane %v919, %v931
      %v933 = vlaneseq
      %v934 = vshrl.u32 %v933, 7
      %v935 = vsub.s32 3, %v934
      %v936 = vrot.slane %v919, %v935
      %937 = vrot.lane.b32.xlu0 %v924, 72
      %v938 = vpop.permute.xlu0 %937
      %939 = vrot.lane.b32.xlu0 %v928, 72
      %v940 = vpop.permute.xlu0 %939
      %941 = vrot.lane.b32.xlu0 %v932, 72
      %v942 = vpop.permute.xlu0 %941
      %943 = vrot.lane.b32.xlu0 %v936, 72
      %v944 = vpop.permute.xlu0 %943
      %v945 = vsel %vm535, %v938, %v940
      %v946 = vsel %vm535, %v940, %v942
      %v947 = vsel %vm535, %v942, %v944
      %v953 = vmul.f32 %v913, %v938
      %v954 = vmul.f32 %v914, %v945
      %v955 = vmul.f32 %v915, %v946
      %v956 = vmul.f32 %v916, %v947
      %v957 = vmul.f32 %v917, %v944
      %963 = vrot.lane.b32.xlu0 %v953, 56
      %v964 = vpop.permute.xlu0 %963
      %965 = vrot.lane.b32.xlu0 %v954, 56
      %v966 = vpop.permute.xlu0 %965
      %967 = vrot.lane.b32.xlu0 %v955, 56
      %v968 = vpop.permute.xlu0 %967
      %969 = vrot.lane.b32.xlu0 %v956, 56
      %v970 = vpop.permute.xlu0 %969
      %971 = vrot.lane.b32.xlu0 %v957, 56
      %v972 = vpop.permute.xlu0 %971
      %v973 = vsel %vm506, %v964, %v966
      %v974 = vsel %vm506, %v966, %v968
      %v975 = vsel %vm506, %v968, %v970
      %v976 = vsel %vm506, %v970, %v972
      %981 = vst [vmem:[#allocation3 + $0xe0] sm:$0xff] %v973
      %982 = vst [vmem:[#allocation3 + $0xe8] sm:$0xff] %v974
      %983 = vst [vmem:[#allocation3 + $0xf0] sm:$0xff] %v975
      %984 = vst [vmem:[#allocation3 + $0xf8] sm:$0xff] %v976
      %v985 = vld [vmem:[#allocation2] sm:$0xff]
      %v986 = vld [vmem:[#allocation2 + $0x8] sm:$0xff]
      %v987 = vld [vmem:[#allocation2 + $0x10] sm:$0xff]
      %v988 = vld [vmem:[#allocation2 + $0x18] sm:$0xff]
      %v989 = vld [vmem:[#allocation2 + $0x20] sm:$0xff]
      %s990 = scalar_lea.vmem %s1, 32
      %v991 = vld [vmem:[%s990] ss:$8 sm:$0xf]
      %v993 = vlaneseq
      %v994 = vshrl.u32 %v993, 7
      %v995 = vsub.s32 0, %v994
      %v996 = vrot.slane %v991, %v995
      %v997 = vlaneseq
      %v998 = vshrl.u32 %v997, 7
      %v999 = vsub.s32 1, %v998
      %v1000 = vrot.slane %v991, %v999
      %v1001 = vlaneseq
      %v1002 = vshrl.u32 %v1001, 7
      %v1003 = vsub.s32 2, %v1002
      %v1004 = vrot.slane %v991, %v1003
      %v1005 = vlaneseq
      %v1006 = vshrl.u32 %v1005, 7
      %v1007 = vsub.s32 3, %v1006
      %v1008 = vrot.slane %v991, %v1007
      %1009 = vrot.lane.b32.xlu0 %v996, 73
      %v1010 = vpop.permute.xlu0 %1009
      %1011 = vrot.lane.b32.xlu0 %v1000, 73
      %v1012 = vpop.permute.xlu0 %1011
      %1013 = vrot.lane.b32.xlu0 %v1004, 73
      %v1014 = vpop.permute.xlu0 %1013
      %1015 = vrot.lane.b32.xlu0 %v1008, 73
      %v1016 = vpop.permute.xlu0 %1015
      %v1017 = vsel %vm461, %v1010, %v1012
      %v1018 = vsel %vm461, %v1012, %v1014
      %v1019 = vsel %vm461, %v1014, %v1016
      %v1025 = vmul.f32 %v985, %v1010
      %v1026 = vmul.f32 %v986, %v1017
      %v1027 = vmul.f32 %v987, %v1018
      %v1028 = vmul.f32 %v988, %v1019
      %v1029 = vmul.f32 %v989, %v1016
      %1035 = vrot.lane.b32.xlu0 %v1025, 55
      %v1036 = vpop.permute.xlu0 %1035
      %1037 = vrot.lane.b32.xlu0 %v1026, 55
      %v1038 = vpop.permute.xlu0 %1037
      %1039 = vrot.lane.b32.xlu0 %v1027, 55
      %v1040 = vpop.permute.xlu0 %1039
      %1041 = vrot.lane.b32.xlu0 %v1028, 55
      %v1042 = vpop.permute.xlu0 %1041
      %1043 = vrot.lane.b32.xlu0 %v1029, 55
      %v1044 = vpop.permute.xlu0 %1043
      %v1045 = vsel %vm432, %v1036, %v1038
      %v1046 = vsel %vm432, %v1038, %v1040
      %v1047 = vsel %vm432, %v1040, %v1042
      %v1048 = vsel %vm432, %v1042, %v1044
      %1053 = vst [vmem:[#allocation3 + $0x100] sm:$0xff] %v1045
      %1054 = vst [vmem:[#allocation3 + $0x108] sm:$0xff] %v1046
      %1055 = vst [vmem:[#allocation3 + $0x110] sm:$0xff] %v1047
      %1056 = vst [vmem:[#allocation3 + $0x118] sm:$0xff] %v1048
      %v1057 = vld [vmem:[#allocation2] sm:$0xff]
      %v1058 = vld [vmem:[#allocation2 + $0x8] sm:$0xff]
      %v1059 = vld [vmem:[#allocation2 + $0x10] sm:$0xff]
      %v1060 = vld [vmem:[#allocation2 + $0x18] sm:$0xff]
      %v1061 = vld [vmem:[#allocation2 + $0x20] sm:$0xff]
      %s1062 = scalar_lea.vmem %s1, 33
      %v1063 = vld [vmem:[%s1062] ss:$8 sm:$0xf]
      %v1065 = vlaneseq
      %v1066 = vshrl.u32 %v1065, 7
      %v1067 = vsub.s32 0, %v1066
      %v1068 = vrot.slane %v1063, %v1067
      %v1069 = vlaneseq
      %v1070 = vshrl.u32 %v1069, 7
      %v1071 = vsub.s32 1, %v1070
      %v1072 = vrot.slane %v1063, %v1071
      %v1073 = vlaneseq
      %v1074 = vshrl.u32 %v1073, 7
      %v1075 = vsub.s32 2, %v1074
      %v1076 = vrot.slane %v1063, %v1075
      %v1077 = vlaneseq
      %v1078 = vshrl.u32 %v1077, 7
      %v1079 = vsub.s32 3, %v1078
      %v1080 = vrot.slane %v1063, %v1079
      %1081 = vrot.lane.b32.xlu0 %v1068, 119
      %v1082 = vpop.permute.xlu0 %1081
      %1083 = vrot.lane.b32.xlu0 %v1072, 119
      %v1084 = vpop.permute.xlu0 %1083
      %1085 = vrot.lane.b32.xlu0 %v1076, 119
      %v1086 = vpop.permute.xlu0 %1085
      %1087 = vrot.lane.b32.xlu0 %v1080, 119
      %v1088 = vpop.permute.xlu0 %1087
      %vm1089 = vcmask 973824
      %v1090 = vsel %vm1089, %v1082, %v1084
      %v1091 = vsel %vm1089, %v1084, %v1086
      %v1092 = vsel %vm1089, %v1086, %v1088
      %v1098 = vmul.f32 %v1057, %v1082
      %v1099 = vmul.f32 %v1058, %v1090
      %v1100 = vmul.f32 %v1059, %v1091
      %v1101 = vmul.f32 %v1060, %v1092
      %v1102 = vmul.f32 %v1061, %v1088
      %1108 = vrot.lane.b32.xlu0 %v1098, 9
      %v1109 = vpop.permute.xlu0 %1108
      %1110 = vrot.lane.b32.xlu0 %v1099, 9
      %v1111 = vpop.permute.xlu0 %1110
      %1112 = vrot.lane.b32.xlu0 %v1100, 9
      %v1113 = vpop.permute.xlu0 %1112
      %1114 = vrot.lane.b32.xlu0 %v1101, 9
      %v1115 = vpop.permute.xlu0 %1114
      %1116 = vrot.lane.b32.xlu0 %v1102, 9
      %v1117 = vpop.permute.xlu0 %1116
      %vm1118 = vcmask 72704
      %v1119 = vsel %vm1118, %v1109, %v1111
      %v1120 = vsel %vm1118, %v1111, %v1113
      %v1121 = vsel %vm1118, %v1113, %v1115
      %v1122 = vsel %vm1118, %v1115, %v1117
      %1127 = vst [vmem:[#allocation3 + $0x120] sm:$0xff] %v1119
      %1128 = vst [vmem:[#allocation3 + $0x128] sm:$0xff] %v1120
      %1129 = vst [vmem:[#allocation3 + $0x130] sm:$0xff] %v1121
      %1130 = vst [vmem:[#allocation3 + $0x138] sm:$0xff] %v1122
      %v1131 = vld [vmem:[#allocation2] sm:$0xff]
      %v1132 = vld [vmem:[#allocation2 + $0x8] sm:$0xff]
      %v1133 = vld [vmem:[#allocation2 + $0x10] sm:$0xff]
      %v1134 = vld [vmem:[#allocation2 + $0x18] sm:$0xff]
      %v1135 = vld [vmem:[#allocation2 + $0x20] sm:$0xff]
      %s1136 = scalar_lea.vmem %s1, 34
      %v1137 = vld [vmem:[%s1136] ss:$8 sm:$0xf]
      %v1139 = vlaneseq
      %v1140 = vshrl.u32 %v1139, 7
      %v1141 = vsub.s32 0, %v1140
      %v1142 = vrot.slane %v1137, %v1141
      %v1143 = vlaneseq
      %v1144 = vshrl.u32 %v1143, 7
      %v1145 = vsub.s32 1, %v1144
      %v1146 = vrot.slane %v1137, %v1145
      %v1147 = vlaneseq
      %v1148 = vshrl.u32 %v1147, 7
      %v1149 = vsub.s32 2, %v1148
      %v1150 = vrot.slane %v1137, %v1149
      %v1151 = vlaneseq
      %v1152 = vshrl.u32 %v1151, 7
      %v1153 = vsub.s32 3, %v1152
      %v1154 = vrot.slane %v1137, %v1153
      %1155 = vrot.lane.b32.xlu0 %v1142, 120
      %v1156 = vpop.permute.xlu0 %1155
      %1157 = vrot.lane.b32.xlu0 %v1146, 120
      %v1158 = vpop.permute.xlu0 %1157
      %1159 = vrot.lane.b32.xlu0 %v1150, 120
      %v1160 = vpop.permute.xlu0 %1159
      %1161 = vrot.lane.b32.xlu0 %v1154, 120
      %v1162 = vpop.permute.xlu0 %1161
      %vm1163 = vcmask 982016
      %v1164 = vsel %vm1163, %v1156, %v1158
      %v1165 = vsel %vm1163, %v1158, %v1160
      %v1166 = vsel %vm1163, %v1160, %v1162
      %v1172 = vmul.f32 %v1131, %v1156
      %v1173 = vmul.f32 %v1132, %v1164
      %v1174 = vmul.f32 %v1133, %v1165
      %v1175 = vmul.f32 %v1134, %v1166
      %v1176 = vmul.f32 %v1135, %v1162
      %1182 = vrot.lane.b32.xlu0 %v1172, 8
      %v1183 = vpop.permute.xlu0 %1182
      %1184 = vrot.lane.b32.xlu0 %v1173, 8
      %v1185 = vpop.permute.xlu0 %1184
      %1186 = vrot.lane.b32.xlu0 %v1174, 8
      %v1187 = vpop.permute.xlu0 %1186
      %1188 = vrot.lane.b32.xlu0 %v1175, 8
      %v1189 = vpop.permute.xlu0 %1188
      %1190 = vrot.lane.b32.xlu0 %v1176, 8
      %v1191 = vpop.permute.xlu0 %1190
      %vm1192 = vcmask 64512
      %v1193 = vsel %vm1192, %v1183, %v1185
      %v1194 = vsel %vm1192, %v1185, %v1187
      %v1195 = vsel %vm1192, %v1187, %v1189
      %v1196 = vsel %vm1192, %v1189, %v1191
      %1201 = vst [vmem:[#allocation3 + $0x140] sm:$0xff] %v1193
      %1202 = vst [vmem:[#allocation3 + $0x148] sm:$0xff] %v1194
      %1203 = vst [vmem:[#allocation3 + $0x150] sm:$0xff] %v1195
      %1204 = vst [vmem:[#allocation3 + $0x158] sm:$0xff] %v1196
      %v1205 = vld [vmem:[#allocation2] sm:$0xff]
      %v1206 = vld [vmem:[#allocation2 + $0x8] sm:$0xff]
      %v1207 = vld [vmem:[#allocation2 + $0x10] sm:$0xff]
      %v1208 = vld [vmem:[#allocation2 + $0x18] sm:$0xff]
      %v1209 = vld [vmem:[#allocation2 + $0x20] sm:$0xff]
      %s1210 = scalar_lea.vmem %s1, 35
      %v1211 = vld [vmem:[%s1210] ss:$8 sm:$0xf]
      %v1213 = vlaneseq
      %v1214 = vshrl.u32 %v1213, 7
      %v1215 = vsub.s32 0, %v1214
      %v1216 = vrot.slane %v1211, %v1215
      %v1217 = vlaneseq
      %v1218 = vshrl.u32 %v1217, 7
      %v1219 = vsub.s32 1, %v1218
      %v1220 = vrot.slane %v1211, %v1219
      %v1221 = vlaneseq
      %v1222 = vshrl.u32 %v1221, 7
      %v1223 = vsub.s32 2, %v1222
      %v1224 = vrot.slane %v1211, %v1223
      %v1225 = vlaneseq
      %v1226 = vshrl.u32 %v1225, 7
      %v1227 = vsub.s32 3, %v1226
      %v1228 = vrot.slane %v1211, %v1227
      %1229 = vrot.lane.b32.xlu0 %v1216, 121
      %v1230 = vpop.permute.xlu0 %1229
      %1231 = vrot.lane.b32.xlu0 %v1220, 121
      %v1232 = vpop.permute.xlu0 %1231
      %1233 = vrot.lane.b32.xlu0 %v1224, 121
      %v1234 = vpop.permute.xlu0 %1233
      %1235 = vrot.lane.b32.xlu0 %v1228, 121
      %v1236 = vpop.permute.xlu0 %1235
      %vm1237 = vcmask 990208
      %v1238 = vsel %vm1237, %v1230, %v1232
      %v1239 = vsel %vm1237, %v1232, %v1234
      %v1240 = vsel %vm1237, %v1234, %v1236
      %v1246 = vmul.f32 %v1205, %v1230
      %v1247 = vmul.f32 %v1206, %v1238
      %v1248 = vmul.f32 %v1207, %v1239
      %v1249 = vmul.f32 %v1208, %v1240
      %v1250 = vmul.f32 %v1209, %v1236
      %1256 = vrot.lane.b32.xlu0 %v1246, 7
      %v1257 = vpop.permute.xlu0 %1256
      %1258 = vrot.lane.b32.xlu0 %v1247, 7
      %v1259 = vpop.permute.xlu0 %1258
      %1260 = vrot.lane.b32.xlu0 %v1248, 7
      %v1261 = vpop.permute.xlu0 %1260
      %1262 = vrot.lane.b32.xlu0 %v1249, 7
      %v1263 = vpop.permute.xlu0 %1262
      %1264 = vrot.lane.b32.xlu0 %v1250, 7
      %v1265 = vpop.permute.xlu0 %1264
      %vm1266 = vcmask 56320
      %v1267 = vsel %vm1266, %v1257, %v1259
      %v1268 = vsel %vm1266, %v1259, %v1261
      %v1269 = vsel %vm1266, %v1261, %v1263
      %v1270 = vsel %vm1266, %v1263, %v1265
      %1275 = vst [vmem:[#allocation3 + $0x160] sm:$0xff] %v1267
      %1276 = vst [vmem:[#allocation3 + $0x168] sm:$0xff] %v1268
      %1277 = vst [vmem:[#allocation3 + $0x170] sm:$0xff] %v1269
      %1278 = vst [vmem:[#allocation3 + $0x178] sm:$0xff] %v1270
      %v1279 = vld [vmem:[#allocation2] sm:$0xff]
      %v1280 = vld [vmem:[#allocation2 + $0x8] sm:$0xff]
      %v1281 = vld [vmem:[#allocation2 + $0x10] sm:$0xff]
      %v1282 = vld [vmem:[#allocation2 + $0x18] sm:$0xff]
      %v1283 = vld [vmem:[#allocation2 + $0x20] sm:$0xff]
      %s1284 = scalar_lea.vmem %s1, 36
      %v1285 = vld [vmem:[%s1284] ss:$8 sm:$0xf]
      %v1287 = vlaneseq
      %v1288 = vshrl.u32 %v1287, 7
      %v1289 = vsub.s32 0, %v1288
      %v1290 = vrot.slane %v1285, %v1289
      %v1291 = vlaneseq
      %v1292 = vshrl.u32 %v1291, 7
      %v1293 = vsub.s32 1, %v1292
      %v1294 = vrot.slane %v1285, %v1293
      %v1295 = vlaneseq
      %v1296 = vshrl.u32 %v1295, 7
      %v1297 = vsub.s32 2, %v1296
      %v1298 = vrot.slane %v1285, %v1297
      %v1299 = vlaneseq
      %v1300 = vshrl.u32 %v1299, 7
      %v1301 = vsub.s32 3, %v1300
      %v1302 = vrot.slane %v1285, %v1301
      %1303 = vrot.lane.b32.xlu0 %v1290, 127
      %v1304 = vpop.permute.xlu0 %1303
      %1305 = vrot.lane.b32.xlu0 %v1294, 127
      %v1306 = vpop.permute.xlu0 %1305
      %1307 = vrot.lane.b32.xlu0 %v1298, 127
      %v1308 = vpop.permute.xlu0 %1307
      %1309 = vrot.lane.b32.xlu0 %v1302, 127
      %v1310 = vpop.permute.xlu0 %1309
      %vm1311 = vcmask 1039360
      %v1312 = vsel %vm1311, %v1304, %v1306
      %v1313 = vsel %vm1311, %v1306, %v1308
      %v1314 = vsel %vm1311, %v1308, %v1310
      %v1320 = vmul.f32 %v1279, %v1304
      %v1321 = vmul.f32 %v1280, %v1312
      %v1322 = vmul.f32 %v1281, %v1313
      %v1323 = vmul.f32 %v1282, %v1314
      %v1324 = vmul.f32 %v1283, %v1310
      %1330 = vrot.lane.b32.xlu0 %v1320, 1
      %v1331 = vpop.permute.xlu0 %1330
      %1332 = vrot.lane.b32.xlu0 %v1321, 1
      %v1333 = vpop.permute.xlu0 %1332
      %1334 = vrot.lane.b32.xlu0 %v1322, 1
      %v1335 = vpop.permute.xlu0 %1334
      %1336 = vrot.lane.b32.xlu0 %v1323, 1
      %v1337 = vpop.permute.xlu0 %1336
      %1338 = vrot.lane.b32.xlu0 %v1324, 1
      %v1339 = vpop.permute.xlu0 %1338
      %vm1340 = vcmask 7168
      %v1341 = vsel %vm1340, %v1331, %v1333
      %v1342 = vsel %vm1340, %v1333, %v1335
      %v1343 = vsel %vm1340, %v1335, %v1337
      %v1344 = vsel %vm1340, %v1337, %v1339
      %1349 = vst [vmem:[#allocation3 + $0x180] sm:$0xff] %v1341
      %1350 = vst [vmem:[#allocation3 + $0x188] sm:$0xff] %v1342
      %1351 = vst [vmem:[#allocation3 + $0x190] sm:$0xff] %v1343
      %1352 = vst [vmem:[#allocation3 + $0x198] sm:$0xff] %v1344
      %v1353 = vld [vmem:[#allocation2 + $0x8] sm:$0xff]
      %v1354 = vld [vmem:[#allocation2 + $0x10] sm:$0xff]
      %v1355 = vld [vmem:[#allocation2 + $0x18] sm:$0xff]
      %v1356 = vld [vmem:[#allocation2 + $0x20] sm:$0xff]
      %1357 = vst [vmem:[#allocation3 + $0x1a0] sm:$0xff] %v1353
      %1358 = vst [vmem:[#allocation3 + $0x1a8] sm:$0xff] %v1354
      %1359 = vst [vmem:[#allocation3 + $0x1b0] sm:$0xff] %v1355
      %1360 = vst [vmem:[#allocation3 + $0x1b8] sm:$0xff] %v1356
      %v1361 = vld [vmem:[#allocation2 + $0x8] sm:$0xff]
      %v1362 = vld [vmem:[#allocation2 + $0x10] sm:$0xff]
      %v1363 = vld [vmem:[#allocation2 + $0x18] sm:$0xff]
      %v1364 = vld [vmem:[#allocation2 + $0x20] sm:$0xff]
      %v1365 = vld [vmem:[#allocation2 + $0x28] sm:$0xff]
      %s1366 = scalar_lea.vmem %s1, 38
      %v1367 = vld [vmem:[%s1366] ss:$8 sm:$0xf]
      %v1369 = vlaneseq
      %v1370 = vshrl.u32 %v1369, 7
      %v1371 = vsub.s32 0, %v1370
      %v1372 = vrot.slane %v1367, %v1371
      %v1373 = vlaneseq
      %v1374 = vshrl.u32 %v1373, 7
      %v1375 = vsub.s32 1, %v1374
      %v1376 = vrot.slane %v1367, %v1375
      %v1377 = vlaneseq
      %v1378 = vshrl.u32 %v1377, 7
      %v1379 = vsub.s32 2, %v1378
      %v1380 = vrot.slane %v1367, %v1379
      %v1381 = vlaneseq
      %v1382 = vshrl.u32 %v1381, 7
      %v1383 = vsub.s32 3, %v1382
      %v1384 = vrot.slane %v1367, %v1383
      %1385 = vrot.lane.b32.xlu0 %v1372, 1
      %v1386 = vpop.permute.xlu0 %1385
      %1387 = vrot.lane.b32.xlu0 %v1376, 1
      %v1388 = vpop.permute.xlu0 %1387
      %1389 = vrot.lane.b32.xlu0 %v1380, 1
      %v1390 = vpop.permute.xlu0 %1389
      %1391 = vrot.lane.b32.xlu0 %v1384, 1
      %v1392 = vpop.permute.xlu0 %1391
      %v1393 = vsel %vm1340, %v1386, %v1388
      %v1394 = vsel %vm1340, %v1388, %v1390
      %v1395 = vsel %vm1340, %v1390, %v1392
      %v1401 = vmul.f32 %v1361, %v1386
      %v1402 = vmul.f32 %v1362, %v1393
      %v1403 = vmul.f32 %v1363, %v1394
      %v1404 = vmul.f32 %v1364, %v1395
      %v1405 = vmul.f32 %v1365, %v1392
      %1411 = vrot.lane.b32.xlu0 %v1401, 127
      %v1412 = vpop.permute.xlu0 %1411
      %1413 = vrot.lane.b32.xlu0 %v1402, 127
      %v1414 = vpop.permute.xlu0 %1413
      %1415 = vrot.lane.b32.xlu0 %v1403, 127
      %v1416 = vpop.permute.xlu0 %1415
      %1417 = vrot.lane.b32.xlu0 %v1404, 127
      %v1418 = vpop.permute.xlu0 %1417
      %1419 = vrot.lane.b32.xlu0 %v1405, 127
      %v1420 = vpop.permute.xlu0 %1419
      %v1421 = vsel %vm1311, %v1412, %v1414
      %v1422 = vsel %vm1311, %v1414, %v1416
      %v1423 = vsel %vm1311, %v1416, %v1418
      %v1424 = vsel %vm1311, %v1418, %v1420
      %1429 = vst [vmem:[#allocation3 + $0x1c0] sm:$0xff] %v1421
      %1430 = vst [vmem:[#allocation3 + $0x1c8] sm:$0xff] %v1422
      %1431 = vst [vmem:[#allocation3 + $0x1d0] sm:$0xff] %v1423
      %1432 = vst [vmem:[#allocation3 + $0x1d8] sm:$0xff] %v1424
      %v1433 = vld [vmem:[#allocation2 + $0x8] sm:$0xff]
      %v1434 = vld [vmem:[#allocation2 + $0x10] sm:$0xff]
      %v1435 = vld [vmem:[#allocation2 + $0x18] sm:$0xff]
      %v1436 = vld [vmem:[#allocation2 + $0x20] sm:$0xff]
      %v1437 = vld [vmem:[#allocation2 + $0x28] sm:$0xff]
      %s1438 = scalar_lea.vmem %s1, 39
      %v1439 = vld [vmem:[%s1438] ss:$8 sm:$0xf]
      %v1441 = vlaneseq
      %v1442 = vshrl.u32 %v1441, 7
      %v1443 = vsub.s32 0, %v1442
      %v1444 = vrot.slane %v1439, %v1443
      %v1445 = vlaneseq
      %v1446 = vshrl.u32 %v1445, 7
      %v1447 = vsub.s32 1, %v1446
      %v1448 = vrot.slane %v1439, %v1447
      %v1449 = vlaneseq
      %v1450 = vshrl.u32 %v1449, 7
      %v1451 = vsub.s32 2, %v1450
      %v1452 = vrot.slane %v1439, %v1451
      %v1453 = vlaneseq
      %v1454 = vshrl.u32 %v1453, 7
      %v1455 = vsub.s32 3, %v1454
      %v1456 = vrot.slane %v1439, %v1455
      %1457 = vrot.lane.b32.xlu0 %v1444, 7
      %v1458 = vpop.permute.xlu0 %1457
      %1459 = vrot.lane.b32.xlu0 %v1448, 7
      %v1460 = vpop.permute.xlu0 %1459
      %1461 = vrot.lane.b32.xlu0 %v1452, 7
      %v1462 = vpop.permute.xlu0 %1461
      %1463 = vrot.lane.b32.xlu0 %v1456, 7
      %v1464 = vpop.permute.xlu0 %1463
      %v1465 = vsel %vm1266, %v1458, %v1460
      %v1466 = vsel %vm1266, %v1460, %v1462
      %v1467 = vsel %vm1266, %v1462, %v1464
      %v1473 = vmul.f32 %v1433, %v1458
      %v1474 = vmul.f32 %v1434, %v1465
      %v1475 = vmul.f32 %v1435, %v1466
      %v1476 = vmul.f32 %v1436, %v1467
      %v1477 = vmul.f32 %v1437, %v1464
      %1483 = vrot.lane.b32.xlu0 %v1473, 121
      %v1484 = vpop.permute.xlu0 %1483
      %1485 = vrot.lane.b32.xlu0 %v1474, 121
      %v1486 = vpop.permute.xlu0 %1485
      %1487 = vrot.lane.b32.xlu0 %v1475, 121
      %v1488 = vpop.permute.xlu0 %1487
      %1489 = vrot.lane.b32.xlu0 %v1476, 121
      %v1490 = vpop.permute.xlu0 %1489
      %1491 = vrot.lane.b32.xlu0 %v1477, 121
      %v1492 = vpop.permute.xlu0 %1491
      %v1493 = vsel %vm1237, %v1484, %v1486
      %v1494 = vsel %vm1237, %v1486, %v1488
      %v1495 = vsel %vm1237, %v1488, %v1490
      %v1496 = vsel %vm1237, %v1490, %v1492
      %1501 = vst [vmem:[#allocation3 + $0x1e0] sm:$0xff] %v1493
      %1502 = vst [vmem:[#allocation3 + $0x1e8] sm:$0xff] %v1494
      %1503 = vst [vmem:[#allocation3 + $0x1f0] sm:$0xff] %v1495
      %1504 = vst [vmem:[#allocation3 + $0x1f8] sm:$0xff] %v1496
      %v1505 = vld [vmem:[#allocation2 + $0x8] sm:$0xff]
      %v1506 = vld [vmem:[#allocation2 + $0x10] sm:$0xff]
      %v1507 = vld [vmem:[#allocation2 + $0x18] sm:$0xff]
      %v1508 = vld [vmem:[#allocation2 + $0x20] sm:$0xff]
      %v1509 = vld [vmem:[#allocation2 + $0x28] sm:$0xff]
      %s1510 = scalar_lea.vmem %s1, 64
      %v1511 = vld [vmem:[%s1510] ss:$8 sm:$0xf]
      %v1513 = vlaneseq
      %v1514 = vshrl.u32 %v1513, 7
      %v1515 = vsub.s32 0, %v1514
      %v1516 = vrot.slane %v1511, %v1515
      %v1517 = vlaneseq
      %v1518 = vshrl.u32 %v1517, 7
      %v1519 = vsub.s32 1, %v1518
      %v1520 = vrot.slane %v1511, %v1519
      %v1521 = vlaneseq
      %v1522 = vshrl.u32 %v1521, 7
      %v1523 = vsub.s32 2, %v1522
      %v1524 = vrot.slane %v1511, %v1523
      %v1525 = vlaneseq
      %v1526 = vshrl.u32 %v1525, 7
      %v1527 = vsub.s32 3, %v1526
      %v1528 = vrot.slane %v1511, %v1527
      %1529 = vrot.lane.b32.xlu0 %v1516, 8
      %v1530 = vpop.permute.xlu0 %1529
      %1531 = vrot.lane.b32.xlu0 %v1520, 8
      %v1532 = vpop.permute.xlu0 %1531
      %1533 = vrot.lane.b32.xlu0 %v1524, 8
      %v1534 = vpop.permute.xlu0 %1533
      %1535 = vrot.lane.b32.xlu0 %v1528, 8
      %v1536 = vpop.permute.xlu0 %1535
      %v1537 = vsel %vm1192, %v1530, %v1532
      %v1538 = vsel %vm1192, %v1532, %v1534
      %v1539 = vsel %vm1192, %v1534, %v1536
      %v1545 = vmul.f32 %v1505, %v1530
      %v1546 = vmul.f32 %v1506, %v1537
      %v1547 = vmul.f32 %v1507, %v1538
      %v1548 = vmul.f32 %v1508, %v1539
      %v1549 = vmul.f32 %v1509, %v1536
      %1555 = vrot.lane.b32.xlu0 %v1545, 120
      %v1556 = vpop.permute.xlu0 %1555
      %1557 = vrot.lane.b32.xlu0 %v1546, 120
      %v1558 = vpop.permute.xlu0 %1557
      %1559 = vrot.lane.b32.xlu0 %v1547, 120
      %v1560 = vpop.permute.xlu0 %1559
      %1561 = vrot.lane.b32.xlu0 %v1548, 120
      %v1562 = vpop.permute.xlu0 %1561
      %1563 = vrot.lane.b32.xlu0 %v1549, 120
      %v1564 = vpop.permute.xlu0 %1563
      %v1565 = vsel %vm1163, %v1556, %v1558
      %v1566 = vsel %vm1163, %v1558, %v1560
      %v1567 = vsel %vm1163, %v1560, %v1562
      %v1568 = vsel %vm1163, %v1562, %v1564
      %1573 = vst [vmem:[#allocation3 + $0x200] sm:$0xff] %v1565
      %1574 = vst [vmem:[#allocation3 + $0x208] sm:$0xff] %v1566
      %1575 = vst [vmem:[#allocation3 + $0x210] sm:$0xff] %v1567
      %1576 = vst [vmem:[#allocation3 + $0x218] sm:$0xff] %v1568
      %v1577 = vld [vmem:[#allocation2 + $0x8] sm:$0xff]
      %v1578 = vld [vmem:[#allocation2 + $0x10] sm:$0xff]
      %v1579 = vld [vmem:[#allocation2 + $0x18] sm:$0xff]
      %v1580 = vld [vmem:[#allocation2 + $0x20] sm:$0xff]
      %v1581 = vld [vmem:[#allocation2 + $0x28] sm:$0xff]
      %s1582 = scalar_lea.vmem %s1, 65
      %v1583 = vld [vmem:[%s1582] ss:$8 sm:$0xf]
      %v1585 = vlaneseq
      %v1586 = vshrl.u32 %v1585, 7
      %v1587 = vsub.s32 0, %v1586
      %v1588 = vrot.slane %v1583, %v1587
      %v1589 = vlaneseq
      %v1590 = vshrl.u32 %v1589, 7
      %v1591 = vsub.s32 1, %v1590
      %v1592 = vrot.slane %v1583, %v1591
      %v1593 = vlaneseq
      %v1594 = vshrl.u32 %v1593, 7
      %v1595 = vsub.s32 2, %v1594
      %v1596 = vrot.slane %v1583, %v1595
      %v1597 = vlaneseq
      %v1598 = vshrl.u32 %v1597, 7
      %v1599 = vsub.s32 3, %v1598
      %v1600 = vrot.slane %v1583, %v1599
      %1601 = vrot.lane.b32.xlu0 %v1588, 9
      %v1602 = vpop.permute.xlu0 %1601
      %1603 = vrot.lane.b32.xlu0 %v1592, 9
      %v1604 = vpop.permute.xlu0 %1603
      %1605 = vrot.lane.b32.xlu0 %v1596, 9
      %v1606 = vpop.permute.xlu0 %1605
      %1607 = vrot.lane.b32.xlu0 %v1600, 9
      %v1608 = vpop.permute.xlu0 %1607
      %v1609 = vsel %vm1118, %v1602, %v1604
      %v1610 = vsel %vm1118, %v1604, %v1606
      %v1611 = vsel %vm1118, %v1606, %v1608
      %v1617 = vmul.f32 %v1577, %v1602
      %v1618 = vmul.f32 %v1578, %v1609
      %v1619 = vmul.f32 %v1579, %v1610
      %v1620 = vmul.f32 %v1580, %v1611
      %v1621 = vmul.f32 %v1581, %v1608
      %1627 = vrot.lane.b32.xlu0 %v1617, 119
      %v1628 = vpop.permute.xlu0 %1627
      %1629 = vrot.lane.b32.xlu0 %v1618, 119
      %v1630 = vpop.permute.xlu0 %1629
      %1631 = vrot.lane.b32.xlu0 %v1619, 119
      %v1632 = vpop.permute.xlu0 %1631
      %1633 = vrot.lane.b32.xlu0 %v1620, 119
      %v1634 = vpop.permute.xlu0 %1633
      %1635 = vrot.lane.b32.xlu0 %v1621, 119
      %v1636 = vpop.permute.xlu0 %1635
      %v1637 = vsel %vm1089, %v1628, %v1630
      %v1638 = vsel %vm1089, %v1630, %v1632
      %v1639 = vsel %vm1089, %v1632, %v1634
      %v1640 = vsel %vm1089, %v1634, %v1636
      %1645 = vst [vmem:[#allocation3 + $0x220] sm:$0xff] %v1637
      %1646 = vst [vmem:[#allocation3 + $0x228] sm:$0xff] %v1638
      %1647 = vst [vmem:[#allocation3 + $0x230] sm:$0xff] %v1639
      %1648 = vst [vmem:[#allocation3 + $0x238] sm:$0xff] %v1640
      %v1649 = vld [vmem:[#allocation2 + $0x8] sm:$0xff]
      %v1650 = vld [vmem:[#allocation2 + $0x10] sm:$0xff]
      %v1651 = vld [vmem:[#allocation2 + $0x18] sm:$0xff]
      %v1652 = vld [vmem:[#allocation2 + $0x20] sm:$0xff]
      %v1653 = vld [vmem:[#allocation2 + $0x28] sm:$0xff]
      %s1654 = scalar_lea.vmem %s1, 66
      %v1655 = vld [vmem:[%s1654] ss:$8 sm:$0xf]
      %v1657 = vlaneseq
      %v1658 = vshrl.u32 %v1657, 7
      %v1659 = vsub.s32 0, %v1658
      %v1660 = vrot.slane %v1655, %v1659
      %v1661 = vlaneseq
      %v1662 = vshrl.u32 %v1661, 7
      %v1663 = vsub.s32 1, %v1662
      %v1664 = vrot.slane %v1655, %v1663
      %v1665 = vlaneseq
      %v1666 = vshrl.u32 %v1665, 7
      %v1667 = vsub.s32 2, %v1666
      %v1668 = vrot.slane %v1655, %v1667
      %v1669 = vlaneseq
      %v1670 = vshrl.u32 %v1669, 7
      %v1671 = vsub.s32 3, %v1670
      %v1672 = vrot.slane %v1655, %v1671
      %1673 = vrot.lane.b32.xlu0 %v1660, 55
      %v1674 = vpop.permute.xlu0 %1673
      %1675 = vrot.lane.b32.xlu0 %v1664, 55
      %v1676 = vpop.permute.xlu0 %1675
      %1677 = vrot.lane.b32.xlu0 %v1668, 55
      %v1678 = vpop.permute.xlu0 %1677
      %1679 = vrot.lane.b32.xlu0 %v1672, 55
      %v1680 = vpop.permute.xlu0 %1679
      %v1681 = vsel %vm432, %v1674, %v1676
      %v1682 = vsel %vm432, %v1676, %v1678
      %v1683 = vsel %vm432, %v1678, %v1680
      %v1689 = vmul.f32 %v1649, %v1674
      %v1690 = vmul.f32 %v1650, %v1681
      %v1691 = vmul.f32 %v1651, %v1682
      %v1692 = vmul.f32 %v1652, %v1683
      %v1693 = vmul.f32 %v1653, %v1680
      %1699 = vrot.lane.b32.xlu0 %v1689, 73
      %v1700 = vpop.permute.xlu0 %1699
      %1701 = vrot.lane.b32.xlu0 %v1690, 73
      %v1702 = vpop.permute.xlu0 %1701
      %1703 = vrot.lane.b32.xlu0 %v1691, 73
      %v1704 = vpop.permute.xlu0 %1703
      %1705 = vrot.lane.b32.xlu0 %v1692, 73
      %v1706 = vpop.permute.xlu0 %1705
      %1707 = vrot.lane.b32.xlu0 %v1693, 73
      %v1708 = vpop.permute.xlu0 %1707
      %v1709 = vsel %vm461, %v1700, %v1702
      %v1710 = vsel %vm461, %v1702, %v1704
      %v1711 = vsel %vm461, %v1704, %v1706
      %v1712 = vsel %vm461, %v1706, %v1708
      %1717 = vst [vmem:[#allocation3 + $0x240] sm:$0xff] %v1709
      %1718 = vst [vmem:[#allocation3 + $0x248] sm:$0xff] %v1710
      %1719 = vst [vmem:[#allocation3 + $0x250] sm:$0xff] %v1711
      %1720 = vst [vmem:[#allocation3 + $0x258] sm:$0xff] %v1712
      %v1721 = vld [vmem:[#allocation2 + $0x8] sm:$0xff]
      %v1722 = vld [vmem:[#allocation2 + $0x10] sm:$0xff]
      %v1723 = vld [vmem:[#allocation2 + $0x18] sm:$0xff]
      %v1724 = vld [vmem:[#allocation2 + $0x20] sm:$0xff]
      %v1725 = vld [vmem:[#allocation2 + $0x28] sm:$0xff]
      %s1726 = scalar_lea.vmem %s1, 67
      %v1727 = vld [vmem:[%s1726] ss:$8 sm:$0xf]
      %v1729 = vlaneseq
      %v1730 = vshrl.u32 %v1729, 7
      %v1731 = vsub.s32 0, %v1730
      %v1732 = vrot.slane %v1727, %v1731
      %v1733 = vlaneseq
      %v1734 = vshrl.u32 %v1733, 7
      %v1735 = vsub.s32 1, %v1734
      %v1736 = vrot.slane %v1727, %v1735
      %v1737 = vlaneseq
      %v1738 = vshrl.u32 %v1737, 7
      %v1739 = vsub.s32 2, %v1738
      %v1740 = vrot.slane %v1727, %v1739
      %v1741 = vlaneseq
      %v1742 = vshrl.u32 %v1741, 7
      %v1743 = vsub.s32 3, %v1742
      %v1744 = vrot.slane %v1727, %v1743
      %1745 = vrot.lane.b32.xlu0 %v1732, 56
      %v1746 = vpop.permute.xlu0 %1745
      %1747 = vrot.lane.b32.xlu0 %v1736, 56
      %v1748 = vpop.permute.xlu0 %1747
      %1749 = vrot.lane.b32.xlu0 %v1740, 56
      %v1750 = vpop.permute.xlu0 %1749
      %1751 = vrot.lane.b32.xlu0 %v1744, 56
      %v1752 = vpop.permute.xlu0 %1751
      %v1753 = vsel %vm506, %v1746, %v1748
      %v1754 = vsel %vm506, %v1748, %v1750
      %v1755 = vsel %vm506, %v1750, %v1752
      %v1761 = vmul.f32 %v1721, %v1746
      %v1762 = vmul.f32 %v1722, %v1753
      %v1763 = vmul.f32 %v1723, %v1754
      %v1764 = vmul.f32 %v1724, %v1755
      %v1765 = vmul.f32 %v1725, %v1752
      %1771 = vrot.lane.b32.xlu0 %v1761, 72
      %v1772 = vpop.permute.xlu0 %1771
      %1773 = vrot.lane.b32.xlu0 %v1762, 72
      %v1774 = vpop.permute.xlu0 %1773
      %1775 = vrot.lane.b32.xlu0 %v1763, 72
      %v1776 = vpop.permute.xlu0 %1775
      %1777 = vrot.lane.b32.xlu0 %v1764, 72
      %v1778 = vpop.permute.xlu0 %1777
      %1779 = vrot.lane.b32.xlu0 %v1765, 72
      %v1780 = vpop.permute.xlu0 %1779
      %v1781 = vsel %vm535, %v1772, %v1774
      %v1782 = vsel %vm535, %v1774, %v1776
      %v1783 = vsel %vm535, %v1776, %v1778
      %v1784 = vsel %vm535, %v1778, %v1780
      %1789 = vst [vmem:[#allocation3 + $0x260] sm:$0xff] %v1781
      %1790 = vst [vmem:[#allocation3 + $0x268] sm:$0xff] %v1782
      %1791 = vst [vmem:[#allocation3 + $0x270] sm:$0xff] %v1783
      %1792 = vst [vmem:[#allocation3 + $0x278] sm:$0xff] %v1784
      %v1793 = vld [vmem:[#allocation2 + $0x8] sm:$0xff]
      %v1794 = vld [vmem:[#allocation2 + $0x10] sm:$0xff]
      %v1795 = vld [vmem:[#allocation2 + $0x18] sm:$0xff]
      %v1796 = vld [vmem:[#allocation2 + $0x20] sm:$0xff]
      %v1797 = vld [vmem:[#allocation2 + $0x28] sm:$0xff]
      %s1798 = scalar_lea.vmem %s1, 68
      %v1799 = vld [vmem:[%s1798] ss:$8 sm:$0xf]
      %v1801 = vlaneseq
      %v1802 = vshrl.u32 %v1801, 7
      %v1803 = vsub.s32 0, %v1802
      %v1804 = vrot.slane %v1799, %v1803
      %v1805 = vlaneseq
      %v1806 = vshrl.u32 %v1805, 7
      %v1807 = vsub.s32 1, %v1806
      %v1808 = vrot.slane %v1799, %v1807
      %v1809 = vlaneseq
      %v1810 = vshrl.u32 %v1809, 7
      %v1811 = vsub.s32 2, %v1810
      %v1812 = vrot.slane %v1799, %v1811
      %v1813 = vlaneseq
      %v1814 = vshrl.u32 %v1813, 7
      %v1815 = vsub.s32 3, %v1814
      %v1816 = vrot.slane %v1799, %v1815
      %1817 = vrot.lane.b32.xlu0 %v1804, 57
      %v1818 = vpop.permute.xlu0 %1817
      %1819 = vrot.lane.b32.xlu0 %v1808, 57
      %v1820 = vpop.permute.xlu0 %1819
      %1821 = vrot.lane.b32.xlu0 %v1812, 57
      %v1822 = vpop.permute.xlu0 %1821
      %1823 = vrot.lane.b32.xlu0 %v1816, 57
      %v1824 = vpop.permute.xlu0 %1823
      %v1825 = vsel %vm580, %v1818, %v1820
      %v1826 = vsel %vm580, %v1820, %v1822
      %v1827 = vsel %vm580, %v1822, %v1824
      %v1833 = vmul.f32 %v1793, %v1818
      %v1834 = vmul.f32 %v1794, %v1825
      %v1835 = vmul.f32 %v1795, %v1826
      %v1836 = vmul.f32 %v1796, %v1827
      %v1837 = vmul.f32 %v1797, %v1824
      %1843 = vrot.lane.b32.xlu0 %v1833, 71
      %v1844 = vpop.permute.xlu0 %1843
      %1845 = vrot.lane.b32.xlu0 %v1834, 71
      %v1846 = vpop.permute.xlu0 %1845
      %1847 = vrot.lane.b32.xlu0 %v1835, 71
      %v1848 = vpop.permute.xlu0 %1847
      %1849 = vrot.lane.b32.xlu0 %v1836, 71
      %v1850 = vpop.permute.xlu0 %1849
      %1851 = vrot.lane.b32.xlu0 %v1837, 71
      %v1852 = vpop.permute.xlu0 %1851
      %v1853 = vsel %vm609, %v1844, %v1846
      %v1854 = vsel %vm609, %v1846, %v1848
      %v1855 = vsel %vm609, %v1848, %v1850
      %v1856 = vsel %vm609, %v1850, %v1852
      %1861 = vst [vmem:[#allocation3 + $0x280] sm:$0xff] %v1853
      %1862 = vst [vmem:[#allocation3 + $0x288] sm:$0xff] %v1854
      %1863 = vst [vmem:[#allocation3 + $0x290] sm:$0xff] %v1855
      %1864 = vst [vmem:[#allocation3 + $0x298] sm:$0xff] %v1856
      %v1865 = vld [vmem:[#allocation2 + $0x8] sm:$0xff]
      %v1866 = vld [vmem:[#allocation2 + $0x10] sm:$0xff]
      %v1867 = vld [vmem:[#allocation2 + $0x18] sm:$0xff]
      %v1868 = vld [vmem:[#allocation2 + $0x20] sm:$0xff]
      %v1869 = vld [vmem:[#allocation2 + $0x28] sm:$0xff]
      %s1870 = scalar_lea.vmem %s1, 69
      %v1871 = vld [vmem:[%s1870] ss:$8 sm:$0xf]
      %v1873 = vlaneseq
      %v1874 = vshrl.u32 %v1873, 7
      %v1875 = vsub.s32 0, %v1874
      %v1876 = vrot.slane %v1871, %v1875
      %v1877 = vlaneseq
      %v1878 = vshrl.u32 %v1877, 7
      %v1879 = vsub.s32 1, %v1878
      %v1880 = vrot.slane %v1871, %v1879
      %v1881 = vlaneseq
      %v1882 = vshrl.u32 %v1881, 7
      %v1883 = vsub.s32 2, %v1882
      %v1884 = vrot.slane %v1871, %v1883
      %v1885 = vlaneseq
      %v1886 = vshrl.u32 %v1885, 7
      %v1887 = vsub.s32 3, %v1886
      %v1888 = vrot.slane %v1871, %v1887
      %1889 = vrot.lane.b32.xlu0 %v1876, 63
      %v1890 = vpop.permute.xlu0 %1889
      %1891 = vrot.lane.b32.xlu0 %v1880, 63
      %v1892 = vpop.permute.xlu0 %1891
      %1893 = vrot.lane.b32.xlu0 %v1884, 63
      %v1894 = vpop.permute.xlu0 %1893
      %1895 = vrot.lane.b32.xlu0 %v1888, 63
      %v1896 = vpop.permute.xlu0 %1895
      %v1897 = vsel %vm654, %v1890, %v1892
      %v1898 = vsel %vm654, %v1892, %v1894
      %v1899 = vsel %vm654, %v1894, %v1896
      %v1905 = vmul.f32 %v1865, %v1890
      %v1906 = vmul.f32 %v1866, %v1897
      %v1907 = vmul.f32 %v1867, %v1898
      %v1908 = vmul.f32 %v1868, %v1899
      %v1909 = vmul.f32 %v1869, %v1896
      %1915 = vrot.lane.b32.xlu0 %v1905, 65
      %v1916 = vpop.permute.xlu0 %1915
      %1917 = vrot.lane.b32.xlu0 %v1906, 65
      %v1918 = vpop.permute.xlu0 %1917
      %1919 = vrot.lane.b32.xlu0 %v1907, 65
      %v1920 = vpop.permute.xlu0 %1919
      %1921 = vrot.lane.b32.xlu0 %v1908, 65
      %v1922 = vpop.permute.xlu0 %1921
      %1923 = vrot.lane.b32.xlu0 %v1909, 65
      %v1924 = vpop.permute.xlu0 %1923
      %v1925 = vsel %vm683, %v1916, %v1918
      %v1926 = vsel %vm683, %v1918, %v1920
      %v1927 = vsel %vm683, %v1920, %v1922
      %v1928 = vsel %vm683, %v1922, %v1924
      %1933 = vst [vmem:[#allocation3 + $0x2a0] sm:$0xff] %v1925
      %1934 = vst [vmem:[#allocation3 + $0x2a8] sm:$0xff] %v1926
      %1935 = vst [vmem:[#allocation3 + $0x2b0] sm:$0xff] %v1927
      %1936 = vst [vmem:[#allocation3 + $0x2b8] sm:$0xff] %v1928
      %v1937 = vld [vmem:[#allocation2 + $0x8] sm:$0xff]
      %v1938 = vld [vmem:[#allocation2 + $0x10] sm:$0xff]
      %v1939 = vld [vmem:[#allocation2 + $0x18] sm:$0xff]
      %v1940 = vld [vmem:[#allocation2 + $0x20] sm:$0xff]
      %v1941 = vld [vmem:[#allocation2 + $0x28] sm:$0xff]
      %s1942 = scalar_lea.vmem %s1, 70
      %v1943 = vld [vmem:[%s1942] ss:$8 sm:$0xf]
      %v1945 = vlaneseq
      %v1946 = vshrl.u32 %v1945, 7
      %v1947 = vsub.s32 0, %v1946
      %v1948 = vrot.slane %v1943, %v1947
      %v1949 = vlaneseq
      %v1950 = vshrl.u32 %v1949, 7
      %v1951 = vsub.s32 1, %v1950
      %v1952 = vrot.slane %v1943, %v1951
      %v1953 = vlaneseq
      %v1954 = vshrl.u32 %v1953, 7
      %v1955 = vsub.s32 2, %v1954
      %v1956 = vrot.slane %v1943, %v1955
      %v1957 = vlaneseq
      %v1958 = vshrl.u32 %v1957, 7
      %v1959 = vsub.s32 3, %v1958
      %v1960 = vrot.slane %v1943, %v1959
      %1961 = vrot.lane.b32.xlu0 %v1948, 64
      %v1962 = vpop.permute.xlu0 %1961
      %1963 = vrot.lane.b32.xlu0 %v1952, 64
      %v1964 = vpop.permute.xlu0 %1963
      %1965 = vrot.lane.b32.xlu0 %v1956, 64
      %v1966 = vpop.permute.xlu0 %1965
      %1967 = vrot.lane.b32.xlu0 %v1960, 64
      %v1968 = vpop.permute.xlu0 %1967
      %v1969 = vsel %vm728, %v1962, %v1964
      %v1970 = vsel %vm728, %v1964, %v1966
      %v1971 = vsel %vm728, %v1966, %v1968
      %v1977 = vmul.f32 %v1937, %v1962
      %v1978 = vmul.f32 %v1938, %v1969
      %v1979 = vmul.f32 %v1939, %v1970
      %v1980 = vmul.f32 %v1940, %v1971
      %v1981 = vmul.f32 %v1941, %v1968
      %1987 = vrot.lane.b32.xlu0 %v1977, 64
      %v1988 = vpop.permute.xlu0 %1987
      %1989 = vrot.lane.b32.xlu0 %v1978, 64
      %v1990 = vpop.permute.xlu0 %1989
      %1991 = vrot.lane.b32.xlu0 %v1979, 64
      %v1992 = vpop.permute.xlu0 %1991
      %1993 = vrot.lane.b32.xlu0 %v1980, 64
      %v1994 = vpop.permute.xlu0 %1993
      %1995 = vrot.lane.b32.xlu0 %v1981, 64
      %v1996 = vpop.permute.xlu0 %1995
      %v1997 = vsel %vm728, %v1988, %v1990
      %v1998 = vsel %vm728, %v1990, %v1992
      %v1999 = vsel %vm728, %v1992, %v1994
      %v2000 = vsel %vm728, %v1994, %v1996
      %2005 = vst [vmem:[#allocation3 + $0x2c0] sm:$0xff] %v1997
      %2006 = vst [vmem:[#allocation3 + $0x2c8] sm:$0xff] %v1998
      %2007 = vst [vmem:[#allocation3 + $0x2d0] sm:$0xff] %v1999
      %2008 = vst [vmem:[#allocation3 + $0x2d8] sm:$0xff] %v2000
      %v2009 = vld [vmem:[#allocation2 + $0x8] sm:$0xff]
      %v2010 = vld [vmem:[#allocation2 + $0x10] sm:$0xff]
      %v2011 = vld [vmem:[#allocation2 + $0x18] sm:$0xff]
      %v2012 = vld [vmem:[#allocation2 + $0x20] sm:$0xff]
      %v2013 = vld [vmem:[#allocation2 + $0x28] sm:$0xff]
      %s2014 = scalar_lea.vmem %s1, 71
      %v2015 = vld [vmem:[%s2014] ss:$8 sm:$0xf]
      %v2017 = vlaneseq
      %v2018 = vshrl.u32 %v2017, 7
      %v2019 = vsub.s32 0, %v2018
      %v2020 = vrot.slane %v2015, %v2019
      %v2021 = vlaneseq
      %v2022 = vshrl.u32 %v2021, 7
      %v2023 = vsub.s32 1, %v2022
      %v2024 = vrot.slane %v2015, %v2023
      %v2025 = vlaneseq
      %v2026 = vshrl.u32 %v2025, 7
      %v2027 = vsub.s32 2, %v2026
      %v2028 = vrot.slane %v2015, %v2027
      %v2029 = vlaneseq
      %v2030 = vshrl.u32 %v2029, 7
      %v2031 = vsub.s32 3, %v2030
      %v2032 = vrot.slane %v2015, %v2031
      %2033 = vrot.lane.b32.xlu0 %v2020, 65
      %v2034 = vpop.permute.xlu0 %2033
      %2035 = vrot.lane.b32.xlu0 %v2024, 65
      %v2036 = vpop.permute.xlu0 %2035
      %2037 = vrot.lane.b32.xlu0 %v2028, 65
      %v2038 = vpop.permute.xlu0 %2037
      %2039 = vrot.lane.b32.xlu0 %v2032, 65
      %v2040 = vpop.permute.xlu0 %2039
      %v2041 = vsel %vm683, %v2034, %v2036
      %v2042 = vsel %vm683, %v2036, %v2038
      %v2043 = vsel %vm683, %v2038, %v2040
      %v2049 = vmul.f32 %v2009, %v2034
      %v2050 = vmul.f32 %v2010, %v2041
      %v2051 = vmul.f32 %v2011, %v2042
      %v2052 = vmul.f32 %v2012, %v2043
      %v2053 = vmul.f32 %v2013, %v2040
      %2059 = vrot.lane.b32.xlu0 %v2049, 63
      %v2060 = vpop.permute.xlu0 %2059
      %2061 = vrot.lane.b32.xlu0 %v2050, 63
      %v2062 = vpop.permute.xlu0 %2061
      %2063 = vrot.lane.b32.xlu0 %v2051, 63
      %v2064 = vpop.permute.xlu0 %2063
      %2065 = vrot.lane.b32.xlu0 %v2052, 63
      %v2066 = vpop.permute.xlu0 %2065
      %2067 = vrot.lane.b32.xlu0 %v2053, 63
      %v2068 = vpop.permute.xlu0 %2067
      %v2069 = vsel %vm654, %v2060, %v2062
      %v2070 = vsel %vm654, %v2062, %v2064
      %v2071 = vsel %vm654, %v2064, %v2066
      %v2072 = vsel %vm654, %v2066, %v2068
      %2077 = vst [vmem:[#allocation3 + $0x2e0] sm:$0xff] %v2069
      %2078 = vst [vmem:[#allocation3 + $0x2e8] sm:$0xff] %v2070
      %2079 = vst [vmem:[#allocation3 + $0x2f0] sm:$0xff] %v2071
      %2080 = vst [vmem:[#allocation3 + $0x2f8] sm:$0xff] %v2072
      %v2081 = vld [vmem:[#allocation2 + $0x8] sm:$0xff]
      %v2082 = vld [vmem:[#allocation2 + $0x10] sm:$0xff]
      %v2083 = vld [vmem:[#allocation2 + $0x18] sm:$0xff]
      %v2084 = vld [vmem:[#allocation2 + $0x20] sm:$0xff]
      %v2085 = vld [vmem:[#allocation2 + $0x28] sm:$0xff]
      %s2086 = scalar_lea.vmem %s1, 96
      %v2087 = vld [vmem:[%s2086] ss:$8 sm:$0xf]
      %v2089 = vlaneseq
      %v2090 = vshrl.u32 %v2089, 7
      %v2091 = vsub.s32 0, %v2090
      %v2092 = vrot.slane %v2087, %v2091
      %v2093 = vlaneseq
      %v2094 = vshrl.u32 %v2093, 7
      %v2095 = vsub.s32 1, %v2094
      %v2096 = vrot.slane %v2087, %v2095
      %v2097 = vlaneseq
      %v2098 = vshrl.u32 %v2097, 7
      %v2099 = vsub.s32 2, %v2098
      %v2100 = vrot.slane %v2087, %v2099
      %v2101 = vlaneseq
      %v2102 = vshrl.u32 %v2101, 7
      %v2103 = vsub.s32 3, %v2102
      %v2104 = vrot.slane %v2087, %v2103
      %2105 = vrot.lane.b32.xlu0 %v2092, 71
      %v2106 = vpop.permute.xlu0 %2105
      %2107 = vrot.lane.b32.xlu0 %v2096, 71
      %v2108 = vpop.permute.xlu0 %2107
      %2109 = vrot.lane.b32.xlu0 %v2100, 71
      %v2110 = vpop.permute.xlu0 %2109
      %2111 = vrot.lane.b32.xlu0 %v2104, 71
      %v2112 = vpop.permute.xlu0 %2111
      %v2113 = vsel %vm609, %v2106, %v2108
      %v2114 = vsel %vm609, %v2108, %v2110
      %v2115 = vsel %vm609, %v2110, %v2112
      %v2121 = vmul.f32 %v2081, %v2106
      %v2122 = vmul.f32 %v2082, %v2113
      %v2123 = vmul.f32 %v2083, %v2114
      %v2124 = vmul.f32 %v2084, %v2115
      %v2125 = vmul.f32 %v2085, %v2112
      %2131 = vrot.lane.b32.xlu0 %v2121, 57
      %v2132 = vpop.permute.xlu0 %2131
      %2133 = vrot.lane.b32.xlu0 %v2122, 57
      %v2134 = vpop.permute.xlu0 %2133
      %2135 = vrot.lane.b32.xlu0 %v2123, 57
      %v2136 = vpop.permute.xlu0 %2135
      %2137 = vrot.lane.b32.xlu0 %v2124, 57
      %v2138 = vpop.permute.xlu0 %2137
      %2139 = vrot.lane.b32.xlu0 %v2125, 57
      %v2140 = vpop.permute.xlu0 %2139
      %v2141 = vsel %vm580, %v2132, %v2134
      %v2142 = vsel %vm580, %v2134, %v2136
      %v2143 = vsel %vm580, %v2136, %v2138
      %v2144 = vsel %vm580, %v2138, %v2140
      %2149 = vst [vmem:[#allocation3 + $0x300] sm:$0xff] %v2141
      %2150 = vst [vmem:[#allocation3 + $0x308] sm:$0xff] %v2142
      %2151 = vst [vmem:[#allocation3 + $0x310] sm:$0xff] %v2143
      %2152 = vst [vmem:[#allocation3 + $0x318] sm:$0xff] %v2144
      %v2153 = vld [vmem:[#allocation2 + $0x8] sm:$0xff]
      %v2154 = vld [vmem:[#allocation2 + $0x10] sm:$0xff]
      %v2155 = vld [vmem:[#allocation2 + $0x18] sm:$0xff]
      %v2156 = vld [vmem:[#allocation2 + $0x20] sm:$0xff]
      %v2157 = vld [vmem:[#allocation2 + $0x28] sm:$0xff]
      %s2158 = scalar_lea.vmem %s1, 97
      %v2159 = vld [vmem:[%s2158] ss:$8 sm:$0xf]
      %v2161 = vlaneseq
      %v2162 = vshrl.u32 %v2161, 7
      %v2163 = vsub.s32 0, %v2162
      %v2164 = vrot.slane %v2159, %v2163
      %v2165 = vlaneseq
      %v2166 = vshrl.u32 %v2165, 7
      %v2167 = vsub.s32 1, %v2166
      %v2168 = vrot.slane %v2159, %v2167
      %v2169 = vlaneseq
      %v2170 = vshrl.u32 %v2169, 7
      %v2171 = vsub.s32 2, %v2170
      %v2172 = vrot.slane %v2159, %v2171
      %v2173 = vlaneseq
      %v2174 = vshrl.u32 %v2173, 7
      %v2175 = vsub.s32 3, %v2174
      %v2176 = vrot.slane %v2159, %v2175
      %2177 = vrot.lane.b32.xlu0 %v2164, 72
      %v2178 = vpop.permute.xlu0 %2177
      %2179 = vrot.lane.b32.xlu0 %v2168, 72
      %v2180 = vpop.permute.xlu0 %2179
      %2181 = vrot.lane.b32.xlu0 %v2172, 72
      %v2182 = vpop.permute.xlu0 %2181
      %2183 = vrot.lane.b32.xlu0 %v2176, 72
      %v2184 = vpop.permute.xlu0 %2183
      %v2185 = vsel %vm535, %v2178, %v2180
      %v2186 = vsel %vm535, %v2180, %v2182
      %v2187 = vsel %vm535, %v2182, %v2184
      %v2193 = vmul.f32 %v2153, %v2178
      %v2194 = vmul.f32 %v2154, %v2185
      %v2195 = vmul.f32 %v2155, %v2186
      %v2196 = vmul.f32 %v2156, %v2187
      %v2197 = vmul.f32 %v2157, %v2184
      %2203 = vrot.lane.b32.xlu0 %v2193, 56
      %v2204 = vpop.permute.xlu0 %2203
      %2205 = vrot.lane.b32.xlu0 %v2194, 56
      %v2206 = vpop.permute.xlu0 %2205
      %2207 = vrot.lane.b32.xlu0 %v2195, 56
      %v2208 = vpop.permute.xlu0 %2207
      %2209 = vrot.lane.b32.xlu0 %v2196, 56
      %v2210 = vpop.permute.xlu0 %2209
      %2211 = vrot.lane.b32.xlu0 %v2197, 56
      %v2212 = vpop.permute.xlu0 %2211
      %v2213 = vsel %vm506, %v2204, %v2206
      %v2214 = vsel %vm506, %v2206, %v2208
      %v2215 = vsel %vm506, %v2208, %v2210
      %v2216 = vsel %vm506, %v2210, %v2212
      %2221 = vst [vmem:[#allocation3 + $0x320] sm:$0xff] %v2213
      %2222 = vst [vmem:[#allocation3 + $0x328] sm:$0xff] %v2214
      %2223 = vst [vmem:[#allocation3 + $0x330] sm:$0xff] %v2215
      %2224 = vst [vmem:[#allocation3 + $0x338] sm:$0xff] %v2216
      %v2225 = vld [vmem:[#allocation2 + $0x8] sm:$0xff]
      %v2226 = vld [vmem:[#allocation2 + $0x10] sm:$0xff]
      %v2227 = vld [vmem:[#allocation2 + $0x18] sm:$0xff]
      %v2228 = vld [vmem:[#allocation2 + $0x20] sm:$0xff]
      %v2229 = vld [vmem:[#allocation2 + $0x28] sm:$0xff]
      %s2230 = scalar_lea.vmem %s1, 98
      %v2231 = vld [vmem:[%s2230] ss:$8 sm:$0xf]
      %v2233 = vlaneseq
      %v2234 = vshrl.u32 %v2233, 7
      %v2235 = vsub.s32 0, %v2234
      %v2236 = vrot.slane %v2231, %v2235
      %v2237 = vlaneseq
      %v2238 = vshrl.u32 %v2237, 7
      %v2239 = vsub.s32 1, %v2238
      %v2240 = vrot.slane %v2231, %v2239
      %v2241 = vlaneseq
      %v2242 = vshrl.u32 %v2241, 7
      %v2243 = vsub.s32 2, %v2242
      %v2244 = vrot.slane %v2231, %v2243
      %v2245 = vlaneseq
      %v2246 = vshrl.u32 %v2245, 7
      %v2247 = vsub.s32 3, %v2246
      %v2248 = vrot.slane %v2231, %v2247
      %2249 = vrot.lane.b32.xlu0 %v2236, 73
      %v2250 = vpop.permute.xlu0 %2249
      %2251 = vrot.lane.b32.xlu0 %v2240, 73
      %v2252 = vpop.permute.xlu0 %2251
      %2253 = vrot.lane.b32.xlu0 %v2244, 73
      %v2254 = vpop.permute.xlu0 %2253
      %2255 = vrot.lane.b32.xlu0 %v2248, 73
      %v2256 = vpop.permute.xlu0 %2255
      %v2257 = vsel %vm461, %v2250, %v2252
      %v2258 = vsel %vm461, %v2252, %v2254
      %v2259 = vsel %vm461, %v2254, %v2256
      %v2265 = vmul.f32 %v2225, %v2250
      %v2266 = vmul.f32 %v2226, %v2257
      %v2267 = vmul.f32 %v2227, %v2258
      %v2268 = vmul.f32 %v2228, %v2259
      %v2269 = vmul.f32 %v2229, %v2256
      %2275 = vrot.lane.b32.xlu0 %v2265, 55
      %v2276 = vpop.permute.xlu0 %2275
      %2277 = vrot.lane.b32.xlu0 %v2266, 55
      %v2278 = vpop.permute.xlu0 %2277
      %2279 = vrot.lane.b32.xlu0 %v2267, 55
      %v2280 = vpop.permute.xlu0 %2279
      %2281 = vrot.lane.b32.xlu0 %v2268, 55
      %v2282 = vpop.permute.xlu0 %2281
      %2283 = vrot.lane.b32.xlu0 %v2269, 55
      %v2284 = vpop.permute.xlu0 %2283
      %v2285 = vsel %vm432, %v2276, %v2278
      %v2286 = vsel %vm432, %v2278, %v2280
      %v2287 = vsel %vm432, %v2280, %v2282
      %v2288 = vsel %vm432, %v2282, %v2284
      %2293 = vst [vmem:[#allocation3 + $0x340] sm:$0xff] %v2285
      %2294 = vst [vmem:[#allocation3 + $0x348] sm:$0xff] %v2286
      %2295 = vst [vmem:[#allocation3 + $0x350] sm:$0xff] %v2287
      %2296 = vst [vmem:[#allocation3 + $0x358] sm:$0xff] %v2288
      %v2297 = vld [vmem:[#allocation3] sm:$0xff]
      %v2298 = vld [vmem:[#allocation3 + $0x8] sm:$0xff]
      %v2299 = vld [vmem:[#allocation3 + $0x10] sm:$0xff]
      %v2300 = vld [vmem:[#allocation3 + $0x18] sm:$0xff]
      %v2301 = vld [vmem:[#allocation3 + $0x20] sm:$0xff]
      %v2302 = vld [vmem:[#allocation3 + $0x28] sm:$0xff]
      %v2303 = vld [vmem:[#allocation3 + $0x30] sm:$0xff]
      %v2304 = vld [vmem:[#allocation3 + $0x38] sm:$0xff]
      %v2305 = vld [vmem:[#allocation3 + $0x40] sm:$0xff]
      %v2306 = vld [vmem:[#allocation3 + $0x48] sm:$0xff]
      %v2307 = vld [vmem:[#allocation3 + $0x50] sm:$0xff]
      %v2308 = vld [vmem:[#allocation3 + $0x58] sm:$0xff]
      %v2309 = vld [vmem:[#allocation3 + $0x60] sm:$0xff]
      %v2310 = vld [vmem:[#allocation3 + $0x68] sm:$0xff]
      %v2311 = vld [vmem:[#allocation3 + $0x70] sm:$0xff]
      %v2312 = vld [vmem:[#allocation3 + $0x78] sm:$0xff]
      %v2313 = vld [vmem:[#allocation3 + $0x80] sm:$0xff]
      %v2314 = vld [vmem:[#allocation3 + $0x88] sm:$0xff]
      %v2315 = vld [vmem:[#allocation3 + $0x90] sm:$0xff]
      %v2316 = vld [vmem:[#allocation3 + $0x98] sm:$0xff]
      %v2317 = vld [vmem:[#allocation3 + $0xa0] sm:$0xff]
      %v2318 = vld [vmem:[#allocation3 + $0xa8] sm:$0xff]
      %v2319 = vld [vmem:[#allocation3 + $0xb0] sm:$0xff]
      %v2320 = vld [vmem:[#allocation3 + $0xb8] sm:$0xff]
      %v2321 = vld [vmem:[#allocation3 + $0xc0] sm:$0xff]
      %v2322 = vld [vmem:[#allocation3 + $0xc8] sm:$0xff]
      %v2323 = vld [vmem:[#allocation3 + $0xd0] sm:$0xff]
      %v2324 = vld [vmem:[#allocation3 + $0xd8] sm:$0xff]
      %v2325 = vld [vmem:[#allocation3 + $0xe0] sm:$0xff]
      %v2326 = vld [vmem:[#allocation3 + $0xe8] sm:$0xff]
      %v2327 = vld [vmem:[#allocation3 + $0xf0] sm:$0xff]
      %v2328 = vld [vmem:[#allocation3 + $0xf8] sm:$0xff]
      %v2329 = vld [vmem:[#allocation3 + $0x100] sm:$0xff]
      %v2330 = vld [vmem:[#allocation3 + $0x108] sm:$0xff]
      %v2331 = vld [vmem:[#allocation3 + $0x110] sm:$0xff]
      %v2332 = vld [vmem:[#allocation3 + $0x118] sm:$0xff]
      %v2333 = vld [vmem:[#allocation3 + $0x120] sm:$0xff]
      %v2334 = vld [vmem:[#allocation3 + $0x128] sm:$0xff]
      %v2335 = vld [vmem:[#allocation3 + $0x130] sm:$0xff]
      %v2336 = vld [vmem:[#allocation3 + $0x138] sm:$0xff]
      %v2337 = vld [vmem:[#allocation3 + $0x140] sm:$0xff]
      %v2338 = vld [vmem:[#allocation3 + $0x148] sm:$0xff]
      %v2339 = vld [vmem:[#allocation3 + $0x150] sm:$0xff]
      %v2340 = vld [vmem:[#allocation3 + $0x158] sm:$0xff]
      %v2341 = vld [vmem:[#allocation3 + $0x160] sm:$0xff]
      %v2342 = vld [vmem:[#allocation3 + $0x168] sm:$0xff]
      %v2343 = vld [vmem:[#allocation3 + $0x170] sm:$0xff]
      %v2344 = vld [vmem:[#allocation3 + $0x178] sm:$0xff]
      %v2345 = vld [vmem:[#allocation3 + $0x180] sm:$0xff]
      %v2346 = vld [vmem:[#allocation3 + $0x188] sm:$0xff]
      %v2347 = vld [vmem:[#allocation3 + $0x190] sm:$0xff]
      %v2348 = vld [vmem:[#allocation3 + $0x198] sm:$0xff]
      %v2349 = vld [vmem:[#allocation3 + $0x1a0] sm:$0xff]
      %v2350 = vld [vmem:[#allocation3 + $0x1a8] sm:$0xff]
      %v2351 = vld [vmem:[#allocation3 + $0x1b0] sm:$0xff]
      %v2352 = vld [vmem:[#allocation3 + $0x1b8] sm:$0xff]
      %v2353 = vld [vmem:[#allocation3 + $0x1c0] sm:$0xff]
      %v2354 = vld [vmem:[#allocation3 + $0x1c8] sm:$0xff]
      %v2355 = vld [vmem:[#allocation3 + $0x1d0] sm:$0xff]
      %v2356 = vld [vmem:[#allocation3 + $0x1d8] sm:$0xff]
      %v2357 = vld [vmem:[#allocation3 + $0x1e0] sm:$0xff]
      %v2358 = vld [vmem:[#allocation3 + $0x1e8] sm:$0xff]
      %v2359 = vld [vmem:[#allocation3 + $0x1f0] sm:$0xff]
      %v2360 = vld [vmem:[#allocation3 + $0x1f8] sm:$0xff]
      %v2361 = vld [vmem:[#allocation3 + $0x200] sm:$0xff]
      %v2362 = vld [vmem:[#allocation3 + $0x208] sm:$0xff]
      %v2363 = vld [vmem:[#allocation3 + $0x210] sm:$0xff]
      %v2364 = vld [vmem:[#allocation3 + $0x218] sm:$0xff]
      %v2365 = vld [vmem:[#allocation3 + $0x220] sm:$0xff]
      %v2366 = vld [vmem:[#allocation3 + $0x228] sm:$0xff]
      %v2367 = vld [vmem:[#allocation3 + $0x230] sm:$0xff]
      %v2368 = vld [vmem:[#allocation3 + $0x238] sm:$0xff]
      %v2369 = vld [vmem:[#allocation3 + $0x240] sm:$0xff]
      %v2370 = vld [vmem:[#allocation3 + $0x248] sm:$0xff]
      %v2371 = vld [vmem:[#allocation3 + $0x250] sm:$0xff]
      %v2372 = vld [vmem:[#allocation3 + $0x258] sm:$0xff]
      %v2373 = vld [vmem:[#allocation3 + $0x260] sm:$0xff]
      %v2374 = vld [vmem:[#allocation3 + $0x268] sm:$0xff]
      %v2375 = vld [vmem:[#allocation3 + $0x270] sm:$0xff]
      %v2376 = vld [vmem:[#allocation3 + $0x278] sm:$0xff]
      %v2377 = vld [vmem:[#allocation3 + $0x280] sm:$0xff]
      %v2378 = vld [vmem:[#allocation3 + $0x288] sm:$0xff]
      %v2379 = vld [vmem:[#allocation3 + $0x290] sm:$0xff]
      %v2380 = vld [vmem:[#allocation3 + $0x298] sm:$0xff]
      %v2381 = vld [vmem:[#allocation3 + $0x2a0] sm:$0xff]
      %v2382 = vld [vmem:[#allocation3 + $0x2a8] sm:$0xff]
      %v2383 = vld [vmem:[#allocation3 + $0x2b0] sm:$0xff]
      %v2384 = vld [vmem:[#allocation3 + $0x2b8] sm:$0xff]
      %v2385 = vld [vmem:[#allocation3 + $0x2c0] sm:$0xff]
      %v2386 = vld [vmem:[#allocation3 + $0x2c8] sm:$0xff]
      %v2387 = vld [vmem:[#allocation3 + $0x2d0] sm:$0xff]
      %v2388 = vld [vmem:[#allocation3 + $0x2d8] sm:$0xff]
      %v2389 = vld [vmem:[#allocation3 + $0x2e0] sm:$0xff]
      %v2390 = vld [vmem:[#allocation3 + $0x2e8] sm:$0xff]
      %v2391 = vld [vmem:[#allocation3 + $0x2f0] sm:$0xff]
      %v2392 = vld [vmem:[#allocation3 + $0x2f8] sm:$0xff]
      %v2393 = vld [vmem:[#allocation3 + $0x300] sm:$0xff]
      %v2394 = vld [vmem:[#allocation3 + $0x308] sm:$0xff]
      %v2395 = vld [vmem:[#allocation3 + $0x310] sm:$0xff]
      %v2396 = vld [vmem:[#allocation3 + $0x318] sm:$0xff]
      %v2397 = vld [vmem:[#allocation3 + $0x320] sm:$0xff]
      %v2398 = vld [vmem:[#allocation3 + $0x328] sm:$0xff]
      %v2399 = vld [vmem:[#allocation3 + $0x330] sm:$0xff]
      %v2400 = vld [vmem:[#allocation3 + $0x338] sm:$0xff]
      %v2401 = vld [vmem:[#allocation3 + $0x340] sm:$0xff]
      %v2402 = vld [vmem:[#allocation3 + $0x348] sm:$0xff]
      %v2403 = vld [vmem:[#allocation3 + $0x350] sm:$0xff]
      %v2404 = vld [vmem:[#allocation3 + $0x358] sm:$0xff]
      %v2405 = vpack.c.bf16 %v2301, %v2297
      %v2406 = vpack.c.bf16 %v2302, %v2298
      %v2407 = vpack.c.bf16 %v2303, %v2299
      %v2408 = vpack.c.bf16 %v2304, %v2300
      %v2409 = vpack.c.bf16 %v2309, %v2305
      %v2410 = vpack.c.bf16 %v2310, %v2306
      %v2411 = vpack.c.bf16 %v2311, %v2307
      %v2412 = vpack.c.bf16 %v2312, %v2308
      %v2413 = vpack.c.bf16 %v2317, %v2313
      %v2414 = vpack.c.bf16 %v2318, %v2314
      %v2415 = vpack.c.bf16 %v2319, %v2315
      %v2416 = vpack.c.bf16 %v2320, %v2316
      %v2417 = vpack.c.bf16 %v2325, %v2321
      %v2418 = vpack.c.bf16 %v2326, %v2322
      %v2419 = vpack.c.bf16 %v2327, %v2323
      %v2420 = vpack.c.bf16 %v2328, %v2324
      %v2421 = vpack.c.bf16 %v2333, %v2329
      %v2422 = vpack.c.bf16 %v2334, %v2330
      %v2423 = vpack.c.bf16 %v2335, %v2331
      %v2424 = vpack.c.bf16 %v2336, %v2332
      %v2425 = vpack.c.bf16 %v2341, %v2337
      %v2426 = vpack.c.bf16 %v2342, %v2338
      %v2427 = vpack.c.bf16 %v2343, %v2339
      %v2428 = vpack.c.bf16 %v2344, %v2340
      %v2429 = vpack.c.bf16 %v2349, %v2345
      %v2430 = vpack.c.bf16 %v2350, %v2346
      %v2431 = vpack.c.bf16 %v2351, %v2347
      %v2432 = vpack.c.bf16 %v2352, %v2348
      %v2433 = vpack.c.bf16 %v2357, %v2353
      %v2434 = vpack.c.bf16 %v2358, %v2354
      %v2435 = vpack.c.bf16 %v2359, %v2355
      %v2436 = vpack.c.bf16 %v2360, %v2356
      %v2437 = vpack.c.bf16 %v2365, %v2361
      %v2438 = vpack.c.bf16 %v2366, %v2362
      %v2439 = vpack.c.bf16 %v2367, %v2363
      %v2440 = vpack.c.bf16 %v2368, %v2364
      %v2441 = vpack.c.bf16 %v2373, %v2369
      %v2442 = vpack.c.bf16 %v2374, %v2370
      %v2443 = vpack.c.bf16 %v2375, %v2371
      %v2444 = vpack.c.bf16 %v2376, %v2372
      %v2445 = vpack.c.bf16 %v2381, %v2377
      %v2446 = vpack.c.bf16 %v2382, %v2378
      %v2447 = vpack.c.bf16 %v2383, %v2379
      %v2448 = vpack.c.bf16 %v2384, %v2380
      %v2449 = vpack.c.bf16 %v2389, %v2385
      %v2450 = vpack.c.bf16 %v2390, %v2386
      %v2451 = vpack.c.bf16 %v2391, %v2387
      %v2452 = vpack.c.bf16 %v2392, %v2388
      %v2453 = vpack.c.bf16 %v2397, %v2393
      %v2454 = vpack.c.bf16 %v2398, %v2394
      %v2455 = vpack.c.bf16 %v2399, %v2395
      %v2456 = vpack.c.bf16 %v2400, %v2396
      %v2457 = vpack.c.bf16 %v2401, %v2401
      %v2458 = vpack.c.bf16 %v2402, %v2402
      %v2459 = vpack.c.bf16 %v2403, %v2403
      %v2460 = vpack.c.bf16 %v2404, %v2404
      %v2461 = vld [vmem:[%s2] sm:$0xff]
      %v2462 = vld [vmem:[%s3] sm:$0xff]
      %2464 = vset.pattern.permute.xlu0 0
      %2465 = vperm.xlu0 %2464, %v2462
      %v2466 = vpop.permute.xlu0 %2465
      %v2469 = vunpack.c.l.b16 %v2461
      %v2470 = vunpack.c.h.b16 %v2461
      %v2471 = vpack.c.b16 %v2469, %v2469
      %v2472 = vpack.c.b16 %v2470, %v2470
      %vm2474 = vcmask 719872
      %v2476 = vsel %vm2474, %v2472, 0
      %vm2478 = vcmask 1043456
      %v2480 = vsel %vm2478, %v2457, 0
      %v2483 = vsel %vm2478, %v2458, 0
      %v2486 = vsel %vm2478, %v2459, 0
      %v2489 = vsel %vm2478, %v2460, 0
      %2491 = vmatprep.subr.bf16.mxu0 %v2434
      %2492 = vmatpush1.bf16.msra.mxu0 %v2433
      %2493 = vmatprep.subr.bf16.mxu0 %v2430
      %2494 = vmatpush1.bf16.msra.mxu0 %v2429
      %2495 = vmatprep.subr.bf16.mxu0 %v2426
      %2496 = vmatpush1.bf16.msra.mxu0 %v2425
      %2497 = vmatprep.subr.bf16.mxu0 %v2422
      %2498 = vmatpush1.bf16.msra.mxu0 %v2421
      %2499 = vmatprep.subr.bf16.mxu0 %v2418
      %2500 = vmatpush1.bf16.msra.mxu0 %v2417
      %2501 = vmatprep.subr.bf16.mxu0 %v2414
      %2502 = vmatpush1.bf16.msra.mxu0 %v2413
      %2503 = vmatprep.subr.bf16.mxu0 %v2410
      %2504 = vmatpush1.bf16.msra.mxu0 %v2409
      %2505 = vmatprep.subr.bf16.mxu0 %v2406
      %2506 = vmatpush1.bf16.msra.mxu0 %v2405
      %2507 = vmatprep.subr.bf16.mxu0 0
      %2508 = vmatpush2.bf16.msra.mxu0 0
      %2509 = vmatprep.subr.bf16.mxu0 0
      %2510 = vmatpush2.bf16.msra.mxu0 0
      %2511 = vmatprep.subr.bf16.mxu0 %v2483
      %2512 = vmatpush2.bf16.msra.mxu0 %v2480
      %2513 = vmatprep.subr.bf16.mxu0 %v2454
      %2514 = vmatpush2.bf16.msra.mxu0 %v2453
      %2515 = vmatprep.subr.bf16.mxu0 %v2450
      %2516 = vmatpush2.bf16.msra.mxu0 %v2449
      %2517 = vmatprep.subr.bf16.mxu0 %v2446
      %2518 = vmatpush2.bf16.msra.mxu0 %v2445
      %2519 = vmatprep.subr.bf16.mxu0 %v2442
      %2520 = vmatpush2.bf16.msra.mxu0 %v2441
      %2521 = vmatprep.subr.bf16.mxu0 %v2438
      %2522 = vmatpush2.bf16.msra.mxu0 %v2437
      %2523 = vmatprep.mubr.bf16.mxu0 %v2476
      %2524 = vmatmul.mubr.bf16.gmra.mxu0 %v2471
      %v2525 = vpop.f32.mrf.mxu0
      %v2526 = vadd.f32 %v2466, %v2525
      %v2527 = vpop.f32.mrf.mxu0
      %v2528 = vadd.f32 %v2466, %v2527
      %v2529 = vpop.f32.mrf.mxu0
      %v2530 = vpop.f32.mrf.mxu0
      %2531 = vdwg.mxu0
      %2532 = vmatprep.subr.bf16.mxu0 %v2436
      %2533 = vmatpush1.bf16.msra.mxu0 %v2435
      %2534 = vmatprep.subr.bf16.mxu0 %v2432
      %2535 = vmatpush1.bf16.msra.mxu0 %v2431
      %2536 = vmatprep.subr.bf16.mxu0 %v2428
      %2537 = vmatpush1.bf16.msra.mxu0 %v2427
      %2538 = vmatprep.subr.bf16.mxu0 %v2424
      %2539 = vmatpush1.bf16.msra.mxu0 %v2423
      %2540 = vmatprep.subr.bf16.mxu0 %v2420
      %2541 = vmatpush1.bf16.msra.mxu0 %v2419
      %2542 = vmatprep.subr.bf16.mxu0 %v2416
      %2543 = vmatpush1.bf16.msra.mxu0 %v2415
      %2544 = vmatprep.subr.bf16.mxu0 %v2412
      %2545 = vmatpush1.bf16.msra.mxu0 %v2411
      %2546 = vmatprep.subr.bf16.mxu0 %v2408
      %2547 = vmatpush1.bf16.msra.mxu0 %v2407
      %2548 = vmatprep.subr.bf16.mxu0 0
      %2549 = vmatpush2.bf16.msra.mxu0 0
      %2550 = vmatprep.subr.bf16.mxu0 0
      %2551 = vmatpush2.bf16.msra.mxu0 0
      %2552 = vmatprep.subr.bf16.mxu0 %v2489
      %2553 = vmatpush2.bf16.msra.mxu0 %v2486
      %2554 = vmatprep.subr.bf16.mxu0 %v2456
      %2555 = vmatpush2.bf16.msra.mxu0 %v2455
      %2556 = vmatprep.subr.bf16.mxu0 %v2452
      %2557 = vmatpush2.bf16.msra.mxu0 %v2451
      %2558 = vmatprep.subr.bf16.mxu0 %v2448
      %2559 = vmatpush2.bf16.msra.mxu0 %v2447
      %2560 = vmatprep.subr.bf16.mxu0 %v2444
      %2561 = vmatpush2.bf16.msra.mxu0 %v2443
      %2562 = vmatprep.subr.bf16.mxu0 %v2440
      %2563 = vmatpush2.bf16.msra.mxu0 %v2439
      %2564 = vmatprep.mubr.bf16.mxu0 %v2476
      %2565 = vmatmul.mubr.bf16.gmra.mxu0 %v2471
      %v2566 = vpop.f32.mrf.mxu0
      %v2567 = vadd.f32 %v2466, %v2566
      %v2568 = vpop.f32.mrf.mxu0
      %v2569 = vadd.f32 %v2466, %v2568
      %v2570 = vpop.f32.mrf.mxu0
      %v2571 = vpop.f32.mrf.mxu0
      %2572 = vdwg.mxu0
      %v2573 = vadd.f32 %v2526, %v2528
      %v2574 = vadd.f32 %v2573, %v2567
      %v2575 = vadd.f32 %v2574, %v2569
      %2576 = vadd.xlane.f32.xlu0 %v2575
      %v2577 = vpop.xlane.xlu0 %2576
      %v2578 = vmul.f32 %v2577, 0.001953125
      %v2579 = vsub.f32 %v2526, %v2578
      %v2580 = vsub.f32 %v2528, %v2578
      %v2581 = vsub.f32 %v2567, %v2578
      %v2582 = vsub.f32 %v2569, %v2578
      %v2583 = vmul.f32 %v2579, %v2579
      %v2584 = vmul.f32 %v2580, %v2580
      %v2585 = vmul.f32 %v2581, %v2581
      %v2586 = vmul.f32 %v2582, %v2582
      %v2587 = vadd.f32 %v2583, %v2584
      %v2588 = vadd.f32 %v2587, %v2585
      %v2589 = vadd.f32 %v2588, %v2586
      %2590 = vadd.xlane.f32.xlu0 %v2589
      %v2591 = vpop.xlane.xlu0 %2590
      %v2592 = vmul.f32 %v2591, 0.001953125
      %v2593 = vadd.f32 %v2592, 1e-05
      %v2594 = vrsqrt.pop %v2593
      %v2595 = vmul.f32 %v2579, %v2594
      %v2596 = vmul.f32 %v2580, %v2594
      %v2597 = vmul.f32 %v2581, %v2594
      %v2598 = vmul.f32 %v2582, %v2594
      %v2599 = vmax.f32 %v2595, 0.0
      %v2600 = vmax.f32 %v2596, 0.0
      %v2601 = vmax.f32 %v2597, 0.0
      %v2602 = vmax.f32 %v2598, 0.0
      %2603 = vst [vmem:[#allocation2 + $0x8] sm:$0xff] %v2599
      %2604 = vst [vmem:[#allocation2 + $0x10] sm:$0xff] %v2600
      %2605 = vst [vmem:[#allocation2 + $0x18] sm:$0xff] %v2601
      %2606 = vst [vmem:[#allocation2 + $0x20] sm:$0xff] %v2602
      %v2607 = vld [vmem:[#allocation2] sm:$0xff]
      %v2608 = vld [vmem:[#allocation2 + $0x8] sm:$0xff]
      %v2609 = vld [vmem:[#allocation2 + $0x10] sm:$0xff]
      %v2610 = vld [vmem:[#allocation2 + $0x18] sm:$0xff]
      %v2611 = vld [vmem:[#allocation2 + $0x20] sm:$0xff]
      %v2612 = vld [vmem:[%s1] ss:$8 sm:$0xf]
      %v2614 = vlaneseq
      %v2615 = vshrl.u32 %v2614, 7
      %v2616 = vsub.s32 0, %v2615
      %v2617 = vrot.slane %v2612, %v2616
      %v2618 = vlaneseq
      %v2619 = vshrl.u32 %v2618, 7
      %v2620 = vsub.s32 1, %v2619
      %v2621 = vrot.slane %v2612, %v2620
      %v2622 = vlaneseq
      %v2623 = vshrl.u32 %v2622, 7
      %v2624 = vsub.s32 2, %v2623
      %v2625 = vrot.slane %v2612, %v2624
      %v2626 = vlaneseq
      %v2627 = vshrl.u32 %v2626, 7
      %v2628 = vsub.s32 3, %v2627
      %v2629 = vrot.slane %v2612, %v2628
      %2630 = vrot.lane.b32.xlu0 %v2617, 55
      %v2631 = vpop.permute.xlu0 %2630
      %2632 = vrot.lane.b32.xlu0 %v2621, 55
      %v2633 = vpop.permute.xlu0 %2632
      %2634 = vrot.lane.b32.xlu0 %v2625, 55
      %v2635 = vpop.permute.xlu0 %2634
      %2636 = vrot.lane.b32.xlu0 %v2629, 55
      %v2637 = vpop.permute.xlu0 %2636
      %v2638 = vsel %vm432, %v2631, %v2633
      %v2639 = vsel %vm432, %v2633, %v2635
      %v2640 = vsel %vm432, %v2635, %v2637
      %v2646 = vmul.f32 %v2607, %v2631
      %v2647 = vmul.f32 %v2608, %v2638
      %v2648 = vmul.f32 %v2609, %v2639
      %v2649 = vmul.f32 %v2610, %v2640
      %v2650 = vmul.f32 %v2611, %v2637
      %2656 = vrot.lane.b32.xlu0 %v2646, 73
      %v2657 = vpop.permute.xlu0 %2656
      %2658 = vrot.lane.b32.xlu0 %v2647, 73
      %v2659 = vpop.permute.xlu0 %2658
      %2660 = vrot.lane.b32.xlu0 %v2648, 73
      %v2661 = vpop.permute.xlu0 %2660
      %2662 = vrot.lane.b32.xlu0 %v2649, 73
      %v2663 = vpop.permute.xlu0 %2662
      %2664 = vrot.lane.b32.xlu0 %v2650, 73
      %v2665 = vpop.permute.xlu0 %2664
      %v2666 = vsel %vm461, %v2657, %v2659
      %v2667 = vsel %vm461, %v2659, %v2661
      %v2668 = vsel %vm461, %v2661, %v2663
      %v2669 = vsel %vm461, %v2663, %v2665
      %2674 = vst [vmem:[#allocation3] sm:$0xff] %v2666
      %2675 = vst [vmem:[#allocation3 + $0x8] sm:$0xff] %v2667
      %2676 = vst [vmem:[#allocation3 + $0x10] sm:$0xff] %v2668
      %2677 = vst [vmem:[#allocation3 + $0x18] sm:$0xff] %v2669
      %v2678 = vld [vmem:[#allocation2] sm:$0xff]
      %v2679 = vld [vmem:[#allocation2 + $0x8] sm:$0xff]
      %v2680 = vld [vmem:[#allocation2 + $0x10] sm:$0xff]
      %v2681 = vld [vmem:[#allocation2 + $0x18] sm:$0xff]
      %v2682 = vld [vmem:[#allocation2 + $0x20] sm:$0xff]
      %v2683 = vld [vmem:[%s479] ss:$8 sm:$0xf]
      %v2685 = vlaneseq
      %v2686 = vshrl.u32 %v2685, 7
      %v2687 = vsub.s32 0, %v2686
      %v2688 = vrot.slane %v2683, %v2687
      %v2689 = vlaneseq
      %v2690 = vshrl.u32 %v2689, 7
      %v2691 = vsub.s32 1, %v2690
      %v2692 = vrot.slane %v2683, %v2691
      %v2693 = vlaneseq
      %v2694 = vshrl.u32 %v2693, 7
      %v2695 = vsub.s32 2, %v2694
      %v2696 = vrot.slane %v2683, %v2695
      %v2697 = vlaneseq
      %v2698 = vshrl.u32 %v2697, 7
      %v2699 = vsub.s32 3, %v2698
      %v2700 = vrot.slane %v2683, %v2699
      %2701 = vrot.lane.b32.xlu0 %v2688, 56
      %v2702 = vpop.permute.xlu0 %2701
      %2703 = vrot.lane.b32.xlu0 %v2692, 56
      %v2704 = vpop.permute.xlu0 %2703
      %2705 = vrot.lane.b32.xlu0 %v2696, 56
      %v2706 = vpop.permute.xlu0 %2705
      %2707 = vrot.lane.b32.xlu0 %v2700, 56
      %v2708 = vpop.permute.xlu0 %2707
      %v2709 = vsel %vm506, %v2702, %v2704
      %v2710 = vsel %vm506, %v2704, %v2706
      %v2711 = vsel %vm506, %v2706, %v2708
      %v2717 = vmul.f32 %v2678, %v2702
      %v2718 = vmul.f32 %v2679, %v2709
      %v2719 = vmul.f32 %v2680, %v2710
      %v2720 = vmul.f32 %v2681, %v2711
      %v2721 = vmul.f32 %v2682, %v2708
      %2727 = vrot.lane.b32.xlu0 %v2717, 72
      %v2728 = vpop.permute.xlu0 %2727
      %2729 = vrot.lane.b32.xlu0 %v2718, 72
      %v2730 = vpop.permute.xlu0 %2729
      %2731 = vrot.lane.b32.xlu0 %v2719, 72
      %v2732 = vpop.permute.xlu0 %2731
      %2733 = vrot.lane.b32.xlu0 %v2720, 72
      %v2734 = vpop.permute.xlu0 %2733
      %2735 = vrot.lane.b32.xlu0 %v2721, 72
      %v2736 = vpop.permute.xlu0 %2735
      %v2737 = vsel %vm535, %v2728, %v2730
      %v2738 = vsel %vm535, %v2730, %v2732
      %v2739 = vsel %vm535, %v2732, %v2734
      %v2740 = vsel %vm535, %v2734, %v2736
      %2745 = vst [vmem:[#allocation3 + $0x20] sm:$0xff] %v2737
      %2746 = vst [vmem:[#allocation3 + $0x28] sm:$0xff] %v2738
      %2747 = vst [vmem:[#allocation3 + $0x30] sm:$0xff] %v2739
      %2748 = vst [vmem:[#allocation3 + $0x38] sm:$0xff] %v2740
      %v2749 = vld [vmem:[#allocation2] sm:$0xff]
      %v2750 = vld [vmem:[#allocation2 + $0x8] sm:$0xff]
      %v2751 = vld [vmem:[#allocation2 + $0x10] sm:$0xff]
      %v2752 = vld [vmem:[#allocation2 + $0x18] sm:$0xff]
      %v2753 = vld [vmem:[#allocation2 + $0x20] sm:$0xff]
      %v2754 = vld [vmem:[%s553] ss:$8 sm:$0xf]
      %v2756 = vlaneseq
      %v2757 = vshrl.u32 %v2756, 7
      %v2758 = vsub.s32 0, %v2757
      %v2759 = vrot.slane %v2754, %v2758
      %v2760 = vlaneseq
      %v2761 = vshrl.u32 %v2760, 7
      %v2762 = vsub.s32 1, %v2761
      %v2763 = vrot.slane %v2754, %v2762
      %v2764 = vlaneseq
      %v2765 = vshrl.u32 %v2764, 7
      %v2766 = vsub.s32 2, %v2765
      %v2767 = vrot.slane %v2754, %v2766
      %v2768 = vlaneseq
      %v2769 = vshrl.u32 %v2768, 7
      %v2770 = vsub.s32 3, %v2769
      %v2771 = vrot.slane %v2754, %v2770
      %2772 = vrot.lane.b32.xlu0 %v2759, 57
      %v2773 = vpop.permute.xlu0 %2772
      %2774 = vrot.lane.b32.xlu0 %v2763, 57
      %v2775 = vpop.permute.xlu0 %2774
      %2776 = vrot.lane.b32.xlu0 %v2767, 57
      %v2777 = vpop.permute.xlu0 %2776
      %2778 = vrot.lane.b32.xlu0 %v2771, 57
      %v2779 = vpop.permute.xlu0 %2778
      %v2780 = vsel %vm580, %v2773, %v2775
      %v2781 = vsel %vm580, %v2775, %v2777
      %v2782 = vsel %vm580, %v2777, %v2779
      %v2788 = vmul.f32 %v2749, %v2773
      %v2789 = vmul.f32 %v2750, %v2780
      %v2790 = vmul.f32 %v2751, %v2781
      %v2791 = vmul.f32 %v2752, %v2782
      %v2792 = vmul.f32 %v2753, %v2779
      %2798 = vrot.lane.b32.xlu0 %v2788, 71
      %v2799 = vpop.permute.xlu0 %2798
      %2800 = vrot.lane.b32.xlu0 %v2789, 71
      %v2801 = vpop.permute.xlu0 %2800
      %2802 = vrot.lane.b32.xlu0 %v2790, 71
      %v2803 = vpop.permute.xlu0 %2802
      %2804 = vrot.lane.b32.xlu0 %v2791, 71
      %v2805 = vpop.permute.xlu0 %2804
      %2806 = vrot.lane.b32.xlu0 %v2792, 71
      %v2807 = vpop.permute.xlu0 %2806
      %v2808 = vsel %vm609, %v2799, %v2801
      %v2809 = vsel %vm609, %v2801, %v2803
      %v2810 = vsel %vm609, %v2803, %v2805
      %v2811 = vsel %vm609, %v2805, %v2807
      %2816 = vst [vmem:[#allocation3 + $0x40] sm:$0xff] %v2808
      %2817 = vst [vmem:[#allocation3 + $0x48] sm:$0xff] %v2809
      %2818 = vst [vmem:[#allocation3 + $0x50] sm:$0xff] %v2810
      %2819 = vst [vmem:[#allocation3 + $0x58] sm:$0xff] %v2811
      %v2820 = vld [vmem:[#allocation2] sm:$0xff]
      %v2821 = vld [vmem:[#allocation2 + $0x8] sm:$0xff]
      %v2822 = vld [vmem:[#allocation2 + $0x10] sm:$0xff]
      %v2823 = vld [vmem:[#allocation2 + $0x18] sm:$0xff]
      %v2824 = vld [vmem:[#allocation2 + $0x20] sm:$0xff]
      %v2825 = vld [vmem:[%s627] ss:$8 sm:$0xf]
      %v2827 = vlaneseq
      %v2828 = vshrl.u32 %v2827, 7
      %v2829 = vsub.s32 0, %v2828
      %v2830 = vrot.slane %v2825, %v2829
      %v2831 = vlaneseq
      %v2832 = vshrl.u32 %v2831, 7
      %v2833 = vsub.s32 1, %v2832
      %v2834 = vrot.slane %v2825, %v2833
      %v2835 = vlaneseq
      %v2836 = vshrl.u32 %v2835, 7
      %v2837 = vsub.s32 2, %v2836
      %v2838 = vrot.slane %v2825, %v2837
      %v2839 = vlaneseq
      %v2840 = vshrl.u32 %v2839, 7
      %v2841 = vsub.s32 3, %v2840
      %v2842 = vrot.slane %v2825, %v2841
      %2843 = vrot.lane.b32.xlu0 %v2830, 63
      %v2844 = vpop.permute.xlu0 %2843
      %2845 = vrot.lane.b32.xlu0 %v2834, 63
      %v2846 = vpop.permute.xlu0 %2845
      %2847 = vrot.lane.b32.xlu0 %v2838, 63
      %v2848 = vpop.permute.xlu0 %2847
      %2849 = vrot.lane.b32.xlu0 %v2842, 63
      %v2850 = vpop.permute.xlu0 %2849
      %v2851 = vsel %vm654, %v2844, %v2846
      %v2852 = vsel %vm654, %v2846, %v2848
      %v2853 = vsel %vm654, %v2848, %v2850
      %v2859 = vmul.f32 %v2820, %v2844
      %v2860 = vmul.f32 %v2821, %v2851
      %v2861 = vmul.f32 %v2822, %v2852
      %v2862 = vmul.f32 %v2823, %v2853
      %v2863 = vmul.f32 %v2824, %v2850
      %2869 = vrot.lane.b32.xlu0 %v2859, 65
      %v2870 = vpop.permute.xlu0 %2869
      %2871 = vrot.lane.b32.xlu0 %v2860, 65
      %v2872 = vpop.permute.xlu0 %2871
      %2873 = vrot.lane.b32.xlu0 %v2861, 65
      %v2874 = vpop.permute.xlu0 %2873
      %2875 = vrot.lane.b32.xlu0 %v2862, 65
      %v2876 = vpop.permute.xlu0 %2875
      %2877 = vrot.lane.b32.xlu0 %v2863, 65
      %v2878 = vpop.permute.xlu0 %2877
      %v2879 = vsel %vm683, %v2870, %v2872
      %v2880 = vsel %vm683, %v2872, %v2874
      %v2881 = vsel %vm683, %v2874, %v2876
      %v2882 = vsel %vm683, %v2876, %v2878
      %2887 = vst [vmem:[#allocation3 + $0x60] sm:$0xff] %v2879
      %2888 = vst [vmem:[#allocation3 + $0x68] sm:$0xff] %v2880
      %2889 = vst [vmem:[#allocation3 + $0x70] sm:$0xff] %v2881
      %2890 = vst [vmem:[#allocation3 + $0x78] sm:$0xff] %v2882
      %v2891 = vld [vmem:[#allocation2] sm:$0xff]
      %v2892 = vld [vmem:[#allocation2 + $0x8] sm:$0xff]
      %v2893 = vld [vmem:[#allocation2 + $0x10] sm:$0xff]
      %v2894 = vld [vmem:[#allocation2 + $0x18] sm:$0xff]
      %v2895 = vld [vmem:[#allocation2 + $0x20] sm:$0xff]
      %v2896 = vld [vmem:[%s701] ss:$8 sm:$0xf]
      %v2898 = vlaneseq
      %v2899 = vshrl.u32 %v2898, 7
      %v2900 = vsub.s32 0, %v2899
      %v2901 = vrot.slane %v2896, %v2900
      %v2902 = vlaneseq
      %v2903 = vshrl.u32 %v2902, 7
      %v2904 = vsub.s32 1, %v2903
      %v2905 = vrot.slane %v2896, %v2904
      %v2906 = vlaneseq
      %v2907 = vshrl.u32 %v2906, 7
      %v2908 = vsub.s32 2, %v2907
      %v2909 = vrot.slane %v2896, %v2908
      %v2910 = vlaneseq
      %v2911 = vshrl.u32 %v2910, 7
      %v2912 = vsub.s32 3, %v2911
      %v2913 = vrot.slane %v2896, %v2912
      %2914 = vrot.lane.b32.xlu0 %v2901, 64
      %v2915 = vpop.permute.xlu0 %2914
      %2916 = vrot.lane.b32.xlu0 %v2905, 64
      %v2917 = vpop.permute.xlu0 %2916
      %2918 = vrot.lane.b32.xlu0 %v2909, 64
      %v2919 = vpop.permute.xlu0 %2918
      %2920 = vrot.lane.b32.xlu0 %v2913, 64
      %v2921 = vpop.permute.xlu0 %2920
      %v2922 = vsel %vm728, %v2915, %v2917
      %v2923 = vsel %vm728, %v2917, %v2919
      %v2924 = vsel %vm728, %v2919, %v2921
      %v2930 = vmul.f32 %v2891, %v2915
      %v2931 = vmul.f32 %v2892, %v2922
      %v2932 = vmul.f32 %v2893, %v2923
      %v2933 = vmul.f32 %v2894, %v2924
      %v2934 = vmul.f32 %v2895, %v2921
      %2940 = vrot.lane.b32.xlu0 %v2930, 64
      %v2941 = vpop.permute.xlu0 %2940
      %2942 = vrot.lane.b32.xlu0 %v2931, 64
      %v2943 = vpop.permute.xlu0 %2942
      %2944 = vrot.lane.b32.xlu0 %v2932, 64
      %v2945 = vpop.permute.xlu0 %2944
      %2946 = vrot.lane.b32.xlu0 %v2933, 64
      %v2947 = vpop.permute.xlu0 %2946
      %2948 = vrot.lane.b32.xlu0 %v2934, 64
      %v2949 = vpop.permute.xlu0 %2948
      %v2950 = vsel %vm728, %v2941, %v2943
      %v2951 = vsel %vm728, %v2943, %v2945
      %v2952 = vsel %vm728, %v2945, %v2947
      %v2953 = vsel %vm728, %v2947, %v2949
      %2958 = vst [vmem:[#allocation3 + $0x80] sm:$0xff] %v2950
      %2959 = vst [vmem:[#allocation3 + $0x88] sm:$0xff] %v2951
      %2960 = vst [vmem:[#allocation3 + $0x90] sm:$0xff] %v2952
      %2961 = vst [vmem:[#allocation3 + $0x98] sm:$0xff] %v2953
      %v2962 = vld [vmem:[#allocation2] sm:$0xff]
      %v2963 = vld [vmem:[#allocation2 + $0x8] sm:$0xff]
      %v2964 = vld [vmem:[#allocation2 + $0x10] sm:$0xff]
      %v2965 = vld [vmem:[#allocation2 + $0x18] sm:$0xff]
      %v2966 = vld [vmem:[#allocation2 + $0x20] sm:$0xff]
      %v2967 = vld [vmem:[%s774] ss:$8 sm:$0xf]
      %v2969 = vlaneseq
      %v2970 = vshrl.u32 %v2969, 7
      %v2971 = vsub.s32 0, %v2970
      %v2972 = vrot.slane %v2967, %v2971
      %v2973 = vlaneseq
      %v2974 = vshrl.u32 %v2973, 7
      %v2975 = vsub.s32 1, %v2974
      %v2976 = vrot.slane %v2967, %v2975
      %v2977 = vlaneseq
      %v2978 = vshrl.u32 %v2977, 7
      %v2979 = vsub.s32 2, %v2978
      %v2980 = vrot.slane %v2967, %v2979
      %v2981 = vlaneseq
      %v2982 = vshrl.u32 %v2981, 7
      %v2983 = vsub.s32 3, %v2982
      %v2984 = vrot.slane %v2967, %v2983
      %2985 = vrot.lane.b32.xlu0 %v2972, 65
      %v2986 = vpop.permute.xlu0 %2985
      %2987 = vrot.lane.b32.xlu0 %v2976, 65
      %v2988 = vpop.permute.xlu0 %2987
      %2989 = vrot.lane.b32.xlu0 %v2980, 65
      %v2990 = vpop.permute.xlu0 %2989
      %2991 = vrot.lane.b32.xlu0 %v2984, 65
      %v2992 = vpop.permute.xlu0 %2991
      %v2993 = vsel %vm683, %v2986, %v2988
      %v2994 = vsel %vm683, %v2988, %v2990
      %v2995 = vsel %vm683, %v2990, %v2992
      %v3001 = vmul.f32 %v2962, %v2986
      %v3002 = vmul.f32 %v2963, %v2993
      %v3003 = vmul.f32 %v2964, %v2994
      %v3004 = vmul.f32 %v2965, %v2995
      %v3005 = vmul.f32 %v2966, %v2992
      %3011 = vrot.lane.b32.xlu0 %v3001, 63
      %v3012 = vpop.permute.xlu0 %3011
      %3013 = vrot.lane.b32.xlu0 %v3002, 63
      %v3014 = vpop.permute.xlu0 %3013
      %3015 = vrot.lane.b32.xlu0 %v3003, 63
      %v3016 = vpop.permute.xlu0 %3015
      %3017 = vrot.lane.b32.xlu0 %v3004, 63
      %v3018 = vpop.permute.xlu0 %3017
      %3019 = vrot.lane.b32.xlu0 %v3005, 63
      %v3020 = vpop.permute.xlu0 %3019
      %v3021 = vsel %vm654, %v3012, %v3014
      %v3022 = vsel %vm654, %v3014, %v3016
      %v3023 = vsel %vm654, %v3016, %v3018
      %v3024 = vsel %vm654, %v3018, %v3020
      %3029 = vst [vmem:[#allocation3 + $0xa0] sm:$0xff] %v3021
      %3030 = vst [vmem:[#allocation3 + $0xa8] sm:$0xff] %v3022
      %3031 = vst [vmem:[#allocation3 + $0xb0] sm:$0xff] %v3023
      %3032 = vst [vmem:[#allocation3 + $0xb8] sm:$0xff] %v3024
      %v3033 = vld [vmem:[#allocation2] sm:$0xff]
      %v3034 = vld [vmem:[#allocation2 + $0x8] sm:$0xff]
      %v3035 = vld [vmem:[#allocation2 + $0x10] sm:$0xff]
      %v3036 = vld [vmem:[#allocation2 + $0x18] sm:$0xff]
      %v3037 = vld [vmem:[#allocation2 + $0x20] sm:$0xff]
      %v3038 = vld [vmem:[%s846] ss:$8 sm:$0xf]
      %v3040 = vlaneseq
      %v3041 = vshrl.u32 %v3040, 7
      %v3042 = vsub.s32 0, %v3041
      %v3043 = vrot.slane %v3038, %v3042
      %v3044 = vlaneseq
      %v3045 = vshrl.u32 %v3044, 7
      %v3046 = vsub.s32 1, %v3045
      %v3047 = vrot.slane %v3038, %v3046
      %v3048 = vlaneseq
      %v3049 = vshrl.u32 %v3048, 7
      %v3050 = vsub.s32 2, %v3049
      %v3051 = vrot.slane %v3038, %v3050
      %v3052 = vlaneseq
      %v3053 = vshrl.u32 %v3052, 7
      %v3054 = vsub.s32 3, %v3053
      %v3055 = vrot.slane %v3038, %v3054
      %3056 = vrot.lane.b32.xlu0 %v3043, 71
      %v3057 = vpop.permute.xlu0 %3056
      %3058 = vrot.lane.b32.xlu0 %v3047, 71
      %v3059 = vpop.permute.xlu0 %3058
      %3060 = vrot.lane.b32.xlu0 %v3051, 71
      %v3061 = vpop.permute.xlu0 %3060
      %3062 = vrot.lane.b32.xlu0 %v3055, 71
      %v3063 = vpop.permute.xlu0 %3062
      %v3064 = vsel %vm609, %v3057, %v3059
      %v3065 = vsel %vm609, %v3059, %v3061
      %v3066 = vsel %vm609, %v3061, %v3063
      %v3072 = vmul.f32 %v3033, %v3057
      %v3073 = vmul.f32 %v3034, %v3064
      %v3074 = vmul.f32 %v3035, %v3065
      %v3075 = vmul.f32 %v3036, %v3066
      %v3076 = vmul.f32 %v3037, %v3063
      %3082 = vrot.lane.b32.xlu0 %v3072, 57
      %v3083 = vpop.permute.xlu0 %3082
      %3084 = vrot.lane.b32.xlu0 %v3073, 57
      %v3085 = vpop.permute.xlu0 %3084
      %3086 = vrot.lane.b32.xlu0 %v3074, 57
      %v3087 = vpop.permute.xlu0 %3086
      %3088 = vrot.lane.b32.xlu0 %v3075, 57
      %v3089 = vpop.permute.xlu0 %3088
      %3090 = vrot.lane.b32.xlu0 %v3076, 57
      %v3091 = vpop.permute.xlu0 %3090
      %v3092 = vsel %vm580, %v3083, %v3085
      %v3093 = vsel %vm580, %v3085, %v3087
      %v3094 = vsel %vm580, %v3087, %v3089
      %v3095 = vsel %vm580, %v3089, %v3091
      %3100 = vst [vmem:[#allocation3 + $0xc0] sm:$0xff] %v3092
      %3101 = vst [vmem:[#allocation3 + $0xc8] sm:$0xff] %v3093
      %3102 = vst [vmem:[#allocation3 + $0xd0] sm:$0xff] %v3094
      %3103 = vst [vmem:[#allocation3 + $0xd8] sm:$0xff] %v3095
      %v3104 = vld [vmem:[#allocation2] sm:$0xff]
      %v3105 = vld [vmem:[#allocation2 + $0x8] sm:$0xff]
      %v3106 = vld [vmem:[#allocation2 + $0x10] sm:$0xff]
      %v3107 = vld [vmem:[#allocation2 + $0x18] sm:$0xff]
      %v3108 = vld [vmem:[#allocation2 + $0x20] sm:$0xff]
      %v3109 = vld [vmem:[%s918] ss:$8 sm:$0xf]
      %v3111 = vlaneseq
      %v3112 = vshrl.u32 %v3111, 7
      %v3113 = vsub.s32 0, %v3112
      %v3114 = vrot.slane %v3109, %v3113
      %v3115 = vlaneseq
      %v3116 = vshrl.u32 %v3115, 7
      %v3117 = vsub.s32 1, %v3116
      %v3118 = vrot.slane %v3109, %v3117
      %v3119 = vlaneseq
      %v3120 = vshrl.u32 %v3119, 7
      %v3121 = vsub.s32 2, %v3120
      %v3122 = vrot.slane %v3109, %v3121
      %v3123 = vlaneseq
      %v3124 = vshrl.u32 %v3123, 7
      %v3125 = vsub.s32 3, %v3124
      %v3126 = vrot.slane %v3109, %v3125
      %3127 = vrot.lane.b32.xlu0 %v3114, 72
      %v3128 = vpop.permute.xlu0 %3127
      %3129 = vrot.lane.b32.xlu0 %v3118, 72
      %v3130 = vpop.permute.xlu0 %3129
      %3131 = vrot.lane.b32.xlu0 %v3122, 72
      %v3132 = vpop.permute.xlu0 %3131
      %3133 = vrot.lane.b32.xlu0 %v3126, 72
      %v3134 = vpop.permute.xlu0 %3133
      %v3135 = vsel %vm535, %v3128, %v3130
      %v3136 = vsel %vm535, %v3130, %v3132
      %v3137 = vsel %vm535, %v3132, %v3134
      %v3143 = vmul.f32 %v3104, %v3128
      %v3144 = vmul.f32 %v3105, %v3135
      %v3145 = vmul.f32 %v3106, %v3136
      %v3146 = vmul.f32 %v3107, %v3137
      %v3147 = vmul.f32 %v3108, %v3134
      %3153 = vrot.lane.b32.xlu0 %v3143, 56
      %v3154 = vpop.permute.xlu0 %3153
      %3155 = vrot.lane.b32.xlu0 %v3144, 56
      %v3156 = vpop.permute.xlu0 %3155
      %3157 = vrot.lane.b32.xlu0 %v3145, 56
      %v3158 = vpop.permute.xlu0 %3157
      %3159 = vrot.lane.b32.xlu0 %v3146, 56
      %v3160 = vpop.permute.xlu0 %3159
      %3161 = vrot.lane.b32.xlu0 %v3147, 56
      %v3162 = vpop.permute.xlu0 %3161
      %v3163 = vsel %vm506, %v3154, %v3156
      %v3164 = vsel %vm506, %v3156, %v3158
      %v3165 = vsel %vm506, %v3158, %v3160
      %v3166 = vsel %vm506, %v3160, %v3162
      %3171 = vst [vmem:[#allocation3 + $0xe0] sm:$0xff] %v3163
      %3172 = vst [vmem:[#allocation3 + $0xe8] sm:$0xff] %v3164
      %3173 = vst [vmem:[#allocation3 + $0xf0] sm:$0xff] %v3165
      %3174 = vst [vmem:[#allocation3 + $0xf8] sm:$0xff] %v3166
      %v3175 = vld [vmem:[#allocation2] sm:$0xff]
      %v3176 = vld [vmem:[#allocation2 + $0x8] sm:$0xff]
      %v3177 = vld [vmem:[#allocation2 + $0x10] sm:$0xff]
      %v3178 = vld [vmem:[#allocation2 + $0x18] sm:$0xff]
      %v3179 = vld [vmem:[#allocation2 + $0x20] sm:$0xff]
      %v3180 = vld [vmem:[%s990] ss:$8 sm:$0xf]
      %v3182 = vlaneseq
      %v3183 = vshrl.u32 %v3182, 7
      %v3184 = vsub.s32 0, %v3183
      %v3185 = vrot.slane %v3180, %v3184
      %v3186 = vlaneseq
      %v3187 = vshrl.u32 %v3186, 7
      %v3188 = vsub.s32 1, %v3187
      %v3189 = vrot.slane %v3180, %v3188
      %v3190 = vlaneseq
      %v3191 = vshrl.u32 %v3190, 7
      %v3192 = vsub.s32 2, %v3191
      %v3193 = vrot.slane %v3180, %v3192
      %v3194 = vlaneseq
      %v3195 = vshrl.u32 %v3194, 7
      %v3196 = vsub.s32 3, %v3195
      %v3197 = vrot.slane %v3180, %v3196
      %3198 = vrot.lane.b32.xlu0 %v3185, 73
      %v3199 = vpop.permute.xlu0 %3198
      %3200 = vrot.lane.b32.xlu0 %v3189, 73
      %v3201 = vpop.permute.xlu0 %3200
      %3202 = vrot.lane.b32.xlu0 %v3193, 73
      %v3203 = vpop.permute.xlu0 %3202
      %3204 = vrot.lane.b32.xlu0 %v3197, 73
      %v3205 = vpop.permute.xlu0 %3204
      %v3206 = vsel %vm461, %v3199, %v3201
      %v3207 = vsel %vm461, %v3201, %v3203
      %v3208 = vsel %vm461, %v3203, %v3205
      %v3214 = vmul.f32 %v3175, %v3199
      %v3215 = vmul.f32 %v3176, %v3206
      %v3216 = vmul.f32 %v3177, %v3207
      %v3217 = vmul.f32 %v3178, %v3208
      %v3218 = vmul.f32 %v3179, %v3205
      %3224 = vrot.lane.b32.xlu0 %v3214, 55
      %v3225 = vpop.permute.xlu0 %3224
      %3226 = vrot.lane.b32.xlu0 %v3215, 55
      %v3227 = vpop.permute.xlu0 %3226
      %3228 = vrot.lane.b32.xlu0 %v3216, 55
      %v3229 = vpop.permute.xlu0 %3228
      %3230 = vrot.lane.b32.xlu0 %v3217, 55
      %v3231 = vpop.permute.xlu0 %3230
      %3232 = vrot.lane.b32.xlu0 %v3218, 55
      %v3233 = vpop.permute.xlu0 %3232
      %v3234 = vsel %vm432, %v3225, %v3227
      %v3235 = vsel %vm432, %v3227, %v3229
      %v3236 = vsel %vm432, %v3229, %v3231
      %v3237 = vsel %vm432, %v3231, %v3233
      %3242 = vst [vmem:[#allocation3 + $0x100] sm:$0xff] %v3234
      %3243 = vst [vmem:[#allocation3 + $0x108] sm:$0xff] %v3235
      %3244 = vst [vmem:[#allocation3 + $0x110] sm:$0xff] %v3236
      %3245 = vst [vmem:[#allocation3 + $0x118] sm:$0xff] %v3237
      %v3246 = vld [vmem:[#allocation2] sm:$0xff]
      %v3247 = vld [vmem:[#allocation2 + $0x8] sm:$0xff]
      %v3248 = vld [vmem:[#allocation2 + $0x10] sm:$0xff]
      %v3249 = vld [vmem:[#allocation2 + $0x18] sm:$0xff]
      %v3250 = vld [vmem:[#allocation2 + $0x20] sm:$0xff]
      %v3251 = vld [vmem:[%s1062] ss:$8 sm:$0xf]
      %v3253 = vlaneseq
      %v3254 = vshrl.u32 %v3253, 7
      %v3255 = vsub.s32 0, %v3254
      %v3256 = vrot.slane %v3251, %v3255
      %v3257 = vlaneseq
      %v3258 = vshrl.u32 %v3257, 7
      %v3259 = vsub.s32 1, %v3258
      %v3260 = vrot.slane %v3251, %v3259
      %v3261 = vlaneseq
      %v3262 = vshrl.u32 %v3261, 7
      %v3263 = vsub.s32 2, %v3262
      %v3264 = vrot.slane %v3251, %v3263
      %v3265 = vlaneseq
      %v3266 = vshrl.u32 %v3265, 7
      %v3267 = vsub.s32 3, %v3266
      %v3268 = vrot.slane %v3251, %v3267
      %3269 = vrot.lane.b32.xlu0 %v3256, 119
      %v3270 = vpop.permute.xlu0 %3269
      %3271 = vrot.lane.b32.xlu0 %v3260, 119
      %v3272 = vpop.permute.xlu0 %3271
      %3273 = vrot.lane.b32.xlu0 %v3264, 119
      %v3274 = vpop.permute.xlu0 %3273
      %3275 = vrot.lane.b32.xlu0 %v3268, 119
      %v3276 = vpop.permute.xlu0 %3275
      %v3277 = vsel %vm1089, %v3270, %v3272
      %v3278 = vsel %vm1089, %v3272, %v3274
      %v3279 = vsel %vm1089, %v3274, %v3276
      %v3285 = vmul.f32 %v3246, %v3270
      %v3286 = vmul.f32 %v3247, %v3277
      %v3287 = vmul.f32 %v3248, %v3278
      %v3288 = vmul.f32 %v3249, %v3279
      %v3289 = vmul.f32 %v3250, %v3276
      %3295 = vrot.lane.b32.xlu0 %v3285, 9
      %v3296 = vpop.permute.xlu0 %3295
      %3297 = vrot.lane.b32.xlu0 %v3286, 9
      %v3298 = vpop.permute.xlu0 %3297
      %3299 = vrot.lane.b32.xlu0 %v3287, 9
      %v3300 = vpop.permute.xlu0 %3299
      %3301 = vrot.lane.b32.xlu0 %v3288, 9
      %v3302 = vpop.permute.xlu0 %3301
      %3303 = vrot.lane.b32.xlu0 %v3289, 9
      %v3304 = vpop.permute.xlu0 %3303
      %v3305 = vsel %vm1118, %v3296, %v3298
      %v3306 = vsel %vm1118, %v3298, %v3300
      %v3307 = vsel %vm1118, %v3300, %v3302
      %v3308 = vsel %vm1118, %v3302, %v3304
      %3313 = vst [vmem:[#allocation3 + $0x120] sm:$0xff] %v3305
      %3314 = vst [vmem:[#allocation3 + $0x128] sm:$0xff] %v3306
      %3315 = vst [vmem:[#allocation3 + $0x130] sm:$0xff] %v3307
      %3316 = vst [vmem:[#allocation3 + $0x138] sm:$0xff] %v3308
      %v3317 = vld [vmem:[#allocation2] sm:$0xff]
      %v3318 = vld [vmem:[#allocation2 + $0x8] sm:$0xff]
      %v3319 = vld [vmem:[#allocation2 + $0x10] sm:$0xff]
      %v3320 = vld [vmem:[#allocation2 + $0x18] sm:$0xff]
      %v3321 = vld [vmem:[#allocation2 + $0x20] sm:$0xff]
      %v3322 = vld [vmem:[%s1136] ss:$8 sm:$0xf]
      %v3324 = vlaneseq
      %v3325 = vshrl.u32 %v3324, 7
      %v3326 = vsub.s32 0, %v3325
      %v3327 = vrot.slane %v3322, %v3326
      %v3328 = vlaneseq
      %v3329 = vshrl.u32 %v3328, 7
      %v3330 = vsub.s32 1, %v3329
      %v3331 = vrot.slane %v3322, %v3330
      %v3332 = vlaneseq
      %v3333 = vshrl.u32 %v3332, 7
      %v3334 = vsub.s32 2, %v3333
      %v3335 = vrot.slane %v3322, %v3334
      %v3336 = vlaneseq
      %v3337 = vshrl.u32 %v3336, 7
      %v3338 = vsub.s32 3, %v3337
      %v3339 = vrot.slane %v3322, %v3338
      %3340 = vrot.lane.b32.xlu0 %v3327, 120
      %v3341 = vpop.permute.xlu0 %3340
      %3342 = vrot.lane.b32.xlu0 %v3331, 120
      %v3343 = vpop.permute.xlu0 %3342
      %3344 = vrot.lane.b32.xlu0 %v3335, 120
      %v3345 = vpop.permute.xlu0 %3344
      %3346 = vrot.lane.b32.xlu0 %v3339, 120
      %v3347 = vpop.permute.xlu0 %3346
      %v3348 = vsel %vm1163, %v3341, %v3343
      %v3349 = vsel %vm1163, %v3343, %v3345
      %v3350 = vsel %vm1163, %v3345, %v3347
      %v3356 = vmul.f32 %v3317, %v3341
      %v3357 = vmul.f32 %v3318, %v3348
      %v3358 = vmul.f32 %v3319, %v3349
      %v3359 = vmul.f32 %v3320, %v3350
      %v3360 = vmul.f32 %v3321, %v3347
      %3366 = vrot.lane.b32.xlu0 %v3356, 8
      %v3367 = vpop.permute.xlu0 %3366
      %3368 = vrot.lane.b32.xlu0 %v3357, 8
      %v3369 = vpop.permute.xlu0 %3368
      %3370 = vrot.lane.b32.xlu0 %v3358, 8
      %v3371 = vpop.permute.xlu0 %3370
      %3372 = vrot.lane.b32.xlu0 %v3359, 8
      %v3373 = vpop.permute.xlu0 %3372
      %3374 = vrot.lane.b32.xlu0 %v3360, 8
      %v3375 = vpop.permute.xlu0 %3374
      %v3376 = vsel %vm1192, %v3367, %v3369
      %v3377 = vsel %vm1192, %v3369, %v3371
      %v3378 = vsel %vm1192, %v3371, %v3373
      %v3379 = vsel %vm1192, %v3373, %v3375
      %3384 = vst [vmem:[#allocation3 + $0x140] sm:$0xff] %v3376
      %3385 = vst [vmem:[#allocation3 + $0x148] sm:$0xff] %v3377
      %3386 = vst [vmem:[#allocation3 + $0x150] sm:$0xff] %v3378
      %3387 = vst [vmem:[#allocation3 + $0x158] sm:$0xff] %v3379
      %v3388 = vld [vmem:[#allocation2] sm:$0xff]
      %v3389 = vld [vmem:[#allocation2 + $0x8] sm:$0xff]
      %v3390 = vld [vmem:[#allocation2 + $0x10] sm:$0xff]
      %v3391 = vld [vmem:[#allocation2 + $0x18] sm:$0xff]
      %v3392 = vld [vmem:[#allocation2 + $0x20] sm:$0xff]
      %v3393 = vld [vmem:[%s1210] ss:$8 sm:$0xf]
      %v3395 = vlaneseq
      %v3396 = vshrl.u32 %v3395, 7
      %v3397 = vsub.s32 0, %v3396
      %v3398 = vrot.slane %v3393, %v3397
      %v3399 = vlaneseq
      %v3400 = vshrl.u32 %v3399, 7
      %v3401 = vsub.s32 1, %v3400
      %v3402 = vrot.slane %v3393, %v3401
      %v3403 = vlaneseq
      %v3404 = vshrl.u32 %v3403, 7
      %v3405 = vsub.s32 2, %v3404
      %v3406 = vrot.slane %v3393, %v3405
      %v3407 = vlaneseq
      %v3408 = vshrl.u32 %v3407, 7
      %v3409 = vsub.s32 3, %v3408
      %v3410 = vrot.slane %v3393, %v3409
      %3411 = vrot.lane.b32.xlu0 %v3398, 121
      %v3412 = vpop.permute.xlu0 %3411
      %3413 = vrot.lane.b32.xlu0 %v3402, 121
      %v3414 = vpop.permute.xlu0 %3413
      %3415 = vrot.lane.b32.xlu0 %v3406, 121
      %v3416 = vpop.permute.xlu0 %3415
      %3417 = vrot.lane.b32.xlu0 %v3410, 121
      %v3418 = vpop.permute.xlu0 %3417
      %v3419 = vsel %vm1237, %v3412, %v3414
      %v3420 = vsel %vm1237, %v3414, %v3416
      %v3421 = vsel %vm1237, %v3416, %v3418
      %v3427 = vmul.f32 %v3388, %v3412
      %v3428 = vmul.f32 %v3389, %v3419
      %v3429 = vmul.f32 %v3390, %v3420
      %v3430 = vmul.f32 %v3391, %v3421
      %v3431 = vmul.f32 %v3392, %v3418
      %3437 = vrot.lane.b32.xlu0 %v3427, 7
      %v3438 = vpop.permute.xlu0 %3437
      %3439 = vrot.lane.b32.xlu0 %v3428, 7
      %v3440 = vpop.permute.xlu0 %3439
      %3441 = vrot.lane.b32.xlu0 %v3429, 7
      %v3442 = vpop.permute.xlu0 %3441
      %3443 = vrot.lane.b32.xlu0 %v3430, 7
      %v3444 = vpop.permute.xlu0 %3443
      %3445 = vrot.lane.b32.xlu0 %v3431, 7
      %v3446 = vpop.permute.xlu0 %3445
      %v3447 = vsel %vm1266, %v3438, %v3440
      %v3448 = vsel %vm1266, %v3440, %v3442
      %v3449 = vsel %vm1266, %v3442, %v3444
      %v3450 = vsel %vm1266, %v3444, %v3446
      %3455 = vst [vmem:[#allocation3 + $0x160] sm:$0xff] %v3447
      %3456 = vst [vmem:[#allocation3 + $0x168] sm:$0xff] %v3448
      %3457 = vst [vmem:[#allocation3 + $0x170] sm:$0xff] %v3449
      %3458 = vst [vmem:[#allocation3 + $0x178] sm:$0xff] %v3450
      %v3459 = vld [vmem:[#allocation2] sm:$0xff]
      %v3460 = vld [vmem:[#allocation2 + $0x8] sm:$0xff]
      %v3461 = vld [vmem:[#allocation2 + $0x10] sm:$0xff]
      %v3462 = vld [vmem:[#allocation2 + $0x18] sm:$0xff]
      %v3463 = vld [vmem:[#allocation2 + $0x20] sm:$0xff]
      %v3464 = vld [vmem:[%s1284] ss:$8 sm:$0xf]
      %v3466 = vlaneseq
      %v3467 = vshrl.u32 %v3466, 7
      %v3468 = vsub.s32 0, %v3467
      %v3469 = vrot.slane %v3464, %v3468
      %v3470 = vlaneseq
      %v3471 = vshrl.u32 %v3470, 7
      %v3472 = vsub.s32 1, %v3471
      %v3473 = vrot.slane %v3464, %v3472
      %v3474 = vlaneseq
      %v3475 = vshrl.u32 %v3474, 7
      %v3476 = vsub.s32 2, %v3475
      %v3477 = vrot.slane %v3464, %v3476
      %v3478 = vlaneseq
      %v3479 = vshrl.u32 %v3478, 7
      %v3480 = vsub.s32 3, %v3479
      %v3481 = vrot.slane %v3464, %v3480
      %3482 = vrot.lane.b32.xlu0 %v3469, 127
      %v3483 = vpop.permute.xlu0 %3482
      %3484 = vrot.lane.b32.xlu0 %v3473, 127
      %v3485 = vpop.permute.xlu0 %3484
      %3486 = vrot.lane.b32.xlu0 %v3477, 127
      %v3487 = vpop.permute.xlu0 %3486
      %3488 = vrot.lane.b32.xlu0 %v3481, 127
      %v3489 = vpop.permute.xlu0 %3488
      %v3490 = vsel %vm1311, %v3483, %v3485
      %v3491 = vsel %vm1311, %v3485, %v3487
      %v3492 = vsel %vm1311, %v3487, %v3489
      %v3498 = vmul.f32 %v3459, %v3483
      %v3499 = vmul.f32 %v3460, %v3490
      %v3500 = vmul.f32 %v3461, %v3491
      %v3501 = vmul.f32 %v3462, %v3492
      %v3502 = vmul.f32 %v3463, %v3489
      %3508 = vrot.lane.b32.xlu0 %v3498, 1
      %v3509 = vpop.permute.xlu0 %3508
      %3510 = vrot.lane.b32.xlu0 %v3499, 1
      %v3511 = vpop.permute.xlu0 %3510
      %3512 = vrot.lane.b32.xlu0 %v3500, 1
      %v3513 = vpop.permute.xlu0 %3512
      %3514 = vrot.lane.b32.xlu0 %v3501, 1
      %v3515 = vpop.permute.xlu0 %3514
      %3516 = vrot.lane.b32.xlu0 %v3502, 1
      %v3517 = vpop.permute.xlu0 %3516
      %v3518 = vsel %vm1340, %v3509, %v3511
      %v3519 = vsel %vm1340, %v3511, %v3513
      %v3520 = vsel %vm1340, %v3513, %v3515
      %v3521 = vsel %vm1340, %v3515, %v3517
      %3526 = vst [vmem:[#allocation3 + $0x180] sm:$0xff] %v3518
      %3527 = vst [vmem:[#allocation3 + $0x188] sm:$0xff] %v3519
      %3528 = vst [vmem:[#allocation3 + $0x190] sm:$0xff] %v3520
      %3529 = vst [vmem:[#allocation3 + $0x198] sm:$0xff] %v3521
      %v3530 = vld [vmem:[#allocation2 + $0x8] sm:$0xff]
      %v3531 = vld [vmem:[#allocation2 + $0x10] sm:$0xff]
      %v3532 = vld [vmem:[#allocation2 + $0x18] sm:$0xff]
      %v3533 = vld [vmem:[#allocation2 + $0x20] sm:$0xff]
      %3534 = vst [vmem:[#allocation3 + $0x1a0] sm:$0xff] %v3530
      %3535 = vst [vmem:[#allocation3 + $0x1a8] sm:$0xff] %v3531
      %3536 = vst [vmem:[#allocation3 + $0x1b0] sm:$0xff] %v3532
      %3537 = vst [vmem:[#allocation3 + $0x1b8] sm:$0xff] %v3533
      %v3538 = vld [vmem:[#allocation2 + $0x8] sm:$0xff]
      %v3539 = vld [vmem:[#allocation2 + $0x10] sm:$0xff]
      %v3540 = vld [vmem:[#allocation2 + $0x18] sm:$0xff]
      %v3541 = vld [vmem:[#allocation2 + $0x20] sm:$0xff]
      %v3542 = vld [vmem:[#allocation2 + $0x28] sm:$0xff]
      %v3543 = vld [vmem:[%s1366] ss:$8 sm:$0xf]
      %v3545 = vlaneseq
      %v3546 = vshrl.u32 %v3545, 7
      %v3547 = vsub.s32 0, %v3546
      %v3548 = vrot.slane %v3543, %v3547
      %v3549 = vlaneseq
      %v3550 = vshrl.u32 %v3549, 7
      %v3551 = vsub.s32 1, %v3550
      %v3552 = vrot.slane %v3543, %v3551
      %v3553 = vlaneseq
      %v3554 = vshrl.u32 %v3553, 7
      %v3555 = vsub.s32 2, %v3554
      %v3556 = vrot.slane %v3543, %v3555
      %v3557 = vlaneseq
      %v3558 = vshrl.u32 %v3557, 7
      %v3559 = vsub.s32 3, %v3558
      %v3560 = vrot.slane %v3543, %v3559
      %3561 = vrot.lane.b32.xlu0 %v3548, 1
      %v3562 = vpop.permute.xlu0 %3561
      %3563 = vrot.lane.b32.xlu0 %v3552, 1
      %v3564 = vpop.permute.xlu0 %3563
      %3565 = vrot.lane.b32.xlu0 %v3556, 1
      %v3566 = vpop.permute.xlu0 %3565
      %3567 = vrot.lane.b32.xlu0 %v3560, 1
      %v3568 = vpop.permute.xlu0 %3567
      %v3569 = vsel %vm1340, %v3562, %v3564
      %v3570 = vsel %vm1340, %v3564, %v3566
      %v3571 = vsel %vm1340, %v3566, %v3568
      %v3577 = vmul.f32 %v3538, %v3562
      %v3578 = vmul.f32 %v3539, %v3569
      %v3579 = vmul.f32 %v3540, %v3570
      %v3580 = vmul.f32 %v3541, %v3571
      %v3581 = vmul.f32 %v3542, %v3568
      %3587 = vrot.lane.b32.xlu0 %v3577, 127
      %v3588 = vpop.permute.xlu0 %3587
      %3589 = vrot.lane.b32.xlu0 %v3578, 127
      %v3590 = vpop.permute.xlu0 %3589
      %3591 = vrot.lane.b32.xlu0 %v3579, 127
      %v3592 = vpop.permute.xlu0 %3591
      %3593 = vrot.lane.b32.xlu0 %v3580, 127
      %v3594 = vpop.permute.xlu0 %3593
      %3595 = vrot.lane.b32.xlu0 %v3581, 127
      %v3596 = vpop.permute.xlu0 %3595
      %v3597 = vsel %vm1311, %v3588, %v3590
      %v3598 = vsel %vm1311, %v3590, %v3592
      %v3599 = vsel %vm1311, %v3592, %v3594
      %v3600 = vsel %vm1311, %v3594, %v3596
      %3605 = vst [vmem:[#allocation3 + $0x1c0] sm:$0xff] %v3597
      %3606 = vst [vmem:[#allocation3 + $0x1c8] sm:$0xff] %v3598
      %3607 = vst [vmem:[#allocation3 + $0x1d0] sm:$0xff] %v3599
      %3608 = vst [vmem:[#allocation3 + $0x1d8] sm:$0xff] %v3600
      %v3609 = vld [vmem:[#allocation2 + $0x8] sm:$0xff]
      %v3610 = vld [vmem:[#allocation2 + $0x10] sm:$0xff]
      %v3611 = vld [vmem:[#allocation2 + $0x18] sm:$0xff]
      %v3612 = vld [vmem:[#allocation2 + $0x20] sm:$0xff]
      %v3613 = vld [vmem:[#allocation2 + $0x28] sm:$0xff]
      %v3614 = vld [vmem:[%s1438] ss:$8 sm:$0xf]
      %v3616 = vlaneseq
      %v3617 = vshrl.u32 %v3616, 7
      %v3618 = vsub.s32 0, %v3617
      %v3619 = vrot.slane %v3614, %v3618
      %v3620 = vlaneseq
      %v3621 = vshrl.u32 %v3620, 7
      %v3622 = vsub.s32 1, %v3621
      %v3623 = vrot.slane %v3614, %v3622
      %v3624 = vlaneseq
      %v3625 = vshrl.u32 %v3624, 7
      %v3626 = vsub.s32 2, %v3625
      %v3627 = vrot.slane %v3614, %v3626
      %v3628 = vlaneseq
      %v3629 = vshrl.u32 %v3628, 7
      %v3630 = vsub.s32 3, %v3629
      %v3631 = vrot.slane %v3614, %v3630
      %3632 = vrot.lane.b32.xlu0 %v3619, 7
      %v3633 = vpop.permute.xlu0 %3632
      %3634 = vrot.lane.b32.xlu0 %v3623, 7
      %v3635 = vpop.permute.xlu0 %3634
      %3636 = vrot.lane.b32.xlu0 %v3627, 7
      %v3637 = vpop.permute.xlu0 %3636
      %3638 = vrot.lane.b32.xlu0 %v3631, 7
      %v3639 = vpop.permute.xlu0 %3638
      %v3640 = vsel %vm1266, %v3633, %v3635
      %v3641 = vsel %vm1266, %v3635, %v3637
      %v3642 = vsel %vm1266, %v3637, %v3639
      %v3648 = vmul.f32 %v3609, %v3633
      %v3649 = vmul.f32 %v3610, %v3640
      %v3650 = vmul.f32 %v3611, %v3641
      %v3651 = vmul.f32 %v3612, %v3642
      %v3652 = vmul.f32 %v3613, %v3639
      %3658 = vrot.lane.b32.xlu0 %v3648, 121
      %v3659 = vpop.permute.xlu0 %3658
      %3660 = vrot.lane.b32.xlu0 %v3649, 121
      %v3661 = vpop.permute.xlu0 %3660
      %3662 = vrot.lane.b32.xlu0 %v3650, 121
      %v3663 = vpop.permute.xlu0 %3662
      %3664 = vrot.lane.b32.xlu0 %v3651, 121
      %v3665 = vpop.permute.xlu0 %3664
      %3666 = vrot.lane.b32.xlu0 %v3652, 121
      %v3667 = vpop.permute.xlu0 %3666
      %v3668 = vsel %vm1237, %v3659, %v3661
      %v3669 = vsel %vm1237, %v3661, %v3663
      %v3670 = vsel %vm1237, %v3663, %v3665
      %v3671 = vsel %vm1237, %v3665, %v3667
      %3676 = vst [vmem:[#allocation3 + $0x1e0] sm:$0xff] %v3668
      %3677 = vst [vmem:[#allocation3 + $0x1e8] sm:$0xff] %v3669
      %3678 = vst [vmem:[#allocation3 + $0x1f0] sm:$0xff] %v3670
      %3679 = vst [vmem:[#allocation3 + $0x1f8] sm:$0xff] %v3671
      %v3680 = vld [vmem:[#allocation2 + $0x8] sm:$0xff]
      %v3681 = vld [vmem:[#allocation2 + $0x10] sm:$0xff]
      %v3682 = vld [vmem:[#allocation2 + $0x18] sm:$0xff]
      %v3683 = vld [vmem:[#allocation2 + $0x20] sm:$0xff]
      %v3684 = vld [vmem:[#allocation2 + $0x28] sm:$0xff]
      %v3685 = vld [vmem:[%s1510] ss:$8 sm:$0xf]
      %v3687 = vlaneseq
      %v3688 = vshrl.u32 %v3687, 7
      %v3689 = vsub.s32 0, %v3688
      %v3690 = vrot.slane %v3685, %v3689
      %v3691 = vlaneseq
      %v3692 = vshrl.u32 %v3691, 7
      %v3693 = vsub.s32 1, %v3692
      %v3694 = vrot.slane %v3685, %v3693
      %v3695 = vlaneseq
      %v3696 = vshrl.u32 %v3695, 7
      %v3697 = vsub.s32 2, %v3696
      %v3698 = vrot.slane %v3685, %v3697
      %v3699 = vlaneseq
      %v3700 = vshrl.u32 %v3699, 7
      %v3701 = vsub.s32 3, %v3700
      %v3702 = vrot.slane %v3685, %v3701
      %3703 = vrot.lane.b32.xlu0 %v3690, 8
      %v3704 = vpop.permute.xlu0 %3703
      %3705 = vrot.lane.b32.xlu0 %v3694, 8
      %v3706 = vpop.permute.xlu0 %3705
      %3707 = vrot.lane.b32.xlu0 %v3698, 8
      %v3708 = vpop.permute.xlu0 %3707
      %3709 = vrot.lane.b32.xlu0 %v3702, 8
      %v3710 = vpop.permute.xlu0 %3709
      %v3711 = vsel %vm1192, %v3704, %v3706
      %v3712 = vsel %vm1192, %v3706, %v3708
      %v3713 = vsel %vm1192, %v3708, %v3710
      %v3719 = vmul.f32 %v3680, %v3704
      %v3720 = vmul.f32 %v3681, %v3711
      %v3721 = vmul.f32 %v3682, %v3712
      %v3722 = vmul.f32 %v3683, %v3713
      %v3723 = vmul.f32 %v3684, %v3710
      %3729 = vrot.lane.b32.xlu0 %v3719, 120
      %v3730 = vpop.permute.xlu0 %3729
      %3731 = vrot.lane.b32.xlu0 %v3720, 120
      %v3732 = vpop.permute.xlu0 %3731
      %3733 = vrot.lane.b32.xlu0 %v3721, 120
      %v3734 = vpop.permute.xlu0 %3733
      %3735 = vrot.lane.b32.xlu0 %v3722, 120
      %v3736 = vpop.permute.xlu0 %3735
      %3737 = vrot.lane.b32.xlu0 %v3723, 120
      %v3738 = vpop.permute.xlu0 %3737
      %v3739 = vsel %vm1163, %v3730, %v3732
      %v3740 = vsel %vm1163, %v3732, %v3734
      %v3741 = vsel %vm1163, %v3734, %v3736
      %v3742 = vsel %vm1163, %v3736, %v3738
      %3747 = vst [vmem:[#allocation3 + $0x200] sm:$0xff] %v3739
      %3748 = vst [vmem:[#allocation3 + $0x208] sm:$0xff] %v3740
      %3749 = vst [vmem:[#allocation3 + $0x210] sm:$0xff] %v3741
      %3750 = vst [vmem:[#allocation3 + $0x218] sm:$0xff] %v3742
      %v3751 = vld [vmem:[#allocation2 + $0x8] sm:$0xff]
      %v3752 = vld [vmem:[#allocation2 + $0x10] sm:$0xff]
      %v3753 = vld [vmem:[#allocation2 + $0x18] sm:$0xff]
      %v3754 = vld [vmem:[#allocation2 + $0x20] sm:$0xff]
      %v3755 = vld [vmem:[#allocation2 + $0x28] sm:$0xff]
      %v3756 = vld [vmem:[%s1582] ss:$8 sm:$0xf]
      %v3758 = vlaneseq
      %v3759 = vshrl.u32 %v3758, 7
      %v3760 = vsub.s32 0, %v3759
      %v3761 = vrot.slane %v3756, %v3760
      %v3762 = vlaneseq
      %v3763 = vshrl.u32 %v3762, 7
      %v3764 = vsub.s32 1, %v3763
      %v3765 = vrot.slane %v3756, %v3764
      %v3766 = vlaneseq
      %v3767 = vshrl.u32 %v3766, 7
      %v3768 = vsub.s32 2, %v3767
      %v3769 = vrot.slane %v3756, %v3768
      %v3770 = vlaneseq
      %v3771 = vshrl.u32 %v3770, 7
      %v3772 = vsub.s32 3, %v3771
      %v3773 = vrot.slane %v3756, %v3772
      %3774 = vrot.lane.b32.xlu0 %v3761, 9
      %v3775 = vpop.permute.xlu0 %3774
      %3776 = vrot.lane.b32.xlu0 %v3765, 9
      %v3777 = vpop.permute.xlu0 %3776
      %3778 = vrot.lane.b32.xlu0 %v3769, 9
      %v3779 = vpop.permute.xlu0 %3778
      %3780 = vrot.lane.b32.xlu0 %v3773, 9
      %v3781 = vpop.permute.xlu0 %3780
      %v3782 = vsel %vm1118, %v3775, %v3777
      %v3783 = vsel %vm1118, %v3777, %v3779
      %v3784 = vsel %vm1118, %v3779, %v3781
      %v3790 = vmul.f32 %v3751, %v3775
      %v3791 = vmul.f32 %v3752, %v3782
      %v3792 = vmul.f32 %v3753, %v3783
      %v3793 = vmul.f32 %v3754, %v3784
      %v3794 = vmul.f32 %v3755, %v3781
      %3800 = vrot.lane.b32.xlu0 %v3790, 119
      %v3801 = vpop.permute.xlu0 %3800
      %3802 = vrot.lane.b32.xlu0 %v3791, 119
      %v3803 = vpop.permute.xlu0 %3802
      %3804 = vrot.lane.b32.xlu0 %v3792, 119
      %v3805 = vpop.permute.xlu0 %3804
      %3806 = vrot.lane.b32.xlu0 %v3793, 119
      %v3807 = vpop.permute.xlu0 %3806
      %3808 = vrot.lane.b32.xlu0 %v3794, 119
      %v3809 = vpop.permute.xlu0 %3808
      %v3810 = vsel %vm1089, %v3801, %v3803
      %v3811 = vsel %vm1089, %v3803, %v3805
      %v3812 = vsel %vm1089, %v3805, %v3807
      %v3813 = vsel %vm1089, %v3807, %v3809
      %3818 = vst [vmem:[#allocation3 + $0x220] sm:$0xff] %v3810
      %3819 = vst [vmem:[#allocation3 + $0x228] sm:$0xff] %v3811
      %3820 = vst [vmem:[#allocation3 + $0x230] sm:$0xff] %v3812
      %3821 = vst [vmem:[#allocation3 + $0x238] sm:$0xff] %v3813
      %v3822 = vld [vmem:[#allocation2 + $0x8] sm:$0xff]
      %v3823 = vld [vmem:[#allocation2 + $0x10] sm:$0xff]
      %v3824 = vld [vmem:[#allocation2 + $0x18] sm:$0xff]
      %v3825 = vld [vmem:[#allocation2 + $0x20] sm:$0xff]
      %v3826 = vld [vmem:[#allocation2 + $0x28] sm:$0xff]
      %v3827 = vld [vmem:[%s1654] ss:$8 sm:$0xf]
      %v3829 = vlaneseq
      %v3830 = vshrl.u32 %v3829, 7
      %v3831 = vsub.s32 0, %v3830
      %v3832 = vrot.slane %v3827, %v3831
      %v3833 = vlaneseq
      %v3834 = vshrl.u32 %v3833, 7
      %v3835 = vsub.s32 1, %v3834
      %v3836 = vrot.slane %v3827, %v3835
      %v3837 = vlaneseq
      %v3838 = vshrl.u32 %v3837, 7
      %v3839 = vsub.s32 2, %v3838
      %v3840 = vrot.slane %v3827, %v3839
      %v3841 = vlaneseq
      %v3842 = vshrl.u32 %v3841, 7
      %v3843 = vsub.s32 3, %v3842
      %v3844 = vrot.slane %v3827, %v3843
      %3845 = vrot.lane.b32.xlu0 %v3832, 55
      %v3846 = vpop.permute.xlu0 %3845
      %3847 = vrot.lane.b32.xlu0 %v3836, 55
      %v3848 = vpop.permute.xlu0 %3847
      %3849 = vrot.lane.b32.xlu0 %v3840, 55
      %v3850 = vpop.permute.xlu0 %3849
      %3851 = vrot.lane.b32.xlu0 %v3844, 55
      %v3852 = vpop.permute.xlu0 %3851
      %v3853 = vsel %vm432, %v3846, %v3848
      %v3854 = vsel %vm432, %v3848, %v3850
      %v3855 = vsel %vm432, %v3850, %v3852
      %v3861 = vmul.f32 %v3822, %v3846
      %v3862 = vmul.f32 %v3823, %v3853
      %v3863 = vmul.f32 %v3824, %v3854
      %v3864 = vmul.f32 %v3825, %v3855
      %v3865 = vmul.f32 %v3826, %v3852
      %3871 = vrot.lane.b32.xlu0 %v3861, 73
      %v3872 = vpop.permute.xlu0 %3871
      %3873 = vrot.lane.b32.xlu0 %v3862, 73
      %v3874 = vpop.permute.xlu0 %3873
      %3875 = vrot.lane.b32.xlu0 %v3863, 73
      %v3876 = vpop.permute.xlu0 %3875
      %3877 = vrot.lane.b32.xlu0 %v3864, 73
      %v3878 = vpop.permute.xlu0 %3877
      %3879 = vrot.lane.b32.xlu0 %v3865, 73
      %v3880 = vpop.permute.xlu0 %3879
      %v3881 = vsel %vm461, %v3872, %v3874
      %v3882 = vsel %vm461, %v3874, %v3876
      %v3883 = vsel %vm461, %v3876, %v3878
      %v3884 = vsel %vm461, %v3878, %v3880
      %3889 = vst [vmem:[#allocation3 + $0x240] sm:$0xff] %v3881
      %3890 = vst [vmem:[#allocation3 + $0x248] sm:$0xff] %v3882
      %3891 = vst [vmem:[#allocation3 + $0x250] sm:$0xff] %v3883
      %3892 = vst [vmem:[#allocation3 + $0x258] sm:$0xff] %v3884
      %v3893 = vld [vmem:[#allocation2 + $0x8] sm:$0xff]
      %v3894 = vld [vmem:[#allocation2 + $0x10] sm:$0xff]
      %v3895 = vld [vmem:[#allocation2 + $0x18] sm:$0xff]
      %v3896 = vld [vmem:[#allocation2 + $0x20] sm:$0xff]
      %v3897 = vld [vmem:[#allocation2 + $0x28] sm:$0xff]
      %v3898 = vld [vmem:[%s1726] ss:$8 sm:$0xf]
      %v3900 = vlaneseq
      %v3901 = vshrl.u32 %v3900, 7
      %v3902 = vsub.s32 0, %v3901
      %v3903 = vrot.slane %v3898, %v3902
      %v3904 = vlaneseq
      %v3905 = vshrl.u32 %v3904, 7
      %v3906 = vsub.s32 1, %v3905
      %v3907 = vrot.slane %v3898, %v3906
      %v3908 = vlaneseq
      %v3909 = vshrl.u32 %v3908, 7
      %v3910 = vsub.s32 2, %v3909
      %v3911 = vrot.slane %v3898, %v3910
      %v3912 = vlaneseq
      %v3913 = vshrl.u32 %v3912, 7
      %v3914 = vsub.s32 3, %v3913
      %v3915 = vrot.slane %v3898, %v3914
      %3916 = vrot.lane.b32.xlu0 %v3903, 56
      %v3917 = vpop.permute.xlu0 %3916
      %3918 = vrot.lane.b32.xlu0 %v3907, 56
      %v3919 = vpop.permute.xlu0 %3918
      %3920 = vrot.lane.b32.xlu0 %v3911, 56
      %v3921 = vpop.permute.xlu0 %3920
      %3922 = vrot.lane.b32.xlu0 %v3915, 56
      %v3923 = vpop.permute.xlu0 %3922
      %v3924 = vsel %vm506, %v3917, %v3919
      %v3925 = vsel %vm506, %v3919, %v3921
      %v3926 = vsel %vm506, %v3921, %v3923
      %v3932 = vmul.f32 %v3893, %v3917
      %v3933 = vmul.f32 %v3894, %v3924
      %v3934 = vmul.f32 %v3895, %v3925
      %v3935 = vmul.f32 %v3896, %v3926
      %v3936 = vmul.f32 %v3897, %v3923
      %3942 = vrot.lane.b32.xlu0 %v3932, 72
      %v3943 = vpop.permute.xlu0 %3942
      %3944 = vrot.lane.b32.xlu0 %v3933, 72
      %v3945 = vpop.permute.xlu0 %3944
      %3946 = vrot.lane.b32.xlu0 %v3934, 72
      %v3947 = vpop.permute.xlu0 %3946
      %3948 = vrot.lane.b32.xlu0 %v3935, 72
      %v3949 = vpop.permute.xlu0 %3948
      %3950 = vrot.lane.b32.xlu0 %v3936, 72
      %v3951 = vpop.permute.xlu0 %3950
      %v3952 = vsel %vm535, %v3943, %v3945
      %v3953 = vsel %vm535, %v3945, %v3947
      %v3954 = vsel %vm535, %v3947, %v3949
      %v3955 = vsel %vm535, %v3949, %v3951
      %3960 = vst [vmem:[#allocation3 + $0x260] sm:$0xff] %v3952
      %3961 = vst [vmem:[#allocation3 + $0x268] sm:$0xff] %v3953
      %3962 = vst [vmem:[#allocation3 + $0x270] sm:$0xff] %v3954
      %3963 = vst [vmem:[#allocation3 + $0x278] sm:$0xff] %v3955
      %v3964 = vld [vmem:[#allocation2 + $0x8] sm:$0xff]
      %v3965 = vld [vmem:[#allocation2 + $0x10] sm:$0xff]
      %v3966 = vld [vmem:[#allocation2 + $0x18] sm:$0xff]
      %v3967 = vld [vmem:[#allocation2 + $0x20] sm:$0xff]
      %v3968 = vld [vmem:[#allocation2 + $0x28] sm:$0xff]
      %v3969 = vld [vmem:[%s1798] ss:$8 sm:$0xf]
      %v3971 = vlaneseq
      %v3972 = vshrl.u32 %v3971, 7
      %v3973 = vsub.s32 0, %v3972
      %v3974 = vrot.slane %v3969, %v3973
      %v3975 = vlaneseq
      %v3976 = vshrl.u32 %v3975, 7
      %v3977 = vsub.s32 1, %v3976
      %v3978 = vrot.slane %v3969, %v3977
      %v3979 = vlaneseq
      %v3980 = vshrl.u32 %v3979, 7
      %v3981 = vsub.s32 2, %v3980
      %v3982 = vrot.slane %v3969, %v3981
      %v3983 = vlaneseq
      %v3984 = vshrl.u32 %v3983, 7
      %v3985 = vsub.s32 3, %v3984
      %v3986 = vrot.slane %v3969, %v3985
      %3987 = vrot.lane.b32.xlu0 %v3974, 57
      %v3988 = vpop.permute.xlu0 %3987
      %3989 = vrot.lane.b32.xlu0 %v3978, 57
      %v3990 = vpop.permute.xlu0 %3989
      %3991 = vrot.lane.b32.xlu0 %v3982, 57
      %v3992 = vpop.permute.xlu0 %3991
      %3993 = vrot.lane.b32.xlu0 %v3986, 57
      %v3994 = vpop.permute.xlu0 %3993
      %v3995 = vsel %vm580, %v3988, %v3990
      %v3996 = vsel %vm580, %v3990, %v3992
      %v3997 = vsel %vm580, %v3992, %v3994
      %v4003 = vmul.f32 %v3964, %v3988
      %v4004 = vmul.f32 %v3965, %v3995
      %v4005 = vmul.f32 %v3966, %v3996
      %v4006 = vmul.f32 %v3967, %v3997
      %v4007 = vmul.f32 %v3968, %v3994
      %4013 = vrot.lane.b32.xlu0 %v4003, 71
      %v4014 = vpop.permute.xlu0 %4013
      %4015 = vrot.lane.b32.xlu0 %v4004, 71
      %v4016 = vpop.permute.xlu0 %4015
      %4017 = vrot.lane.b32.xlu0 %v4005, 71
      %v4018 = vpop.permute.xlu0 %4017
      %4019 = vrot.lane.b32.xlu0 %v4006, 71
      %v4020 = vpop.permute.xlu0 %4019
      %4021 = vrot.lane.b32.xlu0 %v4007, 71
      %v4022 = vpop.permute.xlu0 %4021
      %v4023 = vsel %vm609, %v4014, %v4016
      %v4024 = vsel %vm609, %v4016, %v4018
      %v4025 = vsel %vm609, %v4018, %v4020
      %v4026 = vsel %vm609, %v4020, %v4022
      %4031 = vst [vmem:[#allocation3 + $0x280] sm:$0xff] %v4023
      %4032 = vst [vmem:[#allocation3 + $0x288] sm:$0xff] %v4024
      %4033 = vst [vmem:[#allocation3 + $0x290] sm:$0xff] %v4025
      %4034 = vst [vmem:[#allocation3 + $0x298] sm:$0xff] %v4026
      %v4035 = vld [vmem:[#allocation2 + $0x8] sm:$0xff]
      %v4036 = vld [vmem:[#allocation2 + $0x10] sm:$0xff]
      %v4037 = vld [vmem:[#allocation2 + $0x18] sm:$0xff]
      %v4038 = vld [vmem:[#allocation2 + $0x20] sm:$0xff]
      %v4039 = vld [vmem:[#allocation2 + $0x28] sm:$0xff]
      %v4040 = vld [vmem:[%s1870] ss:$8 sm:$0xf]
      %v4042 = vlaneseq
      %v4043 = vshrl.u32 %v4042, 7
      %v4044 = vsub.s32 0, %v4043
      %v4045 = vrot.slane %v4040, %v4044
      %v4046 = vlaneseq
      %v4047 = vshrl.u32 %v4046, 7
      %v4048 = vsub.s32 1, %v4047
      %v4049 = vrot.slane %v4040, %v4048
      %v4050 = vlaneseq
      %v4051 = vshrl.u32 %v4050, 7
      %v4052 = vsub.s32 2, %v4051
      %v4053 = vrot.slane %v4040, %v4052
      %v4054 = vlaneseq
      %v4055 = vshrl.u32 %v4054, 7
      %v4056 = vsub.s32 3, %v4055
      %v4057 = vrot.slane %v4040, %v4056
      %4058 = vrot.lane.b32.xlu0 %v4045, 63
      %v4059 = vpop.permute.xlu0 %4058
      %4060 = vrot.lane.b32.xlu0 %v4049, 63
      %v4061 = vpop.permute.xlu0 %4060
      %4062 = vrot.lane.b32.xlu0 %v4053, 63
      %v4063 = vpop.permute.xlu0 %4062
      %4064 = vrot.lane.b32.xlu0 %v4057, 63
      %v4065 = vpop.permute.xlu0 %4064
      %v4066 = vsel %vm654, %v4059, %v4061
      %v4067 = vsel %vm654, %v4061, %v4063
      %v4068 = vsel %vm654, %v4063, %v4065
      %v4074 = vmul.f32 %v4035, %v4059
      %v4075 = vmul.f32 %v4036, %v4066
      %v4076 = vmul.f32 %v4037, %v4067
      %v4077 = vmul.f32 %v4038, %v4068
      %v4078 = vmul.f32 %v4039, %v4065
      %4084 = vrot.lane.b32.xlu0 %v4074, 65
      %v4085 = vpop.permute.xlu0 %4084
      %4086 = vrot.lane.b32.xlu0 %v4075, 65
      %v4087 = vpop.permute.xlu0 %4086
      %4088 = vrot.lane.b32.xlu0 %v4076, 65
      %v4089 = vpop.permute.xlu0 %4088
      %4090 = vrot.lane.b32.xlu0 %v4077, 65
      %v4091 = vpop.permute.xlu0 %4090
      %4092 = vrot.lane.b32.xlu0 %v4078, 65
      %v4093 = vpop.permute.xlu0 %4092
      %v4094 = vsel %vm683, %v4085, %v4087
      %v4095 = vsel %vm683, %v4087, %v4089
      %v4096 = vsel %vm683, %v4089, %v4091
      %v4097 = vsel %vm683, %v4091, %v4093
      %4102 = vst [vmem:[#allocation3 + $0x2a0] sm:$0xff] %v4094
      %4103 = vst [vmem:[#allocation3 + $0x2a8] sm:$0xff] %v4095
      %4104 = vst [vmem:[#allocation3 + $0x2b0] sm:$0xff] %v4096
      %4105 = vst [vmem:[#allocation3 + $0x2b8] sm:$0xff] %v4097
      %v4106 = vld [vmem:[#allocation2 + $0x8] sm:$0xff]
      %v4107 = vld [vmem:[#allocation2 + $0x10] sm:$0xff]
      %v4108 = vld [vmem:[#allocation2 + $0x18] sm:$0xff]
      %v4109 = vld [vmem:[#allocation2 + $0x20] sm:$0xff]
      %v4110 = vld [vmem:[#allocation2 + $0x28] sm:$0xff]
      %v4111 = vld [vmem:[%s1942] ss:$8 sm:$0xf]
      %v4113 = vlaneseq
      %v4114 = vshrl.u32 %v4113, 7
      %v4115 = vsub.s32 0, %v4114
      %v4116 = vrot.slane %v4111, %v4115
      %v4117 = vlaneseq
      %v4118 = vshrl.u32 %v4117, 7
      %v4119 = vsub.s32 1, %v4118
      %v4120 = vrot.slane %v4111, %v4119
      %v4121 = vlaneseq
      %v4122 = vshrl.u32 %v4121, 7
      %v4123 = vsub.s32 2, %v4122
      %v4124 = vrot.slane %v4111, %v4123
      %v4125 = vlaneseq
      %v4126 = vshrl.u32 %v4125, 7
      %v4127 = vsub.s32 3, %v4126
      %v4128 = vrot.slane %v4111, %v4127
      %4129 = vrot.lane.b32.xlu0 %v4116, 64
      %v4130 = vpop.permute.xlu0 %4129
      %4131 = vrot.lane.b32.xlu0 %v4120, 64
      %v4132 = vpop.permute.xlu0 %4131
      %4133 = vrot.lane.b32.xlu0 %v4124, 64
      %v4134 = vpop.permute.xlu0 %4133
      %4135 = vrot.lane.b32.xlu0 %v4128, 64
      %v4136 = vpop.permute.xlu0 %4135
      %v4137 = vsel %vm728, %v4130, %v4132
      %v4138 = vsel %vm728, %v4132, %v4134
      %v4139 = vsel %vm728, %v4134, %v4136
      %v4145 = vmul.f32 %v4106, %v4130
      %v4146 = vmul.f32 %v4107, %v4137
      %v4147 = vmul.f32 %v4108, %v4138
      %v4148 = vmul.f32 %v4109, %v4139
      %v4149 = vmul.f32 %v4110, %v4136
      %4155 = vrot.lane.b32.xlu0 %v4145, 64
      %v4156 = vpop.permute.xlu0 %4155
      %4157 = vrot.lane.b32.xlu0 %v4146, 64
      %v4158 = vpop.permute.xlu0 %4157
      %4159 = vrot.lane.b32.xlu0 %v4147, 64
      %v4160 = vpop.permute.xlu0 %4159
      %4161 = vrot.lane.b32.xlu0 %v4148, 64
      %v4162 = vpop.permute.xlu0 %4161
      %4163 = vrot.lane.b32.xlu0 %v4149, 64
      %v4164 = vpop.permute.xlu0 %4163
      %v4165 = vsel %vm728, %v4156, %v4158
      %v4166 = vsel %vm728, %v4158, %v4160
      %v4167 = vsel %vm728, %v4160, %v4162
      %v4168 = vsel %vm728, %v4162, %v4164
      %4173 = vst [vmem:[#allocation3 + $0x2c0] sm:$0xff] %v4165
      %4174 = vst [vmem:[#allocation3 + $0x2c8] sm:$0xff] %v4166
      %4175 = vst [vmem:[#allocation3 + $0x2d0] sm:$0xff] %v4167
      %4176 = vst [vmem:[#allocation3 + $0x2d8] sm:$0xff] %v4168
      %v4177 = vld [vmem:[#allocation2 + $0x8] sm:$0xff]
      %v4178 = vld [vmem:[#allocation2 + $0x10] sm:$0xff]
      %v4179 = vld [vmem:[#allocation2 + $0x18] sm:$0xff]
      %v4180 = vld [vmem:[#allocation2 + $0x20] sm:$0xff]
      %v4181 = vld [vmem:[#allocation2 + $0x28] sm:$0xff]
      %v4182 = vld [vmem:[%s2014] ss:$8 sm:$0xf]
      %v4184 = vlaneseq
      %v4185 = vshrl.u32 %v4184, 7
      %v4186 = vsub.s32 0, %v4185
      %v4187 = vrot.slane %v4182, %v4186
      %v4188 = vlaneseq
      %v4189 = vshrl.u32 %v4188, 7
      %v4190 = vsub.s32 1, %v4189
      %v4191 = vrot.slane %v4182, %v4190
      %v4192 = vlaneseq
      %v4193 = vshrl.u32 %v4192, 7
      %v4194 = vsub.s32 2, %v4193
      %v4195 = vrot.slane %v4182, %v4194
      %v4196 = vlaneseq
      %v4197 = vshrl.u32 %v4196, 7
      %v4198 = vsub.s32 3, %v4197
      %v4199 = vrot.slane %v4182, %v4198
      %4200 = vrot.lane.b32.xlu0 %v4187, 65
      %v4201 = vpop.permute.xlu0 %4200
      %4202 = vrot.lane.b32.xlu0 %v4191, 65
      %v4203 = vpop.permute.xlu0 %4202
      %4204 = vrot.lane.b32.xlu0 %v4195, 65
      %v4205 = vpop.permute.xlu0 %4204
      %4206 = vrot.lane.b32.xlu0 %v4199, 65
      %v4207 = vpop.permute.xlu0 %4206
      %v4208 = vsel %vm683, %v4201, %v4203
      %v4209 = vsel %vm683, %v4203, %v4205
      %v4210 = vsel %vm683, %v4205, %v4207
      %v4216 = vmul.f32 %v4177, %v4201
      %v4217 = vmul.f32 %v4178, %v4208
      %v4218 = vmul.f32 %v4179, %v4209
      %v4219 = vmul.f32 %v4180, %v4210
      %v4220 = vmul.f32 %v4181, %v4207
      %4226 = vrot.lane.b32.xlu0 %v4216, 63
      %v4227 = vpop.permute.xlu0 %4226
      %4228 = vrot.lane.b32.xlu0 %v4217, 63
      %v4229 = vpop.permute.xlu0 %4228
      %4230 = vrot.lane.b32.xlu0 %v4218, 63
      %v4231 = vpop.permute.xlu0 %4230
      %4232 = vrot.lane.b32.xlu0 %v4219, 63
      %v4233 = vpop.permute.xlu0 %4232
      %4234 = vrot.lane.b32.xlu0 %v4220, 63
      %v4235 = vpop.permute.xlu0 %4234
      %v4236 = vsel %vm654, %v4227, %v4229
      %v4237 = vsel %vm654, %v4229, %v4231
      %v4238 = vsel %vm654, %v4231, %v4233
      %v4239 = vsel %vm654, %v4233, %v4235
      %4244 = vst [vmem:[#allocation3 + $0x2e0] sm:$0xff] %v4236
      %4245 = vst [vmem:[#allocation3 + $0x2e8] sm:$0xff] %v4237
      %4246 = vst [vmem:[#allocation3 + $0x2f0] sm:$0xff] %v4238
      %4247 = vst [vmem:[#allocation3 + $0x2f8] sm:$0xff] %v4239
      %v4248 = vld [vmem:[#allocation2 + $0x8] sm:$0xff]
      %v4249 = vld [vmem:[#allocation2 + $0x10] sm:$0xff]
      %v4250 = vld [vmem:[#allocation2 + $0x18] sm:$0xff]
      %v4251 = vld [vmem:[#allocation2 + $0x20] sm:$0xff]
      %v4252 = vld [vmem:[#allocation2 + $0x28] sm:$0xff]
      %v4253 = vld [vmem:[%s2086] ss:$8 sm:$0xf]
      %v4255 = vlaneseq
      %v4256 = vshrl.u32 %v4255, 7
      %v4257 = vsub.s32 0, %v4256
      %v4258 = vrot.slane %v4253, %v4257
      %v4259 = vlaneseq
      %v4260 = vshrl.u32 %v4259, 7
      %v4261 = vsub.s32 1, %v4260
      %v4262 = vrot.slane %v4253, %v4261
      %v4263 = vlaneseq
      %v4264 = vshrl.u32 %v4263, 7
      %v4265 = vsub.s32 2, %v4264
      %v4266 = vrot.slane %v4253, %v4265
      %v4267 = vlaneseq
      %v4268 = vshrl.u32 %v4267, 7
      %v4269 = vsub.s32 3, %v4268
      %v4270 = vrot.slane %v4253, %v4269
      %4271 = vrot.lane.b32.xlu0 %v4258, 71
      %v4272 = vpop.permute.xlu0 %4271
      %4273 = vrot.lane.b32.xlu0 %v4262, 71
      %v4274 = vpop.permute.xlu0 %4273
      %4275 = vrot.lane.b32.xlu0 %v4266, 71
      %v4276 = vpop.permute.xlu0 %4275
      %4277 = vrot.lane.b32.xlu0 %v4270, 71
      %v4278 = vpop.permute.xlu0 %4277
      %v4279 = vsel %vm609, %v4272, %v4274
      %v4280 = vsel %vm609, %v4274, %v4276
      %v4281 = vsel %vm609, %v4276, %v4278
      %v4287 = vmul.f32 %v4248, %v4272
      %v4288 = vmul.f32 %v4249, %v4279
      %v4289 = vmul.f32 %v4250, %v4280
      %v4290 = vmul.f32 %v4251, %v4281
      %v4291 = vmul.f32 %v4252, %v4278
      %4297 = vrot.lane.b32.xlu0 %v4287, 57
      %v4298 = vpop.permute.xlu0 %4297
      %4299 = vrot.lane.b32.xlu0 %v4288, 57
      %v4300 = vpop.permute.xlu0 %4299
      %4301 = vrot.lane.b32.xlu0 %v4289, 57
      %v4302 = vpop.permute.xlu0 %4301
      %4303 = vrot.lane.b32.xlu0 %v4290, 57
      %v4304 = vpop.permute.xlu0 %4303
      %4305 = vrot.lane.b32.xlu0 %v4291, 57
      %v4306 = vpop.permute.xlu0 %4305
      %v4307 = vsel %vm580, %v4298, %v4300
      %v4308 = vsel %vm580, %v4300, %v4302
      %v4309 = vsel %vm580, %v4302, %v4304
      %v4310 = vsel %vm580, %v4304, %v4306
      %4315 = vst [vmem:[#allocation3 + $0x300] sm:$0xff] %v4307
      %4316 = vst [vmem:[#allocation3 + $0x308] sm:$0xff] %v4308
      %4317 = vst [vmem:[#allocation3 + $0x310] sm:$0xff] %v4309
      %4318 = vst [vmem:[#allocation3 + $0x318] sm:$0xff] %v4310
      %v4319 = vld [vmem:[#allocation2 + $0x8] sm:$0xff]
      %v4320 = vld [vmem:[#allocation2 + $0x10] sm:$0xff]
      %v4321 = vld [vmem:[#allocation2 + $0x18] sm:$0xff]
      %v4322 = vld [vmem:[#allocation2 + $0x20] sm:$0xff]
      %v4323 = vld [vmem:[#allocation2 + $0x28] sm:$0xff]
      %v4324 = vld [vmem:[%s2158] ss:$8 sm:$0xf]
      %v4326 = vlaneseq
      %v4327 = vshrl.u32 %v4326, 7
      %v4328 = vsub.s32 0, %v4327
      %v4329 = vrot.slane %v4324, %v4328
      %v4330 = vlaneseq
      %v4331 = vshrl.u32 %v4330, 7
      %v4332 = vsub.s32 1, %v4331
      %v4333 = vrot.slane %v4324, %v4332
      %v4334 = vlaneseq
      %v4335 = vshrl.u32 %v4334, 7
      %v4336 = vsub.s32 2, %v4335
      %v4337 = vrot.slane %v4324, %v4336
      %v4338 = vlaneseq
      %v4339 = vshrl.u32 %v4338, 7
      %v4340 = vsub.s32 3, %v4339
      %v4341 = vrot.slane %v4324, %v4340
      %4342 = vrot.lane.b32.xlu0 %v4329, 72
      %v4343 = vpop.permute.xlu0 %4342
      %4344 = vrot.lane.b32.xlu0 %v4333, 72
      %v4345 = vpop.permute.xlu0 %4344
      %4346 = vrot.lane.b32.xlu0 %v4337, 72
      %v4347 = vpop.permute.xlu0 %4346
      %4348 = vrot.lane.b32.xlu0 %v4341, 72
      %v4349 = vpop.permute.xlu0 %4348
      %v4350 = vsel %vm535, %v4343, %v4345
      %v4351 = vsel %vm535, %v4345, %v4347
      %v4352 = vsel %vm535, %v4347, %v4349
      %v4358 = vmul.f32 %v4319, %v4343
      %v4359 = vmul.f32 %v4320, %v4350
      %v4360 = vmul.f32 %v4321, %v4351
      %v4361 = vmul.f32 %v4322, %v4352
      %v4362 = vmul.f32 %v4323, %v4349
      %4368 = vrot.lane.b32.xlu0 %v4358, 56
      %v4369 = vpop.permute.xlu0 %4368
      %4370 = vrot.lane.b32.xlu0 %v4359, 56
      %v4371 = vpop.permute.xlu0 %4370
      %4372 = vrot.lane.b32.xlu0 %v4360, 56
      %v4373 = vpop.permute.xlu0 %4372
      %4374 = vrot.lane.b32.xlu0 %v4361, 56
      %v4375 = vpop.permute.xlu0 %4374
      %4376 = vrot.lane.b32.xlu0 %v4362, 56
      %v4377 = vpop.permute.xlu0 %4376
      %v4378 = vsel %vm506, %v4369, %v4371
      %v4379 = vsel %vm506, %v4371, %v4373
      %v4380 = vsel %vm506, %v4373, %v4375
      %v4381 = vsel %vm506, %v4375, %v4377
      %4386 = vst [vmem:[#allocation3 + $0x320] sm:$0xff] %v4378
      %4387 = vst [vmem:[#allocation3 + $0x328] sm:$0xff] %v4379
      %4388 = vst [vmem:[#allocation3 + $0x330] sm:$0xff] %v4380
      %4389 = vst [vmem:[#allocation3 + $0x338] sm:$0xff] %v4381
      %v4390 = vld [vmem:[#allocation2 + $0x8] sm:$0xff]
      %v4391 = vld [vmem:[#allocation2 + $0x10] sm:$0xff]
      %v4392 = vld [vmem:[#allocation2 + $0x18] sm:$0xff]
      %v4393 = vld [vmem:[#allocation2 + $0x20] sm:$0xff]
      %v4394 = vld [vmem:[#allocation2 + $0x28] sm:$0xff]
      %v4395 = vld [vmem:[%s2230] ss:$8 sm:$0xf]
      %v4397 = vlaneseq
      %v4398 = vshrl.u32 %v4397, 7
      %v4399 = vsub.s32 0, %v4398
      %v4400 = vrot.slane %v4395, %v4399
      %v4401 = vlaneseq
      %v4402 = vshrl.u32 %v4401, 7
      %v4403 = vsub.s32 1, %v4402
      %v4404 = vrot.slane %v4395, %v4403
      %v4405 = vlaneseq
      %v4406 = vshrl.u32 %v4405, 7
      %v4407 = vsub.s32 2, %v4406
      %v4408 = vrot.slane %v4395, %v4407
      %v4409 = vlaneseq
      %v4410 = vshrl.u32 %v4409, 7
      %v4411 = vsub.s32 3, %v4410
      %v4412 = vrot.slane %v4395, %v4411
      %4413 = vrot.lane.b32.xlu0 %v4400, 73
      %v4414 = vpop.permute.xlu0 %4413
      %4415 = vrot.lane.b32.xlu0 %v4404, 73
      %v4416 = vpop.permute.xlu0 %4415
      %4417 = vrot.lane.b32.xlu0 %v4408, 73
      %v4418 = vpop.permute.xlu0 %4417
      %4419 = vrot.lane.b32.xlu0 %v4412, 73
      %v4420 = vpop.permute.xlu0 %4419
      %v4421 = vsel %vm461, %v4414, %v4416
      %v4422 = vsel %vm461, %v4416, %v4418
      %v4423 = vsel %vm461, %v4418, %v4420
      %v4429 = vmul.f32 %v4390, %v4414
      %v4430 = vmul.f32 %v4391, %v4421
      %v4431 = vmul.f32 %v4392, %v4422
      %v4432 = vmul.f32 %v4393, %v4423
      %v4433 = vmul.f32 %v4394, %v4420
      %4439 = vrot.lane.b32.xlu0 %v4429, 55
      %v4440 = vpop.permute.xlu0 %4439
      %4441 = vrot.lane.b32.xlu0 %v4430, 55
      %v4442 = vpop.permute.xlu0 %4441
      %4443 = vrot.lane.b32.xlu0 %v4431, 55
      %v4444 = vpop.permute.xlu0 %4443
      %4445 = vrot.lane.b32.xlu0 %v4432, 55
      %v4446 = vpop.permute.xlu0 %4445
      %4447 = vrot.lane.b32.xlu0 %v4433, 55
      %v4448 = vpop.permute.xlu0 %4447
      %v4449 = vsel %vm432, %v4440, %v4442
      %v4450 = vsel %vm432, %v4442, %v4444
      %v4451 = vsel %vm432, %v4444, %v4446
      %v4452 = vsel %vm432, %v4446, %v4448
      %4457 = vst [vmem:[#allocation3 + $0x340] sm:$0xff] %v4449
      %4458 = vst [vmem:[#allocation3 + $0x348] sm:$0xff] %v4450
      %4459 = vst [vmem:[#allocation3 + $0x350] sm:$0xff] %v4451
      %4460 = vst [vmem:[#allocation3 + $0x358] sm:$0xff] %v4452
      %v4461 = vld [vmem:[#allocation3] sm:$0xff]
      %v4462 = vld [vmem:[#allocation3 + $0x8] sm:$0xff]
      %v4463 = vld [vmem:[#allocation3 + $0x10] sm:$0xff]
      %v4464 = vld [vmem:[#allocation3 + $0x18] sm:$0xff]
      %v4465 = vld [vmem:[#allocation3 + $0x20] sm:$0xff]
      %v4466 = vld [vmem:[#allocation3 + $0x28] sm:$0xff]
      %v4467 = vld [vmem:[#allocation3 + $0x30] sm:$0xff]
      %v4468 = vld [vmem:[#allocation3 + $0x38] sm:$0xff]
      %v4469 = vld [vmem:[#allocation3 + $0x40] sm:$0xff]
      %v4470 = vld [vmem:[#allocation3 + $0x48] sm:$0xff]
      %v4471 = vld [vmem:[#allocation3 + $0x50] sm:$0xff]
      %v4472 = vld [vmem:[#allocation3 + $0x58] sm:$0xff]
      %v4473 = vld [vmem:[#allocation3 + $0x60] sm:$0xff]
      %v4474 = vld [vmem:[#allocation3 + $0x68] sm:$0xff]
      %v4475 = vld [vmem:[#allocation3 + $0x70] sm:$0xff]
      %v4476 = vld [vmem:[#allocation3 + $0x78] sm:$0xff]
      %v4477 = vld [vmem:[#allocation3 + $0x80] sm:$0xff]
      %v4478 = vld [vmem:[#allocation3 + $0x88] sm:$0xff]
      %v4479 = vld [vmem:[#allocation3 + $0x90] sm:$0xff]
      %v4480 = vld [vmem:[#allocation3 + $0x98] sm:$0xff]
      %v4481 = vld [vmem:[#allocation3 + $0xa0] sm:$0xff]
      %v4482 = vld [vmem:[#allocation3 + $0xa8] sm:$0xff]
      %v4483 = vld [vmem:[#allocation3 + $0xb0] sm:$0xff]
      %v4484 = vld [vmem:[#allocation3 + $0xb8] sm:$0xff]
      %v4485 = vld [vmem:[#allocation3 + $0xc0] sm:$0xff]
      %v4486 = vld [vmem:[#allocation3 + $0xc8] sm:$0xff]
      %v4487 = vld [vmem:[#allocation3 + $0xd0] sm:$0xff]
      %v4488 = vld [vmem:[#allocation3 + $0xd8] sm:$0xff]
      %v4489 = vld [vmem:[#allocation3 + $0xe0] sm:$0xff]
      %v4490 = vld [vmem:[#allocation3 + $0xe8] sm:$0xff]
      %v4491 = vld [vmem:[#allocation3 + $0xf0] sm:$0xff]
      %v4492 = vld [vmem:[#allocation3 + $0xf8] sm:$0xff]
      %v4493 = vld [vmem:[#allocation3 + $0x100] sm:$0xff]
      %v4494 = vld [vmem:[#allocation3 + $0x108] sm:$0xff]
      %v4495 = vld [vmem:[#allocation3 + $0x110] sm:$0xff]
      %v4496 = vld [vmem:[#allocation3 + $0x118] sm:$0xff]
      %v4497 = vld [vmem:[#allocation3 + $0x120] sm:$0xff]
      %v4498 = vld [vmem:[#allocation3 + $0x128] sm:$0xff]
      %v4499 = vld [vmem:[#allocation3 + $0x130] sm:$0xff]
      %v4500 = vld [vmem:[#allocation3 + $0x138] sm:$0xff]
      %v4501 = vld [vmem:[#allocation3 + $0x140] sm:$0xff]
      %v4502 = vld [vmem:[#allocation3 + $0x148] sm:$0xff]
      %v4503 = vld [vmem:[#allocation3 + $0x150] sm:$0xff]
      %v4504 = vld [vmem:[#allocation3 + $0x158] sm:$0xff]
      %v4505 = vld [vmem:[#allocation3 + $0x160] sm:$0xff]
      %v4506 = vld [vmem:[#allocation3 + $0x168] sm:$0xff]
      %v4507 = vld [vmem:[#allocation3 + $0x170] sm:$0xff]
      %v4508 = vld [vmem:[#allocation3 + $0x178] sm:$0xff]
      %v4509 = vld [vmem:[#allocation3 + $0x180] sm:$0xff]
      %v4510 = vld [vmem:[#allocation3 + $0x188] sm:$0xff]
      %v4511 = vld [vmem:[#allocation3 + $0x190] sm:$0xff]
      %v4512 = vld [vmem:[#allocation3 + $0x198] sm:$0xff]
      %v4513 = vld [vmem:[#allocation3 + $0x1a0] sm:$0xff]
      %v4514 = vld [vmem:[#allocation3 + $0x1a8] sm:$0xff]
      %v4515 = vld [vmem:[#allocation3 + $0x1b0] sm:$0xff]
      %v4516 = vld [vmem:[#allocation3 + $0x1b8] sm:$0xff]
      %v4517 = vld [vmem:[#allocation3 + $0x1c0] sm:$0xff]
      %v4518 = vld [vmem:[#allocation3 + $0x1c8] sm:$0xff]
      %v4519 = vld [vmem:[#allocation3 + $0x1d0] sm:$0xff]
      %v4520 = vld [vmem:[#allocation3 + $0x1d8] sm:$0xff]
      %v4521 = vld [vmem:[#allocation3 + $0x1e0] sm:$0xff]
      %v4522 = vld [vmem:[#allocation3 + $0x1e8] sm:$0xff]
      %v4523 = vld [vmem:[#allocation3 + $0x1f0] sm:$0xff]
      %v4524 = vld [vmem:[#allocation3 + $0x1f8] sm:$0xff]
      %v4525 = vld [vmem:[#allocation3 + $0x200] sm:$0xff]
      %v4526 = vld [vmem:[#allocation3 + $0x208] sm:$0xff]
      %v4527 = vld [vmem:[#allocation3 + $0x210] sm:$0xff]
      %v4528 = vld [vmem:[#allocation3 + $0x218] sm:$0xff]
      %v4529 = vld [vmem:[#allocation3 + $0x220] sm:$0xff]
      %v4530 = vld [vmem:[#allocation3 + $0x228] sm:$0xff]
      %v4531 = vld [vmem:[#allocation3 + $0x230] sm:$0xff]
      %v4532 = vld [vmem:[#allocation3 + $0x238] sm:$0xff]
      %v4533 = vld [vmem:[#allocation3 + $0x240] sm:$0xff]
      %v4534 = vld [vmem:[#allocation3 + $0x248] sm:$0xff]
      %v4535 = vld [vmem:[#allocation3 + $0x250] sm:$0xff]
      %v4536 = vld [vmem:[#allocation3 + $0x258] sm:$0xff]
      %v4537 = vld [vmem:[#allocation3 + $0x260] sm:$0xff]
      %v4538 = vld [vmem:[#allocation3 + $0x268] sm:$0xff]
      %v4539 = vld [vmem:[#allocation3 + $0x270] sm:$0xff]
      %v4540 = vld [vmem:[#allocation3 + $0x278] sm:$0xff]
      %v4541 = vld [vmem:[#allocation3 + $0x280] sm:$0xff]
      %v4542 = vld [vmem:[#allocation3 + $0x288] sm:$0xff]
      %v4543 = vld [vmem:[#allocation3 + $0x290] sm:$0xff]
      %v4544 = vld [vmem:[#allocation3 + $0x298] sm:$0xff]
      %v4545 = vld [vmem:[#allocation3 + $0x2a0] sm:$0xff]
      %v4546 = vld [vmem:[#allocation3 + $0x2a8] sm:$0xff]
      %v4547 = vld [vmem:[#allocation3 + $0x2b0] sm:$0xff]
      %v4548 = vld [vmem:[#allocation3 + $0x2b8] sm:$0xff]
      %v4549 = vld [vmem:[#allocation3 + $0x2c0] sm:$0xff]
      %v4550 = vld [vmem:[#allocation3 + $0x2c8] sm:$0xff]
      %v4551 = vld [vmem:[#allocation3 + $0x2d0] sm:$0xff]
      %v4552 = vld [vmem:[#allocation3 + $0x2d8] sm:$0xff]
      %v4553 = vld [vmem:[#allocation3 + $0x2e0] sm:$0xff]
      %v4554 = vld [vmem:[#allocation3 + $0x2e8] sm:$0xff]
      %v4555 = vld [vmem:[#allocation3 + $0x2f0] sm:$0xff]
      %v4556 = vld [vmem:[#allocation3 + $0x2f8] sm:$0xff]
      %v4557 = vld [vmem:[#allocation3 + $0x300] sm:$0xff]
      %v4558 = vld [vmem:[#allocation3 + $0x308] sm:$0xff]
      %v4559 = vld [vmem:[#allocation3 + $0x310] sm:$0xff]
      %v4560 = vld [vmem:[#allocation3 + $0x318] sm:$0xff]
      %v4561 = vld [vmem:[#allocation3 + $0x320] sm:$0xff]
      %v4562 = vld [vmem:[#allocation3 + $0x328] sm:$0xff]
      %v4563 = vld [vmem:[#allocation3 + $0x330] sm:$0xff]
      %v4564 = vld [vmem:[#allocation3 + $0x338] sm:$0xff]
      %v4565 = vld [vmem:[#allocation3 + $0x340] sm:$0xff]
      %v4566 = vld [vmem:[#allocation3 + $0x348] sm:$0xff]
      %v4567 = vld [vmem:[#allocation3 + $0x350] sm:$0xff]
      %v4568 = vld [vmem:[#allocation3 + $0x358] sm:$0xff]
      %v4569 = vpack.c.bf16 %v4465, %v4461
      %v4570 = vpack.c.bf16 %v4466, %v4462
      %v4571 = vpack.c.bf16 %v4467, %v4463
      %v4572 = vpack.c.bf16 %v4468, %v4464
      %v4573 = vpack.c.bf16 %v4473, %v4469
      %v4574 = vpack.c.bf16 %v4474, %v4470
      %v4575 = vpack.c.bf16 %v4475, %v4471
      %v4576 = vpack.c.bf16 %v4476, %v4472
      %v4577 = vpack.c.bf16 %v4481, %v4477
      %v4578 = vpack.c.bf16 %v4482, %v4478
      %v4579 = vpack.c.bf16 %v4483, %v4479
      %v4580 = vpack.c.bf16 %v4484, %v4480
      %v4581 = vpack.c.bf16 %v4489, %v4485
      %v4582 = vpack.c.bf16 %v4490, %v4486
      %v4583 = vpack.c.bf16 %v4491, %v4487
      %v4584 = vpack.c.bf16 %v4492, %v4488
      %v4585 = vpack.c.bf16 %v4497, %v4493
      %v4586 = vpack.c.bf16 %v4498, %v4494
      %v4587 = vpack.c.bf16 %v4499, %v4495
      %v4588 = vpack.c.bf16 %v4500, %v4496
      %v4589 = vpack.c.bf16 %v4505, %v4501
      %v4590 = vpack.c.bf16 %v4506, %v4502
      %v4591 = vpack.c.bf16 %v4507, %v4503
      %v4592 = vpack.c.bf16 %v4508, %v4504
      %v4593 = vpack.c.bf16 %v4513, %v4509
      %v4594 = vpack.c.bf16 %v4514, %v4510
      %v4595 = vpack.c.bf16 %v4515, %v4511
      %v4596 = vpack.c.bf16 %v4516, %v4512
      %v4597 = vpack.c.bf16 %v4521, %v4517
      %v4598 = vpack.c.bf16 %v4522, %v4518
      %v4599 = vpack.c.bf16 %v4523, %v4519
      %v4600 = vpack.c.bf16 %v4524, %v4520
      %v4601 = vpack.c.bf16 %v4529, %v4525
      %v4602 = vpack.c.bf16 %v4530, %v4526
      %v4603 = vpack.c.bf16 %v4531, %v4527
      %v4604 = vpack.c.bf16 %v4532, %v4528
      %v4605 = vpack.c.bf16 %v4537, %v4533
      %v4606 = vpack.c.bf16 %v4538, %v4534
      %v4607 = vpack.c.bf16 %v4539, %v4535
      %v4608 = vpack.c.bf16 %v4540, %v4536
      %v4609 = vpack.c.bf16 %v4545, %v4541
      %v4610 = vpack.c.bf16 %v4546, %v4542
      %v4611 = vpack.c.bf16 %v4547, %v4543
      %v4612 = vpack.c.bf16 %v4548, %v4544
      %v4613 = vpack.c.bf16 %v4553, %v4549
      %v4614 = vpack.c.bf16 %v4554, %v4550
      %v4615 = vpack.c.bf16 %v4555, %v4551
      %v4616 = vpack.c.bf16 %v4556, %v4552
      %v4617 = vpack.c.bf16 %v4561, %v4557
      %v4618 = vpack.c.bf16 %v4562, %v4558
      %v4619 = vpack.c.bf16 %v4563, %v4559
      %v4620 = vpack.c.bf16 %v4564, %v4560
      %v4621 = vpack.c.bf16 %v4565, %v4565
      %v4622 = vpack.c.bf16 %v4566, %v4566
      %v4623 = vpack.c.bf16 %v4567, %v4567
      %v4624 = vpack.c.bf16 %v4568, %v4568
      %v4625 = vld [vmem:[%s4] sm:$0xff]
      %v4626 = vld [vmem:[%s5] sm:$0xff]
      %4628 = vset.pattern.permute.xlu0 0
      %4629 = vperm.xlu0 %4628, %v4626
      %v4630 = vpop.permute.xlu0 %4629
      %v4633 = vunpack.c.l.b16 %v4625
      %v4634 = vunpack.c.h.b16 %v4625
      %v4635 = vpack.c.b16 %v4633, %v4633
      %v4636 = vpack.c.b16 %v4634, %v4634
      %v4639 = vsel %vm2474, %v4636, 0
      %v4642 = vsel %vm2478, %v4621, 0
      %v4645 = vsel %vm2478, %v4622, 0
      %v4648 = vsel %vm2478, %v4623, 0
      %v4651 = vsel %vm2478, %v4624, 0
      %4653 = vmatprep.subr.bf16.mxu0 %v4598
      %4654 = vmatpush1.bf16.msra.mxu0 %v4597
      %4655 = vmatprep.subr.bf16.mxu0 %v4594
      %4656 = vmatpush1.bf16.msra.mxu0 %v4593
      %4657 = vmatprep.subr.bf16.mxu0 %v4590
      %4658 = vmatpush1.bf16.msra.mxu0 %v4589
      %4659 = vmatprep.subr.bf16.mxu0 %v4586
      %4660 = vmatpush1.bf16.msra.mxu0 %v4585
      %4661 = vmatprep.subr.bf16.mxu0 %v4582
      %4662 = vmatpush1.bf16.msra.mxu0 %v4581
      %4663 = vmatprep.subr.bf16.mxu0 %v4578
      %4664 = vmatpush1.bf16.msra.mxu0 %v4577
      %4665 = vmatprep.subr.bf16.mxu0 %v4574
      %4666 = vmatpush1.bf16.msra.mxu0 %v4573
      %4667 = vmatprep.subr.bf16.mxu0 %v4570
      %4668 = vmatpush1.bf16.msra.mxu0 %v4569
      %4669 = vmatprep.subr.bf16.mxu0 0
      %4670 = vmatpush2.bf16.msra.mxu0 0
      %4671 = vmatprep.subr.bf16.mxu0 0
      %4672 = vmatpush2.bf16.msra.mxu0 0
      %4673 = vmatprep.subr.bf16.mxu0 %v4645
      %4674 = vmatpush2.bf16.msra.mxu0 %v4642
      %4675 = vmatprep.subr.bf16.mxu0 %v4618
      %4676 = vmatpush2.bf16.msra.mxu0 %v4617
      %4677 = vmatprep.subr.bf16.mxu0 %v4614
      %4678 = vmatpush2.bf16.msra.mxu0 %v4613
      %4679 = vmatprep.subr.bf16.mxu0 %v4610
      %4680 = vmatpush2.bf16.msra.mxu0 %v4609
      %4681 = vmatprep.subr.bf16.mxu0 %v4606
      %4682 = vmatpush2.bf16.msra.mxu0 %v4605
      %4683 = vmatprep.subr.bf16.mxu0 %v4602
      %4684 = vmatpush2.bf16.msra.mxu0 %v4601
      %4685 = vmatprep.mubr.bf16.mxu0 %v4639
      %4686 = vmatmul.mubr.bf16.gmra.mxu0 %v4635
      %v4687 = vpop.f32.mrf.mxu0
      %v4688 = vadd.f32 %v4630, %v4687
      %v4689 = vpop.f32.mrf.mxu0
      %v4690 = vadd.f32 %v4630, %v4689
      %v4691 = vpop.f32.mrf.mxu0
      %v4692 = vpop.f32.mrf.mxu0
      %4693 = vdwg.mxu0
      %4694 = vmatprep.subr.bf16.mxu0 %v4600
      %4695 = vmatpush1.bf16.msra.mxu0 %v4599
      %4696 = vmatprep.subr.bf16.mxu0 %v4596
      %4697 = vmatpush1.bf16.msra.mxu0 %v4595
      %4698 = vmatprep.subr.bf16.mxu0 %v4592
      %4699 = vmatpush1.bf16.msra.mxu0 %v4591
      %4700 = vmatprep.subr.bf16.mxu0 %v4588
      %4701 = vmatpush1.bf16.msra.mxu0 %v4587
      %4702 = vmatprep.subr.bf16.mxu0 %v4584
      %4703 = vmatpush1.bf16.msra.mxu0 %v4583
      %4704 = vmatprep.subr.bf16.mxu0 %v4580
      %4705 = vmatpush1.bf16.msra.mxu0 %v4579
      %4706 = vmatprep.subr.bf16.mxu0 %v4576
      %4707 = vmatpush1.bf16.msra.mxu0 %v4575
      %4708 = vmatprep.subr.bf16.mxu0 %v4572
      %4709 = vmatpush1.bf16.msra.mxu0 %v4571
      %4710 = vmatprep.subr.bf16.mxu0 0
      %4711 = vmatpush2.bf16.msra.mxu0 0
      %4712 = vmatprep.subr.bf16.mxu0 0
      %4713 = vmatpush2.bf16.msra.mxu0 0
      %4714 = vmatprep.subr.bf16.mxu0 %v4651
      %4715 = vmatpush2.bf16.msra.mxu0 %v4648
      %4716 = vmatprep.subr.bf16.mxu0 %v4620
      %4717 = vmatpush2.bf16.msra.mxu0 %v4619
      %4718 = vmatprep.subr.bf16.mxu0 %v4616
      %4719 = vmatpush2.bf16.msra.mxu0 %v4615
      %4720 = vmatprep.subr.bf16.mxu0 %v4612
      %4721 = vmatpush2.bf16.msra.mxu0 %v4611
      %4722 = vmatprep.subr.bf16.mxu0 %v4608
      %4723 = vmatpush2.bf16.msra.mxu0 %v4607
      %4724 = vmatprep.subr.bf16.mxu0 %v4604
      %4725 = vmatpush2.bf16.msra.mxu0 %v4603
      %4726 = vmatprep.mubr.bf16.mxu0 %v4639
      %4727 = vmatmul.mubr.bf16.gmra.mxu0 %v4635
      %v4728 = vpop.f32.mrf.mxu0
      %v4729 = vadd.f32 %v4630, %v4728
      %v4730 = vpop.f32.mrf.mxu0
      %v4731 = vadd.f32 %v4630, %v4730
      %v4732 = vpop.f32.mrf.mxu0
      %v4733 = vpop.f32.mrf.mxu0
      %4734 = vdwg.mxu0
      %v4735 = vadd.f32 %v4688, %v4690
      %v4736 = vadd.f32 %v4735, %v4729
      %v4737 = vadd.f32 %v4736, %v4731
      %4738 = vadd.xlane.f32.xlu0 %v4737
      %v4739 = vpop.xlane.xlu0 %4738
      %v4740 = vmul.f32 %v4739, 0.001953125
      %v4741 = vsub.f32 %v4688, %v4740
      %v4742 = vsub.f32 %v4690, %v4740
      %v4743 = vsub.f32 %v4729, %v4740
      %v4744 = vsub.f32 %v4731, %v4740
      %v4745 = vmul.f32 %v4741, %v4741
      %v4746 = vmul.f32 %v4742, %v4742
      %v4747 = vmul.f32 %v4743, %v4743
      %v4748 = vmul.f32 %v4744, %v4744
      %v4749 = vadd.f32 %v4745, %v4746
      %v4750 = vadd.f32 %v4749, %v4747
      %v4751 = vadd.f32 %v4750, %v4748
      %4752 = vadd.xlane.f32.xlu0 %v4751
      %v4753 = vpop.xlane.xlu0 %4752
      %v4754 = vmul.f32 %v4753, 0.001953125
      %v4755 = vadd.f32 %v4754, 1e-05
      %v4756 = vrsqrt.pop %v4755
      %v4757 = vmul.f32 %v4741, %v4756
      %v4758 = vmul.f32 %v4742, %v4756
      %v4759 = vmul.f32 %v4743, %v4756
      %v4760 = vmul.f32 %v4744, %v4756
      %v4761 = vmax.f32 %v4757, 0.0
      %v4762 = vmax.f32 %v4758, 0.0
      %v4763 = vmax.f32 %v4759, 0.0
      %v4764 = vmax.f32 %v4760, 0.0
      %4765 = vst [vmem:[#allocation2 + $0x8] sm:$0xff] %v4761
      %4766 = vst [vmem:[#allocation2 + $0x10] sm:$0xff] %v4762
      %4767 = vst [vmem:[#allocation2 + $0x18] sm:$0xff] %v4763
      %4768 = vst [vmem:[#allocation2 + $0x20] sm:$0xff] %v4764
      %v4769 = vld [vmem:[#allocation2] sm:$0xff]
      %v4770 = vld [vmem:[#allocation2 + $0x8] sm:$0xff]
      %v4771 = vld [vmem:[#allocation2 + $0x10] sm:$0xff]
      %v4772 = vld [vmem:[#allocation2 + $0x18] sm:$0xff]
      %v4773 = vld [vmem:[#allocation2 + $0x20] sm:$0xff]
      %v4774 = vld [vmem:[%s1] ss:$8 sm:$0xf]
      %v4776 = vlaneseq
      %v4777 = vshrl.u32 %v4776, 7
      %v4778 = vsub.s32 0, %v4777
      %v4779 = vrot.slane %v4774, %v4778
      %v4780 = vlaneseq
      %v4781 = vshrl.u32 %v4780, 7
      %v4782 = vsub.s32 1, %v4781
      %v4783 = vrot.slane %v4774, %v4782
      %v4784 = vlaneseq
      %v4785 = vshrl.u32 %v4784, 7
      %v4786 = vsub.s32 2, %v4785
      %v4787 = vrot.slane %v4774, %v4786
      %v4788 = vlaneseq
      %v4789 = vshrl.u32 %v4788, 7
      %v4790 = vsub.s32 3, %v4789
      %v4791 = vrot.slane %v4774, %v4790
      %4792 = vrot.lane.b32.xlu0 %v4779, 55
      %v4793 = vpop.permute.xlu0 %4792
      %4794 = vrot.lane.b32.xlu0 %v4783, 55
      %v4795 = vpop.permute.xlu0 %4794
      %4796 = vrot.lane.b32.xlu0 %v4787, 55
      %v4797 = vpop.permute.xlu0 %4796
      %4798 = vrot.lane.b32.xlu0 %v4791, 55
      %v4799 = vpop.permute.xlu0 %4798
      %v4800 = vsel %vm432, %v4793, %v4795
      %v4801 = vsel %vm432, %v4795, %v4797
      %v4802 = vsel %vm432, %v4797, %v4799
      %v4808 = vmul.f32 %v4769, %v4793
      %v4809 = vmul.f32 %v4770, %v4800
      %v4810 = vmul.f32 %v4771, %v4801
      %v4811 = vmul.f32 %v4772, %v4802
      %v4812 = vmul.f32 %v4773, %v4799
      %4818 = vrot.lane.b32.xlu0 %v4808, 73
      %v4819 = vpop.permute.xlu0 %4818
      %4820 = vrot.lane.b32.xlu0 %v4809, 73
      %v4821 = vpop.permute.xlu0 %4820
      %4822 = vrot.lane.b32.xlu0 %v4810, 73
      %v4823 = vpop.permute.xlu0 %4822
      %4824 = vrot.lane.b32.xlu0 %v4811, 73
      %v4825 = vpop.permute.xlu0 %4824
      %4826 = vrot.lane.b32.xlu0 %v4812, 73
      %v4827 = vpop.permute.xlu0 %4826
      %v4828 = vsel %vm461, %v4819, %v4821
      %v4829 = vsel %vm461, %v4821, %v4823
      %v4830 = vsel %vm461, %v4823, %v4825
      %v4831 = vsel %vm461, %v4825, %v4827
      %4836 = vst [vmem:[#allocation3] sm:$0xff] %v4828
      %4837 = vst [vmem:[#allocation3 + $0x8] sm:$0xff] %v4829
      %4838 = vst [vmem:[#allocation3 + $0x10] sm:$0xff] %v4830
      %4839 = vst [vmem:[#allocation3 + $0x18] sm:$0xff] %v4831
      %v4840 = vld [vmem:[#allocation2] sm:$0xff]
      %v4841 = vld [vmem:[#allocation2 + $0x8] sm:$0xff]
      %v4842 = vld [vmem:[#allocation2 + $0x10] sm:$0xff]
      %v4843 = vld [vmem:[#allocation2 + $0x18] sm:$0xff]
      %v4844 = vld [vmem:[#allocation2 + $0x20] sm:$0xff]
      %v4845 = vld [vmem:[%s479] ss:$8 sm:$0xf]
      %v4847 = vlaneseq
      %v4848 = vshrl.u32 %v4847, 7
      %v4849 = vsub.s32 0, %v4848
      %v4850 = vrot.slane %v4845, %v4849
      %v4851 = vlaneseq
      %v4852 = vshrl.u32 %v4851, 7
      %v4853 = vsub.s32 1, %v4852
      %v4854 = vrot.slane %v4845, %v4853
      %v4855 = vlaneseq
      %v4856 = vshrl.u32 %v4855, 7
      %v4857 = vsub.s32 2, %v4856
      %v4858 = vrot.slane %v4845, %v4857
      %v4859 = vlaneseq
      %v4860 = vshrl.u32 %v4859, 7
      %v4861 = vsub.s32 3, %v4860
      %v4862 = vrot.slane %v4845, %v4861
      %4863 = vrot.lane.b32.xlu0 %v4850, 56
      %v4864 = vpop.permute.xlu0 %4863
      %4865 = vrot.lane.b32.xlu0 %v4854, 56
      %v4866 = vpop.permute.xlu0 %4865
      %4867 = vrot.lane.b32.xlu0 %v4858, 56
      %v4868 = vpop.permute.xlu0 %4867
      %4869 = vrot.lane.b32.xlu0 %v4862, 56
      %v4870 = vpop.permute.xlu0 %4869
      %v4871 = vsel %vm506, %v4864, %v4866
      %v4872 = vsel %vm506, %v4866, %v4868
      %v4873 = vsel %vm506, %v4868, %v4870
      %v4879 = vmul.f32 %v4840, %v4864
      %v4880 = vmul.f32 %v4841, %v4871
      %v4881 = vmul.f32 %v4842, %v4872
      %v4882 = vmul.f32 %v4843, %v4873
      %v4883 = vmul.f32 %v4844, %v4870
      %4889 = vrot.lane.b32.xlu0 %v4879, 72
      %v4890 = vpop.permute.xlu0 %4889
      %4891 = vrot.lane.b32.xlu0 %v4880, 72
      %v4892 = vpop.permute.xlu0 %4891
      %4893 = vrot.lane.b32.xlu0 %v4881, 72
      %v4894 = vpop.permute.xlu0 %4893
      %4895 = vrot.lane.b32.xlu0 %v4882, 72
      %v4896 = vpop.permute.xlu0 %4895
      %4897 = vrot.lane.b32.xlu0 %v4883, 72
      %v4898 = vpop.permute.xlu0 %4897
      %v4899 = vsel %vm535, %v4890, %v4892
      %v4900 = vsel %vm535, %v4892, %v4894
      %v4901 = vsel %vm535, %v4894, %v4896
      %v4902 = vsel %vm535, %v4896, %v4898
      %4907 = vst [vmem:[#allocation3 + $0x20] sm:$0xff] %v4899
      %4908 = vst [vmem:[#allocation3 + $0x28] sm:$0xff] %v4900
      %4909 = vst [vmem:[#allocation3 + $0x30] sm:$0xff] %v4901
      %4910 = vst [vmem:[#allocation3 + $0x38] sm:$0xff] %v4902
      %v4911 = vld [vmem:[#allocation2] sm:$0xff]
      %v4912 = vld [vmem:[#allocation2 + $0x8] sm:$0xff]
      %v4913 = vld [vmem:[#allocation2 + $0x10] sm:$0xff]
      %v4914 = vld [vmem:[#allocation2 + $0x18] sm:$0xff]
      %v4915 = vld [vmem:[#allocation2 + $0x20] sm:$0xff]
      %v4916 = vld [vmem:[%s553] ss:$8 sm:$0xf]
      %v4918 = vlaneseq
      %v4919 = vshrl.u32 %v4918, 7
      %v4920 = vsub.s32 0, %v4919
      %v4921 = vrot.slane %v4916, %v4920
      %v4922 = vlaneseq
      %v4923 = vshrl.u32 %v4922, 7
      %v4924 = vsub.s32 1, %v4923
      %v4925 = vrot.slane %v4916, %v4924
      %v4926 = vlaneseq
      %v4927 = vshrl.u32 %v4926, 7
      %v4928 = vsub.s32 2, %v4927
      %v4929 = vrot.slane %v4916, %v4928
      %v4930 = vlaneseq
      %v4931 = vshrl.u32 %v4930, 7
      %v4932 = vsub.s32 3, %v4931
      %v4933 = vrot.slane %v4916, %v4932
      %4934 = vrot.lane.b32.xlu0 %v4921, 57
      %v4935 = vpop.permute.xlu0 %4934
      %4936 = vrot.lane.b32.xlu0 %v4925, 57
      %v4937 = vpop.permute.xlu0 %4936
      %4938 = vrot.lane.b32.xlu0 %v4929, 57
      %v4939 = vpop.permute.xlu0 %4938
      %4940 = vrot.lane.b32.xlu0 %v4933, 57
      %v4941 = vpop.permute.xlu0 %4940
      %v4942 = vsel %vm580, %v4935, %v4937
      %v4943 = vsel %vm580, %v4937, %v4939
      %v4944 = vsel %vm580, %v4939, %v4941
      %v4950 = vmul.f32 %v4911, %v4935
      %v4951 = vmul.f32 %v4912, %v4942
      %v4952 = vmul.f32 %v4913, %v4943
      %v4953 = vmul.f32 %v4914, %v4944
      %v4954 = vmul.f32 %v4915, %v4941
      %4960 = vrot.lane.b32.xlu0 %v4950, 71
      %v4961 = vpop.permute.xlu0 %4960
      %4962 = vrot.lane.b32.xlu0 %v4951, 71
      %v4963 = vpop.permute.xlu0 %4962
      %4964 = vrot.lane.b32.xlu0 %v4952, 71
      %v4965 = vpop.permute.xlu0 %4964
      %4966 = vrot.lane.b32.xlu0 %v4953, 71
      %v4967 = vpop.permute.xlu0 %4966
      %4968 = vrot.lane.b32.xlu0 %v4954, 71
      %v4969 = vpop.permute.xlu0 %4968
      %v4970 = vsel %vm609, %v4961, %v4963
      %v4971 = vsel %vm609, %v4963, %v4965
      %v4972 = vsel %vm609, %v4965, %v4967
      %v4973 = vsel %vm609, %v4967, %v4969
      %4978 = vst [vmem:[#allocation3 + $0x40] sm:$0xff] %v4970
      %4979 = vst [vmem:[#allocation3 + $0x48] sm:$0xff] %v4971
      %4980 = vst [vmem:[#allocation3 + $0x50] sm:$0xff] %v4972
      %4981 = vst [vmem:[#allocation3 + $0x58] sm:$0xff] %v4973
      %v4982 = vld [vmem:[#allocation2] sm:$0xff]
      %v4983 = vld [vmem:[#allocation2 + $0x8] sm:$0xff]
      %v4984 = vld [vmem:[#allocation2 + $0x10] sm:$0xff]
      %v4985 = vld [vmem:[#allocation2 + $0x18] sm:$0xff]
      %v4986 = vld [vmem:[#allocation2 + $0x20] sm:$0xff]
      %v4987 = vld [vmem:[%s627] ss:$8 sm:$0xf]
      %v4989 = vlaneseq
      %v4990 = vshrl.u32 %v4989, 7
      %v4991 = vsub.s32 0, %v4990
      %v4992 = vrot.slane %v4987, %v4991
      %v4993 = vlaneseq
      %v4994 = vshrl.u32 %v4993, 7
      %v4995 = vsub.s32 1, %v4994
      %v4996 = vrot.slane %v4987, %v4995
      %v4997 = vlaneseq
      %v4998 = vshrl.u32 %v4997, 7
      %v4999 = vsub.s32 2, %v4998
      %v5000 = vrot.slane %v4987, %v4999
      %v5001 = vlaneseq
      %v5002 = vshrl.u32 %v5001, 7
      %v5003 = vsub.s32 3, %v5002
      %v5004 = vrot.slane %v4987, %v5003
      %5005 = vrot.lane.b32.xlu0 %v4992, 63
      %v5006 = vpop.permute.xlu0 %5005
      %5007 = vrot.lane.b32.xlu0 %v4996, 63
      %v5008 = vpop.permute.xlu0 %5007
      %5009 = vrot.lane.b32.xlu0 %v5000, 63
      %v5010 = vpop.permute.xlu0 %5009
      %5011 = vrot.lane.b32.xlu0 %v5004, 63
      %v5012 = vpop.permute.xlu0 %5011
      %v5013 = vsel %vm654, %v5006, %v5008
      %v5014 = vsel %vm654, %v5008, %v5010
      %v5015 = vsel %vm654, %v5010, %v5012
      %v5021 = vmul.f32 %v4982, %v5006
      %v5022 = vmul.f32 %v4983, %v5013
      %v5023 = vmul.f32 %v4984, %v5014
      %v5024 = vmul.f32 %v4985, %v5015
      %v5025 = vmul.f32 %v4986, %v5012
      %5031 = vrot.lane.b32.xlu0 %v5021, 65
      %v5032 = vpop.permute.xlu0 %5031
      %5033 = vrot.lane.b32.xlu0 %v5022, 65
      %v5034 = vpop.permute.xlu0 %5033
      %5035 = vrot.lane.b32.xlu0 %v5023, 65
      %v5036 = vpop.permute.xlu0 %5035
      %5037 = vrot.lane.b32.xlu0 %v5024, 65
      %v5038 = vpop.permute.xlu0 %5037
      %5039 = vrot.lane.b32.xlu0 %v5025, 65
      %v5040 = vpop.permute.xlu0 %5039
      %v5041 = vsel %vm683, %v5032, %v5034
      %v5042 = vsel %vm683, %v5034, %v5036
      %v5043 = vsel %vm683, %v5036, %v5038
      %v5044 = vsel %vm683, %v5038, %v5040
      %5049 = vst [vmem:[#allocation3 + $0x60] sm:$0xff] %v5041
      %5050 = vst [vmem:[#allocation3 + $0x68] sm:$0xff] %v5042
      %5051 = vst [vmem:[#allocation3 + $0x70] sm:$0xff] %v5043
      %5052 = vst [vmem:[#allocation3 + $0x78] sm:$0xff] %v5044
      %v5053 = vld [vmem:[#allocation2] sm:$0xff]
      %v5054 = vld [vmem:[#allocation2 + $0x8] sm:$0xff]
      %v5055 = vld [vmem:[#allocation2 + $0x10] sm:$0xff]
      %v5056 = vld [vmem:[#allocation2 + $0x18] sm:$0xff]
      %v5057 = vld [vmem:[#allocation2 + $0x20] sm:$0xff]
      %v5058 = vld [vmem:[%s701] ss:$8 sm:$0xf]
      %v5060 = vlaneseq
      %v5061 = vshrl.u32 %v5060, 7
      %v5062 = vsub.s32 0, %v5061
      %v5063 = vrot.slane %v5058, %v5062
      %v5064 = vlaneseq
      %v5065 = vshrl.u32 %v5064, 7
      %v5066 = vsub.s32 1, %v5065
      %v5067 = vrot.slane %v5058, %v5066
      %v5068 = vlaneseq
      %v5069 = vshrl.u32 %v5068, 7
      %v5070 = vsub.s32 2, %v5069
      %v5071 = vrot.slane %v5058, %v5070
      %v5072 = vlaneseq
      %v5073 = vshrl.u32 %v5072, 7
      %v5074 = vsub.s32 3, %v5073
      %v5075 = vrot.slane %v5058, %v5074
      %5076 = vrot.lane.b32.xlu0 %v5063, 64
      %v5077 = vpop.permute.xlu0 %5076
      %5078 = vrot.lane.b32.xlu0 %v5067, 64
      %v5079 = vpop.permute.xlu0 %5078
      %5080 = vrot.lane.b32.xlu0 %v5071, 64
      %v5081 = vpop.permute.xlu0 %5080
      %5082 = vrot.lane.b32.xlu0 %v5075, 64
      %v5083 = vpop.permute.xlu0 %5082
      %v5084 = vsel %vm728, %v5077, %v5079
      %v5085 = vsel %vm728, %v5079, %v5081
      %v5086 = vsel %vm728, %v5081, %v5083
      %v5092 = vmul.f32 %v5053, %v5077
      %v5093 = vmul.f32 %v5054, %v5084
      %v5094 = vmul.f32 %v5055, %v5085
      %v5095 = vmul.f32 %v5056, %v5086
      %v5096 = vmul.f32 %v5057, %v5083
      %5102 = vrot.lane.b32.xlu0 %v5092, 64
      %v5103 = vpop.permute.xlu0 %5102
      %5104 = vrot.lane.b32.xlu0 %v5093, 64
      %v5105 = vpop.permute.xlu0 %5104
      %5106 = vrot.lane.b32.xlu0 %v5094, 64
      %v5107 = vpop.permute.xlu0 %5106
      %5108 = vrot.lane.b32.xlu0 %v5095, 64
      %v5109 = vpop.permute.xlu0 %5108
      %5110 = vrot.lane.b32.xlu0 %v5096, 64
      %v5111 = vpop.permute.xlu0 %5110
      %v5112 = vsel %vm728, %v5103, %v5105
      %v5113 = vsel %vm728, %v5105, %v5107
      %v5114 = vsel %vm728, %v5107, %v5109
      %v5115 = vsel %vm728, %v5109, %v5111
      %5120 = vst [vmem:[#allocation3 + $0x80] sm:$0xff] %v5112
      %5121 = vst [vmem:[#allocation3 + $0x88] sm:$0xff] %v5113
      %5122 = vst [vmem:[#allocation3 + $0x90] sm:$0xff] %v5114
      %5123 = vst [vmem:[#allocation3 + $0x98] sm:$0xff] %v5115
      %v5124 = vld [vmem:[#allocation2] sm:$0xff]
      %v5125 = vld [vmem:[#allocation2 + $0x8] sm:$0xff]
      %v5126 = vld [vmem:[#allocation2 + $0x10] sm:$0xff]
      %v5127 = vld [vmem:[#allocation2 + $0x18] sm:$0xff]
      %v5128 = vld [vmem:[#allocation2 + $0x20] sm:$0xff]
      %v5129 = vld [vmem:[%s774] ss:$8 sm:$0xf]
      %v5131 = vlaneseq
      %v5132 = vshrl.u32 %v5131, 7
      %v5133 = vsub.s32 0, %v5132
      %v5134 = vrot.slane %v5129, %v5133
      %v5135 = vlaneseq
      %v5136 = vshrl.u32 %v5135, 7
      %v5137 = vsub.s32 1, %v5136
      %v5138 = vrot.slane %v5129, %v5137
      %v5139 = vlaneseq
      %v5140 = vshrl.u32 %v5139, 7
      %v5141 = vsub.s32 2, %v5140
      %v5142 = vrot.slane %v5129, %v5141
      %v5143 = vlaneseq
      %v5144 = vshrl.u32 %v5143, 7
      %v5145 = vsub.s32 3, %v5144
      %v5146 = vrot.slane %v5129, %v5145
      %5147 = vrot.lane.b32.xlu0 %v5134, 65
      %v5148 = vpop.permute.xlu0 %5147
      %5149 = vrot.lane.b32.xlu0 %v5138, 65
      %v5150 = vpop.permute.xlu0 %5149
      %5151 = vrot.lane.b32.xlu0 %v5142, 65
      %v5152 = vpop.permute.xlu0 %5151
      %5153 = vrot.lane.b32.xlu0 %v5146, 65
      %v5154 = vpop.permute.xlu0 %5153
      %v5155 = vsel %vm683, %v5148, %v5150
      %v5156 = vsel %vm683, %v5150, %v5152
      %v5157 = vsel %vm683, %v5152, %v5154
      %v5163 = vmul.f32 %v5124, %v5148
      %v5164 = vmul.f32 %v5125, %v5155
      %v5165 = vmul.f32 %v5126, %v5156
      %v5166 = vmul.f32 %v5127, %v5157
      %v5167 = vmul.f32 %v5128, %v5154
      %5173 = vrot.lane.b32.xlu0 %v5163, 63
      %v5174 = vpop.permute.xlu0 %5173
      %5175 = vrot.lane.b32.xlu0 %v5164, 63
      %v5176 = vpop.permute.xlu0 %5175
      %5177 = vrot.lane.b32.xlu0 %v5165, 63
      %v5178 = vpop.permute.xlu0 %5177
      %5179 = vrot.lane.b32.xlu0 %v5166, 63
      %v5180 = vpop.permute.xlu0 %5179
      %5181 = vrot.lane.b32.xlu0 %v5167, 63
      %v5182 = vpop.permute.xlu0 %5181
      %v5183 = vsel %vm654, %v5174, %v5176
      %v5184 = vsel %vm654, %v5176, %v5178
      %v5185 = vsel %vm654, %v5178, %v5180
      %v5186 = vsel %vm654, %v5180, %v5182
      %5191 = vst [vmem:[#allocation3 + $0xa0] sm:$0xff] %v5183
      %5192 = vst [vmem:[#allocation3 + $0xa8] sm:$0xff] %v5184
      %5193 = vst [vmem:[#allocation3 + $0xb0] sm:$0xff] %v5185
      %5194 = vst [vmem:[#allocation3 + $0xb8] sm:$0xff] %v5186
      %v5195 = vld [vmem:[#allocation2] sm:$0xff]
      %v5196 = vld [vmem:[#allocation2 + $0x8] sm:$0xff]
      %v5197 = vld [vmem:[#allocation2 + $0x10] sm:$0xff]
      %v5198 = vld [vmem:[#allocation2 + $0x18] sm:$0xff]
      %v5199 = vld [vmem:[#allocation2 + $0x20] sm:$0xff]
      %v5200 = vld [vmem:[%s846] ss:$8 sm:$0xf]
      %v5202 = vlaneseq
      %v5203 = vshrl.u32 %v5202, 7
      %v5204 = vsub.s32 0, %v5203
      %v5205 = vrot.slane %v5200, %v5204
      %v5206 = vlaneseq
      %v5207 = vshrl.u32 %v5206, 7
      %v5208 = vsub.s32 1, %v5207
      %v5209 = vrot.slane %v5200, %v5208
      %v5210 = vlaneseq
      %v5211 = vshrl.u32 %v5210, 7
      %v5212 = vsub.s32 2, %v5211
      %v5213 = vrot.slane %v5200, %v5212
      %v5214 = vlaneseq
      %v5215 = vshrl.u32 %v5214, 7
      %v5216 = vsub.s32 3, %v5215
      %v5217 = vrot.slane %v5200, %v5216
      %5218 = vrot.lane.b32.xlu0 %v5205, 71
      %v5219 = vpop.permute.xlu0 %5218
      %5220 = vrot.lane.b32.xlu0 %v5209, 71
      %v5221 = vpop.permute.xlu0 %5220
      %5222 = vrot.lane.b32.xlu0 %v5213, 71
      %v5223 = vpop.permute.xlu0 %5222
      %5224 = vrot.lane.b32.xlu0 %v5217, 71
      %v5225 = vpop.permute.xlu0 %5224
      %v5226 = vsel %vm609, %v5219, %v5221
      %v5227 = vsel %vm609, %v5221, %v5223
      %v5228 = vsel %vm609, %v5223, %v5225
      %v5234 = vmul.f32 %v5195, %v5219
      %v5235 = vmul.f32 %v5196, %v5226
      %v5236 = vmul.f32 %v5197, %v5227
      %v5237 = vmul.f32 %v5198, %v5228
      %v5238 = vmul.f32 %v5199, %v5225
      %5244 = vrot.lane.b32.xlu0 %v5234, 57
      %v5245 = vpop.permute.xlu0 %5244
      %5246 = vrot.lane.b32.xlu0 %v5235, 57
      %v5247 = vpop.permute.xlu0 %5246
      %5248 = vrot.lane.b32.xlu0 %v5236, 57
      %v5249 = vpop.permute.xlu0 %5248
      %5250 = vrot.lane.b32.xlu0 %v5237, 57
      %v5251 = vpop.permute.xlu0 %5250
      %5252 = vrot.lane.b32.xlu0 %v5238, 57
      %v5253 = vpop.permute.xlu0 %5252
      %v5254 = vsel %vm580, %v5245, %v5247
      %v5255 = vsel %vm580, %v5247, %v5249
      %v5256 = vsel %vm580, %v5249, %v5251
      %v5257 = vsel %vm580, %v5251, %v5253
      %5262 = vst [vmem:[#allocation3 + $0xc0] sm:$0xff] %v5254
      %5263 = vst [vmem:[#allocation3 + $0xc8] sm:$0xff] %v5255
      %5264 = vst [vmem:[#allocation3 + $0xd0] sm:$0xff] %v5256
      %5265 = vst [vmem:[#allocation3 + $0xd8] sm:$0xff] %v5257
      %v5266 = vld [vmem:[#allocation2] sm:$0xff]
      %v5267 = vld [vmem:[#allocation2 + $0x8] sm:$0xff]
      %v5268 = vld [vmem:[#allocation2 + $0x10] sm:$0xff]
      %v5269 = vld [vmem:[#allocation2 + $0x18] sm:$0xff]
      %v5270 = vld [vmem:[#allocation2 + $0x20] sm:$0xff]
      %v5271 = vld [vmem:[%s918] ss:$8 sm:$0xf]
      %v5273 = vlaneseq
      %v5274 = vshrl.u32 %v5273, 7
      %v5275 = vsub.s32 0, %v5274
      %v5276 = vrot.slane %v5271, %v5275
      %v5277 = vlaneseq
      %v5278 = vshrl.u32 %v5277, 7
      %v5279 = vsub.s32 1, %v5278
      %v5280 = vrot.slane %v5271, %v5279
      %v5281 = vlaneseq
      %v5282 = vshrl.u32 %v5281, 7
      %v5283 = vsub.s32 2, %v5282
      %v5284 = vrot.slane %v5271, %v5283
      %v5285 = vlaneseq
      %v5286 = vshrl.u32 %v5285, 7
      %v5287 = vsub.s32 3, %v5286
      %v5288 = vrot.slane %v5271, %v5287
      %5289 = vrot.lane.b32.xlu0 %v5276, 72
      %v5290 = vpop.permute.xlu0 %5289
      %5291 = vrot.lane.b32.xlu0 %v5280, 72
      %v5292 = vpop.permute.xlu0 %5291
      %5293 = vrot.lane.b32.xlu0 %v5284, 72
      %v5294 = vpop.permute.xlu0 %5293
      %5295 = vrot.lane.b32.xlu0 %v5288, 72
      %v5296 = vpop.permute.xlu0 %5295
      %v5297 = vsel %vm535, %v5290, %v5292
      %v5298 = vsel %vm535, %v5292, %v5294
      %v5299 = vsel %vm535, %v5294, %v5296
      %v5305 = vmul.f32 %v5266, %v5290
      %v5306 = vmul.f32 %v5267, %v5297
      %v5307 = vmul.f32 %v5268, %v5298
      %v5308 = vmul.f32 %v5269, %v5299
      %v5309 = vmul.f32 %v5270, %v5296
      %5315 = vrot.lane.b32.xlu0 %v5305, 56
      %v5316 = vpop.permute.xlu0 %5315
      %5317 = vrot.lane.b32.xlu0 %v5306, 56
      %v5318 = vpop.permute.xlu0 %5317
      %5319 = vrot.lane.b32.xlu0 %v5307, 56
      %v5320 = vpop.permute.xlu0 %5319
      %5321 = vrot.lane.b32.xlu0 %v5308, 56
      %v5322 = vpop.permute.xlu0 %5321
      %5323 = vrot.lane.b32.xlu0 %v5309, 56
      %v5324 = vpop.permute.xlu0 %5323
      %v5325 = vsel %vm506, %v5316, %v5318
      %v5326 = vsel %vm506, %v5318, %v5320
      %v5327 = vsel %vm506, %v5320, %v5322
      %v5328 = vsel %vm506, %v5322, %v5324
      %5333 = vst [vmem:[#allocation3 + $0xe0] sm:$0xff] %v5325
      %5334 = vst [vmem:[#allocation3 + $0xe8] sm:$0xff] %v5326
      %5335 = vst [vmem:[#allocation3 + $0xf0] sm:$0xff] %v5327
      %5336 = vst [vmem:[#allocation3 + $0xf8] sm:$0xff] %v5328
      %v5337 = vld [vmem:[#allocation2] sm:$0xff]
      %v5338 = vld [vmem:[#allocation2 + $0x8] sm:$0xff]
      %v5339 = vld [vmem:[#allocation2 + $0x10] sm:$0xff]
      %v5340 = vld [vmem:[#allocation2 + $0x18] sm:$0xff]
      %v5341 = vld [vmem:[#allocation2 + $0x20] sm:$0xff]
      %v5342 = vld [vmem:[%s990] ss:$8 sm:$0xf]
      %v5344 = vlaneseq
      %v5345 = vshrl.u32 %v5344, 7
      %v5346 = vsub.s32 0, %v5345
      %v5347 = vrot.slane %v5342, %v5346
      %v5348 = vlaneseq
      %v5349 = vshrl.u32 %v5348, 7
      %v5350 = vsub.s32 1, %v5349
      %v5351 = vrot.slane %v5342, %v5350
      %v5352 = vlaneseq
      %v5353 = vshrl.u32 %v5352, 7
      %v5354 = vsub.s32 2, %v5353
      %v5355 = vrot.slane %v5342, %v5354
      %v5356 = vlaneseq
      %v5357 = vshrl.u32 %v5356, 7
      %v5358 = vsub.s32 3, %v5357
      %v5359 = vrot.slane %v5342, %v5358
      %5360 = vrot.lane.b32.xlu0 %v5347, 73
      %v5361 = vpop.permute.xlu0 %5360
      %5362 = vrot.lane.b32.xlu0 %v5351, 73
      %v5363 = vpop.permute.xlu0 %5362
      %5364 = vrot.lane.b32.xlu0 %v5355, 73
      %v5365 = vpop.permute.xlu0 %5364
      %5366 = vrot.lane.b32.xlu0 %v5359, 73
      %v5367 = vpop.permute.xlu0 %5366
      %v5368 = vsel %vm461, %v5361, %v5363
      %v5369 = vsel %vm461, %v5363, %v5365
      %v5370 = vsel %vm461, %v5365, %v5367
      %v5376 = vmul.f32 %v5337, %v5361
      %v5377 = vmul.f32 %v5338, %v5368
      %v5378 = vmul.f32 %v5339, %v5369
      %v5379 = vmul.f32 %v5340, %v5370
      %v5380 = vmul.f32 %v5341, %v5367
      %5386 = vrot.lane.b32.xlu0 %v5376, 55
      %v5387 = vpop.permute.xlu0 %5386
      %5388 = vrot.lane.b32.xlu0 %v5377, 55
      %v5389 = vpop.permute.xlu0 %5388
      %5390 = vrot.lane.b32.xlu0 %v5378, 55
      %v5391 = vpop.permute.xlu0 %5390
      %5392 = vrot.lane.b32.xlu0 %v5379, 55
      %v5393 = vpop.permute.xlu0 %5392
      %5394 = vrot.lane.b32.xlu0 %v5380, 55
      %v5395 = vpop.permute.xlu0 %5394
      %v5396 = vsel %vm432, %v5387, %v5389
      %v5397 = vsel %vm432, %v5389, %v5391
      %v5398 = vsel %vm432, %v5391, %v5393
      %v5399 = vsel %vm432, %v5393, %v5395
      %5404 = vst [vmem:[#allocation3 + $0x100] sm:$0xff] %v5396
      %5405 = vst [vmem:[#allocation3 + $0x108] sm:$0xff] %v5397
      %5406 = vst [vmem:[#allocation3 + $0x110] sm:$0xff] %v5398
      %5407 = vst [vmem:[#allocation3 + $0x118] sm:$0xff] %v5399
      %v5408 = vld [vmem:[#allocation2] sm:$0xff]
      %v5409 = vld [vmem:[#allocation2 + $0x8] sm:$0xff]
      %v5410 = vld [vmem:[#allocation2 + $0x10] sm:$0xff]
      %v5411 = vld [vmem:[#allocation2 + $0x18] sm:$0xff]
      %v5412 = vld [vmem:[#allocation2 + $0x20] sm:$0xff]
      %v5413 = vld [vmem:[%s1062] ss:$8 sm:$0xf]
      %v5415 = vlaneseq
      %v5416 = vshrl.u32 %v5415, 7
      %v5417 = vsub.s32 0, %v5416
      %v5418 = vrot.slane %v5413, %v5417
      %v5419 = vlaneseq
      %v5420 = vshrl.u32 %v5419, 7
      %v5421 = vsub.s32 1, %v5420
      %v5422 = vrot.slane %v5413, %v5421
      %v5423 = vlaneseq
      %v5424 = vshrl.u32 %v5423, 7
      %v5425 = vsub.s32 2, %v5424
      %v5426 = vrot.slane %v5413, %v5425
      %v5427 = vlaneseq
      %v5428 = vshrl.u32 %v5427, 7
      %v5429 = vsub.s32 3, %v5428
      %v5430 = vrot.slane %v5413, %v5429
      %5431 = vrot.lane.b32.xlu0 %v5418, 119
      %v5432 = vpop.permute.xlu0 %5431
      %5433 = vrot.lane.b32.xlu0 %v5422, 119
      %v5434 = vpop.permute.xlu0 %5433
      %5435 = vrot.lane.b32.xlu0 %v5426, 119
      %v5436 = vpop.permute.xlu0 %5435
      %5437 = vrot.lane.b32.xlu0 %v5430, 119
      %v5438 = vpop.permute.xlu0 %5437
      %v5439 = vsel %vm1089, %v5432, %v5434
      %v5440 = vsel %vm1089, %v5434, %v5436
      %v5441 = vsel %vm1089, %v5436, %v5438
      %v5447 = vmul.f32 %v5408, %v5432
      %v5448 = vmul.f32 %v5409, %v5439
      %v5449 = vmul.f32 %v5410, %v5440
      %v5450 = vmul.f32 %v5411, %v5441
      %v5451 = vmul.f32 %v5412, %v5438
      %5457 = vrot.lane.b32.xlu0 %v5447, 9
      %v5458 = vpop.permute.xlu0 %5457
      %5459 = vrot.lane.b32.xlu0 %v5448, 9
      %v5460 = vpop.permute.xlu0 %5459
      %5461 = vrot.lane.b32.xlu0 %v5449, 9
      %v5462 = vpop.permute.xlu0 %5461
      %5463 = vrot.lane.b32.xlu0 %v5450, 9
      %v5464 = vpop.permute.xlu0 %5463
      %5465 = vrot.lane.b32.xlu0 %v5451, 9
      %v5466 = vpop.permute.xlu0 %5465
      %v5467 = vsel %vm1118, %v5458, %v5460
      %v5468 = vsel %vm1118, %v5460, %v5462
      %v5469 = vsel %vm1118, %v5462, %v5464
      %v5470 = vsel %vm1118, %v5464, %v5466
      %5475 = vst [vmem:[#allocation3 + $0x120] sm:$0xff] %v5467
      %5476 = vst [vmem:[#allocation3 + $0x128] sm:$0xff] %v5468
      %5477 = vst [vmem:[#allocation3 + $0x130] sm:$0xff] %v5469
      %5478 = vst [vmem:[#allocation3 + $0x138] sm:$0xff] %v5470
      %v5479 = vld [vmem:[#allocation2] sm:$0xff]
      %v5480 = vld [vmem:[#allocation2 + $0x8] sm:$0xff]
      %v5481 = vld [vmem:[#allocation2 + $0x10] sm:$0xff]
      %v5482 = vld [vmem:[#allocation2 + $0x18] sm:$0xff]
      %v5483 = vld [vmem:[#allocation2 + $0x20] sm:$0xff]
      %v5484 = vld [vmem:[%s1136] ss:$8 sm:$0xf]
      %v5486 = vlaneseq
      %v5487 = vshrl.u32 %v5486, 7
      %v5488 = vsub.s32 0, %v5487
      %v5489 = vrot.slane %v5484, %v5488
      %v5490 = vlaneseq
      %v5491 = vshrl.u32 %v5490, 7
      %v5492 = vsub.s32 1, %v5491
      %v5493 = vrot.slane %v5484, %v5492
      %v5494 = vlaneseq
      %v5495 = vshrl.u32 %v5494, 7
      %v5496 = vsub.s32 2, %v5495
      %v5497 = vrot.slane %v5484, %v5496
      %v5498 = vlaneseq
      %v5499 = vshrl.u32 %v5498, 7
      %v5500 = vsub.s32 3, %v5499
      %v5501 = vrot.slane %v5484, %v5500
      %5502 = vrot.lane.b32.xlu0 %v5489, 120
      %v5503 = vpop.permute.xlu0 %5502
      %5504 = vrot.lane.b32.xlu0 %v5493, 120
      %v5505 = vpop.permute.xlu0 %5504
      %5506 = vrot.lane.b32.xlu0 %v5497, 120
      %v5507 = vpop.permute.xlu0 %5506
      %5508 = vrot.lane.b32.xlu0 %v5501, 120
      %v5509 = vpop.permute.xlu0 %5508
      %v5510 = vsel %vm1163, %v5503, %v5505
      %v5511 = vsel %vm1163, %v5505, %v5507
      %v5512 = vsel %vm1163, %v5507, %v5509
      %v5518 = vmul.f32 %v5479, %v5503
      %v5519 = vmul.f32 %v5480, %v5510
      %v5520 = vmul.f32 %v5481, %v5511
      %v5521 = vmul.f32 %v5482, %v5512
      %v5522 = vmul.f32 %v5483, %v5509
      %5528 = vrot.lane.b32.xlu0 %v5518, 8
      %v5529 = vpop.permute.xlu0 %5528
      %5530 = vrot.lane.b32.xlu0 %v5519, 8
      %v5531 = vpop.permute.xlu0 %5530
      %5532 = vrot.lane.b32.xlu0 %v5520, 8
      %v5533 = vpop.permute.xlu0 %5532
      %5534 = vrot.lane.b32.xlu0 %v5521, 8
      %v5535 = vpop.permute.xlu0 %5534
      %5536 = vrot.lane.b32.xlu0 %v5522, 8
      %v5537 = vpop.permute.xlu0 %5536
      %v5538 = vsel %vm1192, %v5529, %v5531
      %v5539 = vsel %vm1192, %v5531, %v5533
      %v5540 = vsel %vm1192, %v5533, %v5535
      %v5541 = vsel %vm1192, %v5535, %v5537
      %5546 = vst [vmem:[#allocation3 + $0x140] sm:$0xff] %v5538
      %5547 = vst [vmem:[#allocation3 + $0x148] sm:$0xff] %v5539
      %5548 = vst [vmem:[#allocation3 + $0x150] sm:$0xff] %v5540
      %5549 = vst [vmem:[#allocation3 + $0x158] sm:$0xff] %v5541
      %v5550 = vld [vmem:[#allocation2] sm:$0xff]
      %v5551 = vld [vmem:[#allocation2 + $0x8] sm:$0xff]
      %v5552 = vld [vmem:[#allocation2 + $0x10] sm:$0xff]
      %v5553 = vld [vmem:[#allocation2 + $0x18] sm:$0xff]
      %v5554 = vld [vmem:[#allocation2 + $0x20] sm:$0xff]
      %v5555 = vld [vmem:[%s1210] ss:$8 sm:$0xf]
      %v5557 = vlaneseq
      %v5558 = vshrl.u32 %v5557, 7
      %v5559 = vsub.s32 0, %v5558
      %v5560 = vrot.slane %v5555, %v5559
      %v5561 = vlaneseq
      %v5562 = vshrl.u32 %v5561, 7
      %v5563 = vsub.s32 1, %v5562
      %v5564 = vrot.slane %v5555, %v5563
      %v5565 = vlaneseq
      %v5566 = vshrl.u32 %v5565, 7
      %v5567 = vsub.s32 2, %v5566
      %v5568 = vrot.slane %v5555, %v5567
      %v5569 = vlaneseq
      %v5570 = vshrl.u32 %v5569, 7
      %v5571 = vsub.s32 3, %v5570
      %v5572 = vrot.slane %v5555, %v5571
      %5573 = vrot.lane.b32.xlu0 %v5560, 121
      %v5574 = vpop.permute.xlu0 %5573
      %5575 = vrot.lane.b32.xlu0 %v5564, 121
      %v5576 = vpop.permute.xlu0 %5575
      %5577 = vrot.lane.b32.xlu0 %v5568, 121
      %v5578 = vpop.permute.xlu0 %5577
      %5579 = vrot.lane.b32.xlu0 %v5572, 121
      %v5580 = vpop.permute.xlu0 %5579
      %v5581 = vsel %vm1237, %v5574, %v5576
      %v5582 = vsel %vm1237, %v5576, %v5578
      %v5583 = vsel %vm1237, %v5578, %v5580
      %v5589 = vmul.f32 %v5550, %v5574
      %v5590 = vmul.f32 %v5551, %v5581
      %v5591 = vmul.f32 %v5552, %v5582
      %v5592 = vmul.f32 %v5553, %v5583
      %v5593 = vmul.f32 %v5554, %v5580
      %5599 = vrot.lane.b32.xlu0 %v5589, 7
      %v5600 = vpop.permute.xlu0 %5599
      %5601 = vrot.lane.b32.xlu0 %v5590, 7
      %v5602 = vpop.permute.xlu0 %5601
      %5603 = vrot.lane.b32.xlu0 %v5591, 7
      %v5604 = vpop.permute.xlu0 %5603
      %5605 = vrot.lane.b32.xlu0 %v5592, 7
      %v5606 = vpop.permute.xlu0 %5605
      %5607 = vrot.lane.b32.xlu0 %v5593, 7
      %v5608 = vpop.permute.xlu0 %5607
      %v5609 = vsel %vm1266, %v5600, %v5602
      %v5610 = vsel %vm1266, %v5602, %v5604
      %v5611 = vsel %vm1266, %v5604, %v5606
      %v5612 = vsel %vm1266, %v5606, %v5608
      %5617 = vst [vmem:[#allocation3 + $0x160] sm:$0xff] %v5609
      %5618 = vst [vmem:[#allocation3 + $0x168] sm:$0xff] %v5610
      %5619 = vst [vmem:[#allocation3 + $0x170] sm:$0xff] %v5611
      %5620 = vst [vmem:[#allocation3 + $0x178] sm:$0xff] %v5612
      %v5621 = vld [vmem:[#allocation2] sm:$0xff]
      %v5622 = vld [vmem:[#allocation2 + $0x8] sm:$0xff]
      %v5623 = vld [vmem:[#allocation2 + $0x10] sm:$0xff]
      %v5624 = vld [vmem:[#allocation2 + $0x18] sm:$0xff]
      %v5625 = vld [vmem:[#allocation2 + $0x20] sm:$0xff]
      %v5626 = vld [vmem:[%s1284] ss:$8 sm:$0xf]
      %v5628 = vlaneseq
      %v5629 = vshrl.u32 %v5628, 7
      %v5630 = vsub.s32 0, %v5629
      %v5631 = vrot.slane %v5626, %v5630
      %v5632 = vlaneseq
      %v5633 = vshrl.u32 %v5632, 7
      %v5634 = vsub.s32 1, %v5633
      %v5635 = vrot.slane %v5626, %v5634
      %v5636 = vlaneseq
      %v5637 = vshrl.u32 %v5636, 7
      %v5638 = vsub.s32 2, %v5637
      %v5639 = vrot.slane %v5626, %v5638
      %v5640 = vlaneseq
      %v5641 = vshrl.u32 %v5640, 7
      %v5642 = vsub.s32 3, %v5641
      %v5643 = vrot.slane %v5626, %v5642
      %5644 = vrot.lane.b32.xlu0 %v5631, 127
      %v5645 = vpop.permute.xlu0 %5644
      %5646 = vrot.lane.b32.xlu0 %v5635, 127
      %v5647 = vpop.permute.xlu0 %5646
      %5648 = vrot.lane.b32.xlu0 %v5639, 127
      %v5649 = vpop.permute.xlu0 %5648
      %5650 = vrot.lane.b32.xlu0 %v5643, 127
      %v5651 = vpop.permute.xlu0 %5650
      %v5652 = vsel %vm1311, %v5645, %v5647
      %v5653 = vsel %vm1311, %v5647, %v5649
      %v5654 = vsel %vm1311, %v5649, %v5651
      %v5660 = vmul.f32 %v5621, %v5645
      %v5661 = vmul.f32 %v5622, %v5652
      %v5662 = vmul.f32 %v5623, %v5653
      %v5663 = vmul.f32 %v5624, %v5654
      %v5664 = vmul.f32 %v5625, %v5651
      %5670 = vrot.lane.b32.xlu0 %v5660, 1
      %v5671 = vpop.permute.xlu0 %5670
      %5672 = vrot.lane.b32.xlu0 %v5661, 1
      %v5673 = vpop.permute.xlu0 %5672
      %5674 = vrot.lane.b32.xlu0 %v5662, 1
      %v5675 = vpop.permute.xlu0 %5674
      %5676 = vrot.lane.b32.xlu0 %v5663, 1
      %v5677 = vpop.permute.xlu0 %5676
      %5678 = vrot.lane.b32.xlu0 %v5664, 1
      %v5679 = vpop.permute.xlu0 %5678
      %v5680 = vsel %vm1340, %v5671, %v5673
      %v5681 = vsel %vm1340, %v5673, %v5675
      %v5682 = vsel %vm1340, %v5675, %v5677
      %v5683 = vsel %vm1340, %v5677, %v5679
      %5688 = vst [vmem:[#allocation3 + $0x180] sm:$0xff] %v5680
      %5689 = vst [vmem:[#allocation3 + $0x188] sm:$0xff] %v5681
      %5690 = vst [vmem:[#allocation3 + $0x190] sm:$0xff] %v5682
      %5691 = vst [vmem:[#allocation3 + $0x198] sm:$0xff] %v5683
      %v5692 = vld [vmem:[#allocation2 + $0x8] sm:$0xff]
      %v5693 = vld [vmem:[#allocation2 + $0x10] sm:$0xff]
      %v5694 = vld [vmem:[#allocation2 + $0x18] sm:$0xff]
      %v5695 = vld [vmem:[#allocation2 + $0x20] sm:$0xff]
      %5696 = vst [vmem:[#allocation3 + $0x1a0] sm:$0xff] %v5692
      %5697 = vst [vmem:[#allocation3 + $0x1a8] sm:$0xff] %v5693
      %5698 = vst [vmem:[#allocation3 + $0x1b0] sm:$0xff] %v5694
      %5699 = vst [vmem:[#allocation3 + $0x1b8] sm:$0xff] %v5695
      %v5700 = vld [vmem:[#allocation2 + $0x8] sm:$0xff]
      %v5701 = vld [vmem:[#allocation2 + $0x10] sm:$0xff]
      %v5702 = vld [vmem:[#allocation2 + $0x18] sm:$0xff]
      %v5703 = vld [vmem:[#allocation2 + $0x20] sm:$0xff]
      %v5704 = vld [vmem:[#allocation2 + $0x28] sm:$0xff]
      %v5705 = vld [vmem:[%s1366] ss:$8 sm:$0xf]
      %v5707 = vlaneseq
      %v5708 = vshrl.u32 %v5707, 7
      %v5709 = vsub.s32 0, %v5708
      %v5710 = vrot.slane %v5705, %v5709
      %v5711 = vlaneseq
      %v5712 = vshrl.u32 %v5711, 7
      %v5713 = vsub.s32 1, %v5712
      %v5714 = vrot.slane %v5705, %v5713
      %v5715 = vlaneseq
      %v5716 = vshrl.u32 %v5715, 7
      %v5717 = vsub.s32 2, %v5716
      %v5718 = vrot.slane %v5705, %v5717
      %v5719 = vlaneseq
      %v5720 = vshrl.u32 %v5719, 7
      %v5721 = vsub.s32 3, %v5720
      %v5722 = vrot.slane %v5705, %v5721
      %5723 = vrot.lane.b32.xlu0 %v5710, 1
      %v5724 = vpop.permute.xlu0 %5723
      %5725 = vrot.lane.b32.xlu0 %v5714, 1
      %v5726 = vpop.permute.xlu0 %5725
      %5727 = vrot.lane.b32.xlu0 %v5718, 1
      %v5728 = vpop.permute.xlu0 %5727
      %5729 = vrot.lane.b32.xlu0 %v5722, 1
      %v5730 = vpop.permute.xlu0 %5729
      %v5731 = vsel %vm1340, %v5724, %v5726
      %v5732 = vsel %vm1340, %v5726, %v5728
      %v5733 = vsel %vm1340, %v5728, %v5730
      %v5739 = vmul.f32 %v5700, %v5724
      %v5740 = vmul.f32 %v5701, %v5731
      %v5741 = vmul.f32 %v5702, %v5732
      %v5742 = vmul.f32 %v5703, %v5733
      %v5743 = vmul.f32 %v5704, %v5730
      %5749 = vrot.lane.b32.xlu0 %v5739, 127
      %v5750 = vpop.permute.xlu0 %5749
      %5751 = vrot.lane.b32.xlu0 %v5740, 127
      %v5752 = vpop.permute.xlu0 %5751
      %5753 = vrot.lane.b32.xlu0 %v5741, 127
      %v5754 = vpop.permute.xlu0 %5753
      %5755 = vrot.lane.b32.xlu0 %v5742, 127
      %v5756 = vpop.permute.xlu0 %5755
      %5757 = vrot.lane.b32.xlu0 %v5743, 127
      %v5758 = vpop.permute.xlu0 %5757
      %v5759 = vsel %vm1311, %v5750, %v5752
      %v5760 = vsel %vm1311, %v5752, %v5754
      %v5761 = vsel %vm1311, %v5754, %v5756
      %v5762 = vsel %vm1311, %v5756, %v5758
      %5767 = vst [vmem:[#allocation3 + $0x1c0] sm:$0xff] %v5759
      %5768 = vst [vmem:[#allocation3 + $0x1c8] sm:$0xff] %v5760
      %5769 = vst [vmem:[#allocation3 + $0x1d0] sm:$0xff] %v5761
      %5770 = vst [vmem:[#allocation3 + $0x1d8] sm:$0xff] %v5762
      %v5771 = vld [vmem:[#allocation2 + $0x8] sm:$0xff]
      %v5772 = vld [vmem:[#allocation2 + $0x10] sm:$0xff]
      %v5773 = vld [vmem:[#allocation2 + $0x18] sm:$0xff]
      %v5774 = vld [vmem:[#allocation2 + $0x20] sm:$0xff]
      %v5775 = vld [vmem:[#allocation2 + $0x28] sm:$0xff]
      %v5776 = vld [vmem:[%s1438] ss:$8 sm:$0xf]
      %v5778 = vlaneseq
      %v5779 = vshrl.u32 %v5778, 7
      %v5780 = vsub.s32 0, %v5779
      %v5781 = vrot.slane %v5776, %v5780
      %v5782 = vlaneseq
      %v5783 = vshrl.u32 %v5782, 7
      %v5784 = vsub.s32 1, %v5783
      %v5785 = vrot.slane %v5776, %v5784
      %v5786 = vlaneseq
      %v5787 = vshrl.u32 %v5786, 7
      %v5788 = vsub.s32 2, %v5787
      %v5789 = vrot.slane %v5776, %v5788
      %v5790 = vlaneseq
      %v5791 = vshrl.u32 %v5790, 7
      %v5792 = vsub.s32 3, %v5791
      %v5793 = vrot.slane %v5776, %v5792
      %5794 = vrot.lane.b32.xlu0 %v5781, 7
      %v5795 = vpop.permute.xlu0 %5794
      %5796 = vrot.lane.b32.xlu0 %v5785, 7
      %v5797 = vpop.permute.xlu0 %5796
      %5798 = vrot.lane.b32.xlu0 %v5789, 7
      %v5799 = vpop.permute.xlu0 %5798
      %5800 = vrot.lane.b32.xlu0 %v5793, 7
      %v5801 = vpop.permute.xlu0 %5800
      %v5802 = vsel %vm1266, %v5795, %v5797
      %v5803 = vsel %vm1266, %v5797, %v5799
      %v5804 = vsel %vm1266, %v5799, %v5801
      %v5810 = vmul.f32 %v5771, %v5795
      %v5811 = vmul.f32 %v5772, %v5802
      %v5812 = vmul.f32 %v5773, %v5803
      %v5813 = vmul.f32 %v5774, %v5804
      %v5814 = vmul.f32 %v5775, %v5801
      %5820 = vrot.lane.b32.xlu0 %v5810, 121
      %v5821 = vpop.permute.xlu0 %5820
      %5822 = vrot.lane.b32.xlu0 %v5811, 121
      %v5823 = vpop.permute.xlu0 %5822
      %5824 = vrot.lane.b32.xlu0 %v5812, 121
      %v5825 = vpop.permute.xlu0 %5824
      %5826 = vrot.lane.b32.xlu0 %v5813, 121
      %v5827 = vpop.permute.xlu0 %5826
      %5828 = vrot.lane.b32.xlu0 %v5814, 121
      %v5829 = vpop.permute.xlu0 %5828
      %v5830 = vsel %vm1237, %v5821, %v5823
      %v5831 = vsel %vm1237, %v5823, %v5825
      %v5832 = vsel %vm1237, %v5825, %v5827
      %v5833 = vsel %vm1237, %v5827, %v5829
      %5838 = vst [vmem:[#allocation3 + $0x1e0] sm:$0xff] %v5830
      %5839 = vst [vmem:[#allocation3 + $0x1e8] sm:$0xff] %v5831
      %5840 = vst [vmem:[#allocation3 + $0x1f0] sm:$0xff] %v5832
      %5841 = vst [vmem:[#allocation3 + $0x1f8] sm:$0xff] %v5833
      %v5842 = vld [vmem:[#allocation2 + $0x8] sm:$0xff]
      %v5843 = vld [vmem:[#allocation2 + $0x10] sm:$0xff]
      %v5844 = vld [vmem:[#allocation2 + $0x18] sm:$0xff]
      %v5845 = vld [vmem:[#allocation2 + $0x20] sm:$0xff]
      %v5846 = vld [vmem:[#allocation2 + $0x28] sm:$0xff]
      %v5847 = vld [vmem:[%s1510] ss:$8 sm:$0xf]
      %v5849 = vlaneseq
      %v5850 = vshrl.u32 %v5849, 7
      %v5851 = vsub.s32 0, %v5850
      %v5852 = vrot.slane %v5847, %v5851
      %v5853 = vlaneseq
      %v5854 = vshrl.u32 %v5853, 7
      %v5855 = vsub.s32 1, %v5854
      %v5856 = vrot.slane %v5847, %v5855
      %v5857 = vlaneseq
      %v5858 = vshrl.u32 %v5857, 7
      %v5859 = vsub.s32 2, %v5858
      %v5860 = vrot.slane %v5847, %v5859
      %v5861 = vlaneseq
      %v5862 = vshrl.u32 %v5861, 7
      %v5863 = vsub.s32 3, %v5862
      %v5864 = vrot.slane %v5847, %v5863
      %5865 = vrot.lane.b32.xlu0 %v5852, 8
      %v5866 = vpop.permute.xlu0 %5865
      %5867 = vrot.lane.b32.xlu0 %v5856, 8
      %v5868 = vpop.permute.xlu0 %5867
      %5869 = vrot.lane.b32.xlu0 %v5860, 8
      %v5870 = vpop.permute.xlu0 %5869
      %5871 = vrot.lane.b32.xlu0 %v5864, 8
      %v5872 = vpop.permute.xlu0 %5871
      %v5873 = vsel %vm1192, %v5866, %v5868
      %v5874 = vsel %vm1192, %v5868, %v5870
      %v5875 = vsel %vm1192, %v5870, %v5872
      %v5881 = vmul.f32 %v5842, %v5866
      %v5882 = vmul.f32 %v5843, %v5873
      %v5883 = vmul.f32 %v5844, %v5874
      %v5884 = vmul.f32 %v5845, %v5875
      %v5885 = vmul.f32 %v5846, %v5872
      %5891 = vrot.lane.b32.xlu0 %v5881, 120
      %v5892 = vpop.permute.xlu0 %5891
      %5893 = vrot.lane.b32.xlu0 %v5882, 120
      %v5894 = vpop.permute.xlu0 %5893
      %5895 = vrot.lane.b32.xlu0 %v5883, 120
      %v5896 = vpop.permute.xlu0 %5895
      %5897 = vrot.lane.b32.xlu0 %v5884, 120
      %v5898 = vpop.permute.xlu0 %5897
      %5899 = vrot.lane.b32.xlu0 %v5885, 120
      %v5900 = vpop.permute.xlu0 %5899
      %v5901 = vsel %vm1163, %v5892, %v5894
      %v5902 = vsel %vm1163, %v5894, %v5896
      %v5903 = vsel %vm1163, %v5896, %v5898
      %v5904 = vsel %vm1163, %v5898, %v5900
      %5909 = vst [vmem:[#allocation3 + $0x200] sm:$0xff] %v5901
      %5910 = vst [vmem:[#allocation3 + $0x208] sm:$0xff] %v5902
      %5911 = vst [vmem:[#allocation3 + $0x210] sm:$0xff] %v5903
      %5912 = vst [vmem:[#allocation3 + $0x218] sm:$0xff] %v5904
      %v5913 = vld [vmem:[#allocation2 + $0x8] sm:$0xff]
      %v5914 = vld [vmem:[#allocation2 + $0x10] sm:$0xff]
      %v5915 = vld [vmem:[#allocation2 + $0x18] sm:$0xff]
      %v5916 = vld [vmem:[#allocation2 + $0x20] sm:$0xff]
      %v5917 = vld [vmem:[#allocation2 + $0x28] sm:$0xff]
      %v5918 = vld [vmem:[%s1582] ss:$8 sm:$0xf]
      %v5920 = vlaneseq
      %v5921 = vshrl.u32 %v5920, 7
      %v5922 = vsub.s32 0, %v5921
      %v5923 = vrot.slane %v5918, %v5922
      %v5924 = vlaneseq
      %v5925 = vshrl.u32 %v5924, 7
      %v5926 = vsub.s32 1, %v5925
      %v5927 = vrot.slane %v5918, %v5926
      %v5928 = vlaneseq
      %v5929 = vshrl.u32 %v5928, 7
      %v5930 = vsub.s32 2, %v5929
      %v5931 = vrot.slane %v5918, %v5930
      %v5932 = vlaneseq
      %v5933 = vshrl.u32 %v5932, 7
      %v5934 = vsub.s32 3, %v5933
      %v5935 = vrot.slane %v5918, %v5934
      %5936 = vrot.lane.b32.xlu0 %v5923, 9
      %v5937 = vpop.permute.xlu0 %5936
      %5938 = vrot.lane.b32.xlu0 %v5927, 9
      %v5939 = vpop.permute.xlu0 %5938
      %5940 = vrot.lane.b32.xlu0 %v5931, 9
      %v5941 = vpop.permute.xlu0 %5940
      %5942 = vrot.lane.b32.xlu0 %v5935, 9
      %v5943 = vpop.permute.xlu0 %5942
      %v5944 = vsel %vm1118, %v5937, %v5939
      %v5945 = vsel %vm1118, %v5939, %v5941
      %v5946 = vsel %vm1118, %v5941, %v5943
      %v5952 = vmul.f32 %v5913, %v5937
      %v5953 = vmul.f32 %v5914, %v5944
      %v5954 = vmul.f32 %v5915, %v5945
      %v5955 = vmul.f32 %v5916, %v5946
      %v5956 = vmul.f32 %v5917, %v5943
      %5962 = vrot.lane.b32.xlu0 %v5952, 119
      %v5963 = vpop.permute.xlu0 %5962
      %5964 = vrot.lane.b32.xlu0 %v5953, 119
      %v5965 = vpop.permute.xlu0 %5964
      %5966 = vrot.lane.b32.xlu0 %v5954, 119
      %v5967 = vpop.permute.xlu0 %5966
      %5968 = vrot.lane.b32.xlu0 %v5955, 119
      %v5969 = vpop.permute.xlu0 %5968
      %5970 = vrot.lane.b32.xlu0 %v5956, 119
      %v5971 = vpop.permute.xlu0 %5970
      %v5972 = vsel %vm1089, %v5963, %v5965
      %v5973 = vsel %vm1089, %v5965, %v5967
      %v5974 = vsel %vm1089, %v5967, %v5969
      %v5975 = vsel %vm1089, %v5969, %v5971
      %5980 = vst [vmem:[#allocation3 + $0x220] sm:$0xff] %v5972
      %5981 = vst [vmem:[#allocation3 + $0x228] sm:$0xff] %v5973
      %5982 = vst [vmem:[#allocation3 + $0x230] sm:$0xff] %v5974
      %5983 = vst [vmem:[#allocation3 + $0x238] sm:$0xff] %v5975
      %v5984 = vld [vmem:[#allocation2 + $0x8] sm:$0xff]
      %v5985 = vld [vmem:[#allocation2 + $0x10] sm:$0xff]
      %v5986 = vld [vmem:[#allocation2 + $0x18] sm:$0xff]
      %v5987 = vld [vmem:[#allocation2 + $0x20] sm:$0xff]
      %v5988 = vld [vmem:[#allocation2 + $0x28] sm:$0xff]
      %v5989 = vld [vmem:[%s1654] ss:$8 sm:$0xf]
      %v5991 = vlaneseq
      %v5992 = vshrl.u32 %v5991, 7
      %v5993 = vsub.s32 0, %v5992
      %v5994 = vrot.slane %v5989, %v5993
      %v5995 = vlaneseq
      %v5996 = vshrl.u32 %v5995, 7
      %v5997 = vsub.s32 1, %v5996
      %v5998 = vrot.slane %v5989, %v5997
      %v5999 = vlaneseq
      %v6000 = vshrl.u32 %v5999, 7
      %v6001 = vsub.s32 2, %v6000
      %v6002 = vrot.slane %v5989, %v6001
      %v6003 = vlaneseq
      %v6004 = vshrl.u32 %v6003, 7
      %v6005 = vsub.s32 3, %v6004
      %v6006 = vrot.slane %v5989, %v6005
      %6007 = vrot.lane.b32.xlu0 %v5994, 55
      %v6008 = vpop.permute.xlu0 %6007
      %6009 = vrot.lane.b32.xlu0 %v5998, 55
      %v6010 = vpop.permute.xlu0 %6009
      %6011 = vrot.lane.b32.xlu0 %v6002, 55
      %v6012 = vpop.permute.xlu0 %6011
      %6013 = vrot.lane.b32.xlu0 %v6006, 55
      %v6014 = vpop.permute.xlu0 %6013
      %v6015 = vsel %vm432, %v6008, %v6010
      %v6016 = vsel %vm432, %v6010, %v6012
      %v6017 = vsel %vm432, %v6012, %v6014
      %v6023 = vmul.f32 %v5984, %v6008
      %v6024 = vmul.f32 %v5985, %v6015
      %v6025 = vmul.f32 %v5986, %v6016
      %v6026 = vmul.f32 %v5987, %v6017
      %v6027 = vmul.f32 %v5988, %v6014
      %6033 = vrot.lane.b32.xlu0 %v6023, 73
      %v6034 = vpop.permute.xlu0 %6033
      %6035 = vrot.lane.b32.xlu0 %v6024, 73
      %v6036 = vpop.permute.xlu0 %6035
      %6037 = vrot.lane.b32.xlu0 %v6025, 73
      %v6038 = vpop.permute.xlu0 %6037
      %6039 = vrot.lane.b32.xlu0 %v6026, 73
      %v6040 = vpop.permute.xlu0 %6039
      %6041 = vrot.lane.b32.xlu0 %v6027, 73
      %v6042 = vpop.permute.xlu0 %6041
      %v6043 = vsel %vm461, %v6034, %v6036
      %v6044 = vsel %vm461, %v6036, %v6038
      %v6045 = vsel %vm461, %v6038, %v6040
      %v6046 = vsel %vm461, %v6040, %v6042
      %6051 = vst [vmem:[#allocation3 + $0x240] sm:$0xff] %v6043
      %6052 = vst [vmem:[#allocation3 + $0x248] sm:$0xff] %v6044
      %6053 = vst [vmem:[#allocation3 + $0x250] sm:$0xff] %v6045
      %6054 = vst [vmem:[#allocation3 + $0x258] sm:$0xff] %v6046
      %v6055 = vld [vmem:[#allocation2 + $0x8] sm:$0xff]
      %v6056 = vld [vmem:[#allocation2 + $0x10] sm:$0xff]
      %v6057 = vld [vmem:[#allocation2 + $0x18] sm:$0xff]
      %v6058 = vld [vmem:[#allocation2 + $0x20] sm:$0xff]
      %v6059 = vld [vmem:[#allocation2 + $0x28] sm:$0xff]
      %v6060 = vld [vmem:[%s1726] ss:$8 sm:$0xf]
      %v6062 = vlaneseq
      %v6063 = vshrl.u32 %v6062, 7
      %v6064 = vsub.s32 0, %v6063
      %v6065 = vrot.slane %v6060, %v6064
      %v6066 = vlaneseq
      %v6067 = vshrl.u32 %v6066, 7
      %v6068 = vsub.s32 1, %v6067
      %v6069 = vrot.slane %v6060, %v6068
      %v6070 = vlaneseq
      %v6071 = vshrl.u32 %v6070, 7
      %v6072 = vsub.s32 2, %v6071
      %v6073 = vrot.slane %v6060, %v6072
      %v6074 = vlaneseq
      %v6075 = vshrl.u32 %v6074, 7
      %v6076 = vsub.s32 3, %v6075
      %v6077 = vrot.slane %v6060, %v6076
      %6078 = vrot.lane.b32.xlu0 %v6065, 56
      %v6079 = vpop.permute.xlu0 %6078
      %6080 = vrot.lane.b32.xlu0 %v6069, 56
      %v6081 = vpop.permute.xlu0 %6080
      %6082 = vrot.lane.b32.xlu0 %v6073, 56
      %v6083 = vpop.permute.xlu0 %6082
      %6084 = vrot.lane.b32.xlu0 %v6077, 56
      %v6085 = vpop.permute.xlu0 %6084
      %v6086 = vsel %vm506, %v6079, %v6081
      %v6087 = vsel %vm506, %v6081, %v6083
      %v6088 = vsel %vm506, %v6083, %v6085
      %v6094 = vmul.f32 %v6055, %v6079
      %v6095 = vmul.f32 %v6056, %v6086
      %v6096 = vmul.f32 %v6057, %v6087
      %v6097 = vmul.f32 %v6058, %v6088
      %v6098 = vmul.f32 %v6059, %v6085
      %6104 = vrot.lane.b32.xlu0 %v6094, 72
      %v6105 = vpop.permute.xlu0 %6104
      %6106 = vrot.lane.b32.xlu0 %v6095, 72
      %v6107 = vpop.permute.xlu0 %6106
      %6108 = vrot.lane.b32.xlu0 %v6096, 72
      %v6109 = vpop.permute.xlu0 %6108
      %6110 = vrot.lane.b32.xlu0 %v6097, 72
      %v6111 = vpop.permute.xlu0 %6110
      %6112 = vrot.lane.b32.xlu0 %v6098, 72
      %v6113 = vpop.permute.xlu0 %6112
      %v6114 = vsel %vm535, %v6105, %v6107
      %v6115 = vsel %vm535, %v6107, %v6109
      %v6116 = vsel %vm535, %v6109, %v6111
      %v6117 = vsel %vm535, %v6111, %v6113
      %6122 = vst [vmem:[#allocation3 + $0x260] sm:$0xff] %v6114
      %6123 = vst [vmem:[#allocation3 + $0x268] sm:$0xff] %v6115
      %6124 = vst [vmem:[#allocation3 + $0x270] sm:$0xff] %v6116
      %6125 = vst [vmem:[#allocation3 + $0x278] sm:$0xff] %v6117
      %v6126 = vld [vmem:[#allocation2 + $0x8] sm:$0xff]
      %v6127 = vld [vmem:[#allocation2 + $0x10] sm:$0xff]
      %v6128 = vld [vmem:[#allocation2 + $0x18] sm:$0xff]
      %v6129 = vld [vmem:[#allocation2 + $0x20] sm:$0xff]
      %v6130 = vld [vmem:[#allocation2 + $0x28] sm:$0xff]
      %v6131 = vld [vmem:[%s1798] ss:$8 sm:$0xf]
      %v6133 = vlaneseq
      %v6134 = vshrl.u32 %v6133, 7
      %v6135 = vsub.s32 0, %v6134
      %v6136 = vrot.slane %v6131, %v6135
      %v6137 = vlaneseq
      %v6138 = vshrl.u32 %v6137, 7
      %v6139 = vsub.s32 1, %v6138
      %v6140 = vrot.slane %v6131, %v6139
      %v6141 = vlaneseq
      %v6142 = vshrl.u32 %v6141, 7
      %v6143 = vsub.s32 2, %v6142
      %v6144 = vrot.slane %v6131, %v6143
      %v6145 = vlaneseq
      %v6146 = vshrl.u32 %v6145, 7
      %v6147 = vsub.s32 3, %v6146
      %v6148 = vrot.slane %v6131, %v6147
      %6149 = vrot.lane.b32.xlu0 %v6136, 57
      %v6150 = vpop.permute.xlu0 %6149
      %6151 = vrot.lane.b32.xlu0 %v6140, 57
      %v6152 = vpop.permute.xlu0 %6151
      %6153 = vrot.lane.b32.xlu0 %v6144, 57
      %v6154 = vpop.permute.xlu0 %6153
      %6155 = vrot.lane.b32.xlu0 %v6148, 57
      %v6156 = vpop.permute.xlu0 %6155
      %v6157 = vsel %vm580, %v6150, %v6152
      %v6158 = vsel %vm580, %v6152, %v6154
      %v6159 = vsel %vm580, %v6154, %v6156
      %v6165 = vmul.f32 %v6126, %v6150
      %v6166 = vmul.f32 %v6127, %v6157
      %v6167 = vmul.f32 %v6128, %v6158
      %v6168 = vmul.f32 %v6129, %v6159
      %v6169 = vmul.f32 %v6130, %v6156
      %6175 = vrot.lane.b32.xlu0 %v6165, 71
      %v6176 = vpop.permute.xlu0 %6175
      %6177 = vrot.lane.b32.xlu0 %v6166, 71
      %v6178 = vpop.permute.xlu0 %6177
      %6179 = vrot.lane.b32.xlu0 %v6167, 71
      %v6180 = vpop.permute.xlu0 %6179
      %6181 = vrot.lane.b32.xlu0 %v6168, 71
      %v6182 = vpop.permute.xlu0 %6181
      %6183 = vrot.lane.b32.xlu0 %v6169, 71
      %v6184 = vpop.permute.xlu0 %6183
      %v6185 = vsel %vm609, %v6176, %v6178
      %v6186 = vsel %vm609, %v6178, %v6180
      %v6187 = vsel %vm609, %v6180, %v6182
      %v6188 = vsel %vm609, %v6182, %v6184
      %6193 = vst [vmem:[#allocation3 + $0x280] sm:$0xff] %v6185
      %6194 = vst [vmem:[#allocation3 + $0x288] sm:$0xff] %v6186
      %6195 = vst [vmem:[#allocation3 + $0x290] sm:$0xff] %v6187
      %6196 = vst [vmem:[#allocation3 + $0x298] sm:$0xff] %v6188
      %v6197 = vld [vmem:[#allocation2 + $0x8] sm:$0xff]
      %v6198 = vld [vmem:[#allocation2 + $0x10] sm:$0xff]
      %v6199 = vld [vmem:[#allocation2 + $0x18] sm:$0xff]
      %v6200 = vld [vmem:[#allocation2 + $0x20] sm:$0xff]
      %v6201 = vld [vmem:[#allocation2 + $0x28] sm:$0xff]
      %v6202 = vld [vmem:[%s1870] ss:$8 sm:$0xf]
      %v6204 = vlaneseq
      %v6205 = vshrl.u32 %v6204, 7
      %v6206 = vsub.s32 0, %v6205
      %v6207 = vrot.slane %v6202, %v6206
      %v6208 = vlaneseq
      %v6209 = vshrl.u32 %v6208, 7
      %v6210 = vsub.s32 1, %v6209
      %v6211 = vrot.slane %v6202, %v6210
      %v6212 = vlaneseq
      %v6213 = vshrl.u32 %v6212, 7
      %v6214 = vsub.s32 2, %v6213
      %v6215 = vrot.slane %v6202, %v6214
      %v6216 = vlaneseq
      %v6217 = vshrl.u32 %v6216, 7
      %v6218 = vsub.s32 3, %v6217
      %v6219 = vrot.slane %v6202, %v6218
      %6220 = vrot.lane.b32.xlu0 %v6207, 63
      %v6221 = vpop.permute.xlu0 %6220
      %6222 = vrot.lane.b32.xlu0 %v6211, 63
      %v6223 = vpop.permute.xlu0 %6222
      %6224 = vrot.lane.b32.xlu0 %v6215, 63
      %v6225 = vpop.permute.xlu0 %6224
      %6226 = vrot.lane.b32.xlu0 %v6219, 63
      %v6227 = vpop.permute.xlu0 %6226
      %v6228 = vsel %vm654, %v6221, %v6223
      %v6229 = vsel %vm654, %v6223, %v6225
      %v6230 = vsel %vm654, %v6225, %v6227
      %v6236 = vmul.f32 %v6197, %v6221
      %v6237 = vmul.f32 %v6198, %v6228
      %v6238 = vmul.f32 %v6199, %v6229
      %v6239 = vmul.f32 %v6200, %v6230
      %v6240 = vmul.f32 %v6201, %v6227
      %6246 = vrot.lane.b32.xlu0 %v6236, 65
      %v6247 = vpop.permute.xlu0 %6246
      %6248 = vrot.lane.b32.xlu0 %v6237, 65
      %v6249 = vpop.permute.xlu0 %6248
      %6250 = vrot.lane.b32.xlu0 %v6238, 65
      %v6251 = vpop.permute.xlu0 %6250
      %6252 = vrot.lane.b32.xlu0 %v6239, 65
      %v6253 = vpop.permute.xlu0 %6252
      %6254 = vrot.lane.b32.xlu0 %v6240, 65
      %v6255 = vpop.permute.xlu0 %6254
      %v6256 = vsel %vm683, %v6247, %v6249
      %v6257 = vsel %vm683, %v6249, %v6251
      %v6258 = vsel %vm683, %v6251, %v6253
      %v6259 = vsel %vm683, %v6253, %v6255
      %6264 = vst [vmem:[#allocation3 + $0x2a0] sm:$0xff] %v6256
      %6265 = vst [vmem:[#allocation3 + $0x2a8] sm:$0xff] %v6257
      %6266 = vst [vmem:[#allocation3 + $0x2b0] sm:$0xff] %v6258
      %6267 = vst [vmem:[#allocation3 + $0x2b8] sm:$0xff] %v6259
      %v6268 = vld [vmem:[#allocation2 + $0x8] sm:$0xff]
      %v6269 = vld [vmem:[#allocation2 + $0x10] sm:$0xff]
      %v6270 = vld [vmem:[#allocation2 + $0x18] sm:$0xff]
      %v6271 = vld [vmem:[#allocation2 + $0x20] sm:$0xff]
      %v6272 = vld [vmem:[#allocation2 + $0x28] sm:$0xff]
      %v6273 = vld [vmem:[%s1942] ss:$8 sm:$0xf]
      %v6275 = vlaneseq
      %v6276 = vshrl.u32 %v6275, 7
      %v6277 = vsub.s32 0, %v6276
      %v6278 = vrot.slane %v6273, %v6277
      %v6279 = vlaneseq
      %v6280 = vshrl.u32 %v6279, 7
      %v6281 = vsub.s32 1, %v6280
      %v6282 = vrot.slane %v6273, %v6281
      %v6283 = vlaneseq
      %v6284 = vshrl.u32 %v6283, 7
      %v6285 = vsub.s32 2, %v6284
      %v6286 = vrot.slane %v6273, %v6285
      %v6287 = vlaneseq
      %v6288 = vshrl.u32 %v6287, 7
      %v6289 = vsub.s32 3, %v6288
      %v6290 = vrot.slane %v6273, %v6289
      %6291 = vrot.lane.b32.xlu0 %v6278, 64
      %v6292 = vpop.permute.xlu0 %6291
      %6293 = vrot.lane.b32.xlu0 %v6282, 64
      %v6294 = vpop.permute.xlu0 %6293
      %6295 = vrot.lane.b32.xlu0 %v6286, 64
      %v6296 = vpop.permute.xlu0 %6295
      %6297 = vrot.lane.b32.xlu0 %v6290, 64
      %v6298 = vpop.permute.xlu0 %6297
      %v6299 = vsel %vm728, %v6292, %v6294
      %v6300 = vsel %vm728, %v6294, %v6296
      %v6301 = vsel %vm728, %v6296, %v6298
      %v6307 = vmul.f32 %v6268, %v6292
      %v6308 = vmul.f32 %v6269, %v6299
      %v6309 = vmul.f32 %v6270, %v6300
      %v6310 = vmul.f32 %v6271, %v6301
      %v6311 = vmul.f32 %v6272, %v6298
      %6317 = vrot.lane.b32.xlu0 %v6307, 64
      %v6318 = vpop.permute.xlu0 %6317
      %6319 = vrot.lane.b32.xlu0 %v6308, 64
      %v6320 = vpop.permute.xlu0 %6319
      %6321 = vrot.lane.b32.xlu0 %v6309, 64
      %v6322 = vpop.permute.xlu0 %6321
      %6323 = vrot.lane.b32.xlu0 %v6310, 64
      %v6324 = vpop.permute.xlu0 %6323
      %6325 = vrot.lane.b32.xlu0 %v6311, 64
      %v6326 = vpop.permute.xlu0 %6325
      %v6327 = vsel %vm728, %v6318, %v6320
      %v6328 = vsel %vm728, %v6320, %v6322
      %v6329 = vsel %vm728, %v6322, %v6324
      %v6330 = vsel %vm728, %v6324, %v6326
      %6335 = vst [vmem:[#allocation3 + $0x2c0] sm:$0xff] %v6327
      %6336 = vst [vmem:[#allocation3 + $0x2c8] sm:$0xff] %v6328
      %6337 = vst [vmem:[#allocation3 + $0x2d0] sm:$0xff] %v6329
      %6338 = vst [vmem:[#allocation3 + $0x2d8] sm:$0xff] %v6330
      %v6339 = vld [vmem:[#allocation2 + $0x8] sm:$0xff]
      %v6340 = vld [vmem:[#allocation2 + $0x10] sm:$0xff]
      %v6341 = vld [vmem:[#allocation2 + $0x18] sm:$0xff]
      %v6342 = vld [vmem:[#allocation2 + $0x20] sm:$0xff]
      %v6343 = vld [vmem:[#allocation2 + $0x28] sm:$0xff]
      %v6344 = vld [vmem:[%s2014] ss:$8 sm:$0xf]
      %v6346 = vlaneseq
      %v6347 = vshrl.u32 %v6346, 7
      %v6348 = vsub.s32 0, %v6347
      %v6349 = vrot.slane %v6344, %v6348
      %v6350 = vlaneseq
      %v6351 = vshrl.u32 %v6350, 7
      %v6352 = vsub.s32 1, %v6351
      %v6353 = vrot.slane %v6344, %v6352
      %v6354 = vlaneseq
      %v6355 = vshrl.u32 %v6354, 7
      %v6356 = vsub.s32 2, %v6355
      %v6357 = vrot.slane %v6344, %v6356
      %v6358 = vlaneseq
      %v6359 = vshrl.u32 %v6358, 7
      %v6360 = vsub.s32 3, %v6359
      %v6361 = vrot.slane %v6344, %v6360
      %6362 = vrot.lane.b32.xlu0 %v6349, 65
      %v6363 = vpop.permute.xlu0 %6362
      %6364 = vrot.lane.b32.xlu0 %v6353, 65
      %v6365 = vpop.permute.xlu0 %6364
      %6366 = vrot.lane.b32.xlu0 %v6357, 65
      %v6367 = vpop.permute.xlu0 %6366
      %6368 = vrot.lane.b32.xlu0 %v6361, 65
      %v6369 = vpop.permute.xlu0 %6368
      %v6370 = vsel %vm683, %v6363, %v6365
      %v6371 = vsel %vm683, %v6365, %v6367
      %v6372 = vsel %vm683, %v6367, %v6369
      %v6378 = vmul.f32 %v6339, %v6363
      %v6379 = vmul.f32 %v6340, %v6370
      %v6380 = vmul.f32 %v6341, %v6371
      %v6381 = vmul.f32 %v6342, %v6372
      %v6382 = vmul.f32 %v6343, %v6369
      %6388 = vrot.lane.b32.xlu0 %v6378, 63
      %v6389 = vpop.permute.xlu0 %6388
      %6390 = vrot.lane.b32.xlu0 %v6379, 63
      %v6391 = vpop.permute.xlu0 %6390
      %6392 = vrot.lane.b32.xlu0 %v6380, 63
      %v6393 = vpop.permute.xlu0 %6392
      %6394 = vrot.lane.b32.xlu0 %v6381, 63
      %v6395 = vpop.permute.xlu0 %6394
      %6396 = vrot.lane.b32.xlu0 %v6382, 63
      %v6397 = vpop.permute.xlu0 %6396
      %v6398 = vsel %vm654, %v6389, %v6391
      %v6399 = vsel %vm654, %v6391, %v6393
      %v6400 = vsel %vm654, %v6393, %v6395
      %v6401 = vsel %vm654, %v6395, %v6397
      %6406 = vst [vmem:[#allocation3 + $0x2e0] sm:$0xff] %v6398
      %6407 = vst [vmem:[#allocation3 + $0x2e8] sm:$0xff] %v6399
      %6408 = vst [vmem:[#allocation3 + $0x2f0] sm:$0xff] %v6400
      %6409 = vst [vmem:[#allocation3 + $0x2f8] sm:$0xff] %v6401
      %v6410 = vld [vmem:[#allocation2 + $0x8] sm:$0xff]
      %v6411 = vld [vmem:[#allocation2 + $0x10] sm:$0xff]
      %v6412 = vld [vmem:[#allocation2 + $0x18] sm:$0xff]
      %v6413 = vld [vmem:[#allocation2 + $0x20] sm:$0xff]
      %v6414 = vld [vmem:[#allocation2 + $0x28] sm:$0xff]
      %v6415 = vld [vmem:[%s2086] ss:$8 sm:$0xf]
      %v6417 = vlaneseq
      %v6418 = vshrl.u32 %v6417, 7
      %v6419 = vsub.s32 0, %v6418
      %v6420 = vrot.slane %v6415, %v6419
      %v6421 = vlaneseq
      %v6422 = vshrl.u32 %v6421, 7
      %v6423 = vsub.s32 1, %v6422
      %v6424 = vrot.slane %v6415, %v6423
      %v6425 = vlaneseq
      %v6426 = vshrl.u32 %v6425, 7
      %v6427 = vsub.s32 2, %v6426
      %v6428 = vrot.slane %v6415, %v6427
      %v6429 = vlaneseq
      %v6430 = vshrl.u32 %v6429, 7
      %v6431 = vsub.s32 3, %v6430
      %v6432 = vrot.slane %v6415, %v6431
      %6433 = vrot.lane.b32.xlu0 %v6420, 71
      %v6434 = vpop.permute.xlu0 %6433
      %6435 = vrot.lane.b32.xlu0 %v6424, 71
      %v6436 = vpop.permute.xlu0 %6435
      %6437 = vrot.lane.b32.xlu0 %v6428, 71
      %v6438 = vpop.permute.xlu0 %6437
      %6439 = vrot.lane.b32.xlu0 %v6432, 71
      %v6440 = vpop.permute.xlu0 %6439
      %v6441 = vsel %vm609, %v6434, %v6436
      %v6442 = vsel %vm609, %v6436, %v6438
      %v6443 = vsel %vm609, %v6438, %v6440
      %v6449 = vmul.f32 %v6410, %v6434
      %v6450 = vmul.f32 %v6411, %v6441
      %v6451 = vmul.f32 %v6412, %v6442
      %v6452 = vmul.f32 %v6413, %v6443
      %v6453 = vmul.f32 %v6414, %v6440
      %6459 = vrot.lane.b32.xlu0 %v6449, 57
      %v6460 = vpop.permute.xlu0 %6459
      %6461 = vrot.lane.b32.xlu0 %v6450, 57
      %v6462 = vpop.permute.xlu0 %6461
      %6463 = vrot.lane.b32.xlu0 %v6451, 57
      %v6464 = vpop.permute.xlu0 %6463
      %6465 = vrot.lane.b32.xlu0 %v6452, 57
      %v6466 = vpop.permute.xlu0 %6465
      %6467 = vrot.lane.b32.xlu0 %v6453, 57
      %v6468 = vpop.permute.xlu0 %6467
      %v6469 = vsel %vm580, %v6460, %v6462
      %v6470 = vsel %vm580, %v6462, %v6464
      %v6471 = vsel %vm580, %v6464, %v6466
      %v6472 = vsel %vm580, %v6466, %v6468
      %6477 = vst [vmem:[#allocation3 + $0x300] sm:$0xff] %v6469
      %6478 = vst [vmem:[#allocation3 + $0x308] sm:$0xff] %v6470
      %6479 = vst [vmem:[#allocation3 + $0x310] sm:$0xff] %v6471
      %6480 = vst [vmem:[#allocation3 + $0x318] sm:$0xff] %v6472
      %v6481 = vld [vmem:[#allocation2 + $0x8] sm:$0xff]
      %v6482 = vld [vmem:[#allocation2 + $0x10] sm:$0xff]
      %v6483 = vld [vmem:[#allocation2 + $0x18] sm:$0xff]
      %v6484 = vld [vmem:[#allocation2 + $0x20] sm:$0xff]
      %v6485 = vld [vmem:[#allocation2 + $0x28] sm:$0xff]
      %v6486 = vld [vmem:[%s2158] ss:$8 sm:$0xf]
      %v6488 = vlaneseq
      %v6489 = vshrl.u32 %v6488, 7
      %v6490 = vsub.s32 0, %v6489
      %v6491 = vrot.slane %v6486, %v6490
      %v6492 = vlaneseq
      %v6493 = vshrl.u32 %v6492, 7
      %v6494 = vsub.s32 1, %v6493
      %v6495 = vrot.slane %v6486, %v6494
      %v6496 = vlaneseq
      %v6497 = vshrl.u32 %v6496, 7
      %v6498 = vsub.s32 2, %v6497
      %v6499 = vrot.slane %v6486, %v6498
      %v6500 = vlaneseq
      %v6501 = vshrl.u32 %v6500, 7
      %v6502 = vsub.s32 3, %v6501
      %v6503 = vrot.slane %v6486, %v6502
      %6504 = vrot.lane.b32.xlu0 %v6491, 72
      %v6505 = vpop.permute.xlu0 %6504
      %6506 = vrot.lane.b32.xlu0 %v6495, 72
      %v6507 = vpop.permute.xlu0 %6506
      %6508 = vrot.lane.b32.xlu0 %v6499, 72
      %v6509 = vpop.permute.xlu0 %6508
      %6510 = vrot.lane.b32.xlu0 %v6503, 72
      %v6511 = vpop.permute.xlu0 %6510
      %v6512 = vsel %vm535, %v6505, %v6507
      %v6513 = vsel %vm535, %v6507, %v6509
      %v6514 = vsel %vm535, %v6509, %v6511
      %v6520 = vmul.f32 %v6481, %v6505
      %v6521 = vmul.f32 %v6482, %v6512
      %v6522 = vmul.f32 %v6483, %v6513
      %v6523 = vmul.f32 %v6484, %v6514
      %v6524 = vmul.f32 %v6485, %v6511
      %6530 = vrot.lane.b32.xlu0 %v6520, 56
      %v6531 = vpop.permute.xlu0 %6530
      %6532 = vrot.lane.b32.xlu0 %v6521, 56
      %v6533 = vpop.permute.xlu0 %6532
      %6534 = vrot.lane.b32.xlu0 %v6522, 56
      %v6535 = vpop.permute.xlu0 %6534
      %6536 = vrot.lane.b32.xlu0 %v6523, 56
      %v6537 = vpop.permute.xlu0 %6536
      %6538 = vrot.lane.b32.xlu0 %v6524, 56
      %v6539 = vpop.permute.xlu0 %6538
      %v6540 = vsel %vm506, %v6531, %v6533
      %v6541 = vsel %vm506, %v6533, %v6535
      %v6542 = vsel %vm506, %v6535, %v6537
      %v6543 = vsel %vm506, %v6537, %v6539
      %6548 = vst [vmem:[#allocation3 + $0x320] sm:$0xff] %v6540
      %6549 = vst [vmem:[#allocation3 + $0x328] sm:$0xff] %v6541
      %6550 = vst [vmem:[#allocation3 + $0x330] sm:$0xff] %v6542
      %6551 = vst [vmem:[#allocation3 + $0x338] sm:$0xff] %v6543
      %v6552 = vld [vmem:[#allocation2 + $0x8] sm:$0xff]
      %v6553 = vld [vmem:[#allocation2 + $0x10] sm:$0xff]
      %v6554 = vld [vmem:[#allocation2 + $0x18] sm:$0xff]
      %v6555 = vld [vmem:[#allocation2 + $0x20] sm:$0xff]
      %v6556 = vld [vmem:[#allocation2 + $0x28] sm:$0xff]
      %v6557 = vld [vmem:[%s2230] ss:$8 sm:$0xf]
      %v6559 = vlaneseq
      %v6560 = vshrl.u32 %v6559, 7
      %v6561 = vsub.s32 0, %v6560
      %v6562 = vrot.slane %v6557, %v6561
      %v6563 = vlaneseq
      %v6564 = vshrl.u32 %v6563, 7
      %v6565 = vsub.s32 1, %v6564
      %v6566 = vrot.slane %v6557, %v6565
      %v6567 = vlaneseq
      %v6568 = vshrl.u32 %v6567, 7
      %v6569 = vsub.s32 2, %v6568
      %v6570 = vrot.slane %v6557, %v6569
      %v6571 = vlaneseq
      %v6572 = vshrl.u32 %v6571, 7
      %v6573 = vsub.s32 3, %v6572
      %v6574 = vrot.slane %v6557, %v6573
      %6575 = vrot.lane.b32.xlu0 %v6562, 73
      %v6576 = vpop.permute.xlu0 %6575
      %6577 = vrot.lane.b32.xlu0 %v6566, 73
      %v6578 = vpop.permute.xlu0 %6577
      %6579 = vrot.lane.b32.xlu0 %v6570, 73
      %v6580 = vpop.permute.xlu0 %6579
      %6581 = vrot.lane.b32.xlu0 %v6574, 73
      %v6582 = vpop.permute.xlu0 %6581
      %v6583 = vsel %vm461, %v6576, %v6578
      %v6584 = vsel %vm461, %v6578, %v6580
      %v6585 = vsel %vm461, %v6580, %v6582
      %v6591 = vmul.f32 %v6552, %v6576
      %v6592 = vmul.f32 %v6553, %v6583
      %v6593 = vmul.f32 %v6554, %v6584
      %v6594 = vmul.f32 %v6555, %v6585
      %v6595 = vmul.f32 %v6556, %v6582
      %6601 = vrot.lane.b32.xlu0 %v6591, 55
      %v6602 = vpop.permute.xlu0 %6601
      %6603 = vrot.lane.b32.xlu0 %v6592, 55
      %v6604 = vpop.permute.xlu0 %6603
      %6605 = vrot.lane.b32.xlu0 %v6593, 55
      %v6606 = vpop.permute.xlu0 %6605
      %6607 = vrot.lane.b32.xlu0 %v6594, 55
      %v6608 = vpop.permute.xlu0 %6607
      %6609 = vrot.lane.b32.xlu0 %v6595, 55
      %v6610 = vpop.permute.xlu0 %6609
      %v6611 = vsel %vm432, %v6602, %v6604
      %v6612 = vsel %vm432, %v6604, %v6606
      %v6613 = vsel %vm432, %v6606, %v6608
      %v6614 = vsel %vm432, %v6608, %v6610
      %6619 = vst [vmem:[#allocation3 + $0x340] sm:$0xff] %v6611
      %6620 = vst [vmem:[#allocation3 + $0x348] sm:$0xff] %v6612
      %6621 = vst [vmem:[#allocation3 + $0x350] sm:$0xff] %v6613
      %6622 = vst [vmem:[#allocation3 + $0x358] sm:$0xff] %v6614
      %v6623 = vld [vmem:[#allocation3] sm:$0xff]
      %v6624 = vld [vmem:[#allocation3 + $0x8] sm:$0xff]
      %v6625 = vld [vmem:[#allocation3 + $0x10] sm:$0xff]
      %v6626 = vld [vmem:[#allocation3 + $0x18] sm:$0xff]
      %v6627 = vld [vmem:[#allocation3 + $0x20] sm:$0xff]
      %v6628 = vld [vmem:[#allocation3 + $0x28] sm:$0xff]
      %v6629 = vld [vmem:[#allocation3 + $0x30] sm:$0xff]
      %v6630 = vld [vmem:[#allocation3 + $0x38] sm:$0xff]
      %v6631 = vld [vmem:[#allocation3 + $0x40] sm:$0xff]
      %v6632 = vld [vmem:[#allocation3 + $0x48] sm:$0xff]
      %v6633 = vld [vmem:[#allocation3 + $0x50] sm:$0xff]
      %v6634 = vld [vmem:[#allocation3 + $0x58] sm:$0xff]
      %v6635 = vld [vmem:[#allocation3 + $0x60] sm:$0xff]
      %v6636 = vld [vmem:[#allocation3 + $0x68] sm:$0xff]
      %v6637 = vld [vmem:[#allocation3 + $0x70] sm:$0xff]
      %v6638 = vld [vmem:[#allocation3 + $0x78] sm:$0xff]
      %v6639 = vld [vmem:[#allocation3 + $0x80] sm:$0xff]
      %v6640 = vld [vmem:[#allocation3 + $0x88] sm:$0xff]
      %v6641 = vld [vmem:[#allocation3 + $0x90] sm:$0xff]
      %v6642 = vld [vmem:[#allocation3 + $0x98] sm:$0xff]
      %v6643 = vld [vmem:[#allocation3 + $0xa0] sm:$0xff]
      %v6644 = vld [vmem:[#allocation3 + $0xa8] sm:$0xff]
      %v6645 = vld [vmem:[#allocation3 + $0xb0] sm:$0xff]
      %v6646 = vld [vmem:[#allocation3 + $0xb8] sm:$0xff]
      %v6647 = vld [vmem:[#allocation3 + $0xc0] sm:$0xff]
      %v6648 = vld [vmem:[#allocation3 + $0xc8] sm:$0xff]
      %v6649 = vld [vmem:[#allocation3 + $0xd0] sm:$0xff]
      %v6650 = vld [vmem:[#allocation3 + $0xd8] sm:$0xff]
      %v6651 = vld [vmem:[#allocation3 + $0xe0] sm:$0xff]
      %v6652 = vld [vmem:[#allocation3 + $0xe8] sm:$0xff]
      %v6653 = vld [vmem:[#allocation3 + $0xf0] sm:$0xff]
      %v6654 = vld [vmem:[#allocation3 + $0xf8] sm:$0xff]
      %v6655 = vld [vmem:[#allocation3 + $0x100] sm:$0xff]
      %v6656 = vld [vmem:[#allocation3 + $0x108] sm:$0xff]
      %v6657 = vld [vmem:[#allocation3 + $0x110] sm:$0xff]
      %v6658 = vld [vmem:[#allocation3 + $0x118] sm:$0xff]
      %v6659 = vld [vmem:[#allocation3 + $0x120] sm:$0xff]
      %v6660 = vld [vmem:[#allocation3 + $0x128] sm:$0xff]
      %v6661 = vld [vmem:[#allocation3 + $0x130] sm:$0xff]
      %v6662 = vld [vmem:[#allocation3 + $0x138] sm:$0xff]
      %v6663 = vld [vmem:[#allocation3 + $0x140] sm:$0xff]
      %v6664 = vld [vmem:[#allocation3 + $0x148] sm:$0xff]
      %v6665 = vld [vmem:[#allocation3 + $0x150] sm:$0xff]
      %v6666 = vld [vmem:[#allocation3 + $0x158] sm:$0xff]
      %v6667 = vld [vmem:[#allocation3 + $0x160] sm:$0xff]
      %v6668 = vld [vmem:[#allocation3 + $0x168] sm:$0xff]
      %v6669 = vld [vmem:[#allocation3 + $0x170] sm:$0xff]
      %v6670 = vld [vmem:[#allocation3 + $0x178] sm:$0xff]
      %v6671 = vld [vmem:[#allocation3 + $0x180] sm:$0xff]
      %v6672 = vld [vmem:[#allocation3 + $0x188] sm:$0xff]
      %v6673 = vld [vmem:[#allocation3 + $0x190] sm:$0xff]
      %v6674 = vld [vmem:[#allocation3 + $0x198] sm:$0xff]
      %v6675 = vld [vmem:[#allocation3 + $0x1a0] sm:$0xff]
      %v6676 = vld [vmem:[#allocation3 + $0x1a8] sm:$0xff]
      %v6677 = vld [vmem:[#allocation3 + $0x1b0] sm:$0xff]
      %v6678 = vld [vmem:[#allocation3 + $0x1b8] sm:$0xff]
      %v6679 = vld [vmem:[#allocation3 + $0x1c0] sm:$0xff]
      %v6680 = vld [vmem:[#allocation3 + $0x1c8] sm:$0xff]
      %v6681 = vld [vmem:[#allocation3 + $0x1d0] sm:$0xff]
      %v6682 = vld [vmem:[#allocation3 + $0x1d8] sm:$0xff]
      %v6683 = vld [vmem:[#allocation3 + $0x1e0] sm:$0xff]
      %v6684 = vld [vmem:[#allocation3 + $0x1e8] sm:$0xff]
      %v6685 = vld [vmem:[#allocation3 + $0x1f0] sm:$0xff]
      %v6686 = vld [vmem:[#allocation3 + $0x1f8] sm:$0xff]
      %v6687 = vld [vmem:[#allocation3 + $0x200] sm:$0xff]
      %v6688 = vld [vmem:[#allocation3 + $0x208] sm:$0xff]
      %v6689 = vld [vmem:[#allocation3 + $0x210] sm:$0xff]
      %v6690 = vld [vmem:[#allocation3 + $0x218] sm:$0xff]
      %v6691 = vld [vmem:[#allocation3 + $0x220] sm:$0xff]
      %v6692 = vld [vmem:[#allocation3 + $0x228] sm:$0xff]
      %v6693 = vld [vmem:[#allocation3 + $0x230] sm:$0xff]
      %v6694 = vld [vmem:[#allocation3 + $0x238] sm:$0xff]
      %v6695 = vld [vmem:[#allocation3 + $0x240] sm:$0xff]
      %v6696 = vld [vmem:[#allocation3 + $0x248] sm:$0xff]
      %v6697 = vld [vmem:[#allocation3 + $0x250] sm:$0xff]
      %v6698 = vld [vmem:[#allocation3 + $0x258] sm:$0xff]
      %v6699 = vld [vmem:[#allocation3 + $0x260] sm:$0xff]
      %v6700 = vld [vmem:[#allocation3 + $0x268] sm:$0xff]
      %v6701 = vld [vmem:[#allocation3 + $0x270] sm:$0xff]
      %v6702 = vld [vmem:[#allocation3 + $0x278] sm:$0xff]
      %v6703 = vld [vmem:[#allocation3 + $0x280] sm:$0xff]
      %v6704 = vld [vmem:[#allocation3 + $0x288] sm:$0xff]
      %v6705 = vld [vmem:[#allocation3 + $0x290] sm:$0xff]
      %v6706 = vld [vmem:[#allocation3 + $0x298] sm:$0xff]
      %v6707 = vld [vmem:[#allocation3 + $0x2a0] sm:$0xff]
      %v6708 = vld [vmem:[#allocation3 + $0x2a8] sm:$0xff]
      %v6709 = vld [vmem:[#allocation3 + $0x2b0] sm:$0xff]
      %v6710 = vld [vmem:[#allocation3 + $0x2b8] sm:$0xff]
      %v6711 = vld [vmem:[#allocation3 + $0x2c0] sm:$0xff]
      %v6712 = vld [vmem:[#allocation3 + $0x2c8] sm:$0xff]
      %v6713 = vld [vmem:[#allocation3 + $0x2d0] sm:$0xff]
      %v6714 = vld [vmem:[#allocation3 + $0x2d8] sm:$0xff]
      %v6715 = vld [vmem:[#allocation3 + $0x2e0] sm:$0xff]
      %v6716 = vld [vmem:[#allocation3 + $0x2e8] sm:$0xff]
      %v6717 = vld [vmem:[#allocation3 + $0x2f0] sm:$0xff]
      %v6718 = vld [vmem:[#allocation3 + $0x2f8] sm:$0xff]
      %v6719 = vld [vmem:[#allocation3 + $0x300] sm:$0xff]
      %v6720 = vld [vmem:[#allocation3 + $0x308] sm:$0xff]
      %v6721 = vld [vmem:[#allocation3 + $0x310] sm:$0xff]
      %v6722 = vld [vmem:[#allocation3 + $0x318] sm:$0xff]
      %v6723 = vld [vmem:[#allocation3 + $0x320] sm:$0xff]
      %v6724 = vld [vmem:[#allocation3 + $0x328] sm:$0xff]
      %v6725 = vld [vmem:[#allocation3 + $0x330] sm:$0xff]
      %v6726 = vld [vmem:[#allocation3 + $0x338] sm:$0xff]
      %v6727 = vld [vmem:[#allocation3 + $0x340] sm:$0xff]
      %v6728 = vld [vmem:[#allocation3 + $0x348] sm:$0xff]
      %v6729 = vld [vmem:[#allocation3 + $0x350] sm:$0xff]
      %v6730 = vld [vmem:[#allocation3 + $0x358] sm:$0xff]
      %v6731 = vpack.c.bf16 %v6627, %v6623
      %v6732 = vpack.c.bf16 %v6628, %v6624
      %v6733 = vpack.c.bf16 %v6629, %v6625
      %v6734 = vpack.c.bf16 %v6630, %v6626
      %v6735 = vpack.c.bf16 %v6635, %v6631
      %v6736 = vpack.c.bf16 %v6636, %v6632
      %v6737 = vpack.c.bf16 %v6637, %v6633
      %v6738 = vpack.c.bf16 %v6638, %v6634
      %v6739 = vpack.c.bf16 %v6643, %v6639
      %v6740 = vpack.c.bf16 %v6644, %v6640
      %v6741 = vpack.c.bf16 %v6645, %v6641
      %v6742 = vpack.c.bf16 %v6646, %v6642
      %v6743 = vpack.c.bf16 %v6651, %v6647
      %v6744 = vpack.c.bf16 %v6652, %v6648
      %v6745 = vpack.c.bf16 %v6653, %v6649
      %v6746 = vpack.c.bf16 %v6654, %v6650
      %v6747 = vpack.c.bf16 %v6659, %v6655
      %v6748 = vpack.c.bf16 %v6660, %v6656
      %v6749 = vpack.c.bf16 %v6661, %v6657
      %v6750 = vpack.c.bf16 %v6662, %v6658
      %v6751 = vpack.c.bf16 %v6667, %v6663
      %v6752 = vpack.c.bf16 %v6668, %v6664
      %v6753 = vpack.c.bf16 %v6669, %v6665
      %v6754 = vpack.c.bf16 %v6670, %v6666
      %v6755 = vpack.c.bf16 %v6675, %v6671
      %v6756 = vpack.c.bf16 %v6676, %v6672
      %v6757 = vpack.c.bf16 %v6677, %v6673
      %v6758 = vpack.c.bf16 %v6678, %v6674
      %v6759 = vpack.c.bf16 %v6683, %v6679
      %v6760 = vpack.c.bf16 %v6684, %v6680
      %v6761 = vpack.c.bf16 %v6685, %v6681
      %v6762 = vpack.c.bf16 %v6686, %v6682
      %v6763 = vpack.c.bf16 %v6691, %v6687
      %v6764 = vpack.c.bf16 %v6692, %v6688
      %v6765 = vpack.c.bf16 %v6693, %v6689
      %v6766 = vpack.c.bf16 %v6694, %v6690
      %v6767 = vpack.c.bf16 %v6699, %v6695
      %v6768 = vpack.c.bf16 %v6700, %v6696
      %v6769 = vpack.c.bf16 %v6701, %v6697
      %v6770 = vpack.c.bf16 %v6702, %v6698
      %v6771 = vpack.c.bf16 %v6707, %v6703
      %v6772 = vpack.c.bf16 %v6708, %v6704
      %v6773 = vpack.c.bf16 %v6709, %v6705
      %v6774 = vpack.c.bf16 %v6710, %v6706
      %v6775 = vpack.c.bf16 %v6715, %v6711
      %v6776 = vpack.c.bf16 %v6716, %v6712
      %v6777 = vpack.c.bf16 %v6717, %v6713
      %v6778 = vpack.c.bf16 %v6718, %v6714
      %v6779 = vpack.c.bf16 %v6723, %v6719
      %v6780 = vpack.c.bf16 %v6724, %v6720
      %v6781 = vpack.c.bf16 %v6725, %v6721
      %v6782 = vpack.c.bf16 %v6726, %v6722
      %v6783 = vpack.c.bf16 %v6727, %v6727
      %v6784 = vpack.c.bf16 %v6728, %v6728
      %v6785 = vpack.c.bf16 %v6729, %v6729
      %v6786 = vpack.c.bf16 %v6730, %v6730
      %v6787 = vld [vmem:[%s6] sm:$0xff]
      %v6788 = vld [vmem:[%s7] sm:$0xff]
      %6790 = vset.pattern.permute.xlu0 0
      %6791 = vperm.xlu0 %6790, %v6788
      %v6792 = vpop.permute.xlu0 %6791
      %v6795 = vunpack.c.l.b16 %v6787
      %v6796 = vunpack.c.h.b16 %v6787
      %v6797 = vpack.c.b16 %v6795, %v6795
      %v6798 = vpack.c.b16 %v6796, %v6796
      %v6801 = vsel %vm2474, %v6798, 0
      %v6804 = vsel %vm2478, %v6783, 0
      %v6807 = vsel %vm2478, %v6784, 0
      %v6810 = vsel %vm2478, %v6785, 0
      %v6813 = vsel %vm2478, %v6786, 0
      %6815 = vmatprep.subr.bf16.mxu0 %v6760
      %6816 = vmatpush1.bf16.msra.mxu0 %v6759
      %6817 = vmatprep.subr.bf16.mxu0 %v6756
      %6818 = vmatpush1.bf16.msra.mxu0 %v6755
      %6819 = vmatprep.subr.bf16.mxu0 %v6752
      %6820 = vmatpush1.bf16.msra.mxu0 %v6751
      %6821 = vmatprep.subr.bf16.mxu0 %v6748
      %6822 = vmatpush1.bf16.msra.mxu0 %v6747
      %6823 = vmatprep.subr.bf16.mxu0 %v6744
      %6824 = vmatpush1.bf16.msra.mxu0 %v6743
      %6825 = vmatprep.subr.bf16.mxu0 %v6740
      %6826 = vmatpush1.bf16.msra.mxu0 %v6739
      %6827 = vmatprep.subr.bf16.mxu0 %v6736
      %6828 = vmatpush1.bf16.msra.mxu0 %v6735
      %6829 = vmatprep.subr.bf16.mxu0 %v6732
      %6830 = vmatpush1.bf16.msra.mxu0 %v6731
      %6831 = vmatprep.subr.bf16.mxu0 0
      %6832 = vmatpush2.bf16.msra.mxu0 0
      %6833 = vmatprep.subr.bf16.mxu0 0
      %6834 = vmatpush2.bf16.msra.mxu0 0
      %6835 = vmatprep.subr.bf16.mxu0 %v6807
      %6836 = vmatpush2.bf16.msra.mxu0 %v6804
      %6837 = vmatprep.subr.bf16.mxu0 %v6780
      %6838 = vmatpush2.bf16.msra.mxu0 %v6779
      %6839 = vmatprep.subr.bf16.mxu0 %v6776
      %6840 = vmatpush2.bf16.msra.mxu0 %v6775
      %6841 = vmatprep.subr.bf16.mxu0 %v6772
      %6842 = vmatpush2.bf16.msra.mxu0 %v6771
      %6843 = vmatprep.subr.bf16.mxu0 %v6768
      %6844 = vmatpush2.bf16.msra.mxu0 %v6767
      %6845 = vmatprep.subr.bf16.mxu0 %v6764
      %6846 = vmatpush2.bf16.msra.mxu0 %v6763
      %6847 = vmatprep.mubr.bf16.mxu0 %v6801
      %6848 = vmatmul.mubr.bf16.gmra.mxu0 %v6797
      %v6849 = vpop.f32.mrf.mxu0
      %v6850 = vadd.f32 %v6792, %v6849
      %v6851 = vpop.f32.mrf.mxu0
      %v6852 = vadd.f32 %v6792, %v6851
      %v6853 = vpop.f32.mrf.mxu0
      %v6854 = vpop.f32.mrf.mxu0
      %6855 = vdwg.mxu0
      %6856 = vmatprep.subr.bf16.mxu0 %v6762
      %6857 = vmatpush1.bf16.msra.mxu0 %v6761
      %6858 = vmatprep.subr.bf16.mxu0 %v6758
      %6859 = vmatpush1.bf16.msra.mxu0 %v6757
      %6860 = vmatprep.subr.bf16.mxu0 %v6754
      %6861 = vmatpush1.bf16.msra.mxu0 %v6753
      %6862 = vmatprep.subr.bf16.mxu0 %v6750
      %6863 = vmatpush1.bf16.msra.mxu0 %v6749
      %6864 = vmatprep.subr.bf16.mxu0 %v6746
      %6865 = vmatpush1.bf16.msra.mxu0 %v6745
      %6866 = vmatprep.subr.bf16.mxu0 %v6742
      %6867 = vmatpush1.bf16.msra.mxu0 %v6741
      %6868 = vmatprep.subr.bf16.mxu0 %v6738
      %6869 = vmatpush1.bf16.msra.mxu0 %v6737
      %6870 = vmatprep.subr.bf16.mxu0 %v6734
      %6871 = vmatpush1.bf16.msra.mxu0 %v6733
      %6872 = vmatprep.subr.bf16.mxu0 0
      %6873 = vmatpush2.bf16.msra.mxu0 0
      %6874 = vmatprep.subr.bf16.mxu0 0
      %6875 = vmatpush2.bf16.msra.mxu0 0
      %6876 = vmatprep.subr.bf16.mxu0 %v6813
      %6877 = vmatpush2.bf16.msra.mxu0 %v6810
      %6878 = vmatprep.subr.bf16.mxu0 %v6782
      %6879 = vmatpush2.bf16.msra.mxu0 %v6781
      %6880 = vmatprep.subr.bf16.mxu0 %v6778
      %6881 = vmatpush2.bf16.msra.mxu0 %v6777
      %6882 = vmatprep.subr.bf16.mxu0 %v6774
      %6883 = vmatpush2.bf16.msra.mxu0 %v6773
      %6884 = vmatprep.subr.bf16.mxu0 %v6770
      %6885 = vmatpush2.bf16.msra.mxu0 %v6769
      %6886 = vmatprep.subr.bf16.mxu0 %v6766
      %6887 = vmatpush2.bf16.msra.mxu0 %v6765
      %6888 = vmatprep.mubr.bf16.mxu0 %v6801
      %6889 = vmatmul.mubr.bf16.gmra.mxu0 %v6797
      %v6890 = vpop.f32.mrf.mxu0
      %v6891 = vadd.f32 %v6792, %v6890
      %v6892 = vpop.f32.mrf.mxu0
      %v6893 = vadd.f32 %v6792, %v6892
      %v6894 = vpop.f32.mrf.mxu0
      %v6895 = vpop.f32.mrf.mxu0
      %6896 = vdwg.mxu0
      %v6897 = vadd.f32 %v2526, %v6850
      %v6898 = vadd.f32 %v2528, %v6852
      %v6899 = vadd.f32 %v2567, %v6891
      %v6900 = vadd.f32 %v2569, %v6893
      %v6901 = vadd.f32 %v6897, %v6898
      %v6902 = vadd.f32 %v6901, %v6899
      %v6903 = vadd.f32 %v6902, %v6900
      %6904 = vadd.xlane.f32.xlu0 %v6903
      %v6905 = vpop.xlane.xlu0 %6904
      %v6906 = vmul.f32 %v6905, 0.001953125
      %v6907 = vsub.f32 %v6897, %v6906
      %v6908 = vsub.f32 %v6898, %v6906
      %v6909 = vsub.f32 %v6899, %v6906
      %v6910 = vsub.f32 %v6900, %v6906
      %v6911 = vmul.f32 %v6907, %v6907
      %v6912 = vmul.f32 %v6908, %v6908
      %v6913 = vmul.f32 %v6909, %v6909
      %v6914 = vmul.f32 %v6910, %v6910
      %v6915 = vadd.f32 %v6911, %v6912
      %v6916 = vadd.f32 %v6915, %v6913
      %v6917 = vadd.f32 %v6916, %v6914
      %6918 = vadd.xlane.f32.xlu0 %v6917
      %v6919 = vpop.xlane.xlu0 %6918
      %v6920 = vmul.f32 %v6919, 0.001953125
      %v6921 = vadd.f32 %v6920, 1e-05
      %v6922 = vrsqrt.pop %v6921
      %v6923 = vmul.f32 %v6907, %v6922
      %v6924 = vmul.f32 %v6908, %v6922
      %v6925 = vmul.f32 %v6909, %v6922
      %v6926 = vmul.f32 %v6910, %v6922
      %v6927 = vmax.f32 %v6923, 0.0
      %v6928 = vmax.f32 %v6924, 0.0
      %v6929 = vmax.f32 %v6925, 0.0
      %v6930 = vmax.f32 %v6926, 0.0
      %6931 = vst [vmem:[#allocation2 + $0x8] sm:$0xff] %v6927
      %6932 = vst [vmem:[#allocation2 + $0x10] sm:$0xff] %v6928
      %6933 = vst [vmem:[#allocation2 + $0x18] sm:$0xff] %v6929
      %6934 = vst [vmem:[#allocation2 + $0x20] sm:$0xff] %v6930
      %v6935 = vld [vmem:[#allocation2] sm:$0xff]
      %v6936 = vld [vmem:[#allocation2 + $0x8] sm:$0xff]
      %v6937 = vld [vmem:[#allocation2 + $0x10] sm:$0xff]
      %v6938 = vld [vmem:[#allocation2 + $0x18] sm:$0xff]
      %v6939 = vld [vmem:[#allocation2 + $0x20] sm:$0xff]
      %v6940 = vld [vmem:[%s1] ss:$8 sm:$0xf]
      %v6942 = vlaneseq
      %v6943 = vshrl.u32 %v6942, 7
      %v6944 = vsub.s32 0, %v6943
      %v6945 = vrot.slane %v6940, %v6944
      %v6946 = vlaneseq
      %v6947 = vshrl.u32 %v6946, 7
      %v6948 = vsub.s32 1, %v6947
      %v6949 = vrot.slane %v6940, %v6948
      %v6950 = vlaneseq
      %v6951 = vshrl.u32 %v6950, 7
      %v6952 = vsub.s32 2, %v6951
      %v6953 = vrot.slane %v6940, %v6952
      %v6954 = vlaneseq
      %v6955 = vshrl.u32 %v6954, 7
      %v6956 = vsub.s32 3, %v6955
      %v6957 = vrot.slane %v6940, %v6956
      %6958 = vrot.lane.b32.xlu0 %v6945, 55
      %v6959 = vpop.permute.xlu0 %6958
      %6960 = vrot.lane.b32.xlu0 %v6949, 55
      %v6961 = vpop.permute.xlu0 %6960
      %6962 = vrot.lane.b32.xlu0 %v6953, 55
      %v6963 = vpop.permute.xlu0 %6962
      %6964 = vrot.lane.b32.xlu0 %v6957, 55
      %v6965 = vpop.permute.xlu0 %6964
      %v6966 = vsel %vm432, %v6959, %v6961
      %v6967 = vsel %vm432, %v6961, %v6963
      %v6968 = vsel %vm432, %v6963, %v6965
      %v6974 = vmul.f32 %v6935, %v6959
      %v6975 = vmul.f32 %v6936, %v6966
      %v6976 = vmul.f32 %v6937, %v6967
      %v6977 = vmul.f32 %v6938, %v6968
      %v6978 = vmul.f32 %v6939, %v6965
      %6984 = vrot.lane.b32.xlu0 %v6974, 73
      %v6985 = vpop.permute.xlu0 %6984
      %6986 = vrot.lane.b32.xlu0 %v6975, 73
      %v6987 = vpop.permute.xlu0 %6986
      %6988 = vrot.lane.b32.xlu0 %v6976, 73
      %v6989 = vpop.permute.xlu0 %6988
      %6990 = vrot.lane.b32.xlu0 %v6977, 73
      %v6991 = vpop.permute.xlu0 %6990
      %6992 = vrot.lane.b32.xlu0 %v6978, 73
      %v6993 = vpop.permute.xlu0 %6992
      %v6994 = vsel %vm461, %v6985, %v6987
      %v6995 = vsel %vm461, %v6987, %v6989
      %v6996 = vsel %vm461, %v6989, %v6991
      %v6997 = vsel %vm461, %v6991, %v6993
      %7002 = vst [vmem:[#allocation3] sm:$0xff] %v6994
      %7003 = vst [vmem:[#allocation3 + $0x8] sm:$0xff] %v6995
      %7004 = vst [vmem:[#allocation3 + $0x10] sm:$0xff] %v6996
      %7005 = vst [vmem:[#allocation3 + $0x18] sm:$0xff] %v6997
      %v7006 = vld [vmem:[#allocation2] sm:$0xff]
      %v7007 = vld [vmem:[#allocation2 + $0x8] sm:$0xff]
      %v7008 = vld [vmem:[#allocation2 + $0x10] sm:$0xff]
      %v7009 = vld [vmem:[#allocation2 + $0x18] sm:$0xff]
      %v7010 = vld [vmem:[#allocation2 + $0x20] sm:$0xff]
      %v7011 = vld [vmem:[%s479] ss:$8 sm:$0xf]
      %v7013 = vlaneseq
      %v7014 = vshrl.u32 %v7013, 7
      %v7015 = vsub.s32 0, %v7014
      %v7016 = vrot.slane %v7011, %v7015
      %v7017 = vlaneseq
      %v7018 = vshrl.u32 %v7017, 7
      %v7019 = vsub.s32 1, %v7018
      %v7020 = vrot.slane %v7011, %v7019
      %v7021 = vlaneseq
      %v7022 = vshrl.u32 %v7021, 7
      %v7023 = vsub.s32 2, %v7022
      %v7024 = vrot.slane %v7011, %v7023
      %v7025 = vlaneseq
      %v7026 = vshrl.u32 %v7025, 7
      %v7027 = vsub.s32 3, %v7026
      %v7028 = vrot.slane %v7011, %v7027
      %7029 = vrot.lane.b32.xlu0 %v7016, 56
      %v7030 = vpop.permute.xlu0 %7029
      %7031 = vrot.lane.b32.xlu0 %v7020, 56
      %v7032 = vpop.permute.xlu0 %7031
      %7033 = vrot.lane.b32.xlu0 %v7024, 56
      %v7034 = vpop.permute.xlu0 %7033
      %7035 = vrot.lane.b32.xlu0 %v7028, 56
      %v7036 = vpop.permute.xlu0 %7035
      %v7037 = vsel %vm506, %v7030, %v7032
      %v7038 = vsel %vm506, %v7032, %v7034
      %v7039 = vsel %vm506, %v7034, %v7036
      %v7045 = vmul.f32 %v7006, %v7030
      %v7046 = vmul.f32 %v7007, %v7037
      %v7047 = vmul.f32 %v7008, %v7038
      %v7048 = vmul.f32 %v7009, %v7039
      %v7049 = vmul.f32 %v7010, %v7036
      %7055 = vrot.lane.b32.xlu0 %v7045, 72
      %v7056 = vpop.permute.xlu0 %7055
      %7057 = vrot.lane.b32.xlu0 %v7046, 72
      %v7058 = vpop.permute.xlu0 %7057
      %7059 = vrot.lane.b32.xlu0 %v7047, 72
      %v7060 = vpop.permute.xlu0 %7059
      %7061 = vrot.lane.b32.xlu0 %v7048, 72
      %v7062 = vpop.permute.xlu0 %7061
      %7063 = vrot.lane.b32.xlu0 %v7049, 72
      %v7064 = vpop.permute.xlu0 %7063
      %v7065 = vsel %vm535, %v7056, %v7058
      %v7066 = vsel %vm535, %v7058, %v7060
      %v7067 = vsel %vm535, %v7060, %v7062
      %v7068 = vsel %vm535, %v7062, %v7064
      %7073 = vst [vmem:[#allocation3 + $0x20] sm:$0xff] %v7065
      %7074 = vst [vmem:[#allocation3 + $0x28] sm:$0xff] %v7066
      %7075 = vst [vmem:[#allocation3 + $0x30] sm:$0xff] %v7067
      %7076 = vst [vmem:[#allocation3 + $0x38] sm:$0xff] %v7068
      %v7077 = vld [vmem:[#allocation2] sm:$0xff]
      %v7078 = vld [vmem:[#allocation2 + $0x8] sm:$0xff]
      %v7079 = vld [vmem:[#allocation2 + $0x10] sm:$0xff]
      %v7080 = vld [vmem:[#allocation2 + $0x18] sm:$0xff]
      %v7081 = vld [vmem:[#allocation2 + $0x20] sm:$0xff]
      %v7082 = vld [vmem:[%s553] ss:$8 sm:$0xf]
      %v7084 = vlaneseq
      %v7085 = vshrl.u32 %v7084, 7
      %v7086 = vsub.s32 0, %v7085
      %v7087 = vrot.slane %v7082, %v7086
      %v7088 = vlaneseq
      %v7089 = vshrl.u32 %v7088, 7
      %v7090 = vsub.s32 1, %v7089
      %v7091 = vrot.slane %v7082, %v7090
      %v7092 = vlaneseq
      %v7093 = vshrl.u32 %v7092, 7
      %v7094 = vsub.s32 2, %v7093
      %v7095 = vrot.slane %v7082, %v7094
      %v7096 = vlaneseq
      %v7097 = vshrl.u32 %v7096, 7
      %v7098 = vsub.s32 3, %v7097
      %v7099 = vrot.slane %v7082, %v7098
      %7100 = vrot.lane.b32.xlu0 %v7087, 57
      %v7101 = vpop.permute.xlu0 %7100
      %7102 = vrot.lane.b32.xlu0 %v7091, 57
      %v7103 = vpop.permute.xlu0 %7102
      %7104 = vrot.lane.b32.xlu0 %v7095, 57
      %v7105 = vpop.permute.xlu0 %7104
      %7106 = vrot.lane.b32.xlu0 %v7099, 57
      %v7107 = vpop.permute.xlu0 %7106
      %v7108 = vsel %vm580, %v7101, %v7103
      %v7109 = vsel %vm580, %v7103, %v7105
      %v7110 = vsel %vm580, %v7105, %v7107
      %v7116 = vmul.f32 %v7077, %v7101
      %v7117 = vmul.f32 %v7078, %v7108
      %v7118 = vmul.f32 %v7079, %v7109
      %v7119 = vmul.f32 %v7080, %v7110
      %v7120 = vmul.f32 %v7081, %v7107
      %7126 = vrot.lane.b32.xlu0 %v7116, 71
      %v7127 = vpop.permute.xlu0 %7126
      %7128 = vrot.lane.b32.xlu0 %v7117, 71
      %v7129 = vpop.permute.xlu0 %7128
      %7130 = vrot.lane.b32.xlu0 %v7118, 71
      %v7131 = vpop.permute.xlu0 %7130
      %7132 = vrot.lane.b32.xlu0 %v7119, 71
      %v7133 = vpop.permute.xlu0 %7132
      %7134 = vrot.lane.b32.xlu0 %v7120, 71
      %v7135 = vpop.permute.xlu0 %7134
      %v7136 = vsel %vm609, %v7127, %v7129
      %v7137 = vsel %vm609, %v7129, %v7131
      %v7138 = vsel %vm609, %v7131, %v7133
      %v7139 = vsel %vm609, %v7133, %v7135
      %7144 = vst [vmem:[#allocation3 + $0x40] sm:$0xff] %v7136
      %7145 = vst [vmem:[#allocation3 + $0x48] sm:$0xff] %v7137
      %7146 = vst [vmem:[#allocation3 + $0x50] sm:$0xff] %v7138
      %7147 = vst [vmem:[#allocation3 + $0x58] sm:$0xff] %v7139
      %v7148 = vld [vmem:[#allocation2] sm:$0xff]
      %v7149 = vld [vmem:[#allocation2 + $0x8] sm:$0xff]
      %v7150 = vld [vmem:[#allocation2 + $0x10] sm:$0xff]
      %v7151 = vld [vmem:[#allocation2 + $0x18] sm:$0xff]
      %v7152 = vld [vmem:[#allocation2 + $0x20] sm:$0xff]
      %v7153 = vld [vmem:[%s627] ss:$8 sm:$0xf]
      %v7155 = vlaneseq
      %v7156 = vshrl.u32 %v7155, 7
      %v7157 = vsub.s32 0, %v7156
      %v7158 = vrot.slane %v7153, %v7157
      %v7159 = vlaneseq
      %v7160 = vshrl.u32 %v7159, 7
      %v7161 = vsub.s32 1, %v7160
      %v7162 = vrot.slane %v7153, %v7161
      %v7163 = vlaneseq
      %v7164 = vshrl.u32 %v7163, 7
      %v7165 = vsub.s32 2, %v7164
      %v7166 = vrot.slane %v7153, %v7165
      %v7167 = vlaneseq
      %v7168 = vshrl.u32 %v7167, 7
      %v7169 = vsub.s32 3, %v7168
      %v7170 = vrot.slane %v7153, %v7169
      %7171 = vrot.lane.b32.xlu0 %v7158, 63
      %v7172 = vpop.permute.xlu0 %7171
      %7173 = vrot.lane.b32.xlu0 %v7162, 63
      %v7174 = vpop.permute.xlu0 %7173
      %7175 = vrot.lane.b32.xlu0 %v7166, 63
      %v7176 = vpop.permute.xlu0 %7175
      %7177 = vrot.lane.b32.xlu0 %v7170, 63
      %v7178 = vpop.permute.xlu0 %7177
      %v7179 = vsel %vm654, %v7172, %v7174
      %v7180 = vsel %vm654, %v7174, %v7176
      %v7181 = vsel %vm654, %v7176, %v7178
      %v7187 = vmul.f32 %v7148, %v7172
      %v7188 = vmul.f32 %v7149, %v7179
      %v7189 = vmul.f32 %v7150, %v7180
      %v7190 = vmul.f32 %v7151, %v7181
      %v7191 = vmul.f32 %v7152, %v7178
      %7197 = vrot.lane.b32.xlu0 %v7187, 65
      %v7198 = vpop.permute.xlu0 %7197
      %7199 = vrot.lane.b32.xlu0 %v7188, 65
      %v7200 = vpop.permute.xlu0 %7199
      %7201 = vrot.lane.b32.xlu0 %v7189, 65
      %v7202 = vpop.permute.xlu0 %7201
      %7203 = vrot.lane.b32.xlu0 %v7190, 65
      %v7204 = vpop.permute.xlu0 %7203
      %7205 = vrot.lane.b32.xlu0 %v7191, 65
      %v7206 = vpop.permute.xlu0 %7205
      %v7207 = vsel %vm683, %v7198, %v7200
      %v7208 = vsel %vm683, %v7200, %v7202
      %v7209 = vsel %vm683, %v7202, %v7204
      %v7210 = vsel %vm683, %v7204, %v7206
      %7215 = vst [vmem:[#allocation3 + $0x60] sm:$0xff] %v7207
      %7216 = vst [vmem:[#allocation3 + $0x68] sm:$0xff] %v7208
      %7217 = vst [vmem:[#allocation3 + $0x70] sm:$0xff] %v7209
      %7218 = vst [vmem:[#allocation3 + $0x78] sm:$0xff] %v7210
      %v7219 = vld [vmem:[#allocation2] sm:$0xff]
      %v7220 = vld [vmem:[#allocation2 + $0x8] sm:$0xff]
      %v7221 = vld [vmem:[#allocation2 + $0x10] sm:$0xff]
      %v7222 = vld [vmem:[#allocation2 + $0x18] sm:$0xff]
      %v7223 = vld [vmem:[#allocation2 + $0x20] sm:$0xff]
      %v7224 = vld [vmem:[%s701] ss:$8 sm:$0xf]
      %v7226 = vlaneseq
      %v7227 = vshrl.u32 %v7226, 7
      %v7228 = vsub.s32 0, %v7227
      %v7229 = vrot.slane %v7224, %v7228
      %v7230 = vlaneseq
      %v7231 = vshrl.u32 %v7230, 7
      %v7232 = vsub.s32 1, %v7231
      %v7233 = vrot.slane %v7224, %v7232
      %v7234 = vlaneseq
      %v7235 = vshrl.u32 %v7234, 7
      %v7236 = vsub.s32 2, %v7235
      %v7237 = vrot.slane %v7224, %v7236
      %v7238 = vlaneseq
      %v7239 = vshrl.u32 %v7238, 7
      %v7240 = vsub.s32 3, %v7239
      %v7241 = vrot.slane %v7224, %v7240
      %7242 = vrot.lane.b32.xlu0 %v7229, 64
      %v7243 = vpop.permute.xlu0 %7242
      %7244 = vrot.lane.b32.xlu0 %v7233, 64
      %v7245 = vpop.permute.xlu0 %7244
      %7246 = vrot.lane.b32.xlu0 %v7237, 64
      %v7247 = vpop.permute.xlu0 %7246
      %7248 = vrot.lane.b32.xlu0 %v7241, 64
      %v7249 = vpop.permute.xlu0 %7248
      %v7250 = vsel %vm728, %v7243, %v7245
      %v7251 = vsel %vm728, %v7245, %v7247
      %v7252 = vsel %vm728, %v7247, %v7249
      %v7258 = vmul.f32 %v7219, %v7243
      %v7259 = vmul.f32 %v7220, %v7250
      %v7260 = vmul.f32 %v7221, %v7251
      %v7261 = vmul.f32 %v7222, %v7252
      %v7262 = vmul.f32 %v7223, %v7249
      %7268 = vrot.lane.b32.xlu0 %v7258, 64
      %v7269 = vpop.permute.xlu0 %7268
      %7270 = vrot.lane.b32.xlu0 %v7259, 64
      %v7271 = vpop.permute.xlu0 %7270
      %7272 = vrot.lane.b32.xlu0 %v7260, 64
      %v7273 = vpop.permute.xlu0 %7272
      %7274 = vrot.lane.b32.xlu0 %v7261, 64
      %v7275 = vpop.permute.xlu0 %7274
      %7276 = vrot.lane.b32.xlu0 %v7262, 64
      %v7277 = vpop.permute.xlu0 %7276
      %v7278 = vsel %vm728, %v7269, %v7271
      %v7279 = vsel %vm728, %v7271, %v7273
      %v7280 = vsel %vm728, %v7273, %v7275
      %v7281 = vsel %vm728, %v7275, %v7277
      %7286 = vst [vmem:[#allocation3 + $0x80] sm:$0xff] %v7278
      %7287 = vst [vmem:[#allocation3 + $0x88] sm:$0xff] %v7279
      %7288 = vst [vmem:[#allocation3 + $0x90] sm:$0xff] %v7280
      %7289 = vst [vmem:[#allocation3 + $0x98] sm:$0xff] %v7281
      %v7290 = vld [vmem:[#allocation2] sm:$0xff]
      %v7291 = vld [vmem:[#allocation2 + $0x8] sm:$0xff]
      %v7292 = vld [vmem:[#allocation2 + $0x10] sm:$0xff]
      %v7293 = vld [vmem:[#allocation2 + $0x18] sm:$0xff]
      %v7294 = vld [vmem:[#allocation2 + $0x20] sm:$0xff]
      %v7295 = vld [vmem:[%s774] ss:$8 sm:$0xf]
      %v7297 = vlaneseq
      %v7298 = vshrl.u32 %v7297, 7
      %v7299 = vsub.s32 0, %v7298
      %v7300 = vrot.slane %v7295, %v7299
      %v7301 = vlaneseq
      %v7302 = vshrl.u32 %v7301, 7
      %v7303 = vsub.s32 1, %v7302
      %v7304 = vrot.slane %v7295, %v7303
      %v7305 = vlaneseq
      %v7306 = vshrl.u32 %v7305, 7
      %v7307 = vsub.s32 2, %v7306
      %v7308 = vrot.slane %v7295, %v7307
      %v7309 = vlaneseq
      %v7310 = vshrl.u32 %v7309, 7
      %v7311 = vsub.s32 3, %v7310
      %v7312 = vrot.slane %v7295, %v7311
      %7313 = vrot.lane.b32.xlu0 %v7300, 65
      %v7314 = vpop.permute.xlu0 %7313
      %7315 = vrot.lane.b32.xlu0 %v7304, 65
      %v7316 = vpop.permute.xlu0 %7315
      %7317 = vrot.lane.b32.xlu0 %v7308, 65
      %v7318 = vpop.permute.xlu0 %7317
      %7319 = vrot.lane.b32.xlu0 %v7312, 65
      %v7320 = vpop.permute.xlu0 %7319
      %v7321 = vsel %vm683, %v7314, %v7316
      %v7322 = vsel %vm683, %v7316, %v7318
      %v7323 = vsel %vm683, %v7318, %v7320
      %v7329 = vmul.f32 %v7290, %v7314
      %v7330 = vmul.f32 %v7291, %v7321
      %v7331 = vmul.f32 %v7292, %v7322
      %v7332 = vmul.f32 %v7293, %v7323
      %v7333 = vmul.f32 %v7294, %v7320
      %7339 = vrot.lane.b32.xlu0 %v7329, 63
      %v7340 = vpop.permute.xlu0 %7339
      %7341 = vrot.lane.b32.xlu0 %v7330, 63
      %v7342 = vpop.permute.xlu0 %7341
      %7343 = vrot.lane.b32.xlu0 %v7331, 63
      %v7344 = vpop.permute.xlu0 %7343
      %7345 = vrot.lane.b32.xlu0 %v7332, 63
      %v7346 = vpop.permute.xlu0 %7345
      %7347 = vrot.lane.b32.xlu0 %v7333, 63
      %v7348 = vpop.permute.xlu0 %7347
      %v7349 = vsel %vm654, %v7340, %v7342
      %v7350 = vsel %vm654, %v7342, %v7344
      %v7351 = vsel %vm654, %v7344, %v7346
      %v7352 = vsel %vm654, %v7346, %v7348
      %7357 = vst [vmem:[#allocation3 + $0xa0] sm:$0xff] %v7349
      %7358 = vst [vmem:[#allocation3 + $0xa8] sm:$0xff] %v7350
      %7359 = vst [vmem:[#allocation3 + $0xb0] sm:$0xff] %v7351
      %7360 = vst [vmem:[#allocation3 + $0xb8] sm:$0xff] %v7352
      %v7361 = vld [vmem:[#allocation2] sm:$0xff]
      %v7362 = vld [vmem:[#allocation2 + $0x8] sm:$0xff]
      %v7363 = vld [vmem:[#allocation2 + $0x10] sm:$0xff]
      %v7364 = vld [vmem:[#allocation2 + $0x18] sm:$0xff]
      %v7365 = vld [vmem:[#allocation2 + $0x20] sm:$0xff]
      %v7366 = vld [vmem:[%s846] ss:$8 sm:$0xf]
      %v7368 = vlaneseq
      %v7369 = vshrl.u32 %v7368, 7
      %v7370 = vsub.s32 0, %v7369
      %v7371 = vrot.slane %v7366, %v7370
      %v7372 = vlaneseq
      %v7373 = vshrl.u32 %v7372, 7
      %v7374 = vsub.s32 1, %v7373
      %v7375 = vrot.slane %v7366, %v7374
      %v7376 = vlaneseq
      %v7377 = vshrl.u32 %v7376, 7
      %v7378 = vsub.s32 2, %v7377
      %v7379 = vrot.slane %v7366, %v7378
      %v7380 = vlaneseq
      %v7381 = vshrl.u32 %v7380, 7
      %v7382 = vsub.s32 3, %v7381
      %v7383 = vrot.slane %v7366, %v7382
      %7384 = vrot.lane.b32.xlu0 %v7371, 71
      %v7385 = vpop.permute.xlu0 %7384
      %7386 = vrot.lane.b32.xlu0 %v7375, 71
      %v7387 = vpop.permute.xlu0 %7386
      %7388 = vrot.lane.b32.xlu0 %v7379, 71
      %v7389 = vpop.permute.xlu0 %7388
      %7390 = vrot.lane.b32.xlu0 %v7383, 71
      %v7391 = vpop.permute.xlu0 %7390
      %v7392 = vsel %vm609, %v7385, %v7387
      %v7393 = vsel %vm609, %v7387, %v7389
      %v7394 = vsel %vm609, %v7389, %v7391
      %v7400 = vmul.f32 %v7361, %v7385
      %v7401 = vmul.f32 %v7362, %v7392
      %v7402 = vmul.f32 %v7363, %v7393
      %v7403 = vmul.f32 %v7364, %v7394
      %v7404 = vmul.f32 %v7365, %v7391
      %7410 = vrot.lane.b32.xlu0 %v7400, 57
      %v7411 = vpop.permute.xlu0 %7410
      %7412 = vrot.lane.b32.xlu0 %v7401, 57
      %v7413 = vpop.permute.xlu0 %7412
      %7414 = vrot.lane.b32.xlu0 %v7402, 57
      %v7415 = vpop.permute.xlu0 %7414
      %7416 = vrot.lane.b32.xlu0 %v7403, 57
      %v7417 = vpop.permute.xlu0 %7416
      %7418 = vrot.lane.b32.xlu0 %v7404, 57
      %v7419 = vpop.permute.xlu0 %7418
      %v7420 = vsel %vm580, %v7411, %v7413
      %v7421 = vsel %vm580, %v7413, %v7415
      %v7422 = vsel %vm580, %v7415, %v7417
      %v7423 = vsel %vm580, %v7417, %v7419
      %7428 = vst [vmem:[#allocation3 + $0xc0] sm:$0xff] %v7420
      %7429 = vst [vmem:[#allocation3 + $0xc8] sm:$0xff] %v7421
      %7430 = vst [vmem:[#allocation3 + $0xd0] sm:$0xff] %v7422
      %7431 = vst [vmem:[#allocation3 + $0xd8] sm:$0xff] %v7423
      %v7432 = vld [vmem:[#allocation2] sm:$0xff]
      %v7433 = vld [vmem:[#allocation2 + $0x8] sm:$0xff]
      %v7434 = vld [vmem:[#allocation2 + $0x10] sm:$0xff]
      %v7435 = vld [vmem:[#allocation2 + $0x18] sm:$0xff]
      %v7436 = vld [vmem:[#allocation2 + $0x20] sm:$0xff]
      %v7437 = vld [vmem:[%s918] ss:$8 sm:$0xf]
      %v7439 = vlaneseq
      %v7440 = vshrl.u32 %v7439, 7
      %v7441 = vsub.s32 0, %v7440
      %v7442 = vrot.slane %v7437, %v7441
      %v7443 = vlaneseq
      %v7444 = vshrl.u32 %v7443, 7
      %v7445 = vsub.s32 1, %v7444
      %v7446 = vrot.slane %v7437, %v7445
      %v7447 = vlaneseq
      %v7448 = vshrl.u32 %v7447, 7
      %v7449 = vsub.s32 2, %v7448
      %v7450 = vrot.slane %v7437, %v7449
      %v7451 = vlaneseq
      %v7452 = vshrl.u32 %v7451, 7
      %v7453 = vsub.s32 3, %v7452
      %v7454 = vrot.slane %v7437, %v7453
      %7455 = vrot.lane.b32.xlu0 %v7442, 72
      %v7456 = vpop.permute.xlu0 %7455
      %7457 = vrot.lane.b32.xlu0 %v7446, 72
      %v7458 = vpop.permute.xlu0 %7457
      %7459 = vrot.lane.b32.xlu0 %v7450, 72
      %v7460 = vpop.permute.xlu0 %7459
      %7461 = vrot.lane.b32.xlu0 %v7454, 72
      %v7462 = vpop.permute.xlu0 %7461
      %v7463 = vsel %vm535, %v7456, %v7458
      %v7464 = vsel %vm535, %v7458, %v7460
      %v7465 = vsel %vm535, %v7460, %v7462
      %v7471 = vmul.f32 %v7432, %v7456
      %v7472 = vmul.f32 %v7433, %v7463
      %v7473 = vmul.f32 %v7434, %v7464
      %v7474 = vmul.f32 %v7435, %v7465
      %v7475 = vmul.f32 %v7436, %v7462
      %7481 = vrot.lane.b32.xlu0 %v7471, 56
      %v7482 = vpop.permute.xlu0 %7481
      %7483 = vrot.lane.b32.xlu0 %v7472, 56
      %v7484 = vpop.permute.xlu0 %7483
      %7485 = vrot.lane.b32.xlu0 %v7473, 56
      %v7486 = vpop.permute.xlu0 %7485
      %7487 = vrot.lane.b32.xlu0 %v7474, 56
      %v7488 = vpop.permute.xlu0 %7487
      %7489 = vrot.lane.b32.xlu0 %v7475, 56
      %v7490 = vpop.permute.xlu0 %7489
      %v7491 = vsel %vm506, %v7482, %v7484
      %v7492 = vsel %vm506, %v7484, %v7486
      %v7493 = vsel %vm506, %v7486, %v7488
      %v7494 = vsel %vm506, %v7488, %v7490
      %7499 = vst [vmem:[#allocation3 + $0xe0] sm:$0xff] %v7491
      %7500 = vst [vmem:[#allocation3 + $0xe8] sm:$0xff] %v7492
      %7501 = vst [vmem:[#allocation3 + $0xf0] sm:$0xff] %v7493
      %7502 = vst [vmem:[#allocation3 + $0xf8] sm:$0xff] %v7494
      %v7503 = vld [vmem:[#allocation2] sm:$0xff]
      %v7504 = vld [vmem:[#allocation2 + $0x8] sm:$0xff]
      %v7505 = vld [vmem:[#allocation2 + $0x10] sm:$0xff]
      %v7506 = vld [vmem:[#allocation2 + $0x18] sm:$0xff]
      %v7507 = vld [vmem:[#allocation2 + $0x20] sm:$0xff]
      %v7508 = vld [vmem:[%s990] ss:$8 sm:$0xf]
      %v7510 = vlaneseq
      %v7511 = vshrl.u32 %v7510, 7
      %v7512 = vsub.s32 0, %v7511
      %v7513 = vrot.slane %v7508, %v7512
      %v7514 = vlaneseq
      %v7515 = vshrl.u32 %v7514, 7
      %v7516 = vsub.s32 1, %v7515
      %v7517 = vrot.slane %v7508, %v7516
      %v7518 = vlaneseq
      %v7519 = vshrl.u32 %v7518, 7
      %v7520 = vsub.s32 2, %v7519
      %v7521 = vrot.slane %v7508, %v7520
      %v7522 = vlaneseq
      %v7523 = vshrl.u32 %v7522, 7
      %v7524 = vsub.s32 3, %v7523
      %v7525 = vrot.slane %v7508, %v7524
      %7526 = vrot.lane.b32.xlu0 %v7513, 73
      %v7527 = vpop.permute.xlu0 %7526
      %7528 = vrot.lane.b32.xlu0 %v7517, 73
      %v7529 = vpop.permute.xlu0 %7528
      %7530 = vrot.lane.b32.xlu0 %v7521, 73
      %v7531 = vpop.permute.xlu0 %7530
      %7532 = vrot.lane.b32.xlu0 %v7525, 73
      %v7533 = vpop.permute.xlu0 %7532
      %v7534 = vsel %vm461, %v7527, %v7529
      %v7535 = vsel %vm461, %v7529, %v7531
      %v7536 = vsel %vm461, %v7531, %v7533
      %v7542 = vmul.f32 %v7503, %v7527
      %v7543 = vmul.f32 %v7504, %v7534
      %v7544 = vmul.f32 %v7505, %v7535
      %v7545 = vmul.f32 %v7506, %v7536
      %v7546 = vmul.f32 %v7507, %v7533
      %7552 = vrot.lane.b32.xlu0 %v7542, 55
      %v7553 = vpop.permute.xlu0 %7552
      %7554 = vrot.lane.b32.xlu0 %v7543, 55
      %v7555 = vpop.permute.xlu0 %7554
      %7556 = vrot.lane.b32.xlu0 %v7544, 55
      %v7557 = vpop.permute.xlu0 %7556
      %7558 = vrot.lane.b32.xlu0 %v7545, 55
      %v7559 = vpop.permute.xlu0 %7558
      %7560 = vrot.lane.b32.xlu0 %v7546, 55
      %v7561 = vpop.permute.xlu0 %7560
      %v7562 = vsel %vm432, %v7553, %v7555
      %v7563 = vsel %vm432, %v7555, %v7557
      %v7564 = vsel %vm432, %v7557, %v7559
      %v7565 = vsel %vm432, %v7559, %v7561
      %7570 = vst [vmem:[#allocation3 + $0x100] sm:$0xff] %v7562
      %7571 = vst [vmem:[#allocation3 + $0x108] sm:$0xff] %v7563
      %7572 = vst [vmem:[#allocation3 + $0x110] sm:$0xff] %v7564
      %7573 = vst [vmem:[#allocation3 + $0x118] sm:$0xff] %v7565
      %v7574 = vld [vmem:[#allocation2] sm:$0xff]
      %v7575 = vld [vmem:[#allocation2 + $0x8] sm:$0xff]
      %v7576 = vld [vmem:[#allocation2 + $0x10] sm:$0xff]
      %v7577 = vld [vmem:[#allocation2 + $0x18] sm:$0xff]
      %v7578 = vld [vmem:[#allocation2 + $0x20] sm:$0xff]
      %v7579 = vld [vmem:[%s1062] ss:$8 sm:$0xf]
      %v7581 = vlaneseq
      %v7582 = vshrl.u32 %v7581, 7
      %v7583 = vsub.s32 0, %v7582
      %v7584 = vrot.slane %v7579, %v7583
      %v7585 = vlaneseq
      %v7586 = vshrl.u32 %v7585, 7
      %v7587 = vsub.s32 1, %v7586
      %v7588 = vrot.slane %v7579, %v7587
      %v7589 = vlaneseq
      %v7590 = vshrl.u32 %v7589, 7
      %v7591 = vsub.s32 2, %v7590
      %v7592 = vrot.slane %v7579, %v7591
      %v7593 = vlaneseq
      %v7594 = vshrl.u32 %v7593, 7
      %v7595 = vsub.s32 3, %v7594
      %v7596 = vrot.slane %v7579, %v7595
      %7597 = vrot.lane.b32.xlu0 %v7584, 119
      %v7598 = vpop.permute.xlu0 %7597
      %7599 = vrot.lane.b32.xlu0 %v7588, 119
      %v7600 = vpop.permute.xlu0 %7599
      %7601 = vrot.lane.b32.xlu0 %v7592, 119
      %v7602 = vpop.permute.xlu0 %7601
      %7603 = vrot.lane.b32.xlu0 %v7596, 119
      %v7604 = vpop.permute.xlu0 %7603
      %v7605 = vsel %vm1089, %v7598, %v7600
      %v7606 = vsel %vm1089, %v7600, %v7602
      %v7607 = vsel %vm1089, %v7602, %v7604
      %v7613 = vmul.f32 %v7574, %v7598
      %v7614 = vmul.f32 %v7575, %v7605
      %v7615 = vmul.f32 %v7576, %v7606
      %v7616 = vmul.f32 %v7577, %v7607
      %v7617 = vmul.f32 %v7578, %v7604
      %7623 = vrot.lane.b32.xlu0 %v7613, 9
      %v7624 = vpop.permute.xlu0 %7623
      %7625 = vrot.lane.b32.xlu0 %v7614, 9
      %v7626 = vpop.permute.xlu0 %7625
      %7627 = vrot.lane.b32.xlu0 %v7615, 9
      %v7628 = vpop.permute.xlu0 %7627
      %7629 = vrot.lane.b32.xlu0 %v7616, 9
      %v7630 = vpop.permute.xlu0 %7629
      %7631 = vrot.lane.b32.xlu0 %v7617, 9
      %v7632 = vpop.permute.xlu0 %7631
      %v7633 = vsel %vm1118, %v7624, %v7626
      %v7634 = vsel %vm1118, %v7626, %v7628
      %v7635 = vsel %vm1118, %v7628, %v7630
      %v7636 = vsel %vm1118, %v7630, %v7632
      %7641 = vst [vmem:[#allocation3 + $0x120] sm:$0xff] %v7633
      %7642 = vst [vmem:[#allocation3 + $0x128] sm:$0xff] %v7634
      %7643 = vst [vmem:[#allocation3 + $0x130] sm:$0xff] %v7635
      %7644 = vst [vmem:[#allocation3 + $0x138] sm:$0xff] %v7636
      %v7645 = vld [vmem:[#allocation2] sm:$0xff]
      %v7646 = vld [vmem:[#allocation2 + $0x8] sm:$0xff]
      %v7647 = vld [vmem:[#allocation2 + $0x10] sm:$0xff]
      %v7648 = vld [vmem:[#allocation2 + $0x18] sm:$0xff]
      %v7649 = vld [vmem:[#allocation2 + $0x20] sm:$0xff]
      %v7650 = vld [vmem:[%s1136] ss:$8 sm:$0xf]
      %v7652 = vlaneseq
      %v7653 = vshrl.u32 %v7652, 7
      %v7654 = vsub.s32 0, %v7653
      %v7655 = vrot.slane %v7650, %v7654
      %v7656 = vlaneseq
      %v7657 = vshrl.u32 %v7656, 7
      %v7658 = vsub.s32 1, %v7657
      %v7659 = vrot.slane %v7650, %v7658
      %v7660 = vlaneseq
      %v7661 = vshrl.u32 %v7660, 7
      %v7662 = vsub.s32 2, %v7661
      %v7663 = vrot.slane %v7650, %v7662
      %v7664 = vlaneseq
      %v7665 = vshrl.u32 %v7664, 7
      %v7666 = vsub.s32 3, %v7665
      %v7667 = vrot.slane %v7650, %v7666
      %7668 = vrot.lane.b32.xlu0 %v7655, 120
      %v7669 = vpop.permute.xlu0 %7668
      %7670 = vrot.lane.b32.xlu0 %v7659, 120
      %v7671 = vpop.permute.xlu0 %7670
      %7672 = vrot.lane.b32.xlu0 %v7663, 120
      %v7673 = vpop.permute.xlu0 %7672
      %7674 = vrot.lane.b32.xlu0 %v7667, 120
      %v7675 = vpop.permute.xlu0 %7674
      %v7676 = vsel %vm1163, %v7669, %v7671
      %v7677 = vsel %vm1163, %v7671, %v7673
      %v7678 = vsel %vm1163, %v7673, %v7675
      %v7684 = vmul.f32 %v7645, %v7669
      %v7685 = vmul.f32 %v7646, %v7676
      %v7686 = vmul.f32 %v7647, %v7677
      %v7687 = vmul.f32 %v7648, %v7678
      %v7688 = vmul.f32 %v7649, %v7675
      %7694 = vrot.lane.b32.xlu0 %v7684, 8
      %v7695 = vpop.permute.xlu0 %7694
      %7696 = vrot.lane.b32.xlu0 %v7685, 8
      %v7697 = vpop.permute.xlu0 %7696
      %7698 = vrot.lane.b32.xlu0 %v7686, 8
      %v7699 = vpop.permute.xlu0 %7698
      %7700 = vrot.lane.b32.xlu0 %v7687, 8
      %v7701 = vpop.permute.xlu0 %7700
      %7702 = vrot.lane.b32.xlu0 %v7688, 8
      %v7703 = vpop.permute.xlu0 %7702
      %v7704 = vsel %vm1192, %v7695, %v7697
      %v7705 = vsel %vm1192, %v7697, %v7699
      %v7706 = vsel %vm1192, %v7699, %v7701
      %v7707 = vsel %vm1192, %v7701, %v7703
      %7712 = vst [vmem:[#allocation3 + $0x140] sm:$0xff] %v7704
      %7713 = vst [vmem:[#allocation3 + $0x148] sm:$0xff] %v7705
      %7714 = vst [vmem:[#allocation3 + $0x150] sm:$0xff] %v7706
      %7715 = vst [vmem:[#allocation3 + $0x158] sm:$0xff] %v7707
      %v7716 = vld [vmem:[#allocation2] sm:$0xff]
      %v7717 = vld [vmem:[#allocation2 + $0x8] sm:$0xff]
      %v7718 = vld [vmem:[#allocation2 + $0x10] sm:$0xff]
      %v7719 = vld [vmem:[#allocation2 + $0x18] sm:$0xff]
      %v7720 = vld [vmem:[#allocation2 + $0x20] sm:$0xff]
      %v7721 = vld [vmem:[%s1210] ss:$8 sm:$0xf]
      %v7723 = vlaneseq
      %v7724 = vshrl.u32 %v7723, 7
      %v7725 = vsub.s32 0, %v7724
      %v7726 = vrot.slane %v7721, %v7725
      %v7727 = vlaneseq
      %v7728 = vshrl.u32 %v7727, 7
      %v7729 = vsub.s32 1, %v7728
      %v7730 = vrot.slane %v7721, %v7729
      %v7731 = vlaneseq
      %v7732 = vshrl.u32 %v7731, 7
      %v7733 = vsub.s32 2, %v7732
      %v7734 = vrot.slane %v7721, %v7733
      %v7735 = vlaneseq
      %v7736 = vshrl.u32 %v7735, 7
      %v7737 = vsub.s32 3, %v7736
      %v7738 = vrot.slane %v7721, %v7737
      %7739 = vrot.lane.b32.xlu0 %v7726, 121
      %v7740 = vpop.permute.xlu0 %7739
      %7741 = vrot.lane.b32.xlu0 %v7730, 121
      %v7742 = vpop.permute.xlu0 %7741
      %7743 = vrot.lane.b32.xlu0 %v7734, 121
      %v7744 = vpop.permute.xlu0 %7743
      %7745 = vrot.lane.b32.xlu0 %v7738, 121
      %v7746 = vpop.permute.xlu0 %7745
      %v7747 = vsel %vm1237, %v7740, %v7742
      %v7748 = vsel %vm1237, %v7742, %v7744
      %v7749 = vsel %vm1237, %v7744, %v7746
      %v7755 = vmul.f32 %v7716, %v7740
      %v7756 = vmul.f32 %v7717, %v7747
      %v7757 = vmul.f32 %v7718, %v7748
      %v7758 = vmul.f32 %v7719, %v7749
      %v7759 = vmul.f32 %v7720, %v7746
      %7765 = vrot.lane.b32.xlu0 %v7755, 7
      %v7766 = vpop.permute.xlu0 %7765
      %7767 = vrot.lane.b32.xlu0 %v7756, 7
      %v7768 = vpop.permute.xlu0 %7767
      %7769 = vrot.lane.b32.xlu0 %v7757, 7
      %v7770 = vpop.permute.xlu0 %7769
      %7771 = vrot.lane.b32.xlu0 %v7758, 7
      %v7772 = vpop.permute.xlu0 %7771
      %7773 = vrot.lane.b32.xlu0 %v7759, 7
      %v7774 = vpop.permute.xlu0 %7773
      %v7775 = vsel %vm1266, %v7766, %v7768
      %v7776 = vsel %vm1266, %v7768, %v7770
      %v7777 = vsel %vm1266, %v7770, %v7772
      %v7778 = vsel %vm1266, %v7772, %v7774
      %7783 = vst [vmem:[#allocation3 + $0x160] sm:$0xff] %v7775
      %7784 = vst [vmem:[#allocation3 + $0x168] sm:$0xff] %v7776
      %7785 = vst [vmem:[#allocation3 + $0x170] sm:$0xff] %v7777
      %7786 = vst [vmem:[#allocation3 + $0x178] sm:$0xff] %v7778
      %v7787 = vld [vmem:[#allocation2] sm:$0xff]
      %v7788 = vld [vmem:[#allocation2 + $0x8] sm:$0xff]
      %v7789 = vld [vmem:[#allocation2 + $0x10] sm:$0xff]
      %v7790 = vld [vmem:[#allocation2 + $0x18] sm:$0xff]
      %v7791 = vld [vmem:[#allocation2 + $0x20] sm:$0xff]
      %v7792 = vld [vmem:[%s1284] ss:$8 sm:$0xf]
      %v7794 = vlaneseq
      %v7795 = vshrl.u32 %v7794, 7
      %v7796 = vsub.s32 0, %v7795
      %v7797 = vrot.slane %v7792, %v7796
      %v7798 = vlaneseq
      %v7799 = vshrl.u32 %v7798, 7
      %v7800 = vsub.s32 1, %v7799
      %v7801 = vrot.slane %v7792, %v7800
      %v7802 = vlaneseq
      %v7803 = vshrl.u32 %v7802, 7
      %v7804 = vsub.s32 2, %v7803
      %v7805 = vrot.slane %v7792, %v7804
      %v7806 = vlaneseq
      %v7807 = vshrl.u32 %v7806, 7
      %v7808 = vsub.s32 3, %v7807
      %v7809 = vrot.slane %v7792, %v7808
      %7810 = vrot.lane.b32.xlu0 %v7797, 127
      %v7811 = vpop.permute.xlu0 %7810
      %7812 = vrot.lane.b32.xlu0 %v7801, 127
      %v7813 = vpop.permute.xlu0 %7812
      %7814 = vrot.lane.b32.xlu0 %v7805, 127
      %v7815 = vpop.permute.xlu0 %7814
      %7816 = vrot.lane.b32.xlu0 %v7809, 127
      %v7817 = vpop.permute.xlu0 %7816
      %v7818 = vsel %vm1311, %v7811, %v7813
      %v7819 = vsel %vm1311, %v7813, %v7815
      %v7820 = vsel %vm1311, %v7815, %v7817
      %v7826 = vmul.f32 %v7787, %v7811
      %v7827 = vmul.f32 %v7788, %v7818
      %v7828 = vmul.f32 %v7789, %v7819
      %v7829 = vmul.f32 %v7790, %v7820
      %v7830 = vmul.f32 %v7791, %v7817
      %7836 = vrot.lane.b32.xlu0 %v7826, 1
      %v7837 = vpop.permute.xlu0 %7836
      %7838 = vrot.lane.b32.xlu0 %v7827, 1
      %v7839 = vpop.permute.xlu0 %7838
      %7840 = vrot.lane.b32.xlu0 %v7828, 1
      %v7841 = vpop.permute.xlu0 %7840
      %7842 = vrot.lane.b32.xlu0 %v7829, 1
      %v7843 = vpop.permute.xlu0 %7842
      %7844 = vrot.lane.b32.xlu0 %v7830, 1
      %v7845 = vpop.permute.xlu0 %7844
      %v7846 = vsel %vm1340, %v7837, %v7839
      %v7847 = vsel %vm1340, %v7839, %v7841
      %v7848 = vsel %vm1340, %v7841, %v7843
      %v7849 = vsel %vm1340, %v7843, %v7845
      %7854 = vst [vmem:[#allocation3 + $0x180] sm:$0xff] %v7846
      %7855 = vst [vmem:[#allocation3 + $0x188] sm:$0xff] %v7847
      %7856 = vst [vmem:[#allocation3 + $0x190] sm:$0xff] %v7848
      %7857 = vst [vmem:[#allocation3 + $0x198] sm:$0xff] %v7849
      %v7858 = vld [vmem:[#allocation2 + $0x8] sm:$0xff]
      %v7859 = vld [vmem:[#allocation2 + $0x10] sm:$0xff]
      %v7860 = vld [vmem:[#allocation2 + $0x18] sm:$0xff]
      %v7861 = vld [vmem:[#allocation2 + $0x20] sm:$0xff]
      %7862 = vst [vmem:[#allocation3 + $0x1a0] sm:$0xff] %v7858
      %7863 = vst [vmem:[#allocation3 + $0x1a8] sm:$0xff] %v7859
      %7864 = vst [vmem:[#allocation3 + $0x1b0] sm:$0xff] %v7860
      %7865 = vst [vmem:[#allocation3 + $0x1b8] sm:$0xff] %v7861
      %v7866 = vld [vmem:[#allocation2 + $0x8] sm:$0xff]
      %v7867 = vld [vmem:[#allocation2 + $0x10] sm:$0xff]
      %v7868 = vld [vmem:[#allocation2 + $0x18] sm:$0xff]
      %v7869 = vld [vmem:[#allocation2 + $0x20] sm:$0xff]
      %v7870 = vld [vmem:[#allocation2 + $0x28] sm:$0xff]
      %v7871 = vld [vmem:[%s1366] ss:$8 sm:$0xf]
      %v7873 = vlaneseq
      %v7874 = vshrl.u32 %v7873, 7
      %v7875 = vsub.s32 0, %v7874
      %v7876 = vrot.slane %v7871, %v7875
      %v7877 = vlaneseq
      %v7878 = vshrl.u32 %v7877, 7
      %v7879 = vsub.s32 1, %v7878
      %v7880 = vrot.slane %v7871, %v7879
      %v7881 = vlaneseq
      %v7882 = vshrl.u32 %v7881, 7
      %v7883 = vsub.s32 2, %v7882
      %v7884 = vrot.slane %v7871, %v7883
      %v7885 = vlaneseq
      %v7886 = vshrl.u32 %v7885, 7
      %v7887 = vsub.s32 3, %v7886
      %v7888 = vrot.slane %v7871, %v7887
      %7889 = vrot.lane.b32.xlu0 %v7876, 1
      %v7890 = vpop.permute.xlu0 %7889
      %7891 = vrot.lane.b32.xlu0 %v7880, 1
      %v7892 = vpop.permute.xlu0 %7891
      %7893 = vrot.lane.b32.xlu0 %v7884, 1
      %v7894 = vpop.permute.xlu0 %7893
      %7895 = vrot.lane.b32.xlu0 %v7888, 1
      %v7896 = vpop.permute.xlu0 %7895
      %v7897 = vsel %vm1340, %v7890, %v7892
      %v7898 = vsel %vm1340, %v7892, %v7894
      %v7899 = vsel %vm1340, %v7894, %v7896
      %v7905 = vmul.f32 %v7866, %v7890
      %v7906 = vmul.f32 %v7867, %v7897
      %v7907 = vmul.f32 %v7868, %v7898
      %v7908 = vmul.f32 %v7869, %v7899
      %v7909 = vmul.f32 %v7870, %v7896
      %7915 = vrot.lane.b32.xlu0 %v7905, 127
      %v7916 = vpop.permute.xlu0 %7915
      %7917 = vrot.lane.b32.xlu0 %v7906, 127
      %v7918 = vpop.permute.xlu0 %7917
      %7919 = vrot.lane.b32.xlu0 %v7907, 127
      %v7920 = vpop.permute.xlu0 %7919
      %7921 = vrot.lane.b32.xlu0 %v7908, 127
      %v7922 = vpop.permute.xlu0 %7921
      %7923 = vrot.lane.b32.xlu0 %v7909, 127
      %v7924 = vpop.permute.xlu0 %7923
      %v7925 = vsel %vm1311, %v7916, %v7918
      %v7926 = vsel %vm1311, %v7918, %v7920
      %v7927 = vsel %vm1311, %v7920, %v7922
      %v7928 = vsel %vm1311, %v7922, %v7924
      %7933 = vst [vmem:[#allocation3 + $0x1c0] sm:$0xff] %v7925
      %7934 = vst [vmem:[#allocation3 + $0x1c8] sm:$0xff] %v7926
      %7935 = vst [vmem:[#allocation3 + $0x1d0] sm:$0xff] %v7927
      %7936 = vst [vmem:[#allocation3 + $0x1d8] sm:$0xff] %v7928
      %v7937 = vld [vmem:[#allocation2 + $0x8] sm:$0xff]
      %v7938 = vld [vmem:[#allocation2 + $0x10] sm:$0xff]
      %v7939 = vld [vmem:[#allocation2 + $0x18] sm:$0xff]
      %v7940 = vld [vmem:[#allocation2 + $0x20] sm:$0xff]
      %v7941 = vld [vmem:[#allocation2 + $0x28] sm:$0xff]
      %v7942 = vld [vmem:[%s1438] ss:$8 sm:$0xf]
      %v7944 = vlaneseq
      %v7945 = vshrl.u32 %v7944, 7
      %v7946 = vsub.s32 0, %v7945
      %v7947 = vrot.slane %v7942, %v7946
      %v7948 = vlaneseq
      %v7949 = vshrl.u32 %v7948, 7
      %v7950 = vsub.s32 1, %v7949
      %v7951 = vrot.slane %v7942, %v7950
      %v7952 = vlaneseq
      %v7953 = vshrl.u32 %v7952, 7
      %v7954 = vsub.s32 2, %v7953
      %v7955 = vrot.slane %v7942, %v7954
      %v7956 = vlaneseq
      %v7957 = vshrl.u32 %v7956, 7
      %v7958 = vsub.s32 3, %v7957
      %v7959 = vrot.slane %v7942, %v7958
      %7960 = vrot.lane.b32.xlu0 %v7947, 7
      %v7961 = vpop.permute.xlu0 %7960
      %7962 = vrot.lane.b32.xlu0 %v7951, 7
      %v7963 = vpop.permute.xlu0 %7962
      %7964 = vrot.lane.b32.xlu0 %v7955, 7
      %v7965 = vpop.permute.xlu0 %7964
      %7966 = vrot.lane.b32.xlu0 %v7959, 7
      %v7967 = vpop.permute.xlu0 %7966
      %v7968 = vsel %vm1266, %v7961, %v7963
      %v7969 = vsel %vm1266, %v7963, %v7965
      %v7970 = vsel %vm1266, %v7965, %v7967
      %v7976 = vmul.f32 %v7937, %v7961
      %v7977 = vmul.f32 %v7938, %v7968
      %v7978 = vmul.f32 %v7939, %v7969
      %v7979 = vmul.f32 %v7940, %v7970
      %v7980 = vmul.f32 %v7941, %v7967
      %7986 = vrot.lane.b32.xlu0 %v7976, 121
      %v7987 = vpop.permute.xlu0 %7986
      %7988 = vrot.lane.b32.xlu0 %v7977, 121
      %v7989 = vpop.permute.xlu0 %7988
      %7990 = vrot.lane.b32.xlu0 %v7978, 121
      %v7991 = vpop.permute.xlu0 %7990
      %7992 = vrot.lane.b32.xlu0 %v7979, 121
      %v7993 = vpop.permute.xlu0 %7992
      %7994 = vrot.lane.b32.xlu0 %v7980, 121
      %v7995 = vpop.permute.xlu0 %7994
      %v7996 = vsel %vm1237, %v7987, %v7989
      %v7997 = vsel %vm1237, %v7989, %v7991
      %v7998 = vsel %vm1237, %v7991, %v7993
      %v7999 = vsel %vm1237, %v7993, %v7995
      %8004 = vst [vmem:[#allocation3 + $0x1e0] sm:$0xff] %v7996
      %8005 = vst [vmem:[#allocation3 + $0x1e8] sm:$0xff] %v7997
      %8006 = vst [vmem:[#allocation3 + $0x1f0] sm:$0xff] %v7998
      %8007 = vst [vmem:[#allocation3 + $0x1f8] sm:$0xff] %v7999
      %v8008 = vld [vmem:[#allocation2 + $0x8] sm:$0xff]
      %v8009 = vld [vmem:[#allocation2 + $0x10] sm:$0xff]
      %v8010 = vld [vmem:[#allocation2 + $0x18] sm:$0xff]
      %v8011 = vld [vmem:[#allocation2 + $0x20] sm:$0xff]
      %v8012 = vld [vmem:[#allocation2 + $0x28] sm:$0xff]
      %v8013 = vld [vmem:[%s1510] ss:$8 sm:$0xf]
      %v8015 = vlaneseq
      %v8016 = vshrl.u32 %v8015, 7
      %v8017 = vsub.s32 0, %v8016
      %v8018 = vrot.slane %v8013, %v8017
      %v8019 = vlaneseq
      %v8020 = vshrl.u32 %v8019, 7
      %v8021 = vsub.s32 1, %v8020
      %v8022 = vrot.slane %v8013, %v8021
      %v8023 = vlaneseq
      %v8024 = vshrl.u32 %v8023, 7
      %v8025 = vsub.s32 2, %v8024
      %v8026 = vrot.slane %v8013, %v8025
      %v8027 = vlaneseq
      %v8028 = vshrl.u32 %v8027, 7
      %v8029 = vsub.s32 3, %v8028
      %v8030 = vrot.slane %v8013, %v8029
      %8031 = vrot.lane.b32.xlu0 %v8018, 8
      %v8032 = vpop.permute.xlu0 %8031
      %8033 = vrot.lane.b32.xlu0 %v8022, 8
      %v8034 = vpop.permute.xlu0 %8033
      %8035 = vrot.lane.b32.xlu0 %v8026, 8
      %v8036 = vpop.permute.xlu0 %8035
      %8037 = vrot.lane.b32.xlu0 %v8030, 8
      %v8038 = vpop.permute.xlu0 %8037
      %v8039 = vsel %vm1192, %v8032, %v8034
      %v8040 = vsel %vm1192, %v8034, %v8036
      %v8041 = vsel %vm1192, %v8036, %v8038
      %v8047 = vmul.f32 %v8008, %v8032
      %v8048 = vmul.f32 %v8009, %v8039
      %v8049 = vmul.f32 %v8010, %v8040
      %v8050 = vmul.f32 %v8011, %v8041
      %v8051 = vmul.f32 %v8012, %v8038
      %8057 = vrot.lane.b32.xlu0 %v8047, 120
      %v8058 = vpop.permute.xlu0 %8057
      %8059 = vrot.lane.b32.xlu0 %v8048, 120
      %v8060 = vpop.permute.xlu0 %8059
      %8061 = vrot.lane.b32.xlu0 %v8049, 120
      %v8062 = vpop.permute.xlu0 %8061
      %8063 = vrot.lane.b32.xlu0 %v8050, 120
      %v8064 = vpop.permute.xlu0 %8063
      %8065 = vrot.lane.b32.xlu0 %v8051, 120
      %v8066 = vpop.permute.xlu0 %8065
      %v8067 = vsel %vm1163, %v8058, %v8060
      %v8068 = vsel %vm1163, %v8060, %v8062
      %v8069 = vsel %vm1163, %v8062, %v8064
      %v8070 = vsel %vm1163, %v8064, %v8066
      %8075 = vst [vmem:[#allocation3 + $0x200] sm:$0xff] %v8067
      %8076 = vst [vmem:[#allocation3 + $0x208] sm:$0xff] %v8068
      %8077 = vst [vmem:[#allocation3 + $0x210] sm:$0xff] %v8069
      %8078 = vst [vmem:[#allocation3 + $0x218] sm:$0xff] %v8070
      %v8079 = vld [vmem:[#allocation2 + $0x8] sm:$0xff]
      %v8080 = vld [vmem:[#allocation2 + $0x10] sm:$0xff]
      %v8081 = vld [vmem:[#allocation2 + $0x18] sm:$0xff]
      %v8082 = vld [vmem:[#allocation2 + $0x20] sm:$0xff]
      %v8083 = vld [vmem:[#allocation2 + $0x28] sm:$0xff]
      %v8084 = vld [vmem:[%s1582] ss:$8 sm:$0xf]
      %v8086 = vlaneseq
      %v8087 = vshrl.u32 %v8086, 7
      %v8088 = vsub.s32 0, %v8087
      %v8089 = vrot.slane %v8084, %v8088
      %v8090 = vlaneseq
      %v8091 = vshrl.u32 %v8090, 7
      %v8092 = vsub.s32 1, %v8091
      %v8093 = vrot.slane %v8084, %v8092
      %v8094 = vlaneseq
      %v8095 = vshrl.u32 %v8094, 7
      %v8096 = vsub.s32 2, %v8095
      %v8097 = vrot.slane %v8084, %v8096
      %v8098 = vlaneseq
      %v8099 = vshrl.u32 %v8098, 7
      %v8100 = vsub.s32 3, %v8099
      %v8101 = vrot.slane %v8084, %v8100
      %8102 = vrot.lane.b32.xlu0 %v8089, 9
      %v8103 = vpop.permute.xlu0 %8102
      %8104 = vrot.lane.b32.xlu0 %v8093, 9
      %v8105 = vpop.permute.xlu0 %8104
      %8106 = vrot.lane.b32.xlu0 %v8097, 9
      %v8107 = vpop.permute.xlu0 %8106
      %8108 = vrot.lane.b32.xlu0 %v8101, 9
      %v8109 = vpop.permute.xlu0 %8108
      %v8110 = vsel %vm1118, %v8103, %v8105
      %v8111 = vsel %vm1118, %v8105, %v8107
      %v8112 = vsel %vm1118, %v8107, %v8109
      %v8118 = vmul.f32 %v8079, %v8103
      %v8119 = vmul.f32 %v8080, %v8110
      %v8120 = vmul.f32 %v8081, %v8111
      %v8121 = vmul.f32 %v8082, %v8112
      %v8122 = vmul.f32 %v8083, %v8109
      %8128 = vrot.lane.b32.xlu0 %v8118, 119
      %v8129 = vpop.permute.xlu0 %8128
      %8130 = vrot.lane.b32.xlu0 %v8119, 119
      %v8131 = vpop.permute.xlu0 %8130
      %8132 = vrot.lane.b32.xlu0 %v8120, 119
      %v8133 = vpop.permute.xlu0 %8132
      %8134 = vrot.lane.b32.xlu0 %v8121, 119
      %v8135 = vpop.permute.xlu0 %8134
      %8136 = vrot.lane.b32.xlu0 %v8122, 119
      %v8137 = vpop.permute.xlu0 %8136
      %v8138 = vsel %vm1089, %v8129, %v8131
      %v8139 = vsel %vm1089, %v8131, %v8133
      %v8140 = vsel %vm1089, %v8133, %v8135
      %v8141 = vsel %vm1089, %v8135, %v8137
      %8146 = vst [vmem:[#allocation3 + $0x220] sm:$0xff] %v8138
      %8147 = vst [vmem:[#allocation3 + $0x228] sm:$0xff] %v8139
      %8148 = vst [vmem:[#allocation3 + $0x230] sm:$0xff] %v8140
      %8149 = vst [vmem:[#allocation3 + $0x238] sm:$0xff] %v8141
      %v8150 = vld [vmem:[#allocation2 + $0x8] sm:$0xff]
      %v8151 = vld [vmem:[#allocation2 + $0x10] sm:$0xff]
      %v8152 = vld [vmem:[#allocation2 + $0x18] sm:$0xff]
      %v8153 = vld [vmem:[#allocation2 + $0x20] sm:$0xff]
      %v8154 = vld [vmem:[#allocation2 + $0x28] sm:$0xff]
      %v8155 = vld [vmem:[%s1654] ss:$8 sm:$0xf]
      %v8157 = vlaneseq
      %v8158 = vshrl.u32 %v8157, 7
      %v8159 = vsub.s32 0, %v8158
      %v8160 = vrot.slane %v8155, %v8159
      %v8161 = vlaneseq
      %v8162 = vshrl.u32 %v8161, 7
      %v8163 = vsub.s32 1, %v8162
      %v8164 = vrot.slane %v8155, %v8163
      %v8165 = vlaneseq
      %v8166 = vshrl.u32 %v8165, 7
      %v8167 = vsub.s32 2, %v8166
      %v8168 = vrot.slane %v8155, %v8167
      %v8169 = vlaneseq
      %v8170 = vshrl.u32 %v8169, 7
      %v8171 = vsub.s32 3, %v8170
      %v8172 = vrot.slane %v8155, %v8171
      %8173 = vrot.lane.b32.xlu0 %v8160, 55
      %v8174 = vpop.permute.xlu0 %8173
      %8175 = vrot.lane.b32.xlu0 %v8164, 55
      %v8176 = vpop.permute.xlu0 %8175
      %8177 = vrot.lane.b32.xlu0 %v8168, 55
      %v8178 = vpop.permute.xlu0 %8177
      %8179 = vrot.lane.b32.xlu0 %v8172, 55
      %v8180 = vpop.permute.xlu0 %8179
      %v8181 = vsel %vm432, %v8174, %v8176
      %v8182 = vsel %vm432, %v8176, %v8178
      %v8183 = vsel %vm432, %v8178, %v8180
      %v8189 = vmul.f32 %v8150, %v8174
      %v8190 = vmul.f32 %v8151, %v8181
      %v8191 = vmul.f32 %v8152, %v8182
      %v8192 = vmul.f32 %v8153, %v8183
      %v8193 = vmul.f32 %v8154, %v8180
      %8199 = vrot.lane.b32.xlu0 %v8189, 73
      %v8200 = vpop.permute.xlu0 %8199
      %8201 = vrot.lane.b32.xlu0 %v8190, 73
      %v8202 = vpop.permute.xlu0 %8201
      %8203 = vrot.lane.b32.xlu0 %v8191, 73
      %v8204 = vpop.permute.xlu0 %8203
      %8205 = vrot.lane.b32.xlu0 %v8192, 73
      %v8206 = vpop.permute.xlu0 %8205
      %8207 = vrot.lane.b32.xlu0 %v8193, 73
      %v8208 = vpop.permute.xlu0 %8207
      %v8209 = vsel %vm461, %v8200, %v8202
      %v8210 = vsel %vm461, %v8202, %v8204
      %v8211 = vsel %vm461, %v8204, %v8206
      %v8212 = vsel %vm461, %v8206, %v8208
      %8217 = vst [vmem:[#allocation3 + $0x240] sm:$0xff] %v8209
      %8218 = vst [vmem:[#allocation3 + $0x248] sm:$0xff] %v8210
      %8219 = vst [vmem:[#allocation3 + $0x250] sm:$0xff] %v8211
      %8220 = vst [vmem:[#allocation3 + $0x258] sm:$0xff] %v8212
      %v8221 = vld [vmem:[#allocation2 + $0x8] sm:$0xff]
      %v8222 = vld [vmem:[#allocation2 + $0x10] sm:$0xff]
      %v8223 = vld [vmem:[#allocation2 + $0x18] sm:$0xff]
      %v8224 = vld [vmem:[#allocation2 + $0x20] sm:$0xff]
      %v8225 = vld [vmem:[#allocation2 + $0x28] sm:$0xff]
      %v8226 = vld [vmem:[%s1726] ss:$8 sm:$0xf]
      %v8228 = vlaneseq
      %v8229 = vshrl.u32 %v8228, 7
      %v8230 = vsub.s32 0, %v8229
      %v8231 = vrot.slane %v8226, %v8230
      %v8232 = vlaneseq
      %v8233 = vshrl.u32 %v8232, 7
      %v8234 = vsub.s32 1, %v8233
      %v8235 = vrot.slane %v8226, %v8234
      %v8236 = vlaneseq
      %v8237 = vshrl.u32 %v8236, 7
      %v8238 = vsub.s32 2, %v8237
      %v8239 = vrot.slane %v8226, %v8238
      %v8240 = vlaneseq
      %v8241 = vshrl.u32 %v8240, 7
      %v8242 = vsub.s32 3, %v8241
      %v8243 = vrot.slane %v8226, %v8242
      %8244 = vrot.lane.b32.xlu0 %v8231, 56
      %v8245 = vpop.permute.xlu0 %8244
      %8246 = vrot.lane.b32.xlu0 %v8235, 56
      %v8247 = vpop.permute.xlu0 %8246
      %8248 = vrot.lane.b32.xlu0 %v8239, 56
      %v8249 = vpop.permute.xlu0 %8248
      %8250 = vrot.lane.b32.xlu0 %v8243, 56
      %v8251 = vpop.permute.xlu0 %8250
      %v8252 = vsel %vm506, %v8245, %v8247
      %v8253 = vsel %vm506, %v8247, %v8249
      %v8254 = vsel %vm506, %v8249, %v8251
      %v8260 = vmul.f32 %v8221, %v8245
      %v8261 = vmul.f32 %v8222, %v8252
      %v8262 = vmul.f32 %v8223, %v8253
      %v8263 = vmul.f32 %v8224, %v8254
      %v8264 = vmul.f32 %v8225, %v8251
      %8270 = vrot.lane.b32.xlu0 %v8260, 72
      %v8271 = vpop.permute.xlu0 %8270
      %8272 = vrot.lane.b32.xlu0 %v8261, 72
      %v8273 = vpop.permute.xlu0 %8272
      %8274 = vrot.lane.b32.xlu0 %v8262, 72
      %v8275 = vpop.permute.xlu0 %8274
      %8276 = vrot.lane.b32.xlu0 %v8263, 72
      %v8277 = vpop.permute.xlu0 %8276
      %8278 = vrot.lane.b32.xlu0 %v8264, 72
      %v8279 = vpop.permute.xlu0 %8278
      %v8280 = vsel %vm535, %v8271, %v8273
      %v8281 = vsel %vm535, %v8273, %v8275
      %v8282 = vsel %vm535, %v8275, %v8277
      %v8283 = vsel %vm535, %v8277, %v8279
      %8288 = vst [vmem:[#allocation3 + $0x260] sm:$0xff] %v8280
      %8289 = vst [vmem:[#allocation3 + $0x268] sm:$0xff] %v8281
      %8290 = vst [vmem:[#allocation3 + $0x270] sm:$0xff] %v8282
      %8291 = vst [vmem:[#allocation3 + $0x278] sm:$0xff] %v8283
      %v8292 = vld [vmem:[#allocation2 + $0x8] sm:$0xff]
      %v8293 = vld [vmem:[#allocation2 + $0x10] sm:$0xff]
      %v8294 = vld [vmem:[#allocation2 + $0x18] sm:$0xff]
      %v8295 = vld [vmem:[#allocation2 + $0x20] sm:$0xff]
      %v8296 = vld [vmem:[#allocation2 + $0x28] sm:$0xff]
      %v8297 = vld [vmem:[%s1798] ss:$8 sm:$0xf]
      %v8299 = vlaneseq
      %v8300 = vshrl.u32 %v8299, 7
      %v8301 = vsub.s32 0, %v8300
      %v8302 = vrot.slane %v8297, %v8301
      %v8303 = vlaneseq
      %v8304 = vshrl.u32 %v8303, 7
      %v8305 = vsub.s32 1, %v8304
      %v8306 = vrot.slane %v8297, %v8305
      %v8307 = vlaneseq
      %v8308 = vshrl.u32 %v8307, 7
      %v8309 = vsub.s32 2, %v8308
      %v8310 = vrot.slane %v8297, %v8309
      %v8311 = vlaneseq
      %v8312 = vshrl.u32 %v8311, 7
      %v8313 = vsub.s32 3, %v8312
      %v8314 = vrot.slane %v8297, %v8313
      %8315 = vrot.lane.b32.xlu0 %v8302, 57
      %v8316 = vpop.permute.xlu0 %8315
      %8317 = vrot.lane.b32.xlu0 %v8306, 57
      %v8318 = vpop.permute.xlu0 %8317
      %8319 = vrot.lane.b32.xlu0 %v8310, 57
      %v8320 = vpop.permute.xlu0 %8319
      %8321 = vrot.lane.b32.xlu0 %v8314, 57
      %v8322 = vpop.permute.xlu0 %8321
      %v8323 = vsel %vm580, %v8316, %v8318
      %v8324 = vsel %vm580, %v8318, %v8320
      %v8325 = vsel %vm580, %v8320, %v8322
      %v8331 = vmul.f32 %v8292, %v8316
      %v8332 = vmul.f32 %v8293, %v8323
      %v8333 = vmul.f32 %v8294, %v8324
      %v8334 = vmul.f32 %v8295, %v8325
      %v8335 = vmul.f32 %v8296, %v8322
      %8341 = vrot.lane.b32.xlu0 %v8331, 71
      %v8342 = vpop.permute.xlu0 %8341
      %8343 = vrot.lane.b32.xlu0 %v8332, 71
      %v8344 = vpop.permute.xlu0 %8343
      %8345 = vrot.lane.b32.xlu0 %v8333, 71
      %v8346 = vpop.permute.xlu0 %8345
      %8347 = vrot.lane.b32.xlu0 %v8334, 71
      %v8348 = vpop.permute.xlu0 %8347
      %8349 = vrot.lane.b32.xlu0 %v8335, 71
      %v8350 = vpop.permute.xlu0 %8349
      %v8351 = vsel %vm609, %v8342, %v8344
      %v8352 = vsel %vm609, %v8344, %v8346
      %v8353 = vsel %vm609, %v8346, %v8348
      %v8354 = vsel %vm609, %v8348, %v8350
      %8359 = vst [vmem:[#allocation3 + $0x280] sm:$0xff] %v8351
      %8360 = vst [vmem:[#allocation3 + $0x288] sm:$0xff] %v8352
      %8361 = vst [vmem:[#allocation3 + $0x290] sm:$0xff] %v8353
      %8362 = vst [vmem:[#allocation3 + $0x298] sm:$0xff] %v8354
      %v8363 = vld [vmem:[#allocation2 + $0x8] sm:$0xff]
      %v8364 = vld [vmem:[#allocation2 + $0x10] sm:$0xff]
      %v8365 = vld [vmem:[#allocation2 + $0x18] sm:$0xff]
      %v8366 = vld [vmem:[#allocation2 + $0x20] sm:$0xff]
      %v8367 = vld [vmem:[#allocation2 + $0x28] sm:$0xff]
      %v8368 = vld [vmem:[%s1870] ss:$8 sm:$0xf]
      %v8370 = vlaneseq
      %v8371 = vshrl.u32 %v8370, 7
      %v8372 = vsub.s32 0, %v8371
      %v8373 = vrot.slane %v8368, %v8372
      %v8374 = vlaneseq
      %v8375 = vshrl.u32 %v8374, 7
      %v8376 = vsub.s32 1, %v8375
      %v8377 = vrot.slane %v8368, %v8376
      %v8378 = vlaneseq
      %v8379 = vshrl.u32 %v8378, 7
      %v8380 = vsub.s32 2, %v8379
      %v8381 = vrot.slane %v8368, %v8380
      %v8382 = vlaneseq
      %v8383 = vshrl.u32 %v8382, 7
      %v8384 = vsub.s32 3, %v8383
      %v8385 = vrot.slane %v8368, %v8384
      %8386 = vrot.lane.b32.xlu0 %v8373, 63
      %v8387 = vpop.permute.xlu0 %8386
      %8388 = vrot.lane.b32.xlu0 %v8377, 63
      %v8389 = vpop.permute.xlu0 %8388
      %8390 = vrot.lane.b32.xlu0 %v8381, 63
      %v8391 = vpop.permute.xlu0 %8390
      %8392 = vrot.lane.b32.xlu0 %v8385, 63
      %v8393 = vpop.permute.xlu0 %8392
      %v8394 = vsel %vm654, %v8387, %v8389
      %v8395 = vsel %vm654, %v8389, %v8391
      %v8396 = vsel %vm654, %v8391, %v8393
      %v8402 = vmul.f32 %v8363, %v8387
      %v8403 = vmul.f32 %v8364, %v8394
      %v8404 = vmul.f32 %v8365, %v8395
      %v8405 = vmul.f32 %v8366, %v8396
      %v8406 = vmul.f32 %v8367, %v8393
      %8412 = vrot.lane.b32.xlu0 %v8402, 65
      %v8413 = vpop.permute.xlu0 %8412
      %8414 = vrot.lane.b32.xlu0 %v8403, 65
      %v8415 = vpop.permute.xlu0 %8414
      %8416 = vrot.lane.b32.xlu0 %v8404, 65
      %v8417 = vpop.permute.xlu0 %8416
      %8418 = vrot.lane.b32.xlu0 %v8405, 65
      %v8419 = vpop.permute.xlu0 %8418
      %8420 = vrot.lane.b32.xlu0 %v8406, 65
      %v8421 = vpop.permute.xlu0 %8420
      %v8422 = vsel %vm683, %v8413, %v8415
      %v8423 = vsel %vm683, %v8415, %v8417
      %v8424 = vsel %vm683, %v8417, %v8419
      %v8425 = vsel %vm683, %v8419, %v8421
      %8430 = vst [vmem:[#allocation3 + $0x2a0] sm:$0xff] %v8422
      %8431 = vst [vmem:[#allocation3 + $0x2a8] sm:$0xff] %v8423
      %8432 = vst [vmem:[#allocation3 + $0x2b0] sm:$0xff] %v8424
      %8433 = vst [vmem:[#allocation3 + $0x2b8] sm:$0xff] %v8425
      %v8434 = vld [vmem:[#allocation2 + $0x8] sm:$0xff]
      %v8435 = vld [vmem:[#allocation2 + $0x10] sm:$0xff]
      %v8436 = vld [vmem:[#allocation2 + $0x18] sm:$0xff]
      %v8437 = vld [vmem:[#allocation2 + $0x20] sm:$0xff]
      %v8438 = vld [vmem:[#allocation2 + $0x28] sm:$0xff]
      %v8439 = vld [vmem:[%s1942] ss:$8 sm:$0xf]
      %v8441 = vlaneseq
      %v8442 = vshrl.u32 %v8441, 7
      %v8443 = vsub.s32 0, %v8442
      %v8444 = vrot.slane %v8439, %v8443
      %v8445 = vlaneseq
      %v8446 = vshrl.u32 %v8445, 7
      %v8447 = vsub.s32 1, %v8446
      %v8448 = vrot.slane %v8439, %v8447
      %v8449 = vlaneseq
      %v8450 = vshrl.u32 %v8449, 7
      %v8451 = vsub.s32 2, %v8450
      %v8452 = vrot.slane %v8439, %v8451
      %v8453 = vlaneseq
      %v8454 = vshrl.u32 %v8453, 7
      %v8455 = vsub.s32 3, %v8454
      %v8456 = vrot.slane %v8439, %v8455
      %8457 = vrot.lane.b32.xlu0 %v8444, 64
      %v8458 = vpop.permute.xlu0 %8457
      %8459 = vrot.lane.b32.xlu0 %v8448, 64
      %v8460 = vpop.permute.xlu0 %8459
      %8461 = vrot.lane.b32.xlu0 %v8452, 64
      %v8462 = vpop.permute.xlu0 %8461
      %8463 = vrot.lane.b32.xlu0 %v8456, 64
      %v8464 = vpop.permute.xlu0 %8463
      %v8465 = vsel %vm728, %v8458, %v8460
      %v8466 = vsel %vm728, %v8460, %v8462
      %v8467 = vsel %vm728, %v8462, %v8464
      %v8473 = vmul.f32 %v8434, %v8458
      %v8474 = vmul.f32 %v8435, %v8465
      %v8475 = vmul.f32 %v8436, %v8466
      %v8476 = vmul.f32 %v8437, %v8467
      %v8477 = vmul.f32 %v8438, %v8464
      %8483 = vrot.lane.b32.xlu0 %v8473, 64
      %v8484 = vpop.permute.xlu0 %8483
      %8485 = vrot.lane.b32.xlu0 %v8474, 64
      %v8486 = vpop.permute.xlu0 %8485
      %8487 = vrot.lane.b32.xlu0 %v8475, 64
      %v8488 = vpop.permute.xlu0 %8487
      %8489 = vrot.lane.b32.xlu0 %v8476, 64
      %v8490 = vpop.permute.xlu0 %8489
      %8491 = vrot.lane.b32.xlu0 %v8477, 64
      %v8492 = vpop.permute.xlu0 %8491
      %v8493 = vsel %vm728, %v8484, %v8486
      %v8494 = vsel %vm728, %v8486, %v8488
      %v8495 = vsel %vm728, %v8488, %v8490
      %v8496 = vsel %vm728, %v8490, %v8492
      %8501 = vst [vmem:[#allocation3 + $0x2c0] sm:$0xff] %v8493
      %8502 = vst [vmem:[#allocation3 + $0x2c8] sm:$0xff] %v8494
      %8503 = vst [vmem:[#allocation3 + $0x2d0] sm:$0xff] %v8495
      %8504 = vst [vmem:[#allocation3 + $0x2d8] sm:$0xff] %v8496
      %v8505 = vld [vmem:[#allocation2 + $0x8] sm:$0xff]
      %v8506 = vld [vmem:[#allocation2 + $0x10] sm:$0xff]
      %v8507 = vld [vmem:[#allocation2 + $0x18] sm:$0xff]
      %v8508 = vld [vmem:[#allocation2 + $0x20] sm:$0xff]
      %v8509 = vld [vmem:[#allocation2 + $0x28] sm:$0xff]
      %v8510 = vld [vmem:[%s2014] ss:$8 sm:$0xf]
      %v8512 = vlaneseq
      %v8513 = vshrl.u32 %v8512, 7
      %v8514 = vsub.s32 0, %v8513
      %v8515 = vrot.slane %v8510, %v8514
      %v8516 = vlaneseq
      %v8517 = vshrl.u32 %v8516, 7
      %v8518 = vsub.s32 1, %v8517
      %v8519 = vrot.slane %v8510, %v8518
      %v8520 = vlaneseq
      %v8521 = vshrl.u32 %v8520, 7
      %v8522 = vsub.s32 2, %v8521
      %v8523 = vrot.slane %v8510, %v8522
      %v8524 = vlaneseq
      %v8525 = vshrl.u32 %v8524, 7
      %v8526 = vsub.s32 3, %v8525
      %v8527 = vrot.slane %v8510, %v8526
      %8528 = vrot.lane.b32.xlu0 %v8515, 65
      %v8529 = vpop.permute.xlu0 %8528
      %8530 = vrot.lane.b32.xlu0 %v8519, 65
      %v8531 = vpop.permute.xlu0 %8530
      %8532 = vrot.lane.b32.xlu0 %v8523, 65
      %v8533 = vpop.permute.xlu0 %8532
      %8534 = vrot.lane.b32.xlu0 %v8527, 65
      %v8535 = vpop.permute.xlu0 %8534
      %v8536 = vsel %vm683, %v8529, %v8531
      %v8537 = vsel %vm683, %v8531, %v8533
      %v8538 = vsel %vm683, %v8533, %v8535
      %v8544 = vmul.f32 %v8505, %v8529
      %v8545 = vmul.f32 %v8506, %v8536
      %v8546 = vmul.f32 %v8507, %v8537
      %v8547 = vmul.f32 %v8508, %v8538
      %v8548 = vmul.f32 %v8509, %v8535
      %8554 = vrot.lane.b32.xlu0 %v8544, 63
      %v8555 = vpop.permute.xlu0 %8554
      %8556 = vrot.lane.b32.xlu0 %v8545, 63
      %v8557 = vpop.permute.xlu0 %8556
      %8558 = vrot.lane.b32.xlu0 %v8546, 63
      %v8559 = vpop.permute.xlu0 %8558
      %8560 = vrot.lane.b32.xlu0 %v8547, 63
      %v8561 = vpop.permute.xlu0 %8560
      %8562 = vrot.lane.b32.xlu0 %v8548, 63
      %v8563 = vpop.permute.xlu0 %8562
      %v8564 = vsel %vm654, %v8555, %v8557
      %v8565 = vsel %vm654, %v8557, %v8559
      %v8566 = vsel %vm654, %v8559, %v8561
      %v8567 = vsel %vm654, %v8561, %v8563
      %8572 = vst [vmem:[#allocation3 + $0x2e0] sm:$0xff] %v8564
      %8573 = vst [vmem:[#allocation3 + $0x2e8] sm:$0xff] %v8565
      %8574 = vst [vmem:[#allocation3 + $0x2f0] sm:$0xff] %v8566
      %8575 = vst [vmem:[#allocation3 + $0x2f8] sm:$0xff] %v8567
      %v8576 = vld [vmem:[#allocation2 + $0x8] sm:$0xff]
      %v8577 = vld [vmem:[#allocation2 + $0x10] sm:$0xff]
      %v8578 = vld [vmem:[#allocation2 + $0x18] sm:$0xff]
      %v8579 = vld [vmem:[#allocation2 + $0x20] sm:$0xff]
      %v8580 = vld [vmem:[#allocation2 + $0x28] sm:$0xff]
      %v8581 = vld [vmem:[%s2086] ss:$8 sm:$0xf]
      %v8583 = vlaneseq
      %v8584 = vshrl.u32 %v8583, 7
      %v8585 = vsub.s32 0, %v8584
      %v8586 = vrot.slane %v8581, %v8585
      %v8587 = vlaneseq
      %v8588 = vshrl.u32 %v8587, 7
      %v8589 = vsub.s32 1, %v8588
      %v8590 = vrot.slane %v8581, %v8589
      %v8591 = vlaneseq
      %v8592 = vshrl.u32 %v8591, 7
      %v8593 = vsub.s32 2, %v8592
      %v8594 = vrot.slane %v8581, %v8593
      %v8595 = vlaneseq
      %v8596 = vshrl.u32 %v8595, 7
      %v8597 = vsub.s32 3, %v8596
      %v8598 = vrot.slane %v8581, %v8597
      %8599 = vrot.lane.b32.xlu0 %v8586, 71
      %v8600 = vpop.permute.xlu0 %8599
      %8601 = vrot.lane.b32.xlu0 %v8590, 71
      %v8602 = vpop.permute.xlu0 %8601
      %8603 = vrot.lane.b32.xlu0 %v8594, 71
      %v8604 = vpop.permute.xlu0 %8603
      %8605 = vrot.lane.b32.xlu0 %v8598, 71
      %v8606 = vpop.permute.xlu0 %8605
      %v8607 = vsel %vm609, %v8600, %v8602
      %v8608 = vsel %vm609, %v8602, %v8604
      %v8609 = vsel %vm609, %v8604, %v8606
      %v8615 = vmul.f32 %v8576, %v8600
      %v8616 = vmul.f32 %v8577, %v8607
      %v8617 = vmul.f32 %v8578, %v8608
      %v8618 = vmul.f32 %v8579, %v8609
      %v8619 = vmul.f32 %v8580, %v8606
      %8625 = vrot.lane.b32.xlu0 %v8615, 57
      %v8626 = vpop.permute.xlu0 %8625
      %8627 = vrot.lane.b32.xlu0 %v8616, 57
      %v8628 = vpop.permute.xlu0 %8627
      %8629 = vrot.lane.b32.xlu0 %v8617, 57
      %v8630 = vpop.permute.xlu0 %8629
      %8631 = vrot.lane.b32.xlu0 %v8618, 57
      %v8632 = vpop.permute.xlu0 %8631
      %8633 = vrot.lane.b32.xlu0 %v8619, 57
      %v8634 = vpop.permute.xlu0 %8633
      %v8635 = vsel %vm580, %v8626, %v8628
      %v8636 = vsel %vm580, %v8628, %v8630
      %v8637 = vsel %vm580, %v8630, %v8632
      %v8638 = vsel %vm580, %v8632, %v8634
      %8643 = vst [vmem:[#allocation3 + $0x300] sm:$0xff] %v8635
      %8644 = vst [vmem:[#allocation3 + $0x308] sm:$0xff] %v8636
      %8645 = vst [vmem:[#allocation3 + $0x310] sm:$0xff] %v8637
      %8646 = vst [vmem:[#allocation3 + $0x318] sm:$0xff] %v8638
      %v8647 = vld [vmem:[#allocation2 + $0x8] sm:$0xff]
      %v8648 = vld [vmem:[#allocation2 + $0x10] sm:$0xff]
      %v8649 = vld [vmem:[#allocation2 + $0x18] sm:$0xff]
      %v8650 = vld [vmem:[#allocation2 + $0x20] sm:$0xff]
      %v8651 = vld [vmem:[#allocation2 + $0x28] sm:$0xff]
      %v8652 = vld [vmem:[%s2158] ss:$8 sm:$0xf]
      %v8654 = vlaneseq
      %v8655 = vshrl.u32 %v8654, 7
      %v8656 = vsub.s32 0, %v8655
      %v8657 = vrot.slane %v8652, %v8656
      %v8658 = vlaneseq
      %v8659 = vshrl.u32 %v8658, 7
      %v8660 = vsub.s32 1, %v8659
      %v8661 = vrot.slane %v8652, %v8660
      %v8662 = vlaneseq
      %v8663 = vshrl.u32 %v8662, 7
      %v8664 = vsub.s32 2, %v8663
      %v8665 = vrot.slane %v8652, %v8664
      %v8666 = vlaneseq
      %v8667 = vshrl.u32 %v8666, 7
      %v8668 = vsub.s32 3, %v8667
      %v8669 = vrot.slane %v8652, %v8668
      %8670 = vrot.lane.b32.xlu0 %v8657, 72
      %v8671 = vpop.permute.xlu0 %8670
      %8672 = vrot.lane.b32.xlu0 %v8661, 72
      %v8673 = vpop.permute.xlu0 %8672
      %8674 = vrot.lane.b32.xlu0 %v8665, 72
      %v8675 = vpop.permute.xlu0 %8674
      %8676 = vrot.lane.b32.xlu0 %v8669, 72
      %v8677 = vpop.permute.xlu0 %8676
      %v8678 = vsel %vm535, %v8671, %v8673
      %v8679 = vsel %vm535, %v8673, %v8675
      %v8680 = vsel %vm535, %v8675, %v8677
      %v8686 = vmul.f32 %v8647, %v8671
      %v8687 = vmul.f32 %v8648, %v8678
      %v8688 = vmul.f32 %v8649, %v8679
      %v8689 = vmul.f32 %v8650, %v8680
      %v8690 = vmul.f32 %v8651, %v8677
      %8696 = vrot.lane.b32.xlu0 %v8686, 56
      %v8697 = vpop.permute.xlu0 %8696
      %8698 = vrot.lane.b32.xlu0 %v8687, 56
      %v8699 = vpop.permute.xlu0 %8698
      %8700 = vrot.lane.b32.xlu0 %v8688, 56
      %v8701 = vpop.permute.xlu0 %8700
      %8702 = vrot.lane.b32.xlu0 %v8689, 56
      %v8703 = vpop.permute.xlu0 %8702
      %8704 = vrot.lane.b32.xlu0 %v8690, 56
      %v8705 = vpop.permute.xlu0 %8704
      %v8706 = vsel %vm506, %v8697, %v8699
      %v8707 = vsel %vm506, %v8699, %v8701
      %v8708 = vsel %vm506, %v8701, %v8703
      %v8709 = vsel %vm506, %v8703, %v8705
      %8714 = vst [vmem:[#allocation3 + $0x320] sm:$0xff] %v8706
      %8715 = vst [vmem:[#allocation3 + $0x328] sm:$0xff] %v8707
      %8716 = vst [vmem:[#allocation3 + $0x330] sm:$0xff] %v8708
      %8717 = vst [vmem:[#allocation3 + $0x338] sm:$0xff] %v8709
      %v8718 = vld [vmem:[#allocation2 + $0x8] sm:$0xff]
      %v8719 = vld [vmem:[#allocation2 + $0x10] sm:$0xff]
      %v8720 = vld [vmem:[#allocation2 + $0x18] sm:$0xff]
      %v8721 = vld [vmem:[#allocation2 + $0x20] sm:$0xff]
      %v8722 = vld [vmem:[#allocation2 + $0x28] sm:$0xff]
      %v8723 = vld [vmem:[%s2230] ss:$8 sm:$0xf]
      %v8725 = vlaneseq
      %v8726 = vshrl.u32 %v8725, 7
      %v8727 = vsub.s32 0, %v8726
      %v8728 = vrot.slane %v8723, %v8727
      %v8729 = vlaneseq
      %v8730 = vshrl.u32 %v8729, 7
      %v8731 = vsub.s32 1, %v8730
      %v8732 = vrot.slane %v8723, %v8731
      %v8733 = vlaneseq
      %v8734 = vshrl.u32 %v8733, 7
      %v8735 = vsub.s32 2, %v8734
      %v8736 = vrot.slane %v8723, %v8735
      %v8737 = vlaneseq
      %v8738 = vshrl.u32 %v8737, 7
      %v8739 = vsub.s32 3, %v8738
      %v8740 = vrot.slane %v8723, %v8739
      %8741 = vrot.lane.b32.xlu0 %v8728, 73
      %v8742 = vpop.permute.xlu0 %8741
      %8743 = vrot.lane.b32.xlu0 %v8732, 73
      %v8744 = vpop.permute.xlu0 %8743
      %8745 = vrot.lane.b32.xlu0 %v8736, 73
      %v8746 = vpop.permute.xlu0 %8745
      %8747 = vrot.lane.b32.xlu0 %v8740, 73
      %v8748 = vpop.permute.xlu0 %8747
      %v8749 = vsel %vm461, %v8742, %v8744
      %v8750 = vsel %vm461, %v8744, %v8746
      %v8751 = vsel %vm461, %v8746, %v8748
      %v8757 = vmul.f32 %v8718, %v8742
      %v8758 = vmul.f32 %v8719, %v8749
      %v8759 = vmul.f32 %v8720, %v8750
      %v8760 = vmul.f32 %v8721, %v8751
      %v8761 = vmul.f32 %v8722, %v8748
      %8767 = vrot.lane.b32.xlu0 %v8757, 55
      %v8768 = vpop.permute.xlu0 %8767
      %8769 = vrot.lane.b32.xlu0 %v8758, 55
      %v8770 = vpop.permute.xlu0 %8769
      %8771 = vrot.lane.b32.xlu0 %v8759, 55
      %v8772 = vpop.permute.xlu0 %8771
      %8773 = vrot.lane.b32.xlu0 %v8760, 55
      %v8774 = vpop.permute.xlu0 %8773
      %8775 = vrot.lane.b32.xlu0 %v8761, 55
      %v8776 = vpop.permute.xlu0 %8775
      %v8777 = vsel %vm432, %v8768, %v8770
      %v8778 = vsel %vm432, %v8770, %v8772
      %v8779 = vsel %vm432, %v8772, %v8774
      %v8780 = vsel %vm432, %v8774, %v8776
      %8785 = vst [vmem:[#allocation3 + $0x340] sm:$0xff] %v8777
      %8786 = vst [vmem:[#allocation3 + $0x348] sm:$0xff] %v8778
      %8787 = vst [vmem:[#allocation3 + $0x350] sm:$0xff] %v8779
      %8788 = vst [vmem:[#allocation3 + $0x358] sm:$0xff] %v8780
      %v8789 = vld [vmem:[#allocation3] sm:$0xff]
      %v8790 = vld [vmem:[#allocation3 + $0x8] sm:$0xff]
      %v8791 = vld [vmem:[#allocation3 + $0x10] sm:$0xff]
      %v8792 = vld [vmem:[#allocation3 + $0x18] sm:$0xff]
      %v8793 = vld [vmem:[#allocation3 + $0x20] sm:$0xff]
      %v8794 = vld [vmem:[#allocation3 + $0x28] sm:$0xff]
      %v8795 = vld [vmem:[#allocation3 + $0x30] sm:$0xff]
      %v8796 = vld [vmem:[#allocation3 + $0x38] sm:$0xff]
      %v8797 = vld [vmem:[#allocation3 + $0x40] sm:$0xff]
      %v8798 = vld [vmem:[#allocation3 + $0x48] sm:$0xff]
      %v8799 = vld [vmem:[#allocation3 + $0x50] sm:$0xff]
      %v8800 = vld [vmem:[#allocation3 + $0x58] sm:$0xff]
      %v8801 = vld [vmem:[#allocation3 + $0x60] sm:$0xff]
      %v8802 = vld [vmem:[#allocation3 + $0x68] sm:$0xff]
      %v8803 = vld [vmem:[#allocation3 + $0x70] sm:$0xff]
      %v8804 = vld [vmem:[#allocation3 + $0x78] sm:$0xff]
      %v8805 = vld [vmem:[#allocation3 + $0x80] sm:$0xff]
      %v8806 = vld [vmem:[#allocation3 + $0x88] sm:$0xff]
      %v8807 = vld [vmem:[#allocation3 + $0x90] sm:$0xff]
      %v8808 = vld [vmem:[#allocation3 + $0x98] sm:$0xff]
      %v8809 = vld [vmem:[#allocation3 + $0xa0] sm:$0xff]
      %v8810 = vld [vmem:[#allocation3 + $0xa8] sm:$0xff]
      %v8811 = vld [vmem:[#allocation3 + $0xb0] sm:$0xff]
      %v8812 = vld [vmem:[#allocation3 + $0xb8] sm:$0xff]
      %v8813 = vld [vmem:[#allocation3 + $0xc0] sm:$0xff]
      %v8814 = vld [vmem:[#allocation3 + $0xc8] sm:$0xff]
      %v8815 = vld [vmem:[#allocation3 + $0xd0] sm:$0xff]
      %v8816 = vld [vmem:[#allocation3 + $0xd8] sm:$0xff]
      %v8817 = vld [vmem:[#allocation3 + $0xe0] sm:$0xff]
      %v8818 = vld [vmem:[#allocation3 + $0xe8] sm:$0xff]
      %v8819 = vld [vmem:[#allocation3 + $0xf0] sm:$0xff]
      %v8820 = vld [vmem:[#allocation3 + $0xf8] sm:$0xff]
      %v8821 = vld [vmem:[#allocation3 + $0x100] sm:$0xff]
      %v8822 = vld [vmem:[#allocation3 + $0x108] sm:$0xff]
      %v8823 = vld [vmem:[#allocation3 + $0x110] sm:$0xff]
      %v8824 = vld [vmem:[#allocation3 + $0x118] sm:$0xff]
      %v8825 = vld [vmem:[#allocation3 + $0x120] sm:$0xff]
      %v8826 = vld [vmem:[#allocation3 + $0x128] sm:$0xff]
      %v8827 = vld [vmem:[#allocation3 + $0x130] sm:$0xff]
      %v8828 = vld [vmem:[#allocation3 + $0x138] sm:$0xff]
      %v8829 = vld [vmem:[#allocation3 + $0x140] sm:$0xff]
      %v8830 = vld [vmem:[#allocation3 + $0x148] sm:$0xff]
      %v8831 = vld [vmem:[#allocation3 + $0x150] sm:$0xff]
      %v8832 = vld [vmem:[#allocation3 + $0x158] sm:$0xff]
      %v8833 = vld [vmem:[#allocation3 + $0x160] sm:$0xff]
      %v8834 = vld [vmem:[#allocation3 + $0x168] sm:$0xff]
      %v8835 = vld [vmem:[#allocation3 + $0x170] sm:$0xff]
      %v8836 = vld [vmem:[#allocation3 + $0x178] sm:$0xff]
      %v8837 = vld [vmem:[#allocation3 + $0x180] sm:$0xff]
      %v8838 = vld [vmem:[#allocation3 + $0x188] sm:$0xff]
      %v8839 = vld [vmem:[#allocation3 + $0x190] sm:$0xff]
      %v8840 = vld [vmem:[#allocation3 + $0x198] sm:$0xff]
      %v8841 = vld [vmem:[#allocation3 + $0x1a0] sm:$0xff]
      %v8842 = vld [vmem:[#allocation3 + $0x1a8] sm:$0xff]
      %v8843 = vld [vmem:[#allocation3 + $0x1b0] sm:$0xff]
      %v8844 = vld [vmem:[#allocation3 + $0x1b8] sm:$0xff]
      %v8845 = vld [vmem:[#allocation3 + $0x1c0] sm:$0xff]
      %v8846 = vld [vmem:[#allocation3 + $0x1c8] sm:$0xff]
      %v8847 = vld [vmem:[#allocation3 + $0x1d0] sm:$0xff]
      %v8848 = vld [vmem:[#allocation3 + $0x1d8] sm:$0xff]
      %v8849 = vld [vmem:[#allocation3 + $0x1e0] sm:$0xff]
      %v8850 = vld [vmem:[#allocation3 + $0x1e8] sm:$0xff]
      %v8851 = vld [vmem:[#allocation3 + $0x1f0] sm:$0xff]
      %v8852 = vld [vmem:[#allocation3 + $0x1f8] sm:$0xff]
      %v8853 = vld [vmem:[#allocation3 + $0x200] sm:$0xff]
      %v8854 = vld [vmem:[#allocation3 + $0x208] sm:$0xff]
      %v8855 = vld [vmem:[#allocation3 + $0x210] sm:$0xff]
      %v8856 = vld [vmem:[#allocation3 + $0x218] sm:$0xff]
      %v8857 = vld [vmem:[#allocation3 + $0x220] sm:$0xff]
      %v8858 = vld [vmem:[#allocation3 + $0x228] sm:$0xff]
      %v8859 = vld [vmem:[#allocation3 + $0x230] sm:$0xff]
      %v8860 = vld [vmem:[#allocation3 + $0x238] sm:$0xff]
      %v8861 = vld [vmem:[#allocation3 + $0x240] sm:$0xff]
      %v8862 = vld [vmem:[#allocation3 + $0x248] sm:$0xff]
      %v8863 = vld [vmem:[#allocation3 + $0x250] sm:$0xff]
      %v8864 = vld [vmem:[#allocation3 + $0x258] sm:$0xff]
      %v8865 = vld [vmem:[#allocation3 + $0x260] sm:$0xff]
      %v8866 = vld [vmem:[#allocation3 + $0x268] sm:$0xff]
      %v8867 = vld [vmem:[#allocation3 + $0x270] sm:$0xff]
      %v8868 = vld [vmem:[#allocation3 + $0x278] sm:$0xff]
      %v8869 = vld [vmem:[#allocation3 + $0x280] sm:$0xff]
      %v8870 = vld [vmem:[#allocation3 + $0x288] sm:$0xff]
      %v8871 = vld [vmem:[#allocation3 + $0x290] sm:$0xff]
      %v8872 = vld [vmem:[#allocation3 + $0x298] sm:$0xff]
      %v8873 = vld [vmem:[#allocation3 + $0x2a0] sm:$0xff]
      %v8874 = vld [vmem:[#allocation3 + $0x2a8] sm:$0xff]
      %v8875 = vld [vmem:[#allocation3 + $0x2b0] sm:$0xff]
      %v8876 = vld [vmem:[#allocation3 + $0x2b8] sm:$0xff]
      %v8877 = vld [vmem:[#allocation3 + $0x2c0] sm:$0xff]
      %v8878 = vld [vmem:[#allocation3 + $0x2c8] sm:$0xff]
      %v8879 = vld [vmem:[#allocation3 + $0x2d0] sm:$0xff]
      %v8880 = vld [vmem:[#allocation3 + $0x2d8] sm:$0xff]
      %v8881 = vld [vmem:[#allocation3 + $0x2e0] sm:$0xff]
      %v8882 = vld [vmem:[#allocation3 + $0x2e8] sm:$0xff]
      %v8883 = vld [vmem:[#allocation3 + $0x2f0] sm:$0xff]
      %v8884 = vld [vmem:[#allocation3 + $0x2f8] sm:$0xff]
      %v8885 = vld [vmem:[#allocation3 + $0x300] sm:$0xff]
      %v8886 = vld [vmem:[#allocation3 + $0x308] sm:$0xff]
      %v8887 = vld [vmem:[#allocation3 + $0x310] sm:$0xff]
      %v8888 = vld [vmem:[#allocation3 + $0x318] sm:$0xff]
      %v8889 = vld [vmem:[#allocation3 + $0x320] sm:$0xff]
      %v8890 = vld [vmem:[#allocation3 + $0x328] sm:$0xff]
      %v8891 = vld [vmem:[#allocation3 + $0x330] sm:$0xff]
      %v8892 = vld [vmem:[#allocation3 + $0x338] sm:$0xff]
      %v8893 = vld [vmem:[#allocation3 + $0x340] sm:$0xff]
      %v8894 = vld [vmem:[#allocation3 + $0x348] sm:$0xff]
      %v8895 = vld [vmem:[#allocation3 + $0x350] sm:$0xff]
      %v8896 = vld [vmem:[#allocation3 + $0x358] sm:$0xff]
      %v8897 = vpack.c.bf16 %v8793, %v8789
      %v8898 = vpack.c.bf16 %v8794, %v8790
      %v8899 = vpack.c.bf16 %v8795, %v8791
      %v8900 = vpack.c.bf16 %v8796, %v8792
      %v8901 = vpack.c.bf16 %v8801, %v8797
      %v8902 = vpack.c.bf16 %v8802, %v8798
      %v8903 = vpack.c.bf16 %v8803, %v8799
      %v8904 = vpack.c.bf16 %v8804, %v8800
      %v8905 = vpack.c.bf16 %v8809, %v8805
      %v8906 = vpack.c.bf16 %v8810, %v8806
      %v8907 = vpack.c.bf16 %v8811, %v8807
      %v8908 = vpack.c.bf16 %v8812, %v8808
      %v8909 = vpack.c.bf16 %v8817, %v8813
      %v8910 = vpack.c.bf16 %v8818, %v8814
      %v8911 = vpack.c.bf16 %v8819, %v8815
      %v8912 = vpack.c.bf16 %v8820, %v8816
      %v8913 = vpack.c.bf16 %v8825, %v8821
      %v8914 = vpack.c.bf16 %v8826, %v8822
      %v8915 = vpack.c.bf16 %v8827, %v8823
      %v8916 = vpack.c.bf16 %v8828, %v8824
      %v8917 = vpack.c.bf16 %v8833, %v8829
      %v8918 = vpack.c.bf16 %v8834, %v8830
      %v8919 = vpack.c.bf16 %v8835, %v8831
      %v8920 = vpack.c.bf16 %v8836, %v8832
      %v8921 = vpack.c.bf16 %v8841, %v8837
      %v8922 = vpack.c.bf16 %v8842, %v8838
      %v8923 = vpack.c.bf16 %v8843, %v8839
      %v8924 = vpack.c.bf16 %v8844, %v8840
      %v8925 = vpack.c.bf16 %v8849, %v8845
      %v8926 = vpack.c.bf16 %v8850, %v8846
      %v8927 = vpack.c.bf16 %v8851, %v8847
      %v8928 = vpack.c.bf16 %v8852, %v8848
      %v8929 = vpack.c.bf16 %v8857, %v8853
      %v8930 = vpack.c.bf16 %v8858, %v8854
      %v8931 = vpack.c.bf16 %v8859, %v8855
      %v8932 = vpack.c.bf16 %v8860, %v8856
      %v8933 = vpack.c.bf16 %v8865, %v8861
      %v8934 = vpack.c.bf16 %v8866, %v8862
      %v8935 = vpack.c.bf16 %v8867, %v8863
      %v8936 = vpack.c.bf16 %v8868, %v8864
      %v8937 = vpack.c.bf16 %v8873, %v8869
      %v8938 = vpack.c.bf16 %v8874, %v8870
      %v8939 = vpack.c.bf16 %v8875, %v8871
      %v8940 = vpack.c.bf16 %v8876, %v8872
      %v8941 = vpack.c.bf16 %v8881, %v8877
      %v8942 = vpack.c.bf16 %v8882, %v8878
      %v8943 = vpack.c.bf16 %v8883, %v8879
      %v8944 = vpack.c.bf16 %v8884, %v8880
      %v8945 = vpack.c.bf16 %v8889, %v8885
      %v8946 = vpack.c.bf16 %v8890, %v8886
      %v8947 = vpack.c.bf16 %v8891, %v8887
      %v8948 = vpack.c.bf16 %v8892, %v8888
      %v8949 = vpack.c.bf16 %v8893, %v8893
      %v8950 = vpack.c.bf16 %v8894, %v8894
      %v8951 = vpack.c.bf16 %v8895, %v8895
      %v8952 = vpack.c.bf16 %v8896, %v8896
      %v8953 = vld [vmem:[%s8] sm:$0xff]
      %v8954 = vld [vmem:[%s9] sm:$0xff]
      %8956 = vset.pattern.permute.xlu0 0
      %8957 = vperm.xlu0 %8956, %v8954
      %v8958 = vpop.permute.xlu0 %8957
      %v8961 = vunpack.c.l.b16 %v8953
      %v8962 = vunpack.c.h.b16 %v8953
      %v8963 = vpack.c.b16 %v8961, %v8961
      %v8964 = vpack.c.b16 %v8962, %v8962
      %v8967 = vsel %vm2474, %v8964, 0
      %v8970 = vsel %vm2478, %v8949, 0
      %v8973 = vsel %vm2478, %v8950, 0
      %v8976 = vsel %vm2478, %v8951, 0
      %v8979 = vsel %vm2478, %v8952, 0
      %8981 = vmatprep.subr.bf16.mxu0 %v8926
      %8982 = vmatpush1.bf16.msra.mxu0 %v8925
      %8983 = vmatprep.subr.bf16.mxu0 %v8922
      %8984 = vmatpush1.bf16.msra.mxu0 %v8921
      %8985 = vmatprep.subr.bf16.mxu0 %v8918
      %8986 = vmatpush1.bf16.msra.mxu0 %v8917
      %8987 = vmatprep.subr.bf16.mxu0 %v8914
      %8988 = vmatpush1.bf16.msra.mxu0 %v8913
      %8989 = vmatprep.subr.bf16.mxu0 %v8910
      %8990 = vmatpush1.bf16.msra.mxu0 %v8909
      %8991 = vmatprep.subr.bf16.mxu0 %v8906
      %8992 = vmatpush1.bf16.msra.mxu0 %v8905
      %8993 = vmatprep.subr.bf16.mxu0 %v8902
      %8994 = vmatpush1.bf16.msra.mxu0 %v8901
      %8995 = vmatprep.subr.bf16.mxu0 %v8898
      %8996 = vmatpush1.bf16.msra.mxu0 %v8897
      %8997 = vmatprep.subr.bf16.mxu0 0
      %8998 = vmatpush2.bf16.msra.mxu0 0
      %8999 = vmatprep.subr.bf16.mxu0 0
      %9000 = vmatpush2.bf16.msra.mxu0 0
      %9001 = vmatprep.subr.bf16.mxu0 %v8973
      %9002 = vmatpush2.bf16.msra.mxu0 %v8970
      %9003 = vmatprep.subr.bf16.mxu0 %v8946
      %9004 = vmatpush2.bf16.msra.mxu0 %v8945
      %9005 = vmatprep.subr.bf16.mxu0 %v8942
      %9006 = vmatpush2.bf16.msra.mxu0 %v8941
      %9007 = vmatprep.subr.bf16.mxu0 %v8938
      %9008 = vmatpush2.bf16.msra.mxu0 %v8937
      %9009 = vmatprep.subr.bf16.mxu0 %v8934
      %9010 = vmatpush2.bf16.msra.mxu0 %v8933
      %9011 = vmatprep.subr.bf16.mxu0 %v8930
      %9012 = vmatpush2.bf16.msra.mxu0 %v8929
      %9013 = vmatprep.mubr.bf16.mxu0 %v8967
      %9014 = vmatmul.mubr.bf16.gmra.mxu0 %v8963
      %v9015 = vpop.f32.mrf.mxu0
      %v9016 = vadd.f32 %v8958, %v9015
      %v9017 = vpop.f32.mrf.mxu0
      %v9018 = vadd.f32 %v8958, %v9017
      %v9019 = vpop.f32.mrf.mxu0
      %v9020 = vpop.f32.mrf.mxu0
      %9021 = vdwg.mxu0
      %9022 = vmatprep.subr.bf16.mxu0 %v8928
      %9023 = vmatpush1.bf16.msra.mxu0 %v8927
      %9024 = vmatprep.subr.bf16.mxu0 %v8924
      %9025 = vmatpush1.bf16.msra.mxu0 %v8923
      %9026 = vmatprep.subr.bf16.mxu0 %v8920
      %9027 = vmatpush1.bf16.msra.mxu0 %v8919
      %9028 = vmatprep.subr.bf16.mxu0 %v8916
      %9029 = vmatpush1.bf16.msra.mxu0 %v8915
      %9030 = vmatprep.subr.bf16.mxu0 %v8912
      %9031 = vmatpush1.bf16.msra.mxu0 %v8911
      %9032 = vmatprep.subr.bf16.mxu0 %v8908
      %9033 = vmatpush1.bf16.msra.mxu0 %v8907
      %9034 = vmatprep.subr.bf16.mxu0 %v8904
      %9035 = vmatpush1.bf16.msra.mxu0 %v8903
      %9036 = vmatprep.subr.bf16.mxu0 %v8900
      %9037 = vmatpush1.bf16.msra.mxu0 %v8899
      %9038 = vmatprep.subr.bf16.mxu0 0
      %9039 = vmatpush2.bf16.msra.mxu0 0
      %9040 = vmatprep.subr.bf16.mxu0 0
      %9041 = vmatpush2.bf16.msra.mxu0 0
      %9042 = vmatprep.subr.bf16.mxu0 %v8979
      %9043 = vmatpush2.bf16.msra.mxu0 %v8976
      %9044 = vmatprep.subr.bf16.mxu0 %v8948
      %9045 = vmatpush2.bf16.msra.mxu0 %v8947
      %9046 = vmatprep.subr.bf16.mxu0 %v8944
      %9047 = vmatpush2.bf16.msra.mxu0 %v8943
      %9048 = vmatprep.subr.bf16.mxu0 %v8940
      %9049 = vmatpush2.bf16.msra.mxu0 %v8939
      %9050 = vmatprep.subr.bf16.mxu0 %v8936
      %9051 = vmatpush2.bf16.msra.mxu0 %v8935
      %9052 = vmatprep.subr.bf16.mxu0 %v8932
      %9053 = vmatpush2.bf16.msra.mxu0 %v8931
      %9054 = vmatprep.mubr.bf16.mxu0 %v8967
      %9055 = vmatmul.mubr.bf16.gmra.mxu0 %v8963
      %v9056 = vpop.f32.mrf.mxu0
      %v9057 = vadd.f32 %v8958, %v9056
      %v9058 = vpop.f32.mrf.mxu0
      %v9059 = vadd.f32 %v8958, %v9058
      %v9060 = vpop.f32.mrf.mxu0
      %v9061 = vpop.f32.mrf.mxu0
      %9062 = vdwg.mxu0
      %9063 = vst [vmem:[%s359] sm:$0xff] %v9016
      %9064 = vst [vmem:[%s359 + $0x8] sm:$0xff] %v9018
      %9065 = vst [vmem:[%s359 + $0x10] sm:$0xff] %v9057
      %9066 = vst [vmem:[%s359 + $0x18] sm:$0xff] %v9059
      %p9067 = scmp.lt.s32.totalorder %s21, 1
      %s9068 = scalar_select %p9067, %s21, 1
      %s9069 = smul.addr %s9068, 4
      %s9070 = smul.addr %s9069, 8
      %s9071 = scalar_lea.vmem %s10, %s9070
      // Predicated region
      $region61: #{block_forward.1} parent=59 // pred_check
        %p9072 = pneg %p254
      $region62: #{block_forward.1} parent=59 // pred_check_branch
        %9074 = sbr.rel (%p9072) target = $region64
      $region63: #{block_forward.1} parent=59 // pred_region
        _
      $region64: #{block_forward.1} parent=59 // pred_fallthru
        _
    $region60: #{block_forward.1} parent=5 // pred_fallthru
      _
    %p9075 = scmp.le.s32.totalorder 2, %s16
    // Predicated region
    $region65: #{block_forward.1} parent=5 // pred_check
      %p9076 = pneg %p9075
    $region66: #{block_forward.1} parent=5 // pred_check_branch
      %9078 = sbr.rel (%p9076) target = $region68
    $region67: #{block_forward.1} parent=5 // pred_region
      %s9079 = ssub.s32 %s16, 2
      // Predicated region
      $region69: #{block_forward.1} parent=67 // pred_check
        %p9080 = pneg %p260
      $region70: #{block_forward.1} parent=67 // pred_check_branch
        %9082 = sbr.rel (%p9080) target = $region72
      $region71: #{block_forward.1} parent=67 // pred_region
        %p9083 = scmp.lt.s32.totalorder %s22, 1
        %s9084 = scalar_select %p9083, %s22, 1
        %s9085 = smul.addr %s9084, 4
        %s9086 = smul.addr %s9085, 8
        %s9087 = scalar_lea.vmem %s10, %s9086
      $region72: #{block_forward.1} parent=67 // pred_fallthru
        _
    $region68: #{block_forward.1} parent=5 // pred_fallthru
      _
  $region6: #{block_forward.1} parent=0 // loop_footer
    %s20 = sadd.s32 1, %s16
  $region7: #{block_forward.1} parent=0 // loop_footer_branch
    %15 = sbr.rel target = $region3
  $region8: #{block_forward.1} parent=0 // loop_exit
    _

</llo_original>
